<compile_context>
chip_gen: v7x
topology: tpu7x:2x2x1
jax: 0.10.0
libtpu: 0.0.40
codegen_flags: <defaults>
</compile_context>

<pallas_src>
import functools

import jax
import jax.numpy as jnp
from jax.experimental import pallas as pl
from jax.experimental.pallas import tpu as pltpu

EPS = 1e-5
LANE = 128


def _round_up(x, m):
    return (x + m - 1) // m * m


def _pick_row_tile(m, cap=512):
    """Largest multiple-of-8 divisor of m that is <= cap; falls back to the full m."""
    t = min(cap, m) // 8 * 8
    while t >= 8:
        if m % t == 0:
            return t
        t -= 8
    return m


# ----------------------------- Pallas kernels ------------------------------ #

def _stats_kernel(x_ref, sum_ref, sumsq_ref):
    """Per-channel partial sum / sum-of-squares for one row tile."""
    x = x_ref[...].astype(jnp.float32)
    sum_ref[0] = jnp.sum(x, axis=0, keepdims=True)
    sumsq_ref[0] = jnp.sum(x * x, axis=0, keepdims=True)


def _bn_relu_conv1x1_kernel(x_ref, scale_ref, shift_ref, w_ref,
                            h_ref, sum_ref, sumsq_ref):
    """Fused affine-BN + ReLU + 1x1 conv; also emits stats of its own output
    (per row-tile partials), so the next BN needs no extra pass over hmid."""
    x = x_ref[...]                                             # f32 (tm, kp)
    a = jnp.maximum(x * scale_ref[...] + shift_ref[...], 0.0)  # BN1 + ReLU, f32 VPU
    h = jnp.dot(a.astype(jnp.bfloat16), w_ref[...],            # bf16 MXU, f32 accum
                preferred_element_type=jnp.float32)
    h_ref[...] = h
    sum_ref[0] = jnp.sum(h, axis=0, keepdims=True)
    sumsq_ref[0] = jnp.sum(h * h, axis=0, keepdims=True)


def _make_conv3x3_kernels(h, w, growth, col_off, midp, gp):
    """3x3 conv (pad 1) as 9 shifted matmuls out of a VMEM halo buffer, with the
    BN2 + ReLU prologue fused in.  Returns (in-place-slab kernel, copy-out kernel)."""
    hw = h * w
    rows = (h + 2) * w + 2          # flattened activation + top/bottom halo + corners
    off0 = w + 1                    # scratch row of spatial position (0, 0)

    def conv3x3(h_ref, scale_ref, shift_ref, w3_ref, apad_ref):
        # BN2 + ReLU into the zero-framed halo buffer (f32 scratch, bf16 at the MXU)
        apad_ref[...] = jnp.zeros_like(apad_ref)
        act = jnp.maximum(h_ref[0] * scale_ref[...] + shift_ref[...], 0.0)
        apad_ref[off0:off0 + hw, :] = act
        # x-coordinate of every flattened row: masks the horizontal-wrap taps
        col = jax.lax.broadcasted_iota(jnp.int32, (hw, midp), 0) % w
        acc = jnp.zeros((hw, gp), jnp.float32)
        for ky in range(3):
            for kx in range(3):
                base = off0 + (ky - 1) * w + (kx - 1)          # static offset
                patch = apad_ref[base:base + hw, :]
                if kx == 0:
                    patch = jnp.where(col >= 1, patch, 0.0)
                elif kx == 2:
                    patch = jnp.where(col <= w - 2, patch, 0.0)
                acc = acc + jnp.dot(patch.astype(jnp.bfloat16),
                                    w3_ref[ky * 3 + kx],
                                    preferred_element_type=jnp.float32)
        return acc

    def kernel_inplace(slab_ref, h_ref, scale_ref, shift_ref, w3_ref,
                       slab_out_ref, sum_ref, sumsq_ref, apad_ref):
        acc = conv3x3(h_ref, scale_ref, shift_ref, w3_ref, apad_ref)
        sum_ref[0] = jnp.sum(acc, axis=0, keepdims=True)
        sumsq_ref[0] = jnp.sum(acc * acc, axis=0, keepdims=True)
        # torch.cat emulation: blend the new growth channels (already placed at
        # lanes [col_off, col_off+growth) via the pre-rolled weights) into this
        # 128-lane slab block and write it back with one full, unmasked store.
        lane = jax.lax.broadcasted_iota(jnp.int32, (hw, gp), 1)
        sel = (lane >= col_off) & (lane < col_off + growth)
        slab_out_ref[0] = jnp.where(sel, acc, slab_ref[0])

    def kernel_copyout(h_ref, scale_ref, shift_ref, w3_ref,
                       y_ref, sum_ref, sumsq_ref, apad_ref):
        acc = conv3x3(h_ref, scale_ref, shift_ref, w3_ref, apad_ref)
        sum_ref[0] = jnp.sum(acc, axis=0, keepdims=True)
        sumsq_ref[0] = jnp.sum(acc * acc, axis=0, keepdims=True)
        y_ref[0] = acc

    return kernel_inplace, kernel_copyout, rows


# ----------------------------- pallas_call wrappers ------------------------ #

def channel_stats(x2d, cols):
    """Per-channel (sum, sum^2) over rows of x2d[:, :cols].  Run once, at layer 0."""
    m = x2d.shape[0]
    tm = _pick_row_tile(m)
    g = m // tm
    s, ss = pl.pallas_call(
        _stats_kernel,
        out_shape=(jax.ShapeDtypeStruct((g, 1, cols), jnp.float32),
                   jax.ShapeDtypeStruct((g, 1, cols), jnp.float32)),
        grid=(g,),
        in_specs=[pl.BlockSpec((tm, cols), lambda i: (i, 0))],
        out_specs=(pl.BlockSpec((1, 1, cols), lambda i: (i, 0, 0)),
                   pl.BlockSpec((1, 1, cols), lambda i: (i, 0, 0))),
        compiler_params=pltpu.CompilerParams(dimension_semantics=("parallel",)),
    )(x2d)
    return s.sum(axis=0), ss.sum(axis=0)                        # (1, cols) each


def bn_relu_conv1x1(x_slab, scale, shift, w):
    """relu(BN(x_slab[:, :kp])) @ w plus per-channel stats of the result."""
    m = x_slab.shape[0]
    kp, midp = w.shape
    tm = _pick_row_tile(m)
    g = m // tm
    h, s, ss = pl.pallas_call(
        _bn_relu_conv1x1_kernel,
        out_shape=(jax.ShapeDtypeStruct((m, midp), jnp.float32),
                   jax.ShapeDtypeStruct((g, 1, midp), jnp.float32),
                   jax.ShapeDtypeStruct((g, 1, midp), jnp.float32)),
        grid=(g,),
        in_specs=[pl.BlockSpec((tm, kp), lambda i: (i, 0)),
                  pl.BlockSpec((1, kp), lambda i: (0, 0)),
                  pl.BlockSpec((1, kp), lambda i: (0, 0)),
                  pl.BlockSpec((kp, midp), lambda i: (0, 0))],
        out_specs=(pl.BlockSpec((tm, midp), lambda i: (i, 0)),
                   pl.BlockSpec((1, 1, midp), lambda i: (i, 0, 0)),
                   pl.BlockSpec((1, 1, midp), lambda i: (i, 0, 0))),
        compiler_params=pltpu.CompilerParams(dimension_semantics=("parallel",)),
    )(x_slab, scale, shift, w)
    return h, s.sum(axis=0), ss.sum(axis=0)


def bottleneck_3x3(x_slab, hmid, scale2, shift2, w3, *, n, h, w, growth, c_in):
    """BN2 + ReLU + 3x3 conv; writes the growth channels into the slab at column
    c_in and returns (new slab, sum, sum^2) of the appended channels."""
    m, c_slab = x_slab.shape
    hw = h * w
    midp = hmid.shape[1]
    gp = w3.shape[-1]
    cb, col_off = divmod(c_in, LANE)
    write_slab = (col_off + growth) <= LANE                     # fits one lane block

    kernel_inplace, kernel_copyout, rows = _make_conv3x3_kernels(
        h, w, growth, col_off, midp, gp)

    hmid3 = hmid.reshape(n, hw, midp)
    scratch = [pltpu.VMEM((rows, midp), jnp.float32)]
    cparams = pltpu.CompilerParams(dimension_semantics=("parallel",))
    stats_shape = jax.ShapeDtypeStruct((n, 1, gp), jnp.float32)
    stats_spec = pl.BlockSpec((1, 1, gp), lambda i: (i, 0, 0))

    if write_slab:
        # place the real output channels at lanes [col_off, col_off+growth) so the
        # kernel blends them into the slab's 128-lane block with a full store.
        w3_k = jnp.roll(w3, col_off, axis=-1) if col_off else w3
        slab3 = x_slab.reshape(n, hw, c_slab)
        slab_out, s, ss = pl.pallas_call(
            kernel_inplace,
            out_shape=(jax.ShapeDtypeStruct((n, hw, c_slab), jnp.float32),
                       stats_shape, stats_shape),
            grid=(n,),
            in_specs=[pl.BlockSpec((1, hw, LANE), lambda i: (i, 0, cb)),
                      pl.BlockSpec((1, hw, midp), lambda i: (i, 0, 0)),
                      pl.BlockSpec((1, midp), lambda i: (0, 0)),
                      pl.BlockSpec((1, midp), lambda i: (0, 0)),
                      pl.BlockSpec((9, midp, gp), lambda i: (0, 0, 0))],
            out_specs=(pl.BlockSpec((1, hw, LANE), lambda i: (i, 0, cb)),
                       stats_spec, stats_spec),
            scratch_shapes=scratch,
            input_output_aliases={0: 0},
            compiler_params=cparams,
        )(slab3, hmid3, scale2, shift2, w3_k)
        new_slab = slab_out.reshape(m, c_slab)
        s_new = s.sum(axis=0)[:, col_off:col_off + growth]
        ss_new = ss.sum(axis=0)[:, col_off:col_off + growth]
    else:
        # TODO(synk): growth block straddles a 128-lane boundary -> fall back to a
        # separate lane-padded output and a functional slab update.
        y, s, ss = pl.pallas_call(
            kernel_copyout,
            out_shape=(jax.ShapeDtypeStruct((n, hw, gp), jnp.float32),
                       stats_shape, stats_shape),
            grid=(n,),
            in_specs=[pl.BlockSpec((1, hw, midp), lambda i: (i, 0, 0)),
                      pl.BlockSpec((1, midp), lambda i: (0, 0)),
                      pl.BlockSpec((1, midp), lambda i: (0, 0)),
                      pl.BlockSpec((9, midp, gp), lambda i: (0, 0, 0))],
            out_specs=(pl.BlockSpec((1, hw, gp), lambda i: (i, 0, 0)),
                       stats_spec, stats_spec),
            scratch_shapes=scratch,
            compiler_params=cparams,
        )(hmid3, scale2, shift2, w3)
        new_slab = x_slab.at[:, c_in:c_in + growth].set(y.reshape(m, gp)[:, :growth])
        s_new = s.sum(axis=0)[:, :growth]
        ss_new = ss.sum(axis=0)[:, :growth]
    return new_slab, s_new, ss_new


# ----------------------------- DenseBlock forward --------------------------- #

def init_dense_block_params(key, blocks, dim, growth):
    """Deterministic synthetic init.  Shapes mirror the torch module's __init__,
    zero-padded to 128-lane multiples and stored in bf16 for the MXU."""
    params = []
    c_in = dim
    mid = growth * 4
    midp = _round_up(mid, LANE)
    gp = _round_up(growth, LANE)
    for _ in range(blocks):
        kp = _round_up(c_in, LANE)
        key, k1, k2 = jax.random.split(key, 3)
        # 1x1 conv weight stored (Cin, Cout)  (torch: (Cout, Cin, 1, 1))
        w1 = jnp.zeros((kp, midp), jnp.float32)
        w1 = w1.at[:c_in, :mid].set(
            jax.random.normal(k1, (c_in, mid), jnp.float32) * 0.1)
        # 3x3 conv weight stored HWIO, taps flattened -> (9, Cin, Cout)
        w3 = jnp.zeros((3, 3, midp, gp), jnp.float32)
        w3 = w3.at[:, :, :mid, :growth].set(
            jax.random.normal(k2, (3, 3, mid, growth), jnp.float32) * 0.1)
        params.append(dict(
            g1=jnp.zeros((1, kp), jnp.float32).at[:, :c_in].set(1.0),
            b1=jnp.zeros((1, kp), jnp.float32),
            g2=jnp.zeros((1, midp), jnp.float32).at[:, :mid].set(1.0),
            b2=jnp.zeros((1, midp), jnp.float32),
            w1=w1.astype(jnp.bfloat16),
            w3=w3.reshape(9, midp, gp).astype(jnp.bfloat16),
        ))
        c_in += growth
    return params


def dense_block_forward(x_nchw, params, dim, growth):
    x = jnp.transpose(x_nchw, (0, 2, 3, 1)).astype(jnp.float32)   # NCHW -> NHWC
    n, h, w, _ = x.shape
    m = n * h * w
    blocks = len(params)
    c_final = dim + blocks * growth
    c_slab = _round_up(c_final, LANE)

    # channel-padded feature slab: the concat target, channels on the lane axis
    slab = jnp.zeros((m, c_slab), jnp.float32).at[:, :dim].set(x.reshape(m, dim))

    # running per-channel sum / sum^2 for BN1 of every layer; slab channels never
    # change once written, so each channel's statistics are computed exactly once.
    run_sum = jnp.zeros((1, c_slab), jnp.float32)
    run_ssq = jnp.zeros((1, c_slab), jnp.float32)
    kp0 = _round_up(dim, LANE)
    s0, ss0 = channel_stats(slab, kp0)
    run_sum = run_sum.at[:, :kp0].set(s0)
    run_ssq = run_ssq.at[:, :kp0].set(ss0)

    c_in = dim
    for layer in params:
        kp = layer["w1"].shape[0]
        # ---- ConvBlock 1: BN(c_in) + ReLU + 1x1 conv (fused, emits hmid stats) ----
        mean1 = run_sum[:, :kp] / m
        var1 = jnp.maximum(run_ssq[:, :kp] / m - mean1 * mean1, 0.0)
        scale1 = layer["g1"] * jax.lax.rsqrt(var1 + EPS)
        shift1 = layer["b1"] - mean1 * scale1
        hmid, s2, ss2 = bn_relu_conv1x1(slab, scale1, shift1, layer["w1"])

        # ---- ConvBlock 2: BN(4g) + ReLU + 3x3 conv (pad 1), written into the slab ----
        mean2 = s2 / m
        var2 = jnp.maximum(ss2 / m - mean2 * mean2, 0.0)
        scale2 = layer["g2"] * jax.lax.rsqrt(var2 + EPS)
        shift2 = layer["b2"] - mean2 * scale2
        slab, s_new, ss_new = bottleneck_3x3(
            slab, hmid, scale2, shift2, layer["w3"],
            n=n, h=h, w=w, growth=growth, c_in=c_in)

        # cache the stats of the freshly appended channels for later layers' BN1
        run_sum = run_sum.at[:, c_in:c_in + growth].set(s_new)
        run_ssq = run_ssq.at[:, c_in:c_in + growth].set(ss_new)
        c_in += growth

    out = slab[:, :c_final].reshape(n, h, w, c_final)
    return jnp.transpose(out, (0, 3, 1, 2))                      # NHWC -> NCHW


# ----------------------------------- main ----------------------------------- #

if __name__ == "__main__":
    key = jax.random.PRNGKey(0)
    k_x, k_p = jax.random.split(key)

    BLOCKS, DIM, GROWTH = 2, 4, 4
    N, H, W = 2, 16, 16

    x = jax.random.normal(k_x, (N, DIM, H, W), jnp.float32)      # NCHW like torch
    params = init_dense_block_params(k_p, BLOCKS, DIM, GROWTH)

    fwd = jax.jit(functools.partial(dense_block_forward, dim=DIM, growth=GROWTH))
    out = jax.block_until_ready(fwd(x, params))

    expected_channels = DIM + BLOCKS * GROWTH
    assert out.shape == (N, expected_channels, H, W), out.shape
    assert jnp.all(jnp.isfinite(out))
    print("KERNEL_OK")
</pallas_src>

<mosaic_0001>
module attributes {stable_mosaic.version = 11 : i64} {
  func.func @_stats_kernel(%arg0: i32, %arg1: memref<512x128xf32, #tpu.memory_space<vmem>>, %arg2: memref<1x1x128xf32, #tpu.memory_space<vmem>>, %arg3: memref<1x1x128xf32, #tpu.memory_space<vmem>>) attributes {dimension_semantics = [#tpu.dimension_semantics<parallel>], iteration_bounds = array<i64: 1>, scalar_prefetch = 0 : i64, scratch_operands = 0 : i64, tpu.core_type = #tpu.core_type<tc>, window_params = [{transform_indices = @transform_0, window_bounds = array<i64: 512, 128>}, {transform_indices = @transform_1, window_bounds = array<i64: 1, 1, 128>}, {transform_indices = @transform_2, window_bounds = array<i64: 1, 1, 128>}]} {
    %c0 = arith.constant 0 : index
    %c0_0 = arith.constant 0 : index
    %0 = vector.load %arg1[%c0, %c0_0] : memref<512x128xf32, #tpu.memory_space<vmem>>, vector<512x128xf32>
    %cst = arith.constant dense<0.000000e+00> : vector<128xf32>
    %1 = vector.multi_reduction <add>, %0, %cst [0] : vector<512x128xf32> to vector<128xf32>
    %2 = vector.shape_cast %1 : vector<128xf32> to vector<1x128xf32>
    %c0_1 = arith.constant 0 : index
    %c0_2 = arith.constant 0 : index
    %c0_3 = arith.constant 0 : index
    %3 = vector.load %arg2[%c0_1, %c0_2, %c0_3] : memref<1x1x128xf32, #tpu.memory_space<vmem>>, vector<1x1x128xf32>
    %4 = vector.shape_cast %3 : vector<1x1x128xf32> to vector<1x128xf32>
    %5 = vector.shape_cast %2 : vector<1x128xf32> to vector<1x1x128xf32>
    tpu.vector_store %arg2[%c0_1, %c0_2, %c0_3], %5 {strides = array<i32>} : memref<1x1x128xf32, #tpu.memory_space<vmem>>, vector<1x1x128xf32>,
    %6 = arith.mulf %0, %0 : vector<512x128xf32>
    %cst_4 = arith.constant dense<0.000000e+00> : vector<128xf32>
    %7 = vector.multi_reduction <add>, %6, %cst_4 [0] : vector<512x128xf32> to vector<128xf32>
    %8 = vector.shape_cast %7 : vector<128xf32> to vector<1x128xf32>
    %c0_5 = arith.constant 0 : index
    %c0_6 = arith.constant 0 : index
    %c0_7 = arith.constant 0 : index
    %9 = vector.load %arg3[%c0_5, %c0_6, %c0_7] : memref<1x1x128xf32, #tpu.memory_space<vmem>>, vector<1x1x128xf32>
    %10 = vector.shape_cast %9 : vector<1x1x128xf32> to vector<1x128xf32>
    %11 = vector.shape_cast %8 : vector<1x128xf32> to vector<1x1x128xf32>
    tpu.vector_store %arg3[%c0_5, %c0_6, %c0_7], %11 {strides = array<i32>} : memref<1x1x128xf32, #tpu.memory_space<vmem>>, vector<1x1x128xf32>,
    return
  }
  func.func @transform_0(%arg0: i32) -> (i32, i32) {
    %c0_i32 = arith.constant 0 : i32
    %c0_i32_0 = arith.constant 0 : i32
    return %arg0, %c0_i32 : i32, i32
  }
  func.func @transform_1(%arg0: i32) -> (i32, i32, i32) {
    %c0_i32 = arith.constant 0 : i32
    %c0_i32_0 = arith.constant 0 : i32
    %c0_i32_1 = arith.constant 0 : i32
    return %arg0, %c0_i32, %c0_i32_0 : i32, i32, i32
  }
  func.func @transform_2(%arg0: i32) -> (i32, i32, i32) {
    %c0_i32 = arith.constant 0 : i32
    %c0_i32_0 = arith.constant 0 : i32
    %c0_i32_1 = arith.constant 0 : i32
    return %arg0, %c0_i32, %c0_i32_0 : i32, i32, i32
  }
}

module attributes {stable_mosaic.version = 11 : i64} {
  func.func @_bn_relu_conv1x1_kernel(%arg0: i32, %arg1: memref<512x128xf32, #tpu.memory_space<vmem>>, %arg2: memref<1x128xf32, #tpu.memory_space<vmem>>, %arg3: memref<1x128xf32, #tpu.memory_space<vmem>>, %arg4: memref<128x128xbf16, #tpu.memory_space<vmem>>, %arg5: memref<512x128xf32, #tpu.memory_space<vmem>>, %arg6: memref<1x1x128xf32, #tpu.memory_space<vmem>>, %arg7: memref<1x1x128xf32, #tpu.memory_space<vmem>>) attributes {dimension_semantics = [#tpu.dimension_semantics<parallel>], iteration_bounds = array<i64: 1>, scalar_prefetch = 0 : i64, scratch_operands = 0 : i64, tpu.core_type = #tpu.core_type<tc>, window_params = [{transform_indices = @transform_0, window_bounds = array<i64: 512, 128>}, {pipeline_mode = #tpu.pipeline_mode<synchronous>, transform_indices = @transform_1, window_bounds = array<i64: 1, 128>}, {pipeline_mode = #tpu.pipeline_mode<synchronous>, transform_indices = @transform_2, window_bounds = array<i64: 1, 128>}, {pipeline_mode = #tpu.pipeline_mode<synchronous>, transform_indices = @transform_3, window_bounds = array<i64: 128, 128>}, {transform_indices = @transform_4, window_bounds = array<i64: 512, 128>}, {transform_indices = @transform_5, window_bounds = array<i64: 1, 1, 128>}, {transform_indices = @transform_6, window_bounds = array<i64: 1, 1, 128>}]} {
    %c0 = arith.constant 0 : index
    %c0_0 = arith.constant 0 : index
    %0 = vector.load %arg1[%c0, %c0_0] : memref<512x128xf32, #tpu.memory_space<vmem>>, vector<512x128xf32>
    %c0_1 = arith.constant 0 : index
    %c0_2 = arith.constant 0 : index
    %1 = vector.load %arg2[%c0_1, %c0_2] : memref<1x128xf32, #tpu.memory_space<vmem>>, vector<1x128xf32>
    %2 = vector.broadcast %1 : vector<1x128xf32> to vector<512x128xf32>
    %3 = arith.mulf %0, %2 : vector<512x128xf32>
    %c0_3 = arith.constant 0 : index
    %c0_4 = arith.constant 0 : index
    %4 = vector.load %arg3[%c0_3, %c0_4] : memref<1x128xf32, #tpu.memory_space<vmem>>, vector<1x128xf32>
    %5 = vector.broadcast %4 : vector<1x128xf32> to vector<512x128xf32>
    %6 = arith.addf %3, %5 : vector<512x128xf32>
    %cst = arith.constant 0.000000e+00 : f32
    %7 = vector.broadcast %cst : f32 to vector<512x128xf32>
    %8 = arith.maximumf %6, %7 : vector<512x128xf32>
    %9 = arith.truncf %8 : vector<512x128xf32> to vector<512x128xbf16>
    %c0_5 = arith.constant 0 : index
    %c0_6 = arith.constant 0 : index
    %10 = vector.load %arg4[%c0_5, %c0_6] : memref<128x128xbf16, #tpu.memory_space<vmem>>, vector<128x128xbf16>
    %cst_7 = arith.constant dense<0.000000e+00> : vector<512x128xf32>
    %11 = tpu.matmul %9, %10, %cst_7 {dimension_numbers = #tpu.dot_dimension_numbers<[1], [0], [0], [1], [0, 0, 1, 1], [], []>} : vector<512x128xbf16>, vector<128x128xbf16>, vector<512x128xf32> -> vector<512x128xf32>
    %c0_8 = arith.constant 0 : index
    %c0_9 = arith.constant 0 : index
    %12 = vector.load %arg5[%c0_8, %c0_9] : memref<512x128xf32, #tpu.memory_space<vmem>>, vector<512x128xf32>
    tpu.vector_store %arg5[%c0_8, %c0_9], %11 {strides = array<i32>} : memref<512x128xf32, #tpu.memory_space<vmem>>, vector<512x128xf32>,
    %cst_10 = arith.constant dense<0.000000e+00> : vector<128xf32>
    %13 = vector.multi_reduction <add>, %11, %cst_10 [0] : vector<512x128xf32> to vector<128xf32>
    %14 = vector.shape_cast %13 : vector<128xf32> to vector<1x128xf32>
    %c0_11 = arith.constant 0 : index
    %c0_12 = arith.constant 0 : index
    %c0_13 = arith.constant 0 : index
    %15 = vector.load %arg6[%c0_11, %c0_12, %c0_13] : memref<1x1x128xf32, #tpu.memory_space<vmem>>, vector<1x1x128xf32>
    %16 = vector.shape_cast %15 : vector<1x1x128xf32> to vector<1x128xf32>
    %17 = vector.shape_cast %14 : vector<1x128xf32> to vector<1x1x128xf32>
    tpu.vector_store %arg6[%c0_11, %c0_12, %c0_13], %17 {strides = array<i32>} : memref<1x1x128xf32, #tpu.memory_space<vmem>>, vector<1x1x128xf32>,
    %18 = arith.mulf %11, %11 : vector<512x128xf32>
    %cst_14 = arith.constant dense<0.000000e+00> : vector<128xf32>
    %19 = vector.multi_reduction <add>, %18, %cst_14 [0] : vector<512x128xf32> to vector<128xf32>
    %20 = vector.shape_cast %19 : vector<128xf32> to vector<1x128xf32>
    %c0_15 = arith.constant 0 : index
    %c0_16 = arith.constant 0 : index
    %c0_17 = arith.constant 0 : index
    %21 = vector.load %arg7[%c0_15, %c0_16, %c0_17] : memref<1x1x128xf32, #tpu.memory_space<vmem>>, vector<1x1x128xf32>
    %22 = vector.shape_cast %21 : vector<1x1x128xf32> to vector<1x128xf32>
    %23 = vector.shape_cast %20 : vector<1x128xf32> to vector<1x1x128xf32>
    tpu.vector_store %arg7[%c0_15, %c0_16, %c0_17], %23 {strides = array<i32>} : memref<1x1x128xf32, #tpu.memory_space<vmem>>, vector<1x1x128xf32>,
    return
  }
  func.func @transform_0(%arg0: i32) -> (i32, i32) {
    %c0_i32 = arith.constant 0 : i32
    %c0_i32_0 = arith.constant 0 : i32
    return %arg0, %c0_i32 : i32, i32
  }
  func.func @transform_1(%arg0: i32) -> (i32, i32) {
    %c0_i32 = arith.constant 0 : i32
    %c0_i32_0 = arith.constant 0 : i32
    %c0_i32_1 = arith.constant 0 : i32
    return %c0_i32, %c0_i32_0 : i32, i32
  }
  func.func @transform_2(%arg0: i32) -> (i32, i32) {
    %c0_i32 = arith.constant 0 : i32
    %c0_i32_0 = arith.constant 0 : i32
    %c0_i32_1 = arith.constant 0 : i32
    return %c0_i32, %c0_i32_0 : i32, i32
  }
  func.func @transform_3(%arg0: i32) -> (i32, i32) {
    %c0_i32 = arith.constant 0 : i32
    %c0_i32_0 = arith.constant 0 : i32
    %c0_i32_1 = arith.constant 0 : i32
    return %c0_i32, %c0_i32_0 : i32, i32
  }
  func.func @transform_4(%arg0: i32) -> (i32, i32) {
    %c0_i32 = arith.constant 0 : i32
    %c0_i32_0 = arith.constant 0 : i32
    return %arg0, %c0_i32 : i32, i32
  }
  func.func @transform_5(%arg0: i32) -> (i32, i32, i32) {
    %c0_i32 = arith.constant 0 : i32
    %c0_i32_0 = arith.constant 0 : i32
    %c0_i32_1 = arith.constant 0 : i32
    return %arg0, %c0_i32, %c0_i32_0 : i32, i32, i32
  }
  func.func @transform_6(%arg0: i32) -> (i32, i32, i32) {
    %c0_i32 = arith.constant 0 : i32
    %c0_i32_0 = arith.constant 0 : i32
    %c0_i32_1 = arith.constant 0 : i32
    return %arg0, %c0_i32, %c0_i32_0 : i32, i32, i32
  }
}

module attributes {stable_mosaic.version = 11 : i64} {
  func.func @kernel_inplace(%arg0: i32, %arg1: memref<1x256x128xf32, #tpu.memory_space<vmem>>, %arg2: memref<1x256x128xf32, #tpu.memory_space<vmem>>, %arg3: memref<1x128xf32, #tpu.memory_space<vmem>>, %arg4: memref<1x128xf32, #tpu.memory_space<vmem>>, %arg5: memref<9x128x128xbf16, #tpu.memory_space<vmem>>, %arg6: memref<1x256x128xf32, #tpu.memory_space<vmem>>, %arg7: memref<1x1x128xf32, #tpu.memory_space<vmem>>, %arg8: memref<1x1x128xf32, #tpu.memory_space<vmem>>, %arg9: memref<290x128xf32, #tpu.memory_space<vmem>>) attributes {dimension_semantics = [#tpu.dimension_semantics<parallel>], iteration_bounds = array<i64: 2>, scalar_prefetch = 0 : i64, scratch_operands = 1 : i64, tpu.core_type = #tpu.core_type<tc>, window_params = [{transform_indices = @transform_0, window_bounds = array<i64: 1, 256, 128>}, {transform_indices = @transform_1, window_bounds = array<i64: 1, 256, 128>}, {pipeline_mode = #tpu.pipeline_mode<synchronous>, transform_indices = @transform_2, window_bounds = array<i64: 1, 128>}, {pipeline_mode = #tpu.pipeline_mode<synchronous>, transform_indices = @transform_3, window_bounds = array<i64: 1, 128>}, {pipeline_mode = #tpu.pipeline_mode<synchronous>, transform_indices = @transform_4, window_bounds = array<i64: 9, 128, 128>}, {transform_indices = @transform_5, window_bounds = array<i64: 1, 256, 128>}, {transform_indices = @transform_6, window_bounds = array<i64: 1, 1, 128>}, {transform_indices = @transform_7, window_bounds = array<i64: 1, 1, 128>}]} {
    %cst = arith.constant 0.000000e+00 : f32
    %0 = vector.broadcast %cst : f32 to vector<290x128xf32>
    %c0 = arith.constant 0 : index
    %c0_0 = arith.constant 0 : index
    %1 = vector.load %arg9[%c0, %c0_0] : memref<290x128xf32, #tpu.memory_space<vmem>>, vector<290x128xf32>
    tpu.vector_store %arg9[%c0, %c0_0], %0 {strides = array<i32>} : memref<290x128xf32, #tpu.memory_space<vmem>>, vector<290x128xf32>,
    %c0_1 = arith.constant 0 : index
    %c0_2 = arith.constant 0 : index
    %c0_3 = arith.constant 0 : index
    %2 = vector.load %arg2[%c0_1, %c0_2, %c0_3] : memref<1x256x128xf32, #tpu.memory_space<vmem>>, vector<1x256x128xf32>
    %3 = vector.shape_cast %2 : vector<1x256x128xf32> to vector<256x128xf32>
    %c0_4 = arith.constant 0 : index
    %c0_5 = arith.constant 0 : index
    %4 = vector.load %arg3[%c0_4, %c0_5] : memref<1x128xf32, #tpu.memory_space<vmem>>, vector<1x128xf32>
    %5 = vector.broadcast %4 : vector<1x128xf32> to vector<256x128xf32>
    %6 = arith.mulf %3, %5 : vector<256x128xf32>
    %c0_6 = arith.constant 0 : index
    %c0_7 = arith.constant 0 : index
    %7 = vector.load %arg4[%c0_6, %c0_7] : memref<1x128xf32, #tpu.memory_space<vmem>>, vector<1x128xf32>
    %8 = vector.broadcast %7 : vector<1x128xf32> to vector<256x128xf32>
    %9 = arith.addf %6, %8 : vector<256x128xf32>
    %cst_8 = arith.constant 0.000000e+00 : f32
    %10 = vector.broadcast %cst_8 : f32 to vector<256x128xf32>
    %11 = arith.maximumf %9, %10 : vector<256x128xf32>
    %c17 = arith.constant 17 : index
    %c0_9 = arith.constant 0 : index
    %12 = vector.load %arg9[%c17, %c0_9] : memref<290x128xf32, #tpu.memory_space<vmem>>, vector<256x128xf32>
    tpu.vector_store %arg9[%c17, %c0_9], %11 {strides = array<i32>} : memref<290x128xf32, #tpu.memory_space<vmem>>, vector<256x128xf32>,
    %13 = tpu.iota {dimensions = array<i32: 0>} : vector<256x128xi32>
    %c16_i32 = arith.constant 16 : i32
    %c0_i32 = arith.constant 0 : i32
    %14 = arith.cmpi eq, %c16_i32, %c0_i32 : i32
    %c1_i32 = arith.constant 1 : i32
    %15 = arith.select %14, %c1_i32, %c16_i32 : i32
    %16 = vector.broadcast %15 : i32 to vector<256x128xi32>
    %17 = arith.remsi %13, %16 : vector<256x128xi32>
    %c0_i32_10 = arith.constant 0 : i32
    %18 = vector.broadcast %c0_i32_10 : i32 to vector<256x128xi32>
    %19 = arith.cmpi ne, %17, %18 : vector<256x128xi32>
    %c0_i32_11 = arith.constant 0 : i32
    %20 = vector.broadcast %c0_i32_11 : i32 to vector<256x128xi32>
    %21 = arith.cmpi slt, %17, %20 : vector<256x128xi32>
    %c0_i32_12 = arith.constant 0 : i32
    %22 = arith.cmpi slt, %15, %c0_i32_12 : i32
    %23 = vector.broadcast %22 : i1 to vector<256x128xi1>
    %24 = vector.broadcast %23 : vector<256x128xi1> to vector<256x128xi1>
    %25 = arith.xori %21, %24 : vector<256x128xi1>
    %26 = arith.andi %25, %19 : vector<256x128xi1>
    %27 = vector.broadcast %15 : i32 to vector<256x128xi32>
    %28 = arith.addi %17, %27 : vector<256x128xi32>
    %29 = arith.select %26, %28, %17 : vector<256x128xi1>, vector<256x128xi32>
    %cst_13 = arith.constant 0.000000e+00 : f32
    %30 = vector.broadcast %cst_13 : f32 to vector<256x128xf32>
    %c0_14 = arith.constant 0 : index
    %c0_15 = arith.constant 0 : index
    %31 = vector.load %arg9[%c0_14, %c0_15] : memref<290x128xf32, #tpu.memory_space<vmem>>, vector<256x128xf32>
    %c1_i32_16 = arith.constant 1 : i32
    %32 = vector.broadcast %c1_i32_16 : i32 to vector<256x128xi32>
    %33 = arith.cmpi sge, %29, %32 : vector<256x128xi32>
    %cst_17 = arith.constant 0.000000e+00 : f32
    %34 = vector.broadcast %cst_17 : f32 to vector<256x128xf32>
    %35 = arith.select %33, %31, %34 : vector<256x128xi1>, vector<256x128xf32>
    %36 = arith.truncf %35 : vector<256x128xf32> to vector<256x128xbf16>
    %c0_18 = arith.constant 0 : index
    %c0_19 = arith.constant 0 : index
    %c0_20 = arith.constant 0 : index
    %37 = vector.load %arg5[%c0_18, %c0_19, %c0_20] : memref<9x128x128xbf16, #tpu.memory_space<vmem>>, vector<1x128x128xbf16>
    %38 = vector.shape_cast %37 : vector<1x128x128xbf16> to vector<128x128xbf16>
    %cst_21 = arith.constant dense<0.000000e+00> : vector<256x128xf32>
    %39 = tpu.matmul %36, %38, %cst_21 {dimension_numbers = #tpu.dot_dimension_numbers<[1], [0], [0], [1], [0, 0, 1, 1], [], []>} : vector<256x128xbf16>, vector<128x128xbf16>, vector<256x128xf32> -> vector<256x128xf32>
    %40 = arith.addf %30, %39 : vector<256x128xf32>
    %c1 = arith.constant 1 : index
    %c0_22 = arith.constant 0 : index
    %41 = vector.load %arg9[%c1, %c0_22] : memref<290x128xf32, #tpu.memory_space<vmem>>, vector<256x128xf32>
    %42 = arith.truncf %41 : vector<256x128xf32> to vector<256x128xbf16>
    %c1_23 = arith.constant 1 : index
    %c0_24 = arith.constant 0 : index
    %c0_25 = arith.constant 0 : index
    %43 = vector.load %arg5[%c1_23, %c0_24, %c0_25] : memref<9x128x128xbf16, #tpu.memory_space<vmem>>, vector<1x128x128xbf16>
    %44 = vector.shape_cast %43 : vector<1x128x128xbf16> to vector<128x128xbf16>
    %cst_26 = arith.constant dense<0.000000e+00> : vector<256x128xf32>
    %45 = tpu.matmul %42, %44, %cst_26 {dimension_numbers = #tpu.dot_dimension_numbers<[1], [0], [0], [1], [0, 0, 1, 1], [], []>} : vector<256x128xbf16>, vector<128x128xbf16>, vector<256x128xf32> -> vector<256x128xf32>
    %46 = arith.addf %40, %45 : vector<256x128xf32>
    %c2 = arith.constant 2 : index
    %c0_27 = arith.constant 0 : index
    %47 = vector.load %arg9[%c2, %c0_27] : memref<290x128xf32, #tpu.memory_space<vmem>>, vector<256x128xf32>
    %c14_i32 = arith.constant 14 : i32
    %48 = vector.broadcast %c14_i32 : i32 to vector<256x128xi32>
    %49 = arith.cmpi sle, %29, %48 : vector<256x128xi32>
    %cst_28 = arith.constant 0.000000e+00 : f32
    %50 = vector.broadcast %cst_28 : f32 to vector<256x128xf32>
    %51 = arith.select %49, %47, %50 : vector<256x128xi1>, vector<256x128xf32>
    %52 = arith.truncf %51 : vector<256x128xf32> to vector<256x128xbf16>
    %c2_29 = arith.constant 2 : index
    %c0_30 = arith.constant 0 : index
    %c0_31 = arith.constant 0 : index
    %53 = vector.load %arg5[%c2_29, %c0_30, %c0_31] : memref<9x128x128xbf16, #tpu.memory_space<vmem>>, vector<1x128x128xbf16>
    %54 = vector.shape_cast %53 : vector<1x128x128xbf16> to vector<128x128xbf16>
    %cst_32 = arith.constant dense<0.000000e+00> : vector<256x128xf32>
    %55 = tpu.matmul %52, %54, %cst_32 {dimension_numbers = #tpu.dot_dimension_numbers<[1], [0], [0], [1], [0, 0, 1, 1], [], []>} : vector<256x128xbf16>, vector<128x128xbf16>, vector<256x128xf32> -> vector<256x128xf32>
    %56 = arith.addf %46, %55 : vector<256x128xf32>
    %c16 = arith.constant 16 : index
    %c0_33 = arith.constant 0 : index
    %57 = vector.load %arg9[%c16, %c0_33] : memref<290x128xf32, #tpu.memory_space<vmem>>, vector<256x128xf32>
    %c1_i32_34 = arith.constant 1 : i32
    %58 = vector.broadcast %c1_i32_34 : i32 to vector<256x128xi32>
    %59 = arith.cmpi sge, %29, %58 : vector<256x128xi32>
    %cst_35 = arith.constant 0.000000e+00 : f32
    %60 = vector.broadcast %cst_35 : f32 to vector<256x128xf32>
    %61 = arith.select %59, %57, %60 : vector<256x128xi1>, vector<256x128xf32>
    %62 = arith.truncf %61 : vector<256x128xf32> to vector<256x128xbf16>
    %c3 = arith.constant 3 : index
    %c0_36 = arith.constant 0 : index
    %c0_37 = arith.constant 0 : index
    %63 = vector.load %arg5[%c3, %c0_36, %c0_37] : memref<9x128x128xbf16, #tpu.memory_space<vmem>>, vector<1x128x128xbf16>
    %64 = vector.shape_cast %63 : vector<1x128x128xbf16> to vector<128x128xbf16>
    %cst_38 = arith.constant dense<0.000000e+00> : vector<256x128xf32>
    %65 = tpu.matmul %62, %64, %cst_38 {dimension_numbers = #tpu.dot_dimension_numbers<[1], [0], [0], [1], [0, 0, 1, 1], [], []>} : vector<256x128xbf16>, vector<128x128xbf16>, vector<256x128xf32> -> vector<256x128xf32>
    %66 = arith.addf %56, %65 : vector<256x128xf32>
    %c17_39 = arith.constant 17 : index
    %c0_40 = arith.constant 0 : index
    %67 = vector.load %arg9[%c17_39, %c0_40] : memref<290x128xf32, #tpu.memory_space<vmem>>, vector<256x128xf32>
    %68 = arith.truncf %67 : vector<256x128xf32> to vector<256x128xbf16>
    %c4 = arith.constant 4 : index
    %c0_41 = arith.constant 0 : index
    %c0_42 = arith.constant 0 : index
    %69 = vector.load %arg5[%c4, %c0_41, %c0_42] : memref<9x128x128xbf16, #tpu.memory_space<vmem>>, vector<1x128x128xbf16>
    %70 = vector.shape_cast %69 : vector<1x128x128xbf16> to vector<128x128xbf16>
    %cst_43 = arith.constant dense<0.000000e+00> : vector<256x128xf32>
    %71 = tpu.matmul %68, %70, %cst_43 {dimension_numbers = #tpu.dot_dimension_numbers<[1], [0], [0], [1], [0, 0, 1, 1], [], []>} : vector<256x128xbf16>, vector<128x128xbf16>, vector<256x128xf32> -> vector<256x128xf32>
    %72 = arith.addf %66, %71 : vector<256x128xf32>
    %c18 = arith.constant 18 : index
    %c0_44 = arith.constant 0 : index
    %73 = vector.load %arg9[%c18, %c0_44] : memref<290x128xf32, #tpu.memory_space<vmem>>, vector<256x128xf32>
    %c14_i32_45 = arith.constant 14 : i32
    %74 = vector.broadcast %c14_i32_45 : i32 to vector<256x128xi32>
    %75 = arith.cmpi sle, %29, %74 : vector<256x128xi32>
    %cst_46 = arith.constant 0.000000e+00 : f32
    %76 = vector.broadcast %cst_46 : f32 to vector<256x128xf32>
    %77 = arith.select %75, %73, %76 : vector<256x128xi1>, vector<256x128xf32>
    %78 = arith.truncf %77 : vector<256x128xf32> to vector<256x128xbf16>
    %c5 = arith.constant 5 : index
    %c0_47 = arith.constant 0 : index
    %c0_48 = arith.constant 0 : index
    %79 = vector.load %arg5[%c5, %c0_47, %c0_48] : memref<9x128x128xbf16, #tpu.memory_space<vmem>>, vector<1x128x128xbf16>
    %80 = vector.shape_cast %79 : vector<1x128x128xbf16> to vector<128x128xbf16>
    %cst_49 = arith.constant dense<0.000000e+00> : vector<256x128xf32>
    %81 = tpu.matmul %78, %80, %cst_49 {dimension_numbers = #tpu.dot_dimension_numbers<[1], [0], [0], [1], [0, 0, 1, 1], [], []>} : vector<256x128xbf16>, vector<128x128xbf16>, vector<256x128xf32> -> vector<256x128xf32>
    %82 = arith.addf %72, %81 : vector<256x128xf32>
    %c32 = arith.constant 32 : index
    %c0_50 = arith.constant 0 : index
    %83 = vector.load %arg9[%c32, %c0_50] : memref<290x128xf32, #tpu.memory_space<vmem>>, vector<256x128xf32>
    %c1_i32_51 = arith.constant 1 : i32
    %84 = vector.broadcast %c1_i32_51 : i32 to vector<256x128xi32>
    %85 = arith.cmpi sge, %29, %84 : vector<256x128xi32>
    %cst_52 = arith.constant 0.000000e+00 : f32
    %86 = vector.broadcast %cst_52 : f32 to vector<256x128xf32>
    %87 = arith.select %85, %83, %86 : vector<256x128xi1>, vector<256x128xf32>
    %88 = arith.truncf %87 : vector<256x128xf32> to vector<256x128xbf16>
    %c6 = arith.constant 6 : index
    %c0_53 = arith.constant 0 : index
    %c0_54 = arith.constant 0 : index
    %89 = vector.load %arg5[%c6, %c0_53, %c0_54] : memref<9x128x128xbf16, #tpu.memory_space<vmem>>, vector<1x128x128xbf16>
    %90 = vector.shape_cast %89 : vector<1x128x128xbf16> to vector<128x128xbf16>
    %cst_55 = arith.constant dense<0.000000e+00> : vector<256x128xf32>
    %91 = tpu.matmul %88, %90, %cst_55 {dimension_numbers = #tpu.dot_dimension_numbers<[1], [0], [0], [1], [0, 0, 1, 1], [], []>} : vector<256x128xbf16>, vector<128x128xbf16>, vector<256x128xf32> -> vector<256x128xf32>
    %92 = arith.addf %82, %91 : vector<256x128xf32>
    %c33 = arith.constant 33 : index
    %c0_56 = arith.constant 0 : index
    %93 = vector.load %arg9[%c33, %c0_56] : memref<290x128xf32, #tpu.memory_space<vmem>>, vector<256x128xf32>
    %94 = arith.truncf %93 : vector<256x128xf32> to vector<256x128xbf16>
    %c7 = arith.constant 7 : index
    %c0_57 = arith.constant 0 : index
    %c0_58 = arith.constant 0 : index
    %95 = vector.load %arg5[%c7, %c0_57, %c0_58] : memref<9x128x128xbf16, #tpu.memory_space<vmem>>, vector<1x128x128xbf16>
    %96 = vector.shape_cast %95 : vector<1x128x128xbf16> to vector<128x128xbf16>
    %cst_59 = arith.constant dense<0.000000e+00> : vector<256x128xf32>
    %97 = tpu.matmul %94, %96, %cst_59 {dimension_numbers = #tpu.dot_dimension_numbers<[1], [0], [0], [1], [0, 0, 1, 1], [], []>} : vector<256x128xbf16>, vector<128x128xbf16>, vector<256x128xf32> -> vector<256x128xf32>
    %98 = arith.addf %92, %97 : vector<256x128xf32>
    %c34 = arith.constant 34 : index
    %c0_60 = arith.constant 0 : index
    %99 = vector.load %arg9[%c34, %c0_60] : memref<290x128xf32, #tpu.memory_space<vmem>>, vector<256x128xf32>
    %c14_i32_61 = arith.constant 14 : i32
    %100 = vector.broadcast %c14_i32_61 : i32 to vector<256x128xi32>
    %101 = arith.cmpi sle, %29, %100 : vector<256x128xi32>
    %cst_62 = arith.constant 0.000000e+00 : f32
    %102 = vector.broadcast %cst_62 : f32 to vector<256x128xf32>
    %103 = arith.select %101, %99, %102 : vector<256x128xi1>, vector<256x128xf32>
    %104 = arith.truncf %103 : vector<256x128xf32> to vector<256x128xbf16>
    %c8 = arith.constant 8 : index
    %c0_63 = arith.constant 0 : index
    %c0_64 = arith.constant 0 : index
    %105 = vector.load %arg5[%c8, %c0_63, %c0_64] : memref<9x128x128xbf16, #tpu.memory_space<vmem>>, vector<1x128x128xbf16>
    %106 = vector.shape_cast %105 : vector<1x128x128xbf16> to vector<128x128xbf16>
    %cst_65 = arith.constant dense<0.000000e+00> : vector<256x128xf32>
    %107 = tpu.matmul %104, %106, %cst_65 {dimension_numbers = #tpu.dot_dimension_numbers<[1], [0], [0], [1], [0, 0, 1, 1], [], []>} : vector<256x128xbf16>, vector<128x128xbf16>, vector<256x128xf32> -> vector<256x128xf32>
    %108 = arith.addf %98, %107 : vector<256x128xf32>
    %cst_66 = arith.constant dense<0.000000e+00> : vector<128xf32>
    %109 = vector.multi_reduction <add>, %108, %cst_66 [0] : vector<256x128xf32> to vector<128xf32>
    %110 = vector.shape_cast %109 : vector<128xf32> to vector<1x128xf32>
    %c0_67 = arith.constant 0 : index
    %c0_68 = arith.constant 0 : index
    %c0_69 = arith.constant 0 : index
    %111 = vector.load %arg7[%c0_67, %c0_68, %c0_69] : memref<1x1x128xf32, #tpu.memory_space<vmem>>, vector<1x1x128xf32>
    %112 = vector.shape_cast %111 : vector<1x1x128xf32> to vector<1x128xf32>
    %113 = vector.shape_cast %110 : vector<1x128xf32> to vector<1x1x128xf32>
    tpu.vector_store %arg7[%c0_67, %c0_68, %c0_69], %113 {strides = array<i32>} : memref<1x1x128xf32, #tpu.memory_space<vmem>>, vector<1x1x128xf32>,
    %114 = arith.mulf %108, %108 : vector<256x128xf32>
    %cst_70 = arith.constant dense<0.000000e+00> : vector<128xf32>
    %115 = vector.multi_reduction <add>, %114, %cst_70 [0] : vector<256x128xf32> to vector<128xf32>
    %116 = vector.shape_cast %115 : vector<128xf32> to vector<1x128xf32>
    %c0_71 = arith.constant 0 : index
    %c0_72 = arith.constant 0 : index
    %c0_73 = arith.constant 0 : index
    %117 = vector.load %arg8[%c0_71, %c0_72, %c0_73] : memref<1x1x128xf32, #tpu.memory_space<vmem>>, vector<1x1x128xf32>
    %118 = vector.shape_cast %117 : vector<1x1x128xf32> to vector<1x128xf32>
    %119 = vector.shape_cast %116 : vector<1x128xf32> to vector<1x1x128xf32>
    tpu.vector_store %arg8[%c0_71, %c0_72, %c0_73], %119 {strides = array<i32>} : memref<1x1x128xf32, #tpu.memory_space<vmem>>, vector<1x1x128xf32>,
    %120 = tpu.iota {dimensions = array<i32: 1>} : vector<256x128xi32>
    %c4_i32 = arith.constant 4 : i32
    %121 = vector.broadcast %c4_i32 : i32 to vector<256x128xi32>
    %122 = arith.cmpi sge, %120, %121 : vector<256x128xi32>
    %c8_i32 = arith.constant 8 : i32
    %123 = vector.broadcast %c8_i32 : i32 to vector<256x128xi32>
    %124 = arith.cmpi slt, %120, %123 : vector<256x128xi32>
    %125 = arith.andi %122, %124 : vector<256x128xi1>
    %c0_74 = arith.constant 0 : index
    %c0_75 = arith.constant 0 : index
    %c0_76 = arith.constant 0 : index
    %126 = vector.load %arg1[%c0_74, %c0_75, %c0_76] : memref<1x256x128xf32, #tpu.memory_space<vmem>>, vector<1x256x128xf32>
    %127 = vector.shape_cast %126 : vector<1x256x128xf32> to vector<256x128xf32>
    %128 = arith.select %125, %108, %127 : vector<256x128xi1>, vector<256x128xf32>
    %c0_77 = arith.constant 0 : index
    %c0_78 = arith.constant 0 : index
    %c0_79 = arith.constant 0 : index
    %129 = vector.load %arg6[%c0_77, %c0_78, %c0_79] : memref<1x256x128xf32, #tpu.memory_space<vmem>>, vector<1x256x128xf32>
    %130 = vector.shape_cast %129 : vector<1x256x128xf32> to vector<256x128xf32>
    %131 = vector.shape_cast %128 : vector<256x128xf32> to vector<1x256x128xf32>
    tpu.vector_store %arg6[%c0_77, %c0_78, %c0_79], %131 {strides = array<i32>} : memref<1x256x128xf32, #tpu.memory_space<vmem>>, vector<1x256x128xf32>,
    return
  }
  func.func @transform_0(%arg0: i32) -> (i32, i32, i32) {
    %c0_i32 = arith.constant 0 : i32
    %c0_i32_0 = arith.constant 0 : i32
    %c0_i32_1 = arith.constant 0 : i32
    return %arg0, %c0_i32, %c0_i32_0 : i32, i32, i32
  }
  func.func @transform_1(%arg0: i32) -> (i32, i32, i32) {
    %c0_i32 = arith.constant 0 : i32
    %c0_i32_0 = arith.constant 0 : i32
    %c0_i32_1 = arith.constant 0 : i32
    return %arg0, %c0_i32, %c0_i32_0 : i32, i32, i32
  }
  func.func @transform_2(%arg0: i32) -> (i32, i32) {
    %c0_i32 = arith.constant 0 : i32
    %c0_i32_0 = arith.constant 0 : i32
    %c0_i32_1 = arith.constant 0 : i32
    return %c0_i32, %c0_i32_0 : i32, i32
  }
  func.func @transform_3(%arg0: i32) -> (i32, i32) {
    %c0_i32 = arith.constant 0 : i32
    %c0_i32_0 = arith.constant 0 : i32
    %c0_i32_1 = arith.constant 0 : i32
    return %c0_i32, %c0_i32_0 : i32, i32
  }
  func.func @transform_4(%arg0: i32) -> (i32, i32, i32) {
    %c0_i32 = arith.constant 0 : i32
    %c0_i32_0 = arith.constant 0 : i32
    %c0_i32_1 = arith.constant 0 : i32
    %c0_i32_2 = arith.constant 0 : i32
    return %c0_i32, %c0_i32_0, %c0_i32_1 : i32, i32, i32
  }
  func.func @transform_5(%arg0: i32) -> (i32, i32, i32) {
    %c0_i32 = arith.constant 0 : i32
    %c0_i32_0 = arith.constant 0 : i32
    %c0_i32_1 = arith.constant 0 : i32
    return %arg0, %c0_i32, %c0_i32_0 : i32, i32, i32
  }
  func.func @transform_6(%arg0: i32) -> (i32, i32, i32) {
    %c0_i32 = arith.constant 0 : i32
    %c0_i32_0 = arith.constant 0 : i32
    %c0_i32_1 = arith.constant 0 : i32
    return %arg0, %c0_i32, %c0_i32_0 : i32, i32, i32
  }
  func.func @transform_7(%arg0: i32) -> (i32, i32, i32) {
    %c0_i32 = arith.constant 0 : i32
    %c0_i32_0 = arith.constant 0 : i32
    %c0_i32_1 = arith.constant 0 : i32
    return %arg0, %c0_i32, %c0_i32_0 : i32, i32, i32
  }
}

module attributes {stable_mosaic.version = 11 : i64} {
  func.func @kernel_inplace(%arg0: i32, %arg1: memref<1x256x128xf32, #tpu.memory_space<vmem>>, %arg2: memref<1x256x128xf32, #tpu.memory_space<vmem>>, %arg3: memref<1x128xf32, #tpu.memory_space<vmem>>, %arg4: memref<1x128xf32, #tpu.memory_space<vmem>>, %arg5: memref<9x128x128xbf16, #tpu.memory_space<vmem>>, %arg6: memref<1x256x128xf32, #tpu.memory_space<vmem>>, %arg7: memref<1x1x128xf32, #tpu.memory_space<vmem>>, %arg8: memref<1x1x128xf32, #tpu.memory_space<vmem>>, %arg9: memref<290x128xf32, #tpu.memory_space<vmem>>) attributes {dimension_semantics = [#tpu.dimension_semantics<parallel>], iteration_bounds = array<i64: 2>, scalar_prefetch = 0 : i64, scratch_operands = 1 : i64, tpu.core_type = #tpu.core_type<tc>, window_params = [{transform_indices = @transform_0, window_bounds = array<i64: 1, 256, 128>}, {transform_indices = @transform_1, window_bounds = array<i64: 1, 256, 128>}, {pipeline_mode = #tpu.pipeline_mode<synchronous>, transform_indices = @transform_2, window_bounds = array<i64: 1, 128>}, {pipeline_mode = #tpu.pipeline_mode<synchronous>, transform_indices = @transform_3, window_bounds = array<i64: 1, 128>}, {pipeline_mode = #tpu.pipeline_mode<synchronous>, transform_indices = @transform_4, window_bounds = array<i64: 9, 128, 128>}, {transform_indices = @transform_5, window_bounds = array<i64: 1, 256, 128>}, {transform_indices = @transform_6, window_bounds = array<i64: 1, 1, 128>}, {transform_indices = @transform_7, window_bounds = array<i64: 1, 1, 128>}]} {
    %cst = arith.constant 0.000000e+00 : f32
    %0 = vector.broadcast %cst : f32 to vector<290x128xf32>
    %c0 = arith.constant 0 : index
    %c0_0 = arith.constant 0 : index
    %1 = vector.load %arg9[%c0, %c0_0] : memref<290x128xf32, #tpu.memory_space<vmem>>, vector<290x128xf32>
    tpu.vector_store %arg9[%c0, %c0_0], %0 {strides = array<i32>} : memref<290x128xf32, #tpu.memory_space<vmem>>, vector<290x128xf32>,
    %c0_1 = arith.constant 0 : index
    %c0_2 = arith.constant 0 : index
    %c0_3 = arith.constant 0 : index
    %2 = vector.load %arg2[%c0_1, %c0_2, %c0_3] : memref<1x256x128xf32, #tpu.memory_space<vmem>>, vector<1x256x128xf32>
    %3 = vector.shape_cast %2 : vector<1x256x128xf32> to vector<256x128xf32>
    %c0_4 = arith.constant 0 : index
    %c0_5 = arith.constant 0 : index
    %4 = vector.load %arg3[%c0_4, %c0_5] : memref<1x128xf32, #tpu.memory_space<vmem>>, vector<1x128xf32>
    %5 = vector.broadcast %4 : vector<1x128xf32> to vector<256x128xf32>
    %6 = arith.mulf %3, %5 : vector<256x128xf32>
    %c0_6 = arith.constant 0 : index
    %c0_7 = arith.constant 0 : index
    %7 = vector.load %arg4[%c0_6, %c0_7] : memref<1x128xf32, #tpu.memory_space<vmem>>, vector<1x128xf32>
    %8 = vector.broadcast %7 : vector<1x128xf32> to vector<256x128xf32>
    %9 = arith.addf %6, %8 : vector<256x128xf32>
    %cst_8 = arith.constant 0.000000e+00 : f32
    %10 = vector.broadcast %cst_8 : f32 to vector<256x128xf32>
    %11 = arith.maximumf %9, %10 : vector<256x128xf32>
    %c17 = arith.constant 17 : index
    %c0_9 = arith.constant 0 : index
    %12 = vector.load %arg9[%c17, %c0_9] : memref<290x128xf32, #tpu.memory_space<vmem>>, vector<256x128xf32>
    tpu.vector_store %arg9[%c17, %c0_9], %11 {strides = array<i32>} : memref<290x128xf32, #tpu.memory_space<vmem>>, vector<256x128xf32>,
    %13 = tpu.iota {dimensions = array<i32: 0>} : vector<256x128xi32>
    %c16_i32 = arith.constant 16 : i32
    %c0_i32 = arith.constant 0 : i32
    %14 = arith.cmpi eq, %c16_i32, %c0_i32 : i32
    %c1_i32 = arith.constant 1 : i32
    %15 = arith.select %14, %c1_i32, %c16_i32 : i32
    %16 = vector.broadcast %15 : i32 to vector<256x128xi32>
    %17 = arith.remsi %13, %16 : vector<256x128xi32>
    %c0_i32_10 = arith.constant 0 : i32
    %18 = vector.broadcast %c0_i32_10 : i32 to vector<256x128xi32>
    %19 = arith.cmpi ne, %17, %18 : vector<256x128xi32>
    %c0_i32_11 = arith.constant 0 : i32
    %20 = vector.broadcast %c0_i32_11 : i32 to vector<256x128xi32>
    %21 = arith.cmpi slt, %17, %20 : vector<256x128xi32>
    %c0_i32_12 = arith.constant 0 : i32
    %22 = arith.cmpi slt, %15, %c0_i32_12 : i32
    %23 = vector.broadcast %22 : i1 to vector<256x128xi1>
    %24 = vector.broadcast %23 : vector<256x128xi1> to vector<256x128xi1>
    %25 = arith.xori %21, %24 : vector<256x128xi1>
    %26 = arith.andi %25, %19 : vector<256x128xi1>
    %27 = vector.broadcast %15 : i32 to vector<256x128xi32>
    %28 = arith.addi %17, %27 : vector<256x128xi32>
    %29 = arith.select %26, %28, %17 : vector<256x128xi1>, vector<256x128xi32>
    %cst_13 = arith.constant 0.000000e+00 : f32
    %30 = vector.broadcast %cst_13 : f32 to vector<256x128xf32>
    %c0_14 = arith.constant 0 : index
    %c0_15 = arith.constant 0 : index
    %31 = vector.load %arg9[%c0_14, %c0_15] : memref<290x128xf32, #tpu.memory_space<vmem>>, vector<256x128xf32>
    %c1_i32_16 = arith.constant 1 : i32
    %32 = vector.broadcast %c1_i32_16 : i32 to vector<256x128xi32>
    %33 = arith.cmpi sge, %29, %32 : vector<256x128xi32>
    %cst_17 = arith.constant 0.000000e+00 : f32
    %34 = vector.broadcast %cst_17 : f32 to vector<256x128xf32>
    %35 = arith.select %33, %31, %34 : vector<256x128xi1>, vector<256x128xf32>
    %36 = arith.truncf %35 : vector<256x128xf32> to vector<256x128xbf16>
    %c0_18 = arith.constant 0 : index
    %c0_19 = arith.constant 0 : index
    %c0_20 = arith.constant 0 : index
    %37 = vector.load %arg5[%c0_18, %c0_19, %c0_20] : memref<9x128x128xbf16, #tpu.memory_space<vmem>>, vector<1x128x128xbf16>
    %38 = vector.shape_cast %37 : vector<1x128x128xbf16> to vector<128x128xbf16>
    %cst_21 = arith.constant dense<0.000000e+00> : vector<256x128xf32>
    %39 = tpu.matmul %36, %38, %cst_21 {dimension_numbers = #tpu.dot_dimension_numbers<[1], [0], [0], [1], [0, 0, 1, 1], [], []>} : vector<256x128xbf16>, vector<128x128xbf16>, vector<256x128xf32> -> vector<256x128xf32>
    %40 = arith.addf %30, %39 : vector<256x128xf32>
    %c1 = arith.constant 1 : index
    %c0_22 = arith.constant 0 : index
    %41 = vector.load %arg9[%c1, %c0_22] : memref<290x128xf32, #tpu.memory_space<vmem>>, vector<256x128xf32>
    %42 = arith.truncf %41 : vector<256x128xf32> to vector<256x128xbf16>
    %c1_23 = arith.constant 1 : index
    %c0_24 = arith.constant 0 : index
    %c0_25 = arith.constant 0 : index
    %43 = vector.load %arg5[%c1_23, %c0_24, %c0_25] : memref<9x128x128xbf16, #tpu.memory_space<vmem>>, vector<1x128x128xbf16>
    %44 = vector.shape_cast %43 : vector<1x128x128xbf16> to vector<128x128xbf16>
    %cst_26 = arith.constant dense<0.000000e+00> : vector<256x128xf32>
    %45 = tpu.matmul %42, %44, %cst_26 {dimension_numbers = #tpu.dot_dimension_numbers<[1], [0], [0], [1], [0, 0, 1, 1], [], []>} : vector<256x128xbf16>, vector<128x128xbf16>, vector<256x128xf32> -> vector<256x128xf32>
    %46 = arith.addf %40, %45 : vector<256x128xf32>
    %c2 = arith.constant 2 : index
    %c0_27 = arith.constant 0 : index
    %47 = vector.load %arg9[%c2, %c0_27] : memref<290x128xf32, #tpu.memory_space<vmem>>, vector<256x128xf32>
    %c14_i32 = arith.constant 14 : i32
    %48 = vector.broadcast %c14_i32 : i32 to vector<256x128xi32>
    %49 = arith.cmpi sle, %29, %48 : vector<256x128xi32>
    %cst_28 = arith.constant 0.000000e+00 : f32
    %50 = vector.broadcast %cst_28 : f32 to vector<256x128xf32>
    %51 = arith.select %49, %47, %50 : vector<256x128xi1>, vector<256x128xf32>
    %52 = arith.truncf %51 : vector<256x128xf32> to vector<256x128xbf16>
    %c2_29 = arith.constant 2 : index
    %c0_30 = arith.constant 0 : index
    %c0_31 = arith.constant 0 : index
    %53 = vector.load %arg5[%c2_29, %c0_30, %c0_31] : memref<9x128x128xbf16, #tpu.memory_space<vmem>>, vector<1x128x128xbf16>
    %54 = vector.shape_cast %53 : vector<1x128x128xbf16> to vector<128x128xbf16>
    %cst_32 = arith.constant dense<0.000000e+00> : vector<256x128xf32>
    %55 = tpu.matmul %52, %54, %cst_32 {dimension_numbers = #tpu.dot_dimension_numbers<[1], [0], [0], [1], [0, 0, 1, 1], [], []>} : vector<256x128xbf16>, vector<128x128xbf16>, vector<256x128xf32> -> vector<256x128xf32>
    %56 = arith.addf %46, %55 : vector<256x128xf32>
    %c16 = arith.constant 16 : index
    %c0_33 = arith.constant 0 : index
    %57 = vector.load %arg9[%c16, %c0_33] : memref<290x128xf32, #tpu.memory_space<vmem>>, vector<256x128xf32>
    %c1_i32_34 = arith.constant 1 : i32
    %58 = vector.broadcast %c1_i32_34 : i32 to vector<256x128xi32>
    %59 = arith.cmpi sge, %29, %58 : vector<256x128xi32>
    %cst_35 = arith.constant 0.000000e+00 : f32
    %60 = vector.broadcast %cst_35 : f32 to vector<256x128xf32>
    %61 = arith.select %59, %57, %60 : vector<256x128xi1>, vector<256x128xf32>
    %62 = arith.truncf %61 : vector<256x128xf32> to vector<256x128xbf16>
    %c3 = arith.constant 3 : index
    %c0_36 = arith.constant 0 : index
    %c0_37 = arith.constant 0 : index
    %63 = vector.load %arg5[%c3, %c0_36, %c0_37] : memref<9x128x128xbf16, #tpu.memory_space<vmem>>, vector<1x128x128xbf16>
    %64 = vector.shape_cast %63 : vector<1x128x128xbf16> to vector<128x128xbf16>
    %cst_38 = arith.constant dense<0.000000e+00> : vector<256x128xf32>
    %65 = tpu.matmul %62, %64, %cst_38 {dimension_numbers = #tpu.dot_dimension_numbers<[1], [0], [0], [1], [0, 0, 1, 1], [], []>} : vector<256x128xbf16>, vector<128x128xbf16>, vector<256x128xf32> -> vector<256x128xf32>
    %66 = arith.addf %56, %65 : vector<256x128xf32>
    %c17_39 = arith.constant 17 : index
    %c0_40 = arith.constant 0 : index
    %67 = vector.load %arg9[%c17_39, %c0_40] : memref<290x128xf32, #tpu.memory_space<vmem>>, vector<256x128xf32>
    %68 = arith.truncf %67 : vector<256x128xf32> to vector<256x128xbf16>
    %c4 = arith.constant 4 : index
    %c0_41 = arith.constant 0 : index
    %c0_42 = arith.constant 0 : index
    %69 = vector.load %arg5[%c4, %c0_41, %c0_42] : memref<9x128x128xbf16, #tpu.memory_space<vmem>>, vector<1x128x128xbf16>
    %70 = vector.shape_cast %69 : vector<1x128x128xbf16> to vector<128x128xbf16>
    %cst_43 = arith.constant dense<0.000000e+00> : vector<256x128xf32>
    %71 = tpu.matmul %68, %70, %cst_43 {dimension_numbers = #tpu.dot_dimension_numbers<[1], [0], [0], [1], [0, 0, 1, 1], [], []>} : vector<256x128xbf16>, vector<128x128xbf16>, vector<256x128xf32> -> vector<256x128xf32>
    %72 = arith.addf %66, %71 : vector<256x128xf32>
    %c18 = arith.constant 18 : index
    %c0_44 = arith.constant 0 : index
    %73 = vector.load %arg9[%c18, %c0_44] : memref<290x128xf32, #tpu.memory_space<vmem>>, vector<256x128xf32>
    %c14_i32_45 = arith.constant 14 : i32
    %74 = vector.broadcast %c14_i32_45 : i32 to vector<256x128xi32>
    %75 = arith.cmpi sle, %29, %74 : vector<256x128xi32>
    %cst_46 = arith.constant 0.000000e+00 : f32
    %76 = vector.broadcast %cst_46 : f32 to vector<256x128xf32>
    %77 = arith.select %75, %73, %76 : vector<256x128xi1>, vector<256x128xf32>
    %78 = arith.truncf %77 : vector<256x128xf32> to vector<256x128xbf16>
    %c5 = arith.constant 5 : index
    %c0_47 = arith.constant 0 : index
    %c0_48 = arith.constant 0 : index
    %79 = vector.load %arg5[%c5, %c0_47, %c0_48] : memref<9x128x128xbf16, #tpu.memory_space<vmem>>, vector<1x128x128xbf16>
    %80 = vector.shape_cast %79 : vector<1x128x128xbf16> to vector<128x128xbf16>
    %cst_49 = arith.constant dense<0.000000e+00> : vector<256x128xf32>
    %81 = tpu.matmul %78, %80, %cst_49 {dimension_numbers = #tpu.dot_dimension_numbers<[1], [0], [0], [1], [0, 0, 1, 1], [], []>} : vector<256x128xbf16>, vector<128x128xbf16>, vector<256x128xf32> -> vector<256x128xf32>
    %82 = arith.addf %72, %81 : vector<256x128xf32>
    %c32 = arith.constant 32 : index
    %c0_50 = arith.constant 0 : index
    %83 = vector.load %arg9[%c32, %c0_50] : memref<290x128xf32, #tpu.memory_space<vmem>>, vector<256x128xf32>
    %c1_i32_51 = arith.constant 1 : i32
    %84 = vector.broadcast %c1_i32_51 : i32 to vector<256x128xi32>
    %85 = arith.cmpi sge, %29, %84 : vector<256x128xi32>
    %cst_52 = arith.constant 0.000000e+00 : f32
    %86 = vector.broadcast %cst_52 : f32 to vector<256x128xf32>
    %87 = arith.select %85, %83, %86 : vector<256x128xi1>, vector<256x128xf32>
    %88 = arith.truncf %87 : vector<256x128xf32> to vector<256x128xbf16>
    %c6 = arith.constant 6 : index
    %c0_53 = arith.constant 0 : index
    %c0_54 = arith.constant 0 : index
    %89 = vector.load %arg5[%c6, %c0_53, %c0_54] : memref<9x128x128xbf16, #tpu.memory_space<vmem>>, vector<1x128x128xbf16>
    %90 = vector.shape_cast %89 : vector<1x128x128xbf16> to vector<128x128xbf16>
    %cst_55 = arith.constant dense<0.000000e+00> : vector<256x128xf32>
    %91 = tpu.matmul %88, %90, %cst_55 {dimension_numbers = #tpu.dot_dimension_numbers<[1], [0], [0], [1], [0, 0, 1, 1], [], []>} : vector<256x128xbf16>, vector<128x128xbf16>, vector<256x128xf32> -> vector<256x128xf32>
    %92 = arith.addf %82, %91 : vector<256x128xf32>
    %c33 = arith.constant 33 : index
    %c0_56 = arith.constant 0 : index
    %93 = vector.load %arg9[%c33, %c0_56] : memref<290x128xf32, #tpu.memory_space<vmem>>, vector<256x128xf32>
    %94 = arith.truncf %93 : vector<256x128xf32> to vector<256x128xbf16>
    %c7 = arith.constant 7 : index
    %c0_57 = arith.constant 0 : index
    %c0_58 = arith.constant 0 : index
    %95 = vector.load %arg5[%c7, %c0_57, %c0_58] : memref<9x128x128xbf16, #tpu.memory_space<vmem>>, vector<1x128x128xbf16>
    %96 = vector.shape_cast %95 : vector<1x128x128xbf16> to vector<128x128xbf16>
    %cst_59 = arith.constant dense<0.000000e+00> : vector<256x128xf32>
    %97 = tpu.matmul %94, %96, %cst_59 {dimension_numbers = #tpu.dot_dimension_numbers<[1], [0], [0], [1], [0, 0, 1, 1], [], []>} : vector<256x128xbf16>, vector<128x128xbf16>, vector<256x128xf32> -> vector<256x128xf32>
    %98 = arith.addf %92, %97 : vector<256x128xf32>
    %c34 = arith.constant 34 : index
    %c0_60 = arith.constant 0 : index
    %99 = vector.load %arg9[%c34, %c0_60] : memref<290x128xf32, #tpu.memory_space<vmem>>, vector<256x128xf32>
    %c14_i32_61 = arith.constant 14 : i32
    %100 = vector.broadcast %c14_i32_61 : i32 to vector<256x128xi32>
    %101 = arith.cmpi sle, %29, %100 : vector<256x128xi32>
    %cst_62 = arith.constant 0.000000e+00 : f32
    %102 = vector.broadcast %cst_62 : f32 to vector<256x128xf32>
    %103 = arith.select %101, %99, %102 : vector<256x128xi1>, vector<256x128xf32>
    %104 = arith.truncf %103 : vector<256x128xf32> to vector<256x128xbf16>
    %c8 = arith.constant 8 : index
    %c0_63 = arith.constant 0 : index
    %c0_64 = arith.constant 0 : index
    %105 = vector.load %arg5[%c8, %c0_63, %c0_64] : memref<9x128x128xbf16, #tpu.memory_space<vmem>>, vector<1x128x128xbf16>
    %106 = vector.shape_cast %105 : vector<1x128x128xbf16> to vector<128x128xbf16>
    %cst_65 = arith.constant dense<0.000000e+00> : vector<256x128xf32>
    %107 = tpu.matmul %104, %106, %cst_65 {dimension_numbers = #tpu.dot_dimension_numbers<[1], [0], [0], [1], [0, 0, 1, 1], [], []>} : vector<256x128xbf16>, vector<128x128xbf16>, vector<256x128xf32> -> vector<256x128xf32>
    %108 = arith.addf %98, %107 : vector<256x128xf32>
    %cst_66 = arith.constant dense<0.000000e+00> : vector<128xf32>
    %109 = vector.multi_reduction <add>, %108, %cst_66 [0] : vector<256x128xf32> to vector<128xf32>
    %110 = vector.shape_cast %109 : vector<128xf32> to vector<1x128xf32>
    %c0_67 = arith.constant 0 : index
    %c0_68 = arith.constant 0 : index
    %c0_69 = arith.constant 0 : index
    %111 = vector.load %arg7[%c0_67, %c0_68, %c0_69] : memref<1x1x128xf32, #tpu.memory_space<vmem>>, vector<1x1x128xf32>
    %112 = vector.shape_cast %111 : vector<1x1x128xf32> to vector<1x128xf32>
    %113 = vector.shape_cast %110 : vector<1x128xf32> to vector<1x1x128xf32>
    tpu.vector_store %arg7[%c0_67, %c0_68, %c0_69], %113 {strides = array<i32>} : memref<1x1x128xf32, #tpu.memory_space<vmem>>, vector<1x1x128xf32>,
    %114 = arith.mulf %108, %108 : vector<256x128xf32>
    %cst_70 = arith.constant dense<0.000000e+00> : vector<128xf32>
    %115 = vector.multi_reduction <add>, %114, %cst_70 [0] : vector<256x128xf32> to vector<128xf32>
    %116 = vector.shape_cast %115 : vector<128xf32> to vector<1x128xf32>
    %c0_71 = arith.constant 0 : index
    %c0_72 = arith.constant 0 : index
    %c0_73 = arith.constant 0 : index
    %117 = vector.load %arg8[%c0_71, %c0_72, %c0_73] : memref<1x1x128xf32, #tpu.memory_space<vmem>>, vector<1x1x128xf32>
    %118 = vector.shape_cast %117 : vector<1x1x128xf32> to vector<1x128xf32>
    %119 = vector.shape_cast %116 : vector<1x128xf32> to vector<1x1x128xf32>
    tpu.vector_store %arg8[%c0_71, %c0_72, %c0_73], %119 {strides = array<i32>} : memref<1x1x128xf32, #tpu.memory_space<vmem>>, vector<1x1x128xf32>,
    %120 = tpu.iota {dimensions = array<i32: 1>} : vector<256x128xi32>
    %c8_i32 = arith.constant 8 : i32
    %121 = vector.broadcast %c8_i32 : i32 to vector<256x128xi32>
    %122 = arith.cmpi sge, %120, %121 : vector<256x128xi32>
    %c12_i32 = arith.constant 12 : i32
    %123 = vector.broadcast %c12_i32 : i32 to vector<256x128xi32>
    %124 = arith.cmpi slt, %120, %123 : vector<256x128xi32>
    %125 = arith.andi %122, %124 : vector<256x128xi1>
    %c0_74 = arith.constant 0 : index
    %c0_75 = arith.constant 0 : index
    %c0_76 = arith.constant 0 : index
    %126 = vector.load %arg1[%c0_74, %c0_75, %c0_76] : memref<1x256x128xf32, #tpu.memory_space<vmem>>, vector<1x256x128xf32>
    %127 = vector.shape_cast %126 : vector<1x256x128xf32> to vector<256x128xf32>
    %128 = arith.select %125, %108, %127 : vector<256x128xi1>, vector<256x128xf32>
    %c0_77 = arith.constant 0 : index
    %c0_78 = arith.constant 0 : index
    %c0_79 = arith.constant 0 : index
    %129 = vector.load %arg6[%c0_77, %c0_78, %c0_79] : memref<1x256x128xf32, #tpu.memory_space<vmem>>, vector<1x256x128xf32>
    %130 = vector.shape_cast %129 : vector<1x256x128xf32> to vector<256x128xf32>
    %131 = vector.shape_cast %128 : vector<256x128xf32> to vector<1x256x128xf32>
    tpu.vector_store %arg6[%c0_77, %c0_78, %c0_79], %131 {strides = array<i32>} : memref<1x256x128xf32, #tpu.memory_space<vmem>>, vector<1x256x128xf32>,
    return
  }
  func.func @transform_0(%arg0: i32) -> (i32, i32, i32) {
    %c0_i32 = arith.constant 0 : i32
    %c0_i32_0 = arith.constant 0 : i32
    %c0_i32_1 = arith.constant 0 : i32
    return %arg0, %c0_i32, %c0_i32_0 : i32, i32, i32
  }
  func.func @transform_1(%arg0: i32) -> (i32, i32, i32) {
    %c0_i32 = arith.constant 0 : i32
    %c0_i32_0 = arith.constant 0 : i32
    %c0_i32_1 = arith.constant 0 : i32
    return %arg0, %c0_i32, %c0_i32_0 : i32, i32, i32
  }
  func.func @transform_2(%arg0: i32) -> (i32, i32) {
    %c0_i32 = arith.constant 0 : i32
    %c0_i32_0 = arith.constant 0 : i32
    %c0_i32_1 = arith.constant 0 : i32
    return %c0_i32, %c0_i32_0 : i32, i32
  }
  func.func @transform_3(%arg0: i32) -> (i32, i32) {
    %c0_i32 = arith.constant 0 : i32
    %c0_i32_0 = arith.constant 0 : i32
    %c0_i32_1 = arith.constant 0 : i32
    return %c0_i32, %c0_i32_0 : i32, i32
  }
  func.func @transform_4(%arg0: i32) -> (i32, i32, i32) {
    %c0_i32 = arith.constant 0 : i32
    %c0_i32_0 = arith.constant 0 : i32
    %c0_i32_1 = arith.constant 0 : i32
    %c0_i32_2 = arith.constant 0 : i32
    return %c0_i32, %c0_i32_0, %c0_i32_1 : i32, i32, i32
  }
  func.func @transform_5(%arg0: i32) -> (i32, i32, i32) {
    %c0_i32 = arith.constant 0 : i32
    %c0_i32_0 = arith.constant 0 : i32
    %c0_i32_1 = arith.constant 0 : i32
    return %arg0, %c0_i32, %c0_i32_0 : i32, i32, i32
  }
  func.func @transform_6(%arg0: i32) -> (i32, i32, i32) {
    %c0_i32 = arith.constant 0 : i32
    %c0_i32_0 = arith.constant 0 : i32
    %c0_i32_1 = arith.constant 0 : i32
    return %arg0, %c0_i32, %c0_i32_0 : i32, i32, i32
  }
  func.func @transform_7(%arg0: i32) -> (i32, i32, i32) {
    %c0_i32 = arith.constant 0 : i32
    %c0_i32_0 = arith.constant 0 : i32
    %c0_i32_1 = arith.constant 0 : i32
    return %arg0, %c0_i32, %c0_i32_0 : i32, i32, i32
  }
}

</mosaic_0001>

<llo_original>
// kernel: dense_block_forward.5
$region0: #{dense_block_forward.5}
  #allocation0 [shape = 'u32[]', space=smem, size = 0x4, offset = 0x4, fixed_abs, tag = 'smem constant byte address 0x4 - core index']
  #allocation1 [shape = 'u32[144,128]{1,0:T(1,128)}', space=vmem, size = 0x12000, scoped, tag = 'internal scratch']
  %s0 = inlined_call_operand.vmem [shape: f32[512,128], index: 0, kind: input, shape index: {}]
  %s1 = inlined_call_operand.vmem [shape: f32[1,1,128], index: 1, kind: output, shape index: {0}]
  %s2 = inlined_call_operand.vmem [shape: f32[1,1,128], index: 2, kind: output, shape index: {1}]
  %3 = xla_tuple %s1, %s2
  %s4 = sld [smem:[#allocation0]]
  $region22: #{dense_block_forward.5} parent=0
    _
  %s6 = ssub.s32 1, %s4
  %s7 = scalar_select 0, %s6, %s4
  // Predicated region
  $region2: #{dense_block_forward.5} parent=0 // pred_check
    _
  $region3: #{dense_block_forward.5} parent=0 // pred_check_branch
    %9 = sbr.rel (0) target = $region5
  $region4: #{dense_block_forward.5} parent=0 // pred_region
    _
  $region5: #{dense_block_forward.5} parent=0 // pred_fallthru
    _
  %v10 = vld [vmem:[%s0] sm:$0xff]
  %v11 = vld [vmem:[%s0 + $0x8] sm:$0xff]
  %v12 = vld [vmem:[%s0 + $0x10] sm:$0xff]
  %v13 = vld [vmem:[%s0 + $0x18] sm:$0xff]
  %v14 = vld [vmem:[%s0 + $0x20] sm:$0xff]
  %v15 = vld [vmem:[%s0 + $0x28] sm:$0xff]
  %v16 = vld [vmem:[%s0 + $0x30] sm:$0xff]
  %v17 = vld [vmem:[%s0 + $0x38] sm:$0xff]
  %v18 = vld [vmem:[%s0 + $0x40] sm:$0xff]
  %v19 = vld [vmem:[%s0 + $0x48] sm:$0xff]
  %v20 = vld [vmem:[%s0 + $0x50] sm:$0xff]
  %v21 = vld [vmem:[%s0 + $0x58] sm:$0xff]
  %v22 = vld [vmem:[%s0 + $0x60] sm:$0xff]
  %v23 = vld [vmem:[%s0 + $0x68] sm:$0xff]
  %v24 = vld [vmem:[%s0 + $0x70] sm:$0xff]
  %v25 = vld [vmem:[%s0 + $0x78] sm:$0xff]
  %v26 = vld [vmem:[%s0 + $0x80] sm:$0xff]
  %v27 = vld [vmem:[%s0 + $0x88] sm:$0xff]
  %v28 = vld [vmem:[%s0 + $0x90] sm:$0xff]
  %v29 = vld [vmem:[%s0 + $0x98] sm:$0xff]
  %v30 = vld [vmem:[%s0 + $0xa0] sm:$0xff]
  %v31 = vld [vmem:[%s0 + $0xa8] sm:$0xff]
  %v32 = vld [vmem:[%s0 + $0xb0] sm:$0xff]
  %v33 = vld [vmem:[%s0 + $0xb8] sm:$0xff]
  %v34 = vld [vmem:[%s0 + $0xc0] sm:$0xff]
  %v35 = vld [vmem:[%s0 + $0xc8] sm:$0xff]
  %v36 = vld [vmem:[%s0 + $0xd0] sm:$0xff]
  %v37 = vld [vmem:[%s0 + $0xd8] sm:$0xff]
  %v38 = vld [vmem:[%s0 + $0xe0] sm:$0xff]
  %v39 = vld [vmem:[%s0 + $0xe8] sm:$0xff]
  %v40 = vld [vmem:[%s0 + $0xf0] sm:$0xff]
  %v41 = vld [vmem:[%s0 + $0xf8] sm:$0xff]
  %v42 = vld [vmem:[%s0 + $0x100] sm:$0xff]
  %v43 = vld [vmem:[%s0 + $0x108] sm:$0xff]
  %v44 = vld [vmem:[%s0 + $0x110] sm:$0xff]
  %v45 = vld [vmem:[%s0 + $0x118] sm:$0xff]
  %v46 = vld [vmem:[%s0 + $0x120] sm:$0xff]
  %v47 = vld [vmem:[%s0 + $0x128] sm:$0xff]
  %v48 = vld [vmem:[%s0 + $0x130] sm:$0xff]
  %v49 = vld [vmem:[%s0 + $0x138] sm:$0xff]
  %v50 = vld [vmem:[%s0 + $0x140] sm:$0xff]
  %v51 = vld [vmem:[%s0 + $0x148] sm:$0xff]
  %v52 = vld [vmem:[%s0 + $0x150] sm:$0xff]
  %v53 = vld [vmem:[%s0 + $0x158] sm:$0xff]
  %v54 = vld [vmem:[%s0 + $0x160] sm:$0xff]
  %v55 = vld [vmem:[%s0 + $0x168] sm:$0xff]
  %v56 = vld [vmem:[%s0 + $0x170] sm:$0xff]
  %v57 = vld [vmem:[%s0 + $0x178] sm:$0xff]
  %v58 = vld [vmem:[%s0 + $0x180] sm:$0xff]
  %v59 = vld [vmem:[%s0 + $0x188] sm:$0xff]
  %v60 = vld [vmem:[%s0 + $0x190] sm:$0xff]
  %v61 = vld [vmem:[%s0 + $0x198] sm:$0xff]
  %v62 = vld [vmem:[%s0 + $0x1a0] sm:$0xff]
  %v63 = vld [vmem:[%s0 + $0x1a8] sm:$0xff]
  %v64 = vld [vmem:[%s0 + $0x1b0] sm:$0xff]
  %v65 = vld [vmem:[%s0 + $0x1b8] sm:$0xff]
  %v66 = vld [vmem:[%s0 + $0x1c0] sm:$0xff]
  %v67 = vld [vmem:[%s0 + $0x1c8] sm:$0xff]
  %v68 = vld [vmem:[%s0 + $0x1d0] sm:$0xff]
  %v69 = vld [vmem:[%s0 + $0x1d8] sm:$0xff]
  %v70 = vld [vmem:[%s0 + $0x1e0] sm:$0xff]
  %v71 = vld [vmem:[%s0 + $0x1e8] sm:$0xff]
  %v72 = vld [vmem:[%s0 + $0x1f0] sm:$0xff]
  %v73 = vld [vmem:[%s0 + $0x1f8] sm:$0xff]
  %v74 = vadd.f32 %v10, %v11
  %v75 = vadd.f32 %v74, %v12
  %v76 = vadd.f32 %v75, %v13
  %v77 = vadd.f32 %v76, %v14
  %v78 = vadd.f32 %v77, %v15
  %v79 = vadd.f32 %v78, %v16
  %v80 = vadd.f32 %v79, %v17
  %v81 = vadd.f32 %v80, %v18
  %v82 = vadd.f32 %v81, %v19
  %v83 = vadd.f32 %v82, %v20
  %v84 = vadd.f32 %v83, %v21
  %v85 = vadd.f32 %v84, %v22
  %v86 = vadd.f32 %v85, %v23
  %v87 = vadd.f32 %v86, %v24
  %v88 = vadd.f32 %v87, %v25
  %v89 = vadd.f32 %v88, %v26
  %v90 = vadd.f32 %v89, %v27
  %v91 = vadd.f32 %v90, %v28
  %v92 = vadd.f32 %v91, %v29
  %v93 = vadd.f32 %v92, %v30
  %v94 = vadd.f32 %v93, %v31
  %v95 = vadd.f32 %v94, %v32
  %v96 = vadd.f32 %v95, %v33
  %v97 = vadd.f32 %v96, %v34
  %v98 = vadd.f32 %v97, %v35
  %v99 = vadd.f32 %v98, %v36
  %v100 = vadd.f32 %v99, %v37
  %v101 = vadd.f32 %v100, %v38
  %v102 = vadd.f32 %v101, %v39
  %v103 = vadd.f32 %v102, %v40
  %v104 = vadd.f32 %v103, %v41
  %v105 = vadd.f32 %v104, %v42
  %v106 = vadd.f32 %v105, %v43
  %v107 = vadd.f32 %v106, %v44
  %v108 = vadd.f32 %v107, %v45
  %v109 = vadd.f32 %v108, %v46
  %v110 = vadd.f32 %v109, %v47
  %v111 = vadd.f32 %v110, %v48
  %v112 = vadd.f32 %v111, %v49
  %v113 = vadd.f32 %v112, %v50
  %v114 = vadd.f32 %v113, %v51
  %v115 = vadd.f32 %v114, %v52
  %v116 = vadd.f32 %v115, %v53
  %v117 = vadd.f32 %v116, %v54
  %v118 = vadd.f32 %v117, %v55
  %v119 = vadd.f32 %v118, %v56
  %v120 = vadd.f32 %v119, %v57
  %v121 = vadd.f32 %v120, %v58
  %v122 = vadd.f32 %v121, %v59
  %v123 = vadd.f32 %v122, %v60
  %v124 = vadd.f32 %v123, %v61
  %v125 = vadd.f32 %v124, %v62
  %v126 = vadd.f32 %v125, %v63
  %v127 = vadd.f32 %v126, %v64
  %v128 = vadd.f32 %v127, %v65
  %v129 = vadd.f32 %v128, %v66
  %v130 = vadd.f32 %v129, %v67
  %v131 = vadd.f32 %v130, %v68
  %v132 = vadd.f32 %v131, %v69
  %v133 = vadd.f32 %v132, %v70
  %v134 = vadd.f32 %v133, %v71
  %v135 = vadd.f32 %v134, %v72
  %v136 = vadd.f32 %v135, %v73
  %v137 = vrot.slane %v136, 4
  %v138 = vadd.f32 %v136, %v137
  %v139 = vrot.slane %v138, 2
  %v140 = vadd.f32 %v138, %v139
  %v141 = vrot.slane %v140, 1
  %v142 = vadd.f32 %v140, %v141
  %143 = vst [vmem:[%s1] sm:$0x1] %v142
  %v144 = vmul.f32 %v10, %v10
  %v145 = vmul.f32 %v11, %v11
  %v146 = vmul.f32 %v12, %v12
  %v147 = vmul.f32 %v13, %v13
  %v148 = vmul.f32 %v14, %v14
  %v149 = vmul.f32 %v15, %v15
  %v150 = vmul.f32 %v16, %v16
  %v151 = vmul.f32 %v17, %v17
  %v152 = vmul.f32 %v18, %v18
  %v153 = vmul.f32 %v19, %v19
  %v154 = vmul.f32 %v20, %v20
  %v155 = vmul.f32 %v21, %v21
  %v156 = vmul.f32 %v22, %v22
  %v157 = vmul.f32 %v23, %v23
  %v158 = vmul.f32 %v24, %v24
  %v159 = vmul.f32 %v25, %v25
  %v160 = vmul.f32 %v26, %v26
  %v161 = vmul.f32 %v27, %v27
  %v162 = vmul.f32 %v28, %v28
  %v163 = vmul.f32 %v29, %v29
  %v164 = vmul.f32 %v30, %v30
  %v165 = vmul.f32 %v31, %v31
  %v166 = vmul.f32 %v32, %v32
  %v167 = vmul.f32 %v33, %v33
  %v168 = vmul.f32 %v34, %v34
  %v169 = vmul.f32 %v35, %v35
  %v170 = vmul.f32 %v36, %v36
  %v171 = vmul.f32 %v37, %v37
  %v172 = vmul.f32 %v38, %v38
  %v173 = vmul.f32 %v39, %v39
  %v174 = vmul.f32 %v40, %v40
  %v175 = vmul.f32 %v41, %v41
  %v176 = vmul.f32 %v42, %v42
  %v177 = vmul.f32 %v43, %v43
  %v178 = vmul.f32 %v44, %v44
  %v179 = vmul.f32 %v45, %v45
  %v180 = vmul.f32 %v46, %v46
  %v181 = vmul.f32 %v47, %v47
  %v182 = vmul.f32 %v48, %v48
  %v183 = vmul.f32 %v49, %v49
  %v184 = vmul.f32 %v50, %v50
  %v185 = vmul.f32 %v51, %v51
  %v186 = vmul.f32 %v52, %v52
  %v187 = vmul.f32 %v53, %v53
  %v188 = vmul.f32 %v54, %v54
  %v189 = vmul.f32 %v55, %v55
  %v190 = vmul.f32 %v56, %v56
  %v191 = vmul.f32 %v57, %v57
  %v192 = vmul.f32 %v58, %v58
  %v193 = vmul.f32 %v59, %v59
  %v194 = vmul.f32 %v60, %v60
  %v195 = vmul.f32 %v61, %v61
  %v196 = vmul.f32 %v62, %v62
  %v197 = vmul.f32 %v63, %v63
  %v198 = vmul.f32 %v64, %v64
  %v199 = vmul.f32 %v65, %v65
  %v200 = vmul.f32 %v66, %v66
  %v201 = vmul.f32 %v67, %v67
  %v202 = vmul.f32 %v68, %v68
  %v203 = vmul.f32 %v69, %v69
  %v204 = vmul.f32 %v70, %v70
  %v205 = vmul.f32 %v71, %v71
  %v206 = vmul.f32 %v72, %v72
  %v207 = vmul.f32 %v73, %v73
  %v208 = vadd.f32 %v144, %v145
  %v209 = vadd.f32 %v208, %v146
  %v210 = vadd.f32 %v209, %v147
  %v211 = vadd.f32 %v210, %v148
  %v212 = vadd.f32 %v211, %v149
  %v213 = vadd.f32 %v212, %v150
  %v214 = vadd.f32 %v213, %v151
  %v215 = vadd.f32 %v214, %v152
  %v216 = vadd.f32 %v215, %v153
  %v217 = vadd.f32 %v216, %v154
  %v218 = vadd.f32 %v217, %v155
  %v219 = vadd.f32 %v218, %v156
  %v220 = vadd.f32 %v219, %v157
  %v221 = vadd.f32 %v220, %v158
  %v222 = vadd.f32 %v221, %v159
  %v223 = vadd.f32 %v222, %v160
  %v224 = vadd.f32 %v223, %v161
  %v225 = vadd.f32 %v224, %v162
  %v226 = vadd.f32 %v225, %v163
  %v227 = vadd.f32 %v226, %v164
  %v228 = vadd.f32 %v227, %v165
  %v229 = vadd.f32 %v228, %v166
  %v230 = vadd.f32 %v229, %v167
  %v231 = vadd.f32 %v230, %v168
  %v232 = vadd.f32 %v231, %v169
  %v233 = vadd.f32 %v232, %v170
  %v234 = vadd.f32 %v233, %v171
  %v235 = vadd.f32 %v234, %v172
  %v236 = vadd.f32 %v235, %v173
  %v237 = vadd.f32 %v236, %v174
  %v238 = vadd.f32 %v237, %v175
  %v239 = vadd.f32 %v238, %v176
  %v240 = vadd.f32 %v239, %v177
  %v241 = vadd.f32 %v240, %v178
  %v242 = vadd.f32 %v241, %v179
  %v243 = vadd.f32 %v242, %v180
  %v244 = vadd.f32 %v243, %v181
  %v245 = vadd.f32 %v244, %v182
  %v246 = vadd.f32 %v245, %v183
  %v247 = vadd.f32 %v246, %v184
  %v248 = vadd.f32 %v247, %v185
  %v249 = vadd.f32 %v248, %v186
  %v250 = vadd.f32 %v249, %v187
  %v251 = vadd.f32 %v250, %v188
  %v252 = vadd.f32 %v251, %v189
  %v253 = vadd.f32 %v252, %v190
  %v254 = vadd.f32 %v253, %v191
  %v255 = vadd.f32 %v254, %v192
  %v256 = vadd.f32 %v255, %v193
  %v257 = vadd.f32 %v256, %v194
  %v258 = vadd.f32 %v257, %v195
  %v259 = vadd.f32 %v258, %v196
  %v260 = vadd.f32 %v259, %v197
  %v261 = vadd.f32 %v260, %v198
  %v262 = vadd.f32 %v261, %v199
  %v263 = vadd.f32 %v262, %v200
  %v264 = vadd.f32 %v263, %v201
  %v265 = vadd.f32 %v264, %v202
  %v266 = vadd.f32 %v265, %v203
  %v267 = vadd.f32 %v266, %v204
  %v268 = vadd.f32 %v267, %v205
  %v269 = vadd.f32 %v268, %v206
  %v270 = vadd.f32 %v269, %v207
  %v271 = vrot.slane %v270, 4
  %v272 = vadd.f32 %v270, %v271
  %v273 = vrot.slane %v272, 2
  %v274 = vadd.f32 %v272, %v273
  %v275 = vrot.slane %v274, 1
  %v276 = vadd.f32 %v274, %v275
  %277 = vst [vmem:[%s2] sm:$0x1] %v276
  // Predicated region
  $region6: #{dense_block_forward.5} parent=0 // pred_check
    _
  $region7: #{dense_block_forward.5} parent=0 // pred_check_branch
    %279 = sbr.rel (0) target = $region9
  $region8: #{dense_block_forward.5} parent=0 // pred_region
    _
  $region9: #{dense_block_forward.5} parent=0 // pred_fallthru
    _
  // Predicated region
  $region10: #{dense_block_forward.5} parent=0 // pred_check
    _
  $region11: #{dense_block_forward.5} parent=0 // pred_check_branch
    %281 = sbr.rel (0) target = $region13
  $region12: #{dense_block_forward.5} parent=0 // pred_region
    _
  $region13: #{dense_block_forward.5} parent=0 // pred_fallthru
    _
  // Predicated region
  $region14: #{dense_block_forward.5} parent=0 // pred_check
    _
  $region15: #{dense_block_forward.5} parent=0 // pred_check_branch
    %283 = sbr.rel (0) target = $region17
  $region16: #{dense_block_forward.5} parent=0 // pred_region
    _
  $region17: #{dense_block_forward.5} parent=0 // pred_fallthru
    _
  // Predicated region
  $region18: #{dense_block_forward.5} parent=0 // pred_check
    _
  $region19: #{dense_block_forward.5} parent=0 // pred_check_branch
    %285 = sbr.rel (0) target = $region21
  $region20: #{dense_block_forward.5} parent=0 // pred_region
    _
  $region21: #{dense_block_forward.5} parent=0 // pred_fallthru
    _

// kernel: dense_block_forward.6
$region0: #{dense_block_forward.6}
  #allocation0 [shape = 'u32[]', space=smem, size = 0x4, offset = 0x4, fixed_abs, tag = 'smem constant byte address 0x4 - core index']
  #allocation1 [shape = 'u32[144,128]{1,0:T(1,128)}', space=vmem, size = 0x12000, scoped, tag = 'internal scratch']
  %s0 = inlined_call_operand.vmem [shape: f32[512,128], index: 0, kind: input, shape index: {}]
  %s1 = inlined_call_operand.vmem [shape: f32[1,128], index: 1, kind: input, shape index: {}]
  %s2 = inlined_call_operand.vmem [shape: f32[1,128], index: 2, kind: input, shape index: {}]
  %s3 = inlined_call_operand.vmem [shape: bf16[128,128], index: 3, kind: input, shape index: {}]
  %s4 = inlined_call_operand.vmem [shape: f32[512,128], index: 4, kind: output, shape index: {0}]
  %s5 = inlined_call_operand.vmem [shape: f32[1,1,128], index: 5, kind: output, shape index: {1}]
  %s6 = inlined_call_operand.vmem [shape: f32[1,1,128], index: 6, kind: output, shape index: {2}]
  %7 = xla_tuple %s4, %s5, %s6
  %s8 = sld [smem:[#allocation0]]
  $region42: #{dense_block_forward.6} parent=0
    _
  %s10 = ssub.s32 1, %s8
  %s11 = scalar_select 0, %s10, %s8
  // Predicated region
  $region2: #{dense_block_forward.6} parent=0 // pred_check
    _
  $region3: #{dense_block_forward.6} parent=0 // pred_check_branch
    %13 = sbr.rel (0) target = $region5
  $region4: #{dense_block_forward.6} parent=0 // pred_region
    _
  $region5: #{dense_block_forward.6} parent=0 // pred_fallthru
    _
  // Predicated region
  $region6: #{dense_block_forward.6} parent=0 // pred_check
    _
  $region7: #{dense_block_forward.6} parent=0 // pred_check_branch
    %15 = sbr.rel (0) target = $region9
  $region8: #{dense_block_forward.6} parent=0 // pred_region
    _
  $region9: #{dense_block_forward.6} parent=0 // pred_fallthru
    _
  // Predicated region
  $region10: #{dense_block_forward.6} parent=0 // pred_check
    _
  $region11: #{dense_block_forward.6} parent=0 // pred_check_branch
    %17 = sbr.rel (0) target = $region13
  $region12: #{dense_block_forward.6} parent=0 // pred_region
    _
  $region13: #{dense_block_forward.6} parent=0 // pred_fallthru
    _
  // Predicated region
  $region14: #{dense_block_forward.6} parent=0 // pred_check
    _
  $region15: #{dense_block_forward.6} parent=0 // pred_check_branch
    %19 = sbr.rel (0) target = $region17
  $region16: #{dense_block_forward.6} parent=0 // pred_region
    _
  $region17: #{dense_block_forward.6} parent=0 // pred_fallthru
    _
  %v21 = vld [vmem:[%s0] sm:$0xff]
  %v22 = vld [vmem:[%s0 + $0x8] sm:$0xff]
  %v23 = vld [vmem:[%s0 + $0x10] sm:$0xff]
  %v24 = vld [vmem:[%s0 + $0x18] sm:$0xff]
  %v25 = vld [vmem:[%s0 + $0x20] sm:$0xff]
  %v26 = vld [vmem:[%s0 + $0x28] sm:$0xff]
  %v27 = vld [vmem:[%s0 + $0x30] sm:$0xff]
  %v28 = vld [vmem:[%s0 + $0x38] sm:$0xff]
  %v29 = vld [vmem:[%s0 + $0x40] sm:$0xff]
  %v30 = vld [vmem:[%s0 + $0x48] sm:$0xff]
  %v31 = vld [vmem:[%s0 + $0x50] sm:$0xff]
  %v32 = vld [vmem:[%s0 + $0x58] sm:$0xff]
  %v33 = vld [vmem:[%s0 + $0x60] sm:$0xff]
  %v34 = vld [vmem:[%s0 + $0x68] sm:$0xff]
  %v35 = vld [vmem:[%s0 + $0x70] sm:$0xff]
  %v36 = vld [vmem:[%s0 + $0x78] sm:$0xff]
  %v37 = vld [vmem:[%s0 + $0x80] sm:$0xff]
  %v38 = vld [vmem:[%s0 + $0x88] sm:$0xff]
  %v39 = vld [vmem:[%s0 + $0x90] sm:$0xff]
  %v40 = vld [vmem:[%s0 + $0x98] sm:$0xff]
  %v41 = vld [vmem:[%s0 + $0xa0] sm:$0xff]
  %v42 = vld [vmem:[%s0 + $0xa8] sm:$0xff]
  %v43 = vld [vmem:[%s0 + $0xb0] sm:$0xff]
  %v44 = vld [vmem:[%s0 + $0xb8] sm:$0xff]
  %v45 = vld [vmem:[%s0 + $0xc0] sm:$0xff]
  %v46 = vld [vmem:[%s0 + $0xc8] sm:$0xff]
  %v47 = vld [vmem:[%s0 + $0xd0] sm:$0xff]
  %v48 = vld [vmem:[%s0 + $0xd8] sm:$0xff]
  %v49 = vld [vmem:[%s0 + $0xe0] sm:$0xff]
  %v50 = vld [vmem:[%s0 + $0xe8] sm:$0xff]
  %v51 = vld [vmem:[%s0 + $0xf0] sm:$0xff]
  %v52 = vld [vmem:[%s0 + $0xf8] sm:$0xff]
  %v53 = vld [vmem:[%s0 + $0x100] sm:$0xff]
  %v54 = vld [vmem:[%s0 + $0x108] sm:$0xff]
  %v55 = vld [vmem:[%s0 + $0x110] sm:$0xff]
  %v56 = vld [vmem:[%s0 + $0x118] sm:$0xff]
  %v57 = vld [vmem:[%s0 + $0x120] sm:$0xff]
  %v58 = vld [vmem:[%s0 + $0x128] sm:$0xff]
  %v59 = vld [vmem:[%s0 + $0x130] sm:$0xff]
  %v60 = vld [vmem:[%s0 + $0x138] sm:$0xff]
  %v61 = vld [vmem:[%s0 + $0x140] sm:$0xff]
  %v62 = vld [vmem:[%s0 + $0x148] sm:$0xff]
  %v63 = vld [vmem:[%s0 + $0x150] sm:$0xff]
  %v64 = vld [vmem:[%s0 + $0x158] sm:$0xff]
  %v65 = vld [vmem:[%s0 + $0x160] sm:$0xff]
  %v66 = vld [vmem:[%s0 + $0x168] sm:$0xff]
  %v67 = vld [vmem:[%s0 + $0x170] sm:$0xff]
  %v68 = vld [vmem:[%s0 + $0x178] sm:$0xff]
  %v69 = vld [vmem:[%s0 + $0x180] sm:$0xff]
  %v70 = vld [vmem:[%s0 + $0x188] sm:$0xff]
  %v71 = vld [vmem:[%s0 + $0x190] sm:$0xff]
  %v72 = vld [vmem:[%s0 + $0x198] sm:$0xff]
  %v73 = vld [vmem:[%s0 + $0x1a0] sm:$0xff]
  %v74 = vld [vmem:[%s0 + $0x1a8] sm:$0xff]
  %v75 = vld [vmem:[%s0 + $0x1b0] sm:$0xff]
  %v76 = vld [vmem:[%s0 + $0x1b8] sm:$0xff]
  %v77 = vld [vmem:[%s0 + $0x1c0] sm:$0xff]
  %v78 = vld [vmem:[%s0 + $0x1c8] sm:$0xff]
  %v79 = vld [vmem:[%s0 + $0x1d0] sm:$0xff]
  %v80 = vld [vmem:[%s0 + $0x1d8] sm:$0xff]
  %v81 = vld [vmem:[%s0 + $0x1e0] sm:$0xff]
  %v82 = vld [vmem:[%s0 + $0x1e8] sm:$0xff]
  %v83 = vld [vmem:[%s0 + $0x1f0] sm:$0xff]
  %v84 = vld [vmem:[%s0 + $0x1f8] sm:$0xff]
  %v85 = vld [vmem:[%s1] sm:$0x1]
  %v87 = vlaneseq
  %v88 = vshrl.u32 %v87, 7
  %v89 = vsub.s32 0, %v88
  %v90 = vrot.slane %v85, %v89
  %v92 = vmul.f32 %v21, %v90
  %v93 = vmul.f32 %v22, %v90
  %v94 = vmul.f32 %v23, %v90
  %v95 = vmul.f32 %v24, %v90
  %v96 = vmul.f32 %v25, %v90
  %v97 = vmul.f32 %v26, %v90
  %v98 = vmul.f32 %v27, %v90
  %v99 = vmul.f32 %v28, %v90
  %v100 = vmul.f32 %v29, %v90
  %v101 = vmul.f32 %v30, %v90
  %v102 = vmul.f32 %v31, %v90
  %v103 = vmul.f32 %v32, %v90
  %v104 = vmul.f32 %v33, %v90
  %v105 = vmul.f32 %v34, %v90
  %v106 = vmul.f32 %v35, %v90
  %v107 = vmul.f32 %v36, %v90
  %v108 = vmul.f32 %v37, %v90
  %v109 = vmul.f32 %v38, %v90
  %v110 = vmul.f32 %v39, %v90
  %v111 = vmul.f32 %v40, %v90
  %v112 = vmul.f32 %v41, %v90
  %v113 = vmul.f32 %v42, %v90
  %v114 = vmul.f32 %v43, %v90
  %v115 = vmul.f32 %v44, %v90
  %v116 = vmul.f32 %v45, %v90
  %v117 = vmul.f32 %v46, %v90
  %v118 = vmul.f32 %v47, %v90
  %v119 = vmul.f32 %v48, %v90
  %v120 = vmul.f32 %v49, %v90
  %v121 = vmul.f32 %v50, %v90
  %v122 = vmul.f32 %v51, %v90
  %v123 = vmul.f32 %v52, %v90
  %v124 = vmul.f32 %v53, %v90
  %v125 = vmul.f32 %v54, %v90
  %v126 = vmul.f32 %v55, %v90
  %v127 = vmul.f32 %v56, %v90
  %v128 = vmul.f32 %v57, %v90
  %v129 = vmul.f32 %v58, %v90
  %v130 = vmul.f32 %v59, %v90
  %v131 = vmul.f32 %v60, %v90
  %v132 = vmul.f32 %v61, %v90
  %v133 = vmul.f32 %v62, %v90
  %v134 = vmul.f32 %v63, %v90
  %v135 = vmul.f32 %v64, %v90
  %v136 = vmul.f32 %v65, %v90
  %v137 = vmul.f32 %v66, %v90
  %v138 = vmul.f32 %v67, %v90
  %v139 = vmul.f32 %v68, %v90
  %v140 = vmul.f32 %v69, %v90
  %v141 = vmul.f32 %v70, %v90
  %v142 = vmul.f32 %v71, %v90
  %v143 = vmul.f32 %v72, %v90
  %v144 = vmul.f32 %v73, %v90
  %v145 = vmul.f32 %v74, %v90
  %v146 = vmul.f32 %v75, %v90
  %v147 = vmul.f32 %v76, %v90
  %v148 = vmul.f32 %v77, %v90
  %v149 = vmul.f32 %v78, %v90
  %v150 = vmul.f32 %v79, %v90
  %v151 = vmul.f32 %v80, %v90
  %v152 = vmul.f32 %v81, %v90
  %v153 = vmul.f32 %v82, %v90
  %v154 = vmul.f32 %v83, %v90
  %v155 = vmul.f32 %v84, %v90
  %v156 = vld [vmem:[%s2] sm:$0x1]
  %v158 = vlaneseq
  %v159 = vshrl.u32 %v158, 7
  %v160 = vsub.s32 0, %v159
  %v161 = vrot.slane %v156, %v160
  %v163 = vadd.f32 %v92, %v161
  %v164 = vadd.f32 %v93, %v161
  %v165 = vadd.f32 %v94, %v161
  %v166 = vadd.f32 %v95, %v161
  %v167 = vadd.f32 %v96, %v161
  %v168 = vadd.f32 %v97, %v161
  %v169 = vadd.f32 %v98, %v161
  %v170 = vadd.f32 %v99, %v161
  %v171 = vadd.f32 %v100, %v161
  %v172 = vadd.f32 %v101, %v161
  %v173 = vadd.f32 %v102, %v161
  %v174 = vadd.f32 %v103, %v161
  %v175 = vadd.f32 %v104, %v161
  %v176 = vadd.f32 %v105, %v161
  %v177 = vadd.f32 %v106, %v161
  %v178 = vadd.f32 %v107, %v161
  %v179 = vadd.f32 %v108, %v161
  %v180 = vadd.f32 %v109, %v161
  %v181 = vadd.f32 %v110, %v161
  %v182 = vadd.f32 %v111, %v161
  %v183 = vadd.f32 %v112, %v161
  %v184 = vadd.f32 %v113, %v161
  %v185 = vadd.f32 %v114, %v161
  %v186 = vadd.f32 %v115, %v161
  %v187 = vadd.f32 %v116, %v161
  %v188 = vadd.f32 %v117, %v161
  %v189 = vadd.f32 %v118, %v161
  %v190 = vadd.f32 %v119, %v161
  %v191 = vadd.f32 %v120, %v161
  %v192 = vadd.f32 %v121, %v161
  %v193 = vadd.f32 %v122, %v161
  %v194 = vadd.f32 %v123, %v161
  %v195 = vadd.f32 %v124, %v161
  %v196 = vadd.f32 %v125, %v161
  %v197 = vadd.f32 %v126, %v161
  %v198 = vadd.f32 %v127, %v161
  %v199 = vadd.f32 %v128, %v161
  %v200 = vadd.f32 %v129, %v161
  %v201 = vadd.f32 %v130, %v161
  %v202 = vadd.f32 %v131, %v161
  %v203 = vadd.f32 %v132, %v161
  %v204 = vadd.f32 %v133, %v161
  %v205 = vadd.f32 %v134, %v161
  %v206 = vadd.f32 %v135, %v161
  %v207 = vadd.f32 %v136, %v161
  %v208 = vadd.f32 %v137, %v161
  %v209 = vadd.f32 %v138, %v161
  %v210 = vadd.f32 %v139, %v161
  %v211 = vadd.f32 %v140, %v161
  %v212 = vadd.f32 %v141, %v161
  %v213 = vadd.f32 %v142, %v161
  %v214 = vadd.f32 %v143, %v161
  %v215 = vadd.f32 %v144, %v161
  %v216 = vadd.f32 %v145, %v161
  %v217 = vadd.f32 %v146, %v161
  %v218 = vadd.f32 %v147, %v161
  %v219 = vadd.f32 %v148, %v161
  %v220 = vadd.f32 %v149, %v161
  %v221 = vadd.f32 %v150, %v161
  %v222 = vadd.f32 %v151, %v161
  %v223 = vadd.f32 %v152, %v161
  %v224 = vadd.f32 %v153, %v161
  %v225 = vadd.f32 %v154, %v161
  %v226 = vadd.f32 %v155, %v161
  %v227 = vmax.f32 %v163, 0.0
  %v228 = vmax.f32 %v164, 0.0
  %v229 = vmax.f32 %v165, 0.0
  %v230 = vmax.f32 %v166, 0.0
  %v231 = vmax.f32 %v167, 0.0
  %v232 = vmax.f32 %v168, 0.0
  %v233 = vmax.f32 %v169, 0.0
  %v234 = vmax.f32 %v170, 0.0
  %v235 = vmax.f32 %v171, 0.0
  %v236 = vmax.f32 %v172, 0.0
  %v237 = vmax.f32 %v173, 0.0
  %v238 = vmax.f32 %v174, 0.0
  %v239 = vmax.f32 %v175, 0.0
  %v240 = vmax.f32 %v176, 0.0
  %v241 = vmax.f32 %v177, 0.0
  %v242 = vmax.f32 %v178, 0.0
  %v243 = vmax.f32 %v179, 0.0
  %v244 = vmax.f32 %v180, 0.0
  %v245 = vmax.f32 %v181, 0.0
  %v246 = vmax.f32 %v182, 0.0
  %v247 = vmax.f32 %v183, 0.0
  %v248 = vmax.f32 %v184, 0.0
  %v249 = vmax.f32 %v185, 0.0
  %v250 = vmax.f32 %v186, 0.0
  %v251 = vmax.f32 %v187, 0.0
  %v252 = vmax.f32 %v188, 0.0
  %v253 = vmax.f32 %v189, 0.0
  %v254 = vmax.f32 %v190, 0.0
  %v255 = vmax.f32 %v191, 0.0
  %v256 = vmax.f32 %v192, 0.0
  %v257 = vmax.f32 %v193, 0.0
  %v258 = vmax.f32 %v194, 0.0
  %v259 = vmax.f32 %v195, 0.0
  %v260 = vmax.f32 %v196, 0.0
  %v261 = vmax.f32 %v197, 0.0
  %v262 = vmax.f32 %v198, 0.0
  %v263 = vmax.f32 %v199, 0.0
  %v264 = vmax.f32 %v200, 0.0
  %v265 = vmax.f32 %v201, 0.0
  %v266 = vmax.f32 %v202, 0.0
  %v267 = vmax.f32 %v203, 0.0
  %v268 = vmax.f32 %v204, 0.0
  %v269 = vmax.f32 %v205, 0.0
  %v270 = vmax.f32 %v206, 0.0
  %v271 = vmax.f32 %v207, 0.0
  %v272 = vmax.f32 %v208, 0.0
  %v273 = vmax.f32 %v209, 0.0
  %v274 = vmax.f32 %v210, 0.0
  %v275 = vmax.f32 %v211, 0.0
  %v276 = vmax.f32 %v212, 0.0
  %v277 = vmax.f32 %v213, 0.0
  %v278 = vmax.f32 %v214, 0.0
  %v279 = vmax.f32 %v215, 0.0
  %v280 = vmax.f32 %v216, 0.0
  %v281 = vmax.f32 %v217, 0.0
  %v282 = vmax.f32 %v218, 0.0
  %v283 = vmax.f32 %v219, 0.0
  %v284 = vmax.f32 %v220, 0.0
  %v285 = vmax.f32 %v221, 0.0
  %v286 = vmax.f32 %v222, 0.0
  %v287 = vmax.f32 %v223, 0.0
  %v288 = vmax.f32 %v224, 0.0
  %v289 = vmax.f32 %v225, 0.0
  %v290 = vmax.f32 %v226, 0.0
  %v291 = vpack.c.bf16 %v228, %v227
  %v292 = vpack.c.bf16 %v230, %v229
  %v293 = vpack.c.bf16 %v232, %v231
  %v294 = vpack.c.bf16 %v234, %v233
  %v295 = vpack.c.bf16 %v236, %v235
  %v296 = vpack.c.bf16 %v238, %v237
  %v297 = vpack.c.bf16 %v240, %v239
  %v298 = vpack.c.bf16 %v242, %v241
  %v299 = vpack.c.bf16 %v244, %v243
  %v300 = vpack.c.bf16 %v246, %v245
  %v301 = vpack.c.bf16 %v248, %v247
  %v302 = vpack.c.bf16 %v250, %v249
  %v303 = vpack.c.bf16 %v252, %v251
  %v304 = vpack.c.bf16 %v254, %v253
  %v305 = vpack.c.bf16 %v256, %v255
  %v306 = vpack.c.bf16 %v258, %v257
  %v307 = vpack.c.bf16 %v260, %v259
  %v308 = vpack.c.bf16 %v262, %v261
  %v309 = vpack.c.bf16 %v264, %v263
  %v310 = vpack.c.bf16 %v266, %v265
  %v311 = vpack.c.bf16 %v268, %v267
  %v312 = vpack.c.bf16 %v270, %v269
  %v313 = vpack.c.bf16 %v272, %v271
  %v314 = vpack.c.bf16 %v274, %v273
  %v315 = vpack.c.bf16 %v276, %v275
  %v316 = vpack.c.bf16 %v278, %v277
  %v317 = vpack.c.bf16 %v280, %v279
  %v318 = vpack.c.bf16 %v282, %v281
  %v319 = vpack.c.bf16 %v284, %v283
  %v320 = vpack.c.bf16 %v286, %v285
  %v321 = vpack.c.bf16 %v288, %v287
  %v322 = vpack.c.bf16 %v290, %v289
  %v323 = vld [vmem:[%s3] sm:$0xf]
  %v324 = vld [vmem:[%s3 + $0x4] sm:$0xf]
  %v325 = vld [vmem:[%s3 + $0x8] sm:$0xf]
  %v326 = vld [vmem:[%s3 + $0xc] sm:$0xf]
  %v327 = vld [vmem:[%s3 + $0x10] sm:$0xf]
  %v328 = vld [vmem:[%s3 + $0x14] sm:$0xf]
  %v329 = vld [vmem:[%s3 + $0x18] sm:$0xf]
  %v330 = vld [vmem:[%s3 + $0x1c] sm:$0xf]
  %v331 = vld [vmem:[%s3 + $0x20] sm:$0xf]
  %v332 = vld [vmem:[%s3 + $0x24] sm:$0xf]
  %v333 = vld [vmem:[%s3 + $0x28] sm:$0xf]
  %v334 = vld [vmem:[%s3 + $0x2c] sm:$0xf]
  %v335 = vld [vmem:[%s3 + $0x30] sm:$0xf]
  %v336 = vld [vmem:[%s3 + $0x34] sm:$0xf]
  %v337 = vld [vmem:[%s3 + $0x38] sm:$0xf]
  %v338 = vld [vmem:[%s3 + $0x3c] sm:$0xf]
  %v355 = vunpack.c.l.b16 %v323
  %v356 = vunpack.c.l.b16 %v324
  %v357 = vunpack.c.l.b16 %v325
  %v358 = vunpack.c.l.b16 %v326
  %v359 = vunpack.c.l.b16 %v327
  %v360 = vunpack.c.l.b16 %v328
  %v361 = vunpack.c.l.b16 %v329
  %v362 = vunpack.c.l.b16 %v330
  %v363 = vunpack.c.l.b16 %v331
  %v364 = vunpack.c.l.b16 %v332
  %v365 = vunpack.c.l.b16 %v333
  %v366 = vunpack.c.l.b16 %v334
  %v367 = vunpack.c.l.b16 %v335
  %v368 = vunpack.c.l.b16 %v336
  %v369 = vunpack.c.l.b16 %v337
  %v370 = vunpack.c.l.b16 %v338
  %v371 = vpack.c.b16 %v356, %v355
  %v372 = vpack.c.b16 %v358, %v357
  %v373 = vpack.c.b16 %v360, %v359
  %v374 = vpack.c.b16 %v362, %v361
  %v375 = vpack.c.b16 %v364, %v363
  %v376 = vpack.c.b16 %v366, %v365
  %v377 = vpack.c.b16 %v368, %v367
  %v378 = vpack.c.b16 %v370, %v369
  %387 = vmatprep.subr.bf16.mxu0 0
  %388 = vmatpush1.bf16.msra.mxu0 %v371
  %389 = vmatprep.subr.bf16.mxu0 0
  %390 = vmatpush1.bf16.msra.mxu0 %v372
  %391 = vmatprep.subr.bf16.mxu0 0
  %392 = vmatpush1.bf16.msra.mxu0 %v373
  %393 = vmatprep.subr.bf16.mxu0 0
  %394 = vmatpush1.bf16.msra.mxu0 %v374
  %395 = vmatprep.subr.bf16.mxu0 0
  %396 = vmatpush1.bf16.msra.mxu0 %v375
  %397 = vmatprep.subr.bf16.mxu0 0
  %398 = vmatpush1.bf16.msra.mxu0 %v376
  %399 = vmatprep.subr.bf16.mxu0 0
  %400 = vmatpush1.bf16.msra.mxu0 %v377
  %401 = vmatprep.subr.bf16.mxu0 0
  %402 = vmatpush1.bf16.msra.mxu0 %v378
  %403 = vmatprep.subr.bf16.mxu0 0
  %404 = vmatpush1.bf16.msra.mxu0 0
  %405 = vmatprep.subr.bf16.mxu0 0
  %406 = vmatpush1.bf16.msra.mxu0 0
  %407 = vmatprep.subr.bf16.mxu0 0
  %408 = vmatpush1.bf16.msra.mxu0 0
  %409 = vmatprep.subr.bf16.mxu0 0
  %410 = vmatpush1.bf16.msra.mxu0 0
  %411 = vmatprep.subr.bf16.mxu0 0
  %412 = vmatpush1.bf16.msra.mxu0 0
  %413 = vmatprep.subr.bf16.mxu0 0
  %414 = vmatpush1.bf16.msra.mxu0 0
  %415 = vmatprep.subr.bf16.mxu0 0
  %416 = vmatpush1.bf16.msra.mxu0 0
  %417 = vmatprep.subr.bf16.mxu0 0
  %418 = vmatpush1.bf16.msra.mxu0 0
  %419 = vmatprep.mubr.bf16.mxu0 0
  %420 = vmatmul.mubr.bf16.gmra.mrb[0].mxu0 %v291
  %v421 = vpop.f32.mrb[0].mxu0
  %v422 = vadd.f32 0.0, %v421
  %v423 = vpop.f32.mrb[0].mxu0
  %v424 = vpop.f32.mrb[0].mxu0
  %v425 = vadd.f32 0.0, %v424
  %v426 = vpop.f32.mrb[0].mxu0
  %427 = vmatprep.mubr.bf16.mxu0 0
  %428 = vmatmul.mubr.bf16.gmra.mrb[0].mxu0 %v292
  %v429 = vpop.f32.mrb[0].mxu0
  %v430 = vadd.f32 0.0, %v429
  %v431 = vpop.f32.mrb[0].mxu0
  %v432 = vpop.f32.mrb[0].mxu0
  %v433 = vadd.f32 0.0, %v432
  %v434 = vpop.f32.mrb[0].mxu0
  %435 = vmatprep.mubr.bf16.mxu0 0
  %436 = vmatmul.mubr.bf16.gmra.mrb[0].mxu0 %v293
  %v437 = vpop.f32.mrb[0].mxu0
  %v438 = vadd.f32 0.0, %v437
  %v439 = vpop.f32.mrb[0].mxu0
  %v440 = vpop.f32.mrb[0].mxu0
  %v441 = vadd.f32 0.0, %v440
  %v442 = vpop.f32.mrb[0].mxu0
  %443 = vmatprep.mubr.bf16.mxu0 0
  %444 = vmatmul.mubr.bf16.gmra.mrb[0].mxu0 %v294
  %v445 = vpop.f32.mrb[0].mxu0
  %v446 = vadd.f32 0.0, %v445
  %v447 = vpop.f32.mrb[0].mxu0
  %v448 = vpop.f32.mrb[0].mxu0
  %v449 = vadd.f32 0.0, %v448
  %v450 = vpop.f32.mrb[0].mxu0
  %451 = vmatprep.mubr.bf16.mxu0 0
  %452 = vmatmul.mubr.bf16.gmra.mrb[0].mxu0 %v295
  %v453 = vpop.f32.mrb[0].mxu0
  %v454 = vadd.f32 0.0, %v453
  %v455 = vpop.f32.mrb[0].mxu0
  %v456 = vpop.f32.mrb[0].mxu0
  %v457 = vadd.f32 0.0, %v456
  %v458 = vpop.f32.mrb[0].mxu0
  %459 = vmatprep.mubr.bf16.mxu0 0
  %460 = vmatmul.mubr.bf16.gmra.mrb[0].mxu0 %v296
  %v461 = vpop.f32.mrb[0].mxu0
  %v462 = vadd.f32 0.0, %v461
  %v463 = vpop.f32.mrb[0].mxu0
  %v464 = vpop.f32.mrb[0].mxu0
  %v465 = vadd.f32 0.0, %v464
  %v466 = vpop.f32.mrb[0].mxu0
  %467 = vmatprep.mubr.bf16.mxu0 0
  %468 = vmatmul.mubr.bf16.gmra.mrb[0].mxu0 %v297
  %v469 = vpop.f32.mrb[0].mxu0
  %v470 = vadd.f32 0.0, %v469
  %v471 = vpop.f32.mrb[0].mxu0
  %v472 = vpop.f32.mrb[0].mxu0
  %v473 = vadd.f32 0.0, %v472
  %v474 = vpop.f32.mrb[0].mxu0
  %475 = vmatprep.mubr.bf16.mxu0 0
  %476 = vmatmul.mubr.bf16.gmra.mrb[0].mxu0 %v298
  %v477 = vpop.f32.mrb[0].mxu0
  %v478 = vadd.f32 0.0, %v477
  %v479 = vpop.f32.mrb[0].mxu0
  %v480 = vpop.f32.mrb[0].mxu0
  %v481 = vadd.f32 0.0, %v480
  %v482 = vpop.f32.mrb[0].mxu0
  %483 = vmatprep.mubr.bf16.mxu0 0
  %484 = vmatmul.mubr.bf16.gmra.mrb[0].mxu0 %v299
  %v485 = vpop.f32.mrb[0].mxu0
  %v486 = vadd.f32 0.0, %v485
  %v487 = vpop.f32.mrb[0].mxu0
  %v488 = vpop.f32.mrb[0].mxu0
  %v489 = vadd.f32 0.0, %v488
  %v490 = vpop.f32.mrb[0].mxu0
  %491 = vmatprep.mubr.bf16.mxu0 0
  %492 = vmatmul.mubr.bf16.gmra.mrb[0].mxu0 %v300
  %v493 = vpop.f32.mrb[0].mxu0
  %v494 = vadd.f32 0.0, %v493
  %v495 = vpop.f32.mrb[0].mxu0
  %v496 = vpop.f32.mrb[0].mxu0
  %v497 = vadd.f32 0.0, %v496
  %v498 = vpop.f32.mrb[0].mxu0
  %499 = vmatprep.mubr.bf16.mxu0 0
  %500 = vmatmul.mubr.bf16.gmra.mrb[0].mxu0 %v301
  %v501 = vpop.f32.mrb[0].mxu0
  %v502 = vadd.f32 0.0, %v501
  %v503 = vpop.f32.mrb[0].mxu0
  %v504 = vpop.f32.mrb[0].mxu0
  %v505 = vadd.f32 0.0, %v504
  %v506 = vpop.f32.mrb[0].mxu0
  %507 = vmatprep.mubr.bf16.mxu0 0
  %508 = vmatmul.mubr.bf16.gmra.mrb[0].mxu0 %v302
  %v509 = vpop.f32.mrb[0].mxu0
  %v510 = vadd.f32 0.0, %v509
  %v511 = vpop.f32.mrb[0].mxu0
  %v512 = vpop.f32.mrb[0].mxu0
  %v513 = vadd.f32 0.0, %v512
  %v514 = vpop.f32.mrb[0].mxu0
  %515 = vmatprep.mubr.bf16.mxu0 0
  %516 = vmatmul.mubr.bf16.gmra.mrb[0].mxu0 %v303
  %v517 = vpop.f32.mrb[0].mxu0
  %v518 = vadd.f32 0.0, %v517
  %v519 = vpop.f32.mrb[0].mxu0
  %v520 = vpop.f32.mrb[0].mxu0
  %v521 = vadd.f32 0.0, %v520
  %v522 = vpop.f32.mrb[0].mxu0
  %523 = vmatprep.mubr.bf16.mxu0 0
  %524 = vmatmul.mubr.bf16.gmra.mrb[0].mxu0 %v304
  %v525 = vpop.f32.mrb[0].mxu0
  %v526 = vadd.f32 0.0, %v525
  %v527 = vpop.f32.mrb[0].mxu0
  %v528 = vpop.f32.mrb[0].mxu0
  %v529 = vadd.f32 0.0, %v528
  %v530 = vpop.f32.mrb[0].mxu0
  %531 = vmatprep.mubr.bf16.mxu0 0
  %532 = vmatmul.mubr.bf16.gmra.mrb[0].mxu0 %v305
  %v533 = vpop.f32.mrb[0].mxu0
  %v534 = vadd.f32 0.0, %v533
  %v535 = vpop.f32.mrb[0].mxu0
  %v536 = vpop.f32.mrb[0].mxu0
  %v537 = vadd.f32 0.0, %v536
  %v538 = vpop.f32.mrb[0].mxu0
  %539 = vmatprep.mubr.bf16.mxu0 0
  %540 = vmatmul.mubr.bf16.gmra.mrb[0].mxu0 %v306
  %v541 = vpop.f32.mrb[0].mxu0
  %v542 = vadd.f32 0.0, %v541
  %v543 = vpop.f32.mrb[0].mxu0
  %v544 = vpop.f32.mrb[0].mxu0
  %v545 = vadd.f32 0.0, %v544
  %v546 = vpop.f32.mrb[0].mxu0
  %547 = vmatprep.mubr.bf16.mxu0 0
  %548 = vmatmul.mubr.bf16.gmra.mrb[0].mxu0 %v307
  %v549 = vpop.f32.mrb[0].mxu0
  %v550 = vadd.f32 0.0, %v549
  %v551 = vpop.f32.mrb[0].mxu0
  %v552 = vpop.f32.mrb[0].mxu0
  %v553 = vadd.f32 0.0, %v552
  %v554 = vpop.f32.mrb[0].mxu0
  %555 = vmatprep.mubr.bf16.mxu0 0
  %556 = vmatmul.mubr.bf16.gmra.mrb[0].mxu0 %v308
  %v557 = vpop.f32.mrb[0].mxu0
  %v558 = vadd.f32 0.0, %v557
  %v559 = vpop.f32.mrb[0].mxu0
  %v560 = vpop.f32.mrb[0].mxu0
  %v561 = vadd.f32 0.0, %v560
  %v562 = vpop.f32.mrb[0].mxu0
  %563 = vmatprep.mubr.bf16.mxu0 0
  %564 = vmatmul.mubr.bf16.gmra.mrb[0].mxu0 %v309
  %v565 = vpop.f32.mrb[0].mxu0
  %v566 = vadd.f32 0.0, %v565
  %v567 = vpop.f32.mrb[0].mxu0
  %v568 = vpop.f32.mrb[0].mxu0
  %v569 = vadd.f32 0.0, %v568
  %v570 = vpop.f32.mrb[0].mxu0
  %571 = vmatprep.mubr.bf16.mxu0 0
  %572 = vmatmul.mubr.bf16.gmra.mrb[0].mxu0 %v310
  %v573 = vpop.f32.mrb[0].mxu0
  %v574 = vadd.f32 0.0, %v573
  %v575 = vpop.f32.mrb[0].mxu0
  %v576 = vpop.f32.mrb[0].mxu0
  %v577 = vadd.f32 0.0, %v576
  %v578 = vpop.f32.mrb[0].mxu0
  %579 = vmatprep.mubr.bf16.mxu0 0
  %580 = vmatmul.mubr.bf16.gmra.mrb[0].mxu0 %v311
  %v581 = vpop.f32.mrb[0].mxu0
  %v582 = vadd.f32 0.0, %v581
  %v583 = vpop.f32.mrb[0].mxu0
  %v584 = vpop.f32.mrb[0].mxu0
  %v585 = vadd.f32 0.0, %v584
  %v586 = vpop.f32.mrb[0].mxu0
  %587 = vmatprep.mubr.bf16.mxu0 0
  %588 = vmatmul.mubr.bf16.gmra.mrb[0].mxu0 %v312
  %v589 = vpop.f32.mrb[0].mxu0
  %v590 = vadd.f32 0.0, %v589
  %v591 = vpop.f32.mrb[0].mxu0
  %v592 = vpop.f32.mrb[0].mxu0
  %v593 = vadd.f32 0.0, %v592
  %v594 = vpop.f32.mrb[0].mxu0
  %595 = vmatprep.mubr.bf16.mxu0 0
  %596 = vmatmul.mubr.bf16.gmra.mrb[0].mxu0 %v313
  %v597 = vpop.f32.mrb[0].mxu0
  %v598 = vadd.f32 0.0, %v597
  %v599 = vpop.f32.mrb[0].mxu0
  %v600 = vpop.f32.mrb[0].mxu0
  %v601 = vadd.f32 0.0, %v600
  %v602 = vpop.f32.mrb[0].mxu0
  %603 = vmatprep.mubr.bf16.mxu0 0
  %604 = vmatmul.mubr.bf16.gmra.mrb[0].mxu0 %v314
  %v605 = vpop.f32.mrb[0].mxu0
  %v606 = vadd.f32 0.0, %v605
  %v607 = vpop.f32.mrb[0].mxu0
  %v608 = vpop.f32.mrb[0].mxu0
  %v609 = vadd.f32 0.0, %v608
  %v610 = vpop.f32.mrb[0].mxu0
  %611 = vmatprep.mubr.bf16.mxu0 0
  %612 = vmatmul.mubr.bf16.gmra.mrb[0].mxu0 %v315
  %v613 = vpop.f32.mrb[0].mxu0
  %v614 = vadd.f32 0.0, %v613
  %v615 = vpop.f32.mrb[0].mxu0
  %v616 = vpop.f32.mrb[0].mxu0
  %v617 = vadd.f32 0.0, %v616
  %v618 = vpop.f32.mrb[0].mxu0
  %619 = vmatprep.mubr.bf16.mxu0 0
  %620 = vmatmul.mubr.bf16.gmra.mrb[0].mxu0 %v316
  %v621 = vpop.f32.mrb[0].mxu0
  %v622 = vadd.f32 0.0, %v621
  %v623 = vpop.f32.mrb[0].mxu0
  %v624 = vpop.f32.mrb[0].mxu0
  %v625 = vadd.f32 0.0, %v624
  %v626 = vpop.f32.mrb[0].mxu0
  %627 = vmatprep.mubr.bf16.mxu0 0
  %628 = vmatmul.mubr.bf16.gmra.mrb[0].mxu0 %v317
  %v629 = vpop.f32.mrb[0].mxu0
  %v630 = vadd.f32 0.0, %v629
  %v631 = vpop.f32.mrb[0].mxu0
  %v632 = vpop.f32.mrb[0].mxu0
  %v633 = vadd.f32 0.0, %v632
  %v634 = vpop.f32.mrb[0].mxu0
  %635 = vmatprep.mubr.bf16.mxu0 0
  %636 = vmatmul.mubr.bf16.gmra.mrb[0].mxu0 %v318
  %v637 = vpop.f32.mrb[0].mxu0
  %v638 = vadd.f32 0.0, %v637
  %v639 = vpop.f32.mrb[0].mxu0
  %v640 = vpop.f32.mrb[0].mxu0
  %v641 = vadd.f32 0.0, %v640
  %v642 = vpop.f32.mrb[0].mxu0
  %643 = vmatprep.mubr.bf16.mxu0 0
  %644 = vmatmul.mubr.bf16.gmra.mrb[0].mxu0 %v319
  %v645 = vpop.f32.mrb[0].mxu0
  %v646 = vadd.f32 0.0, %v645
  %v647 = vpop.f32.mrb[0].mxu0
  %v648 = vpop.f32.mrb[0].mxu0
  %v649 = vadd.f32 0.0, %v648
  %v650 = vpop.f32.mrb[0].mxu0
  %651 = vmatprep.mubr.bf16.mxu0 0
  %652 = vmatmul.mubr.bf16.gmra.mrb[0].mxu0 %v320
  %v653 = vpop.f32.mrb[0].mxu0
  %v654 = vadd.f32 0.0, %v653
  %v655 = vpop.f32.mrb[0].mxu0
  %v656 = vpop.f32.mrb[0].mxu0
  %v657 = vadd.f32 0.0, %v656
  %v658 = vpop.f32.mrb[0].mxu0
  %659 = vmatprep.mubr.bf16.mxu0 0
  %660 = vmatmul.mubr.bf16.gmra.mrb[0].mxu0 %v321
  %v661 = vpop.f32.mrb[0].mxu0
  %v662 = vadd.f32 0.0, %v661
  %v663 = vpop.f32.mrb[0].mxu0
  %v664 = vpop.f32.mrb[0].mxu0
  %v665 = vadd.f32 0.0, %v664
  %v666 = vpop.f32.mrb[0].mxu0
  %667 = vmatprep.mubr.bf16.mxu0 0
  %668 = vmatmul.mubr.bf16.gmra.mrb[0].mxu0 %v322
  %v669 = vpop.f32.mrb[0].mxu0
  %v670 = vadd.f32 0.0, %v669
  %v671 = vpop.f32.mrb[0].mxu0
  %v672 = vpop.f32.mrb[0].mxu0
  %v673 = vadd.f32 0.0, %v672
  %v674 = vpop.f32.mrb[0].mxu0
  %675 = vdwg.mxu0
  %676 = vst [vmem:[%s4] sm:$0xff] %v422
  %677 = vst [vmem:[%s4 + $0x8] sm:$0xff] %v425
  %678 = vst [vmem:[%s4 + $0x10] sm:$0xff] %v430
  %679 = vst [vmem:[%s4 + $0x18] sm:$0xff] %v433
  %680 = vst [vmem:[%s4 + $0x20] sm:$0xff] %v438
  %681 = vst [vmem:[%s4 + $0x28] sm:$0xff] %v441
  %682 = vst [vmem:[%s4 + $0x30] sm:$0xff] %v446
  %683 = vst [vmem:[%s4 + $0x38] sm:$0xff] %v449
  %684 = vst [vmem:[%s4 + $0x40] sm:$0xff] %v454
  %685 = vst [vmem:[%s4 + $0x48] sm:$0xff] %v457
  %686 = vst [vmem:[%s4 + $0x50] sm:$0xff] %v462
  %687 = vst [vmem:[%s4 + $0x58] sm:$0xff] %v465
  %688 = vst [vmem:[%s4 + $0x60] sm:$0xff] %v470
  %689 = vst [vmem:[%s4 + $0x68] sm:$0xff] %v473
  %690 = vst [vmem:[%s4 + $0x70] sm:$0xff] %v478
  %691 = vst [vmem:[%s4 + $0x78] sm:$0xff] %v481
  %692 = vst [vmem:[%s4 + $0x80] sm:$0xff] %v486
  %693 = vst [vmem:[%s4 + $0x88] sm:$0xff] %v489
  %694 = vst [vmem:[%s4 + $0x90] sm:$0xff] %v494
  %695 = vst [vmem:[%s4 + $0x98] sm:$0xff] %v497
  %696 = vst [vmem:[%s4 + $0xa0] sm:$0xff] %v502
  %697 = vst [vmem:[%s4 + $0xa8] sm:$0xff] %v505
  %698 = vst [vmem:[%s4 + $0xb0] sm:$0xff] %v510
  %699 = vst [vmem:[%s4 + $0xb8] sm:$0xff] %v513
  %700 = vst [vmem:[%s4 + $0xc0] sm:$0xff] %v518
  %701 = vst [vmem:[%s4 + $0xc8] sm:$0xff] %v521
  %702 = vst [vmem:[%s4 + $0xd0] sm:$0xff] %v526
  %703 = vst [vmem:[%s4 + $0xd8] sm:$0xff] %v529
  %704 = vst [vmem:[%s4 + $0xe0] sm:$0xff] %v534
  %705 = vst [vmem:[%s4 + $0xe8] sm:$0xff] %v537
  %706 = vst [vmem:[%s4 + $0xf0] sm:$0xff] %v542
  %707 = vst [vmem:[%s4 + $0xf8] sm:$0xff] %v545
  %708 = vst [vmem:[%s4 + $0x100] sm:$0xff] %v550
  %709 = vst [vmem:[%s4 + $0x108] sm:$0xff] %v553
  %710 = vst [vmem:[%s4 + $0x110] sm:$0xff] %v558
  %711 = vst [vmem:[%s4 + $0x118] sm:$0xff] %v561
  %712 = vst [vmem:[%s4 + $0x120] sm:$0xff] %v566
  %713 = vst [vmem:[%s4 + $0x128] sm:$0xff] %v569
  %714 = vst [vmem:[%s4 + $0x130] sm:$0xff] %v574
  %715 = vst [vmem:[%s4 + $0x138] sm:$0xff] %v577
  %716 = vst [vmem:[%s4 + $0x140] sm:$0xff] %v582
  %717 = vst [vmem:[%s4 + $0x148] sm:$0xff] %v585
  %718 = vst [vmem:[%s4 + $0x150] sm:$0xff] %v590
  %719 = vst [vmem:[%s4 + $0x158] sm:$0xff] %v593
  %720 = vst [vmem:[%s4 + $0x160] sm:$0xff] %v598
  %721 = vst [vmem:[%s4 + $0x168] sm:$0xff] %v601
  %722 = vst [vmem:[%s4 + $0x170] sm:$0xff] %v606
  %723 = vst [vmem:[%s4 + $0x178] sm:$0xff] %v609
  %724 = vst [vmem:[%s4 + $0x180] sm:$0xff] %v614
  %725 = vst [vmem:[%s4 + $0x188] sm:$0xff] %v617
  %726 = vst [vmem:[%s4 + $0x190] sm:$0xff] %v622
  %727 = vst [vmem:[%s4 + $0x198] sm:$0xff] %v625
  %728 = vst [vmem:[%s4 + $0x1a0] sm:$0xff] %v630
  %729 = vst [vmem:[%s4 + $0x1a8] sm:$0xff] %v633
  %730 = vst [vmem:[%s4 + $0x1b0] sm:$0xff] %v638
  %731 = vst [vmem:[%s4 + $0x1b8] sm:$0xff] %v641
  %732 = vst [vmem:[%s4 + $0x1c0] sm:$0xff] %v646
  %733 = vst [vmem:[%s4 + $0x1c8] sm:$0xff] %v649
  %734 = vst [vmem:[%s4 + $0x1d0] sm:$0xff] %v654
  %735 = vst [vmem:[%s4 + $0x1d8] sm:$0xff] %v657
  %736 = vst [vmem:[%s4 + $0x1e0] sm:$0xff] %v662
  %737 = vst [vmem:[%s4 + $0x1e8] sm:$0xff] %v665
  %738 = vst [vmem:[%s4 + $0x1f0] sm:$0xff] %v670
  %739 = vst [vmem:[%s4 + $0x1f8] sm:$0xff] %v673
  %v740 = vadd.f32 %v422, %v425
  %v741 = vadd.f32 %v740, %v430
  %v742 = vadd.f32 %v741, %v433
  %v743 = vadd.f32 %v742, %v438
  %v744 = vadd.f32 %v743, %v441
  %v745 = vadd.f32 %v744, %v446
  %v746 = vadd.f32 %v745, %v449
  %v747 = vadd.f32 %v746, %v454
  %v748 = vadd.f32 %v747, %v457
  %v749 = vadd.f32 %v748, %v462
  %v750 = vadd.f32 %v749, %v465
  %v751 = vadd.f32 %v750, %v470
  %v752 = vadd.f32 %v751, %v473
  %v753 = vadd.f32 %v752, %v478
  %v754 = vadd.f32 %v753, %v481
  %v755 = vadd.f32 %v754, %v486
  %v756 = vadd.f32 %v755, %v489
  %v757 = vadd.f32 %v756, %v494
  %v758 = vadd.f32 %v757, %v497
  %v759 = vadd.f32 %v758, %v502
  %v760 = vadd.f32 %v759, %v505
  %v761 = vadd.f32 %v760, %v510
  %v762 = vadd.f32 %v761, %v513
  %v763 = vadd.f32 %v762, %v518
  %v764 = vadd.f32 %v763, %v521
  %v765 = vadd.f32 %v764, %v526
  %v766 = vadd.f32 %v765, %v529
  %v767 = vadd.f32 %v766, %v534
  %v768 = vadd.f32 %v767, %v537
  %v769 = vadd.f32 %v768, %v542
  %v770 = vadd.f32 %v769, %v545
  %v771 = vadd.f32 %v770, %v550
  %v772 = vadd.f32 %v771, %v553
  %v773 = vadd.f32 %v772, %v558
  %v774 = vadd.f32 %v773, %v561
  %v775 = vadd.f32 %v774, %v566
  %v776 = vadd.f32 %v775, %v569
  %v777 = vadd.f32 %v776, %v574
  %v778 = vadd.f32 %v777, %v577
  %v779 = vadd.f32 %v778, %v582
  %v780 = vadd.f32 %v779, %v585
  %v781 = vadd.f32 %v780, %v590
  %v782 = vadd.f32 %v781, %v593
  %v783 = vadd.f32 %v782, %v598
  %v784 = vadd.f32 %v783, %v601
  %v785 = vadd.f32 %v784, %v606
  %v786 = vadd.f32 %v785, %v609
  %v787 = vadd.f32 %v786, %v614
  %v788 = vadd.f32 %v787, %v617
  %v789 = vadd.f32 %v788, %v622
  %v790 = vadd.f32 %v789, %v625
  %v791 = vadd.f32 %v790, %v630
  %v792 = vadd.f32 %v791, %v633
  %v793 = vadd.f32 %v792, %v638
  %v794 = vadd.f32 %v793, %v641
  %v795 = vadd.f32 %v794, %v646
  %v796 = vadd.f32 %v795, %v649
  %v797 = vadd.f32 %v796, %v654
  %v798 = vadd.f32 %v797, %v657
  %v799 = vadd.f32 %v798, %v662
  %v800 = vadd.f32 %v799, %v665
  %v801 = vadd.f32 %v800, %v670
  %v802 = vadd.f32 %v801, %v673
  %v803 = vrot.slane %v802, 4
  %v804 = vadd.f32 %v802, %v803
  %v805 = vrot.slane %v804, 2
  %v806 = vadd.f32 %v804, %v805
  %v807 = vrot.slane %v806, 1
  %v808 = vadd.f32 %v806, %v807
  %809 = vst [vmem:[%s5] sm:$0x1] %v808
  %v810 = vmul.f32 %v422, %v422
  %v811 = vmul.f32 %v425, %v425
  %v812 = vmul.f32 %v430, %v430
  %v813 = vmul.f32 %v433, %v433
  %v814 = vmul.f32 %v438, %v438
  %v815 = vmul.f32 %v441, %v441
  %v816 = vmul.f32 %v446, %v446
  %v817 = vmul.f32 %v449, %v449
  %v818 = vmul.f32 %v454, %v454
  %v819 = vmul.f32 %v457, %v457
  %v820 = vmul.f32 %v462, %v462
  %v821 = vmul.f32 %v465, %v465
  %v822 = vmul.f32 %v470, %v470
  %v823 = vmul.f32 %v473, %v473
  %v824 = vmul.f32 %v478, %v478
  %v825 = vmul.f32 %v481, %v481
  %v826 = vmul.f32 %v486, %v486
  %v827 = vmul.f32 %v489, %v489
  %v828 = vmul.f32 %v494, %v494
  %v829 = vmul.f32 %v497, %v497
  %v830 = vmul.f32 %v502, %v502
  %v831 = vmul.f32 %v505, %v505
  %v832 = vmul.f32 %v510, %v510
  %v833 = vmul.f32 %v513, %v513
  %v834 = vmul.f32 %v518, %v518
  %v835 = vmul.f32 %v521, %v521
  %v836 = vmul.f32 %v526, %v526
  %v837 = vmul.f32 %v529, %v529
  %v838 = vmul.f32 %v534, %v534
  %v839 = vmul.f32 %v537, %v537
  %v840 = vmul.f32 %v542, %v542
  %v841 = vmul.f32 %v545, %v545
  %v842 = vmul.f32 %v550, %v550
  %v843 = vmul.f32 %v553, %v553
  %v844 = vmul.f32 %v558, %v558
  %v845 = vmul.f32 %v561, %v561
  %v846 = vmul.f32 %v566, %v566
  %v847 = vmul.f32 %v569, %v569
  %v848 = vmul.f32 %v574, %v574
  %v849 = vmul.f32 %v577, %v577
  %v850 = vmul.f32 %v582, %v582
  %v851 = vmul.f32 %v585, %v585
  %v852 = vmul.f32 %v590, %v590
  %v853 = vmul.f32 %v593, %v593
  %v854 = vmul.f32 %v598, %v598
  %v855 = vmul.f32 %v601, %v601
  %v856 = vmul.f32 %v606, %v606
  %v857 = vmul.f32 %v609, %v609
  %v858 = vmul.f32 %v614, %v614
  %v859 = vmul.f32 %v617, %v617
  %v860 = vmul.f32 %v622, %v622
  %v861 = vmul.f32 %v625, %v625
  %v862 = vmul.f32 %v630, %v630
  %v863 = vmul.f32 %v633, %v633
  %v864 = vmul.f32 %v638, %v638
  %v865 = vmul.f32 %v641, %v641
  %v866 = vmul.f32 %v646, %v646
  %v867 = vmul.f32 %v649, %v649
  %v868 = vmul.f32 %v654, %v654
  %v869 = vmul.f32 %v657, %v657
  %v870 = vmul.f32 %v662, %v662
  %v871 = vmul.f32 %v665, %v665
  %v872 = vmul.f32 %v670, %v670
  %v873 = vmul.f32 %v673, %v673
  %v874 = vadd.f32 %v810, %v811
  %v875 = vadd.f32 %v874, %v812
  %v876 = vadd.f32 %v875, %v813
  %v877 = vadd.f32 %v876, %v814
  %v878 = vadd.f32 %v877, %v815
  %v879 = vadd.f32 %v878, %v816
  %v880 = vadd.f32 %v879, %v817
  %v881 = vadd.f32 %v880, %v818
  %v882 = vadd.f32 %v881, %v819
  %v883 = vadd.f32 %v882, %v820
  %v884 = vadd.f32 %v883, %v821
  %v885 = vadd.f32 %v884, %v822
  %v886 = vadd.f32 %v885, %v823
  %v887 = vadd.f32 %v886, %v824
  %v888 = vadd.f32 %v887, %v825
  %v889 = vadd.f32 %v888, %v826
  %v890 = vadd.f32 %v889, %v827
  %v891 = vadd.f32 %v890, %v828
  %v892 = vadd.f32 %v891, %v829
  %v893 = vadd.f32 %v892, %v830
  %v894 = vadd.f32 %v893, %v831
  %v895 = vadd.f32 %v894, %v832
  %v896 = vadd.f32 %v895, %v833
  %v897 = vadd.f32 %v896, %v834
  %v898 = vadd.f32 %v897, %v835
  %v899 = vadd.f32 %v898, %v836
  %v900 = vadd.f32 %v899, %v837
  %v901 = vadd.f32 %v900, %v838
  %v902 = vadd.f32 %v901, %v839
  %v903 = vadd.f32 %v902, %v840
  %v904 = vadd.f32 %v903, %v841
  %v905 = vadd.f32 %v904, %v842
  %v906 = vadd.f32 %v905, %v843
  %v907 = vadd.f32 %v906, %v844
  %v908 = vadd.f32 %v907, %v845
  %v909 = vadd.f32 %v908, %v846
  %v910 = vadd.f32 %v909, %v847
  %v911 = vadd.f32 %v910, %v848
  %v912 = vadd.f32 %v911, %v849
  %v913 = vadd.f32 %v912, %v850
  %v914 = vadd.f32 %v913, %v851
  %v915 = vadd.f32 %v914, %v852
  %v916 = vadd.f32 %v915, %v853
  %v917 = vadd.f32 %v916, %v854
  %v918 = vadd.f32 %v917, %v855
  %v919 = vadd.f32 %v918, %v856
  %v920 = vadd.f32 %v919, %v857
  %v921 = vadd.f32 %v920, %v858
  %v922 = vadd.f32 %v921, %v859
  %v923 = vadd.f32 %v922, %v860
  %v924 = vadd.f32 %v923, %v861
  %v925 = vadd.f32 %v924, %v862
  %v926 = vadd.f32 %v925, %v863
  %v927 = vadd.f32 %v926, %v864
  %v928 = vadd.f32 %v927, %v865
  %v929 = vadd.f32 %v928, %v866
  %v930 = vadd.f32 %v929, %v867
  %v931 = vadd.f32 %v930, %v868
  %v932 = vadd.f32 %v931, %v869
  %v933 = vadd.f32 %v932, %v870
  %v934 = vadd.f32 %v933, %v871
  %v935 = vadd.f32 %v934, %v872
  %v936 = vadd.f32 %v935, %v873
  %v937 = vrot.slane %v936, 4
  %v938 = vadd.f32 %v936, %v937
  %v939 = vrot.slane %v938, 2
  %v940 = vadd.f32 %v938, %v939
  %v941 = vrot.slane %v940, 1
  %v942 = vadd.f32 %v940, %v941
  %943 = vst [vmem:[%s6] sm:$0x1] %v942
  // Predicated region
  $region18: #{dense_block_forward.6} parent=0 // pred_check
    _
  $region19: #{dense_block_forward.6} parent=0 // pred_check_branch
    %945 = sbr.rel (0) target = $region21
  $region20: #{dense_block_forward.6} parent=0 // pred_region
    _
  $region21: #{dense_block_forward.6} parent=0 // pred_fallthru
    _
  // Predicated region
  $region22: #{dense_block_forward.6} parent=0 // pred_check
    _
  $region23: #{dense_block_forward.6} parent=0 // pred_check_branch
    %947 = sbr.rel (0) target = $region25
  $region24: #{dense_block_forward.6} parent=0 // pred_region
    _
  $region25: #{dense_block_forward.6} parent=0 // pred_fallthru
    _
  // Predicated region
  $region26: #{dense_block_forward.6} parent=0 // pred_check
    _
  $region27: #{dense_block_forward.6} parent=0 // pred_check_branch
    %949 = sbr.rel (0) target = $region29
  $region28: #{dense_block_forward.6} parent=0 // pred_region
    _
  $region29: #{dense_block_forward.6} parent=0 // pred_fallthru
    _
  // Predicated region
  $region30: #{dense_block_forward.6} parent=0 // pred_check
    _
  $region31: #{dense_block_forward.6} parent=0 // pred_check_branch
    %951 = sbr.rel (0) target = $region33
  $region32: #{dense_block_forward.6} parent=0 // pred_region
    _
  $region33: #{dense_block_forward.6} parent=0 // pred_fallthru
    _
  // Predicated region
  $region34: #{dense_block_forward.6} parent=0 // pred_check
    _
  $region35: #{dense_block_forward.6} parent=0 // pred_check_branch
    %953 = sbr.rel (0) target = $region37
  $region36: #{dense_block_forward.6} parent=0 // pred_region
    _
  $region37: #{dense_block_forward.6} parent=0 // pred_fallthru
    _
  // Predicated region
  $region38: #{dense_block_forward.6} parent=0 // pred_check
    _
  $region39: #{dense_block_forward.6} parent=0 // pred_check_branch
    %955 = sbr.rel (0) target = $region41
  $region40: #{dense_block_forward.6} parent=0 // pred_region
    _
  $region41: #{dense_block_forward.6} parent=0 // pred_fallthru
    _

// kernel: dense_block_forward.7
$region0: #{dense_block_forward.7}
  #allocation0 [shape = 'u32[]', space=smem, size = 0x4, offset = 0x4, fixed_abs, tag = 'smem constant byte address 0x4 - core index']
  #allocation1 [shape = 'u32[144,128]{1,0:T(1,128)}', space=vmem, size = 0x12000, scoped, tag = 'internal scratch']
  #allocation2 [shape = 'f32[290,128]{1,0:T(8,128)}', space=vmem, size = 0x25000, scoped, tag = 'scratch operand']
  %s0 = inlined_call_operand.vmem [shape: f32[2,256,128], index: 0, kind: input, shape index: {}, may-alias: {0,5}]
  %s1 = inlined_call_operand.vmem [shape: f32[2,256,128], index: 1, kind: input, shape index: {}]
  %s2 = inlined_call_operand.vmem [shape: f32[1,128], index: 2, kind: input, shape index: {}]
  %s3 = inlined_call_operand.vmem [shape: f32[1,128], index: 3, kind: input, shape index: {}]
  %s4 = inlined_call_operand.vmem [shape: bf16[9,128,128], index: 4, kind: input, shape index: {}]
  %s5 = inlined_call_operand.vmem [shape: f32[2,256,128], index: 5, kind: output, shape index: {0}, may-alias: {0,5}]
  %s6 = inlined_call_operand.vmem [shape: f32[2,1,128], index: 6, kind: output, shape index: {1}]
  %s7 = inlined_call_operand.vmem [shape: f32[2,1,128], index: 7, kind: output, shape index: {2}]
  %8 = xla_tuple %s5, %s6, %s7
  %s9 = sld [smem:[#allocation0]]
  $region69: #{dense_block_forward.7} parent=0
    _
  %s11 = ssub.s32 1, %s9
  %s12 = scalar_select 0, %s11, %s9
  loop: start=0, step=1, limit=4
  $region2: #{dense_block_forward.7} parent=0 // loop_pre_header
    _
  $region3: #{dense_block_forward.7} parent=0 // loop_header
    %s14 = sphi 0, %s18
    %p15 = scmp.ge.s32.totalorder %s14, 4
    %s24 = sphi 0, %s26
    %s27 = sphi 0, %s24
    %s28 = sphi 0, %s27
    %s44 = sphi 0, %s28
    %s50 = sphi 0, %s52
    %s53 = sphi 0, %s50
    %s54 = sphi 0, %s53
    %s70 = sphi 0, %s54
    %s74 = sphi 0, %s74
    %s76 = sphi 0, %s74
    %s77 = sphi 0, %s76
    %s91 = sphi 0, %s77
    %s95 = sphi 0, %s95
    %s97 = sphi 0, %s95
    %s98 = sphi 0, %s97
    %s112 = sphi 0, %s98
    %s116 = sphi 0, %s116
    %s118 = sphi 0, %s116
    %s119 = sphi 0, %s118
    %s133 = sphi 0, %s119
    %s139 = sphi 0, %s141
    %s142 = sphi 0, %s139
    %s143 = sphi 0, %s142
    %s159 = sphi 0, %s143
    %s165 = sphi 0, %s167
    %s168 = sphi 0, %s165
    %s169 = sphi 0, %s168
    %s185 = sphi 0, %s169
    %s191 = sphi 0, %s193
    %s194 = sphi 0, %s191
    %s195 = sphi 0, %s194
    %s211 = sphi 0, %s195
  $region4: #{dense_block_forward.7} parent=0 // loop_header_branch
    %17 = sbr.rel (%p15) target = $region8
  $region5: #{dense_block_forward.7} parent=0 // loop_body
    %s19 = ssub.s32 %s14, 1
    %s20 = ssub.s32 %s14, 2
    %s21 = sadd.s32 %s14, 1
    %s22 = ssub.s32 %s14, %s21
    %p23 = scmp.eq.s32.totalorder %s22, 0
    %s25 = sadd.s32 %s24, 1
    %s26 = scalar_select %p23, %s24, %s25
    %p29 = pneg %p23
    %p30 = scmp.eq.s32.totalorder %s14, 1
    %p31 = por %p29, %p30
    %p32 = scmp.ne.s32.totalorder %s24, %s27
    %p33 = scmp.eq.s32.totalorder %s14, 0
    %p34 = por %p32, %p33
    %p35 = scmp.ne.s32.totalorder %s24, %s27
    %p36 = scmp.eq.s32.totalorder %s19, 1
    %p37 = por %p35, %p36
    %p38 = scmp.ne.s32.totalorder %s27, %s28
    %p39 = scmp.eq.s32.totalorder %s19, 0
    %p40 = por %p38, %p39
    %p41 = scmp.ne.s32.totalorder %s27, %s28
    %p42 = scmp.eq.s32.totalorder %s20, 1
    %p43 = por %p41, %p42
    %p45 = scmp.ne.s32.totalorder %s28, %s44
    %p46 = scmp.eq.s32.totalorder %s20, 0
    %p47 = por %p45, %p46
    %s48 = ssub.s32 %s14, %s21
    %p49 = scmp.eq.s32.totalorder %s48, 0
    %s51 = sadd.s32 %s50, 1
    %s52 = scalar_select %p49, %s50, %s51
    %p55 = pneg %p49
    %p56 = scmp.eq.s32.totalorder %s14, 1
    %p57 = por %p55, %p56
    %p58 = scmp.ne.s32.totalorder %s50, %s53
    %p59 = scmp.eq.s32.totalorder %s14, 0
    %p60 = por %p58, %p59
    %p61 = scmp.ne.s32.totalorder %s50, %s53
    %p62 = scmp.eq.s32.totalorder %s19, 1
    %p63 = por %p61, %p62
    %p64 = scmp.ne.s32.totalorder %s53, %s54
    %p65 = scmp.eq.s32.totalorder %s19, 0
    %p66 = por %p64, %p65
    %p67 = scmp.ne.s32.totalorder %s53, %s54
    %p68 = scmp.eq.s32.totalorder %s20, 1
    %p69 = por %p67, %p68
    %p71 = scmp.ne.s32.totalorder %s54, %s70
    %p72 = scmp.eq.s32.totalorder %s20, 0
    %p73 = por %p71, %p72
    %s75 = sadd.s32 %s74, 1
    %p78 = scmp.eq.s32.totalorder %s14, 1
    %p79 = scmp.ne.s32.totalorder %s74, %s76
    %p80 = scmp.eq.s32.totalorder %s14, 0
    %p81 = por %p79, %p80
    %p82 = scmp.ne.s32.totalorder %s74, %s76
    %p83 = scmp.eq.s32.totalorder %s19, 1
    %p84 = por %p82, %p83
    %p85 = scmp.ne.s32.totalorder %s76, %s77
    %p86 = scmp.eq.s32.totalorder %s19, 0
    %p87 = por %p85, %p86
    %p88 = scmp.ne.s32.totalorder %s76, %s77
    %p89 = scmp.eq.s32.totalorder %s20, 1
    %p90 = por %p88, %p89
    %p92 = scmp.ne.s32.totalorder %s77, %s91
    %p93 = scmp.eq.s32.totalorder %s20, 0
    %p94 = por %p92, %p93
    %s96 = sadd.s32 %s95, 1
    %p99 = scmp.eq.s32.totalorder %s14, 1
    %p100 = scmp.ne.s32.totalorder %s95, %s97
    %p101 = scmp.eq.s32.totalorder %s14, 0
    %p102 = por %p100, %p101
    %p103 = scmp.ne.s32.totalorder %s95, %s97
    %p104 = scmp.eq.s32.totalorder %s19, 1
    %p105 = por %p103, %p104
    %p106 = scmp.ne.s32.totalorder %s97, %s98
    %p107 = scmp.eq.s32.totalorder %s19, 0
    %p108 = por %p106, %p107
    %p109 = scmp.ne.s32.totalorder %s97, %s98
    %p110 = scmp.eq.s32.totalorder %s20, 1
    %p111 = por %p109, %p110
    %p113 = scmp.ne.s32.totalorder %s98, %s112
    %p114 = scmp.eq.s32.totalorder %s20, 0
    %p115 = por %p113, %p114
    %s117 = sadd.s32 %s116, 1
    %p120 = scmp.eq.s32.totalorder %s14, 1
    %p121 = scmp.ne.s32.totalorder %s116, %s118
    %p122 = scmp.eq.s32.totalorder %s14, 0
    %p123 = por %p121, %p122
    %p124 = scmp.ne.s32.totalorder %s116, %s118
    %p125 = scmp.eq.s32.totalorder %s19, 1
    %p126 = por %p124, %p125
    %p127 = scmp.ne.s32.totalorder %s118, %s119
    %p128 = scmp.eq.s32.totalorder %s19, 0
    %p129 = por %p127, %p128
    %p130 = scmp.ne.s32.totalorder %s118, %s119
    %p131 = scmp.eq.s32.totalorder %s20, 1
    %p132 = por %p130, %p131
    %p134 = scmp.ne.s32.totalorder %s119, %s133
    %p135 = scmp.eq.s32.totalorder %s20, 0
    %p136 = por %p134, %p135
    %s137 = ssub.s32 %s14, %s21
    %p138 = scmp.eq.s32.totalorder %s137, 0
    %s140 = sadd.s32 %s139, 1
    %s141 = scalar_select %p138, %s139, %s140
    %p144 = pneg %p138
    %p145 = scmp.eq.s32.totalorder %s14, 1
    %p146 = por %p144, %p145
    %p147 = scmp.ne.s32.totalorder %s139, %s142
    %p148 = scmp.eq.s32.totalorder %s14, 0
    %p149 = por %p147, %p148
    %p150 = scmp.ne.s32.totalorder %s139, %s142
    %p151 = scmp.eq.s32.totalorder %s19, 1
    %p152 = por %p150, %p151
    %p153 = scmp.ne.s32.totalorder %s142, %s143
    %p154 = scmp.eq.s32.totalorder %s19, 0
    %p155 = por %p153, %p154
    %p156 = scmp.ne.s32.totalorder %s142, %s143
    %p157 = scmp.eq.s32.totalorder %s20, 1
    %p158 = por %p156, %p157
    %p160 = scmp.ne.s32.totalorder %s143, %s159
    %p161 = scmp.eq.s32.totalorder %s20, 0
    %p162 = por %p160, %p161
    %s163 = ssub.s32 %s14, %s21
    %p164 = scmp.eq.s32.totalorder %s163, 0
    %s166 = sadd.s32 %s165, 1
    %s167 = scalar_select %p164, %s165, %s166
    %p170 = pneg %p164
    %p171 = scmp.eq.s32.totalorder %s14, 1
    %p172 = por %p170, %p171
    %p173 = scmp.ne.s32.totalorder %s165, %s168
    %p174 = scmp.eq.s32.totalorder %s14, 0
    %p175 = por %p173, %p174
    %p176 = scmp.ne.s32.totalorder %s165, %s168
    %p177 = scmp.eq.s32.totalorder %s19, 1
    %p178 = por %p176, %p177
    %p179 = scmp.ne.s32.totalorder %s168, %s169
    %p180 = scmp.eq.s32.totalorder %s19, 0
    %p181 = por %p179, %p180
    %p182 = scmp.ne.s32.totalorder %s168, %s169
    %p183 = scmp.eq.s32.totalorder %s20, 1
    %p184 = por %p182, %p183
    %p186 = scmp.ne.s32.totalorder %s169, %s185
    %p187 = scmp.eq.s32.totalorder %s20, 0
    %p188 = por %p186, %p187
    %s189 = ssub.s32 %s14, %s21
    %p190 = scmp.eq.s32.totalorder %s189, 0
    %s192 = sadd.s32 %s191, 1
    %s193 = scalar_select %p190, %s191, %s192
    %p196 = pneg %p190
    %p197 = scmp.eq.s32.totalorder %s14, 1
    %p198 = por %p196, %p197
    %p199 = scmp.ne.s32.totalorder %s191, %s194
    %p200 = scmp.eq.s32.totalorder %s14, 0
    %p201 = por %p199, %p200
    %p202 = scmp.ne.s32.totalorder %s191, %s194
    %p203 = scmp.eq.s32.totalorder %s19, 1
    %p204 = por %p202, %p203
    %p205 = scmp.ne.s32.totalorder %s194, %s195
    %p206 = scmp.eq.s32.totalorder %s19, 0
    %p207 = por %p205, %p206
    %p208 = scmp.ne.s32.totalorder %s194, %s195
    %p209 = scmp.eq.s32.totalorder %s20, 1
    %p210 = por %p208, %p209
    %p212 = scmp.ne.s32.totalorder %s195, %s211
    %p213 = scmp.eq.s32.totalorder %s20, 0
    %p214 = por %p212, %p213
    %p215 = scmp.le.s32.totalorder 1, %s14
    %p216 = scmp.lt.s32.totalorder %s14, 3
    %p217 = pnand %p215, %p216
    %p218 = pneg %p217
    // Predicated region
    $region9: #{dense_block_forward.7} parent=5 // pred_check
      _
    $region10: #{dense_block_forward.7} parent=5 // pred_check_branch
      %220 = sbr.rel (%p217) target = $region12
    $region11: #{dense_block_forward.7} parent=5 // pred_region
      %s221 = ssub.s32 %s14, 1
      // Predicated region
      $region13: #{dense_block_forward.7} parent=11 // pred_check
        %p222 = pneg %p87
      $region14: #{dense_block_forward.7} parent=11 // pred_check_branch
        %224 = sbr.rel (%p222) target = $region16
      $region15: #{dense_block_forward.7} parent=11 // pred_region
        _
      $region16: #{dense_block_forward.7} parent=11 // pred_fallthru
        _
      // Predicated region
      $region17: #{dense_block_forward.7} parent=11 // pred_check
        %p225 = pneg %p108
      $region18: #{dense_block_forward.7} parent=11 // pred_check_branch
        %227 = sbr.rel (%p225) target = $region20
      $region19: #{dense_block_forward.7} parent=11 // pred_region
        _
      $region20: #{dense_block_forward.7} parent=11 // pred_fallthru
        _
      // Predicated region
      $region21: #{dense_block_forward.7} parent=11 // pred_check
        %p228 = pneg %p129
      $region22: #{dense_block_forward.7} parent=11 // pred_check_branch
        %230 = sbr.rel (%p228) target = $region24
      $region23: #{dense_block_forward.7} parent=11 // pred_region
        _
      $region24: #{dense_block_forward.7} parent=11 // pred_fallthru
        _
    $region12: #{dense_block_forward.7} parent=5 // pred_fallthru
      _
    %p231 = scmp.lt.s32.totalorder %s14, 2
    // Predicated region
    $region25: #{dense_block_forward.7} parent=5 // pred_check
      %p232 = pneg %p231
    $region26: #{dense_block_forward.7} parent=5 // pred_check_branch
      %234 = sbr.rel (%p232) target = $region28
    $region27: #{dense_block_forward.7} parent=5 // pred_region
      // Predicated region
      $region29: #{dense_block_forward.7} parent=27 // pred_check
        %p235 = pneg %p34
      $region30: #{dense_block_forward.7} parent=27 // pred_check_branch
        %237 = sbr.rel (%p235) target = $region32
      $region31: #{dense_block_forward.7} parent=27 // pred_region
        %p238 = scmp.lt.s32.totalorder %s14, 1
        %s239 = scalar_select %p238, %s14, 1
        %s240 = smul.addr %s239, 32
        %s241 = smul.addr %s240, 8
        %s242 = scalar_lea.vmem %s0, %s241
      $region32: #{dense_block_forward.7} parent=27 // pred_fallthru
        _
      // Predicated region
      $region33: #{dense_block_forward.7} parent=27 // pred_check
        %p243 = pneg %p60
      $region34: #{dense_block_forward.7} parent=27 // pred_check_branch
        %245 = sbr.rel (%p243) target = $region36
      $region35: #{dense_block_forward.7} parent=27 // pred_region
        %p246 = scmp.lt.s32.totalorder %s14, 1
        %s247 = scalar_select %p246, %s14, 1
        %s248 = smul.addr %s247, 32
        %s249 = smul.addr %s248, 8
        %s250 = scalar_lea.vmem %s1, %s249
      $region36: #{dense_block_forward.7} parent=27 // pred_fallthru
        _
    $region28: #{dense_block_forward.7} parent=5 // pred_fallthru
      _
    %p251 = scmp.le.s32.totalorder 1, %s14
    %p252 = scmp.lt.s32.totalorder %s14, 3
    %p253 = pnand %p251, %p252
    %p254 = pneg %p253
    // Predicated region
    $region37: #{dense_block_forward.7} parent=5 // pred_check
      _
    $region38: #{dense_block_forward.7} parent=5 // pred_check_branch
      %256 = sbr.rel (%p253) target = $region40
    $region39: #{dense_block_forward.7} parent=5 // pred_region
      %s257 = ssub.s32 %s14, 1
      %p258 = scmp.lt.s32.totalorder %s19, 1
      %s259 = scalar_select %p258, %s19, 1
      %s260 = smul.addr %s259, 32
      %s261 = smul.addr %s260, 8
      %s262 = scalar_lea.vmem %s0, %s261
      %p263 = pneg %p40
      %p264 = pneg %p37
      %p265 = scmp.lt.s32.totalorder %s19, 1
      %s266 = scalar_select %p265, %s19, 1
      %s267 = smul.addr %s266, 32
      %s268 = smul.addr %s267, 8
      %s269 = scalar_lea.vmem %s1, %s268
      %p270 = pneg %p66
      %p271 = pneg %p63
      %p272 = pneg %p87
      %p273 = pneg %p84
      %p274 = pneg %p108
      %p275 = pneg %p105
      %p276 = pneg %p129
      %p277 = pneg %p126
      %p278 = pneg %p155
      %p279 = pneg %p152
      %p280 = scmp.lt.s32.totalorder %s19, 1
      %s281 = scalar_select %p280, %s19, 1
      %s282 = smul.addr %s281, 32
      %s283 = smul.addr %s282, 8
      %s284 = scalar_lea.vmem %s5, %s283
      %p285 = pneg %p181
      %p286 = pneg %p178
      %p287 = scmp.lt.s32.totalorder %s19, 1
      %s288 = scalar_select %p287, %s19, 1
      %s289 = scalar_lea.vmem %s6, %s288
      %p290 = pneg %p207
      %p291 = pneg %p204
      %p292 = scmp.lt.s32.totalorder %s19, 1
      %s293 = scalar_select %p292, %s19, 1
      %s294 = scalar_lea.vmem %s7, %s293
      %p295 = scmp.lt.s32.totalorder %s19, 1
      %s296 = scalar_select %p295, %s19, 1
      %s297 = smul.addr %s296, 32
      %s298 = smul.addr %s297, 8
      %s299 = scalar_lea.vmem %s0, %s298
      %p300 = scmp.lt.s32.totalorder %s19, 1
      %s301 = scalar_select %p300, %s19, 1
      %s302 = smul.addr %s301, 32
      %s303 = smul.addr %s302, 8
      %s304 = scalar_lea.vmem %s1, %s303
      %p305 = scmp.lt.s32.totalorder %s19, 1
      %s306 = scalar_select %p305, %s19, 1
      %s307 = smul.addr %s306, 32
      %s308 = smul.addr %s307, 8
      %s309 = scalar_lea.vmem %s5, %s308
      %p310 = scmp.lt.s32.totalorder %s19, 1
      %s311 = scalar_select %p310, %s19, 1
      %s312 = scalar_lea.vmem %s6, %s311
      %p313 = scmp.lt.s32.totalorder %s19, 1
      %s314 = scalar_select %p313, %s19, 1
      %s315 = scalar_lea.vmem %s7, %s314
      %317 = vst [vmem:[#allocation2] sm:$0xff] 0.0
      %318 = vst [vmem:[#allocation2 + $0x8] sm:$0xff] 0.0
      %319 = vst [vmem:[#allocation2 + $0x10] sm:$0xff] 0.0
      %320 = vst [vmem:[#allocation2 + $0x18] sm:$0xff] 0.0
      %321 = vst [vmem:[#allocation2 + $0x20] sm:$0xff] 0.0
      %322 = vst [vmem:[#allocation2 + $0x28] sm:$0xff] 0.0
      %323 = vst [vmem:[#allocation2 + $0x30] sm:$0xff] 0.0
      %324 = vst [vmem:[#allocation2 + $0x38] sm:$0xff] 0.0
      %325 = vst [vmem:[#allocation2 + $0x40] sm:$0xff] 0.0
      %326 = vst [vmem:[#allocation2 + $0x48] sm:$0xff] 0.0
      %327 = vst [vmem:[#allocation2 + $0x50] sm:$0xff] 0.0
      %328 = vst [vmem:[#allocation2 + $0x58] sm:$0xff] 0.0
      %329 = vst [vmem:[#allocation2 + $0x60] sm:$0xff] 0.0
      %330 = vst [vmem:[#allocation2 + $0x68] sm:$0xff] 0.0
      %331 = vst [vmem:[#allocation2 + $0x70] sm:$0xff] 0.0
      %332 = vst [vmem:[#allocation2 + $0x78] sm:$0xff] 0.0
      %333 = vst [vmem:[#allocation2 + $0x80] sm:$0xff] 0.0
      %334 = vst [vmem:[#allocation2 + $0x88] sm:$0xff] 0.0
      %335 = vst [vmem:[#allocation2 + $0x90] sm:$0xff] 0.0
      %336 = vst [vmem:[#allocation2 + $0x98] sm:$0xff] 0.0
      %337 = vst [vmem:[#allocation2 + $0xa0] sm:$0xff] 0.0
      %338 = vst [vmem:[#allocation2 + $0xa8] sm:$0xff] 0.0
      %339 = vst [vmem:[#allocation2 + $0xb0] sm:$0xff] 0.0
      %340 = vst [vmem:[#allocation2 + $0xb8] sm:$0xff] 0.0
      %341 = vst [vmem:[#allocation2 + $0xc0] sm:$0xff] 0.0
      %342 = vst [vmem:[#allocation2 + $0xc8] sm:$0xff] 0.0
      %343 = vst [vmem:[#allocation2 + $0xd0] sm:$0xff] 0.0
      %344 = vst [vmem:[#allocation2 + $0xd8] sm:$0xff] 0.0
      %345 = vst [vmem:[#allocation2 + $0xe0] sm:$0xff] 0.0
      %346 = vst [vmem:[#allocation2 + $0xe8] sm:$0xff] 0.0
      %347 = vst [vmem:[#allocation2 + $0xf0] sm:$0xff] 0.0
      %348 = vst [vmem:[#allocation2 + $0xf8] sm:$0xff] 0.0
      %349 = vst [vmem:[#allocation2 + $0x100] sm:$0xff] 0.0
      %350 = vst [vmem:[#allocation2 + $0x108] sm:$0xff] 0.0
      %351 = vst [vmem:[#allocation2 + $0x110] sm:$0xff] 0.0
      %352 = vst [vmem:[#allocation2 + $0x118] sm:$0xff] 0.0
      %353 = vst [vmem:[#allocation2 + $0x120] sm:$0x3] 0.0
      %v354 = vld [vmem:[%s304] sm:$0xff]
      %v355 = vld [vmem:[%s304 + $0x8] sm:$0xff]
      %v356 = vld [vmem:[%s304 + $0x10] sm:$0xff]
      %v357 = vld [vmem:[%s304 + $0x18] sm:$0xff]
      %v358 = vld [vmem:[%s304 + $0x20] sm:$0xff]
      %v359 = vld [vmem:[%s304 + $0x28] sm:$0xff]
      %v360 = vld [vmem:[%s304 + $0x30] sm:$0xff]
      %v361 = vld [vmem:[%s304 + $0x38] sm:$0xff]
      %v362 = vld [vmem:[%s304 + $0x40] sm:$0xff]
      %v363 = vld [vmem:[%s304 + $0x48] sm:$0xff]
      %v364 = vld [vmem:[%s304 + $0x50] sm:$0xff]
      %v365 = vld [vmem:[%s304 + $0x58] sm:$0xff]
      %v366 = vld [vmem:[%s304 + $0x60] sm:$0xff]
      %v367 = vld [vmem:[%s304 + $0x68] sm:$0xff]
      %v368 = vld [vmem:[%s304 + $0x70] sm:$0xff]
      %v369 = vld [vmem:[%s304 + $0x78] sm:$0xff]
      %v370 = vld [vmem:[%s304 + $0x80] sm:$0xff]
      %v371 = vld [vmem:[%s304 + $0x88] sm:$0xff]
      %v372 = vld [vmem:[%s304 + $0x90] sm:$0xff]
      %v373 = vld [vmem:[%s304 + $0x98] sm:$0xff]
      %v374 = vld [vmem:[%s304 + $0xa0] sm:$0xff]
      %v375 = vld [vmem:[%s304 + $0xa8] sm:$0xff]
      %v376 = vld [vmem:[%s304 + $0xb0] sm:$0xff]
      %v377 = vld [vmem:[%s304 + $0xb8] sm:$0xff]
      %v378 = vld [vmem:[%s304 + $0xc0] sm:$0xff]
      %v379 = vld [vmem:[%s304 + $0xc8] sm:$0xff]
      %v380 = vld [vmem:[%s304 + $0xd0] sm:$0xff]
      %v381 = vld [vmem:[%s304 + $0xd8] sm:$0xff]
      %v382 = vld [vmem:[%s304 + $0xe0] sm:$0xff]
      %v383 = vld [vmem:[%s304 + $0xe8] sm:$0xff]
      %v384 = vld [vmem:[%s304 + $0xf0] sm:$0xff]
      %v385 = vld [vmem:[%s304 + $0xf8] sm:$0xff]
      %v386 = vld [vmem:[%s2] sm:$0x1]
      %v388 = vlaneseq
      %v389 = vshrl.u32 %v388, 7
      %v390 = vsub.s32 0, %v389
      %v391 = vrot.slane %v386, %v390
      %v393 = vmul.f32 %v354, %v391
      %v394 = vmul.f32 %v355, %v391
      %v395 = vmul.f32 %v356, %v391
      %v396 = vmul.f32 %v357, %v391
      %v397 = vmul.f32 %v358, %v391
      %v398 = vmul.f32 %v359, %v391
      %v399 = vmul.f32 %v360, %v391
      %v400 = vmul.f32 %v361, %v391
      %v401 = vmul.f32 %v362, %v391
      %v402 = vmul.f32 %v363, %v391
      %v403 = vmul.f32 %v364, %v391
      %v404 = vmul.f32 %v365, %v391
      %v405 = vmul.f32 %v366, %v391
      %v406 = vmul.f32 %v367, %v391
      %v407 = vmul.f32 %v368, %v391
      %v408 = vmul.f32 %v369, %v391
      %v409 = vmul.f32 %v370, %v391
      %v410 = vmul.f32 %v371, %v391
      %v411 = vmul.f32 %v372, %v391
      %v412 = vmul.f32 %v373, %v391
      %v413 = vmul.f32 %v374, %v391
      %v414 = vmul.f32 %v375, %v391
      %v415 = vmul.f32 %v376, %v391
      %v416 = vmul.f32 %v377, %v391
      %v417 = vmul.f32 %v378, %v391
      %v418 = vmul.f32 %v379, %v391
      %v419 = vmul.f32 %v380, %v391
      %v420 = vmul.f32 %v381, %v391
      %v421 = vmul.f32 %v382, %v391
      %v422 = vmul.f32 %v383, %v391
      %v423 = vmul.f32 %v384, %v391
      %v424 = vmul.f32 %v385, %v391
      %v425 = vld [vmem:[%s3] sm:$0x1]
      %v427 = vlaneseq
      %v428 = vshrl.u32 %v427, 7
      %v429 = vsub.s32 0, %v428
      %v430 = vrot.slane %v425, %v429
      %v432 = vadd.f32 %v393, %v430
      %v433 = vadd.f32 %v394, %v430
      %v434 = vadd.f32 %v395, %v430
      %v435 = vadd.f32 %v396, %v430
      %v436 = vadd.f32 %v397, %v430
      %v437 = vadd.f32 %v398, %v430
      %v438 = vadd.f32 %v399, %v430
      %v439 = vadd.f32 %v400, %v430
      %v440 = vadd.f32 %v401, %v430
      %v441 = vadd.f32 %v402, %v430
      %v442 = vadd.f32 %v403, %v430
      %v443 = vadd.f32 %v404, %v430
      %v444 = vadd.f32 %v405, %v430
      %v445 = vadd.f32 %v406, %v430
      %v446 = vadd.f32 %v407, %v430
      %v447 = vadd.f32 %v408, %v430
      %v448 = vadd.f32 %v409, %v430
      %v449 = vadd.f32 %v410, %v430
      %v450 = vadd.f32 %v411, %v430
      %v451 = vadd.f32 %v412, %v430
      %v452 = vadd.f32 %v413, %v430
      %v453 = vadd.f32 %v414, %v430
      %v454 = vadd.f32 %v415, %v430
      %v455 = vadd.f32 %v416, %v430
      %v456 = vadd.f32 %v417, %v430
      %v457 = vadd.f32 %v418, %v430
      %v458 = vadd.f32 %v419, %v430
      %v459 = vadd.f32 %v420, %v430
      %v460 = vadd.f32 %v421, %v430
      %v461 = vadd.f32 %v422, %v430
      %v462 = vadd.f32 %v423, %v430
      %v463 = vadd.f32 %v424, %v430
      %v464 = vmax.f32 %v432, 0.0
      %v465 = vmax.f32 %v433, 0.0
      %v466 = vmax.f32 %v434, 0.0
      %v467 = vmax.f32 %v435, 0.0
      %v468 = vmax.f32 %v436, 0.0
      %v469 = vmax.f32 %v437, 0.0
      %v470 = vmax.f32 %v438, 0.0
      %v471 = vmax.f32 %v439, 0.0
      %v472 = vmax.f32 %v440, 0.0
      %v473 = vmax.f32 %v441, 0.0
      %v474 = vmax.f32 %v442, 0.0
      %v475 = vmax.f32 %v443, 0.0
      %v476 = vmax.f32 %v444, 0.0
      %v477 = vmax.f32 %v445, 0.0
      %v478 = vmax.f32 %v446, 0.0
      %v479 = vmax.f32 %v447, 0.0
      %v480 = vmax.f32 %v448, 0.0
      %v481 = vmax.f32 %v449, 0.0
      %v482 = vmax.f32 %v450, 0.0
      %v483 = vmax.f32 %v451, 0.0
      %v484 = vmax.f32 %v452, 0.0
      %v485 = vmax.f32 %v453, 0.0
      %v486 = vmax.f32 %v454, 0.0
      %v487 = vmax.f32 %v455, 0.0
      %v488 = vmax.f32 %v456, 0.0
      %v489 = vmax.f32 %v457, 0.0
      %v490 = vmax.f32 %v458, 0.0
      %v491 = vmax.f32 %v459, 0.0
      %v492 = vmax.f32 %v460, 0.0
      %v493 = vmax.f32 %v461, 0.0
      %v494 = vmax.f32 %v462, 0.0
      %v495 = vmax.f32 %v463, 0.0
      %496 = vst [vmem:[#allocation2 + $0x11] sm:$0xff] %v464
      %497 = vst [vmem:[#allocation2 + $0x19] sm:$0xff] %v465
      %498 = vst [vmem:[#allocation2 + $0x21] sm:$0xff] %v466
      %499 = vst [vmem:[#allocation2 + $0x29] sm:$0xff] %v467
      %500 = vst [vmem:[#allocation2 + $0x31] sm:$0xff] %v468
      %501 = vst [vmem:[#allocation2 + $0x39] sm:$0xff] %v469
      %502 = vst [vmem:[#allocation2 + $0x41] sm:$0xff] %v470
      %503 = vst [vmem:[#allocation2 + $0x49] sm:$0xff] %v471
      %504 = vst [vmem:[#allocation2 + $0x51] sm:$0xff] %v472
      %505 = vst [vmem:[#allocation2 + $0x59] sm:$0xff] %v473
      %506 = vst [vmem:[#allocation2 + $0x61] sm:$0xff] %v474
      %507 = vst [vmem:[#allocation2 + $0x69] sm:$0xff] %v475
      %508 = vst [vmem:[#allocation2 + $0x71] sm:$0xff] %v476
      %509 = vst [vmem:[#allocation2 + $0x79] sm:$0xff] %v477
      %510 = vst [vmem:[#allocation2 + $0x81] sm:$0xff] %v478
      %511 = vst [vmem:[#allocation2 + $0x89] sm:$0xff] %v479
      %512 = vst [vmem:[#allocation2 + $0x91] sm:$0xff] %v480
      %513 = vst [vmem:[#allocation2 + $0x99] sm:$0xff] %v481
      %514 = vst [vmem:[#allocation2 + $0xa1] sm:$0xff] %v482
      %515 = vst [vmem:[#allocation2 + $0xa9] sm:$0xff] %v483
      %516 = vst [vmem:[#allocation2 + $0xb1] sm:$0xff] %v484
      %517 = vst [vmem:[#allocation2 + $0xb9] sm:$0xff] %v485
      %518 = vst [vmem:[#allocation2 + $0xc1] sm:$0xff] %v486
      %519 = vst [vmem:[#allocation2 + $0xc9] sm:$0xff] %v487
      %520 = vst [vmem:[#allocation2 + $0xd1] sm:$0xff] %v488
      %521 = vst [vmem:[#allocation2 + $0xd9] sm:$0xff] %v489
      %522 = vst [vmem:[#allocation2 + $0xe1] sm:$0xff] %v490
      %523 = vst [vmem:[#allocation2 + $0xe9] sm:$0xff] %v491
      %524 = vst [vmem:[#allocation2 + $0xf1] sm:$0xff] %v492
      %525 = vst [vmem:[#allocation2 + $0xf9] sm:$0xff] %v493
      %526 = vst [vmem:[#allocation2 + $0x101] sm:$0xff] %v494
      %527 = vst [vmem:[#allocation2 + $0x109] sm:$0xff] %v495
      %v528 = vlaneseq
      %v529 = vshrl.u32 %v528, 7
      %v530 = vadd.s32 %v529, 8
      %v531 = vadd.s32 %v529, 16
      %v532 = vadd.s32 %v529, 24
      %v533 = vadd.s32 %v529, 32
      %v534 = vadd.s32 %v529, 40
      %v535 = vadd.s32 %v529, 48
      %v536 = vadd.s32 %v529, 56
      %v537 = vadd.s32 %v529, 64
      %v538 = vadd.s32 %v529, 72
      %v539 = vadd.s32 %v529, 80
      %v540 = vadd.s32 %v529, 88
      %v541 = vadd.s32 %v529, 96
      %v542 = vadd.s32 %v529, 104
      %v543 = vadd.s32 %v529, 112
      %v544 = vadd.s32 %v529, 120
      %v545 = vadd.s32 %v529, 128
      %v546 = vadd.s32 %v529, 136
      %v547 = vadd.s32 %v529, 144
      %v548 = vadd.s32 %v529, 152
      %v549 = vadd.s32 %v529, 160
      %v550 = vadd.s32 %v529, 168
      %v551 = vadd.s32 %v529, 176
      %v552 = vadd.s32 %v529, 184
      %v553 = vadd.s32 %v529, 192
      %v554 = vadd.s32 %v529, 200
      %v555 = vadd.s32 %v529, 208
      %v556 = vadd.s32 %v529, 216
      %v557 = vadd.s32 %v529, 224
      %v558 = vadd.s32 %v529, 232
      %v559 = vadd.s32 %v529, 240
      %v560 = vadd.s32 %v529, 248
      %vm561 = vcmp.lt.s32.totalorder %v529, 0
      %v562 = vsub.s32 0, %v529
      %v563 = vsel %vm561, %v562, %v529
      %v564 = vshrl.u32 %v563, 4
      %v565 = vand.u32 %v563, 15
      %v566 = vsub.s32 0, %v565
      %v567 = vsel %vm561, %v566, %v565
      %vm568 = vcmp.lt.s32.totalorder %v530, 0
      %v569 = vsub.s32 0, %v530
      %v570 = vsel %vm568, %v569, %v530
      %v571 = vshrl.u32 %v570, 4
      %v572 = vand.u32 %v570, 15
      %v573 = vsub.s32 0, %v572
      %v574 = vsel %vm568, %v573, %v572
      %vm575 = vcmp.lt.s32.totalorder %v531, 0
      %v576 = vsub.s32 0, %v531
      %v577 = vsel %vm575, %v576, %v531
      %v578 = vshrl.u32 %v577, 4
      %v579 = vand.u32 %v577, 15
      %v580 = vsub.s32 0, %v579
      %v581 = vsel %vm575, %v580, %v579
      %vm582 = vcmp.lt.s32.totalorder %v532, 0
      %v583 = vsub.s32 0, %v532
      %v584 = vsel %vm582, %v583, %v532
      %v585 = vshrl.u32 %v584, 4
      %v586 = vand.u32 %v584, 15
      %v587 = vsub.s32 0, %v586
      %v588 = vsel %vm582, %v587, %v586
      %vm589 = vcmp.lt.s32.totalorder %v533, 0
      %v590 = vsub.s32 0, %v533
      %v591 = vsel %vm589, %v590, %v533
      %v592 = vshrl.u32 %v591, 4
      %v593 = vand.u32 %v591, 15
      %v594 = vsub.s32 0, %v593
      %v595 = vsel %vm589, %v594, %v593
      %vm596 = vcmp.lt.s32.totalorder %v534, 0
      %v597 = vsub.s32 0, %v534
      %v598 = vsel %vm596, %v597, %v534
      %v599 = vshrl.u32 %v598, 4
      %v600 = vand.u32 %v598, 15
      %v601 = vsub.s32 0, %v600
      %v602 = vsel %vm596, %v601, %v600
      %vm603 = vcmp.lt.s32.totalorder %v535, 0
      %v604 = vsub.s32 0, %v535
      %v605 = vsel %vm603, %v604, %v535
      %v606 = vshrl.u32 %v605, 4
      %v607 = vand.u32 %v605, 15
      %v608 = vsub.s32 0, %v607
      %v609 = vsel %vm603, %v608, %v607
      %vm610 = vcmp.lt.s32.totalorder %v536, 0
      %v611 = vsub.s32 0, %v536
      %v612 = vsel %vm610, %v611, %v536
      %v613 = vshrl.u32 %v612, 4
      %v614 = vand.u32 %v612, 15
      %v615 = vsub.s32 0, %v614
      %v616 = vsel %vm610, %v615, %v614
      %vm617 = vcmp.lt.s32.totalorder %v537, 0
      %v618 = vsub.s32 0, %v537
      %v619 = vsel %vm617, %v618, %v537
      %v620 = vshrl.u32 %v619, 4
      %v621 = vand.u32 %v619, 15
      %v622 = vsub.s32 0, %v621
      %v623 = vsel %vm617, %v622, %v621
      %vm624 = vcmp.lt.s32.totalorder %v538, 0
      %v625 = vsub.s32 0, %v538
      %v626 = vsel %vm624, %v625, %v538
      %v627 = vshrl.u32 %v626, 4
      %v628 = vand.u32 %v626, 15
      %v629 = vsub.s32 0, %v628
      %v630 = vsel %vm624, %v629, %v628
      %vm631 = vcmp.lt.s32.totalorder %v539, 0
      %v632 = vsub.s32 0, %v539
      %v633 = vsel %vm631, %v632, %v539
      %v634 = vshrl.u32 %v633, 4
      %v635 = vand.u32 %v633, 15
      %v636 = vsub.s32 0, %v635
      %v637 = vsel %vm631, %v636, %v635
      %vm638 = vcmp.lt.s32.totalorder %v540, 0
      %v639 = vsub.s32 0, %v540
      %v640 = vsel %vm638, %v639, %v540
      %v641 = vshrl.u32 %v640, 4
      %v642 = vand.u32 %v640, 15
      %v643 = vsub.s32 0, %v642
      %v644 = vsel %vm638, %v643, %v642
      %vm645 = vcmp.lt.s32.totalorder %v541, 0
      %v646 = vsub.s32 0, %v541
      %v647 = vsel %vm645, %v646, %v541
      %v648 = vshrl.u32 %v647, 4
      %v649 = vand.u32 %v647, 15
      %v650 = vsub.s32 0, %v649
      %v651 = vsel %vm645, %v650, %v649
      %vm652 = vcmp.lt.s32.totalorder %v542, 0
      %v653 = vsub.s32 0, %v542
      %v654 = vsel %vm652, %v653, %v542
      %v655 = vshrl.u32 %v654, 4
      %v656 = vand.u32 %v654, 15
      %v657 = vsub.s32 0, %v656
      %v658 = vsel %vm652, %v657, %v656
      %vm659 = vcmp.lt.s32.totalorder %v543, 0
      %v660 = vsub.s32 0, %v543
      %v661 = vsel %vm659, %v660, %v543
      %v662 = vshrl.u32 %v661, 4
      %v663 = vand.u32 %v661, 15
      %v664 = vsub.s32 0, %v663
      %v665 = vsel %vm659, %v664, %v663
      %vm666 = vcmp.lt.s32.totalorder %v544, 0
      %v667 = vsub.s32 0, %v544
      %v668 = vsel %vm666, %v667, %v544
      %v669 = vshrl.u32 %v668, 4
      %v670 = vand.u32 %v668, 15
      %v671 = vsub.s32 0, %v670
      %v672 = vsel %vm666, %v671, %v670
      %vm673 = vcmp.lt.s32.totalorder %v545, 0
      %v674 = vsub.s32 0, %v545
      %v675 = vsel %vm673, %v674, %v545
      %v676 = vshrl.u32 %v675, 4
      %v677 = vand.u32 %v675, 15
      %v678 = vsub.s32 0, %v677
      %v679 = vsel %vm673, %v678, %v677
      %vm680 = vcmp.lt.s32.totalorder %v546, 0
      %v681 = vsub.s32 0, %v546
      %v682 = vsel %vm680, %v681, %v546
      %v683 = vshrl.u32 %v682, 4
      %v684 = vand.u32 %v682, 15
      %v685 = vsub.s32 0, %v684
      %v686 = vsel %vm680, %v685, %v684
      %vm687 = vcmp.lt.s32.totalorder %v547, 0
      %v688 = vsub.s32 0, %v547
      %v689 = vsel %vm687, %v688, %v547
      %v690 = vshrl.u32 %v689, 4
      %v691 = vand.u32 %v689, 15
      %v692 = vsub.s32 0, %v691
      %v693 = vsel %vm687, %v692, %v691
      %vm694 = vcmp.lt.s32.totalorder %v548, 0
      %v695 = vsub.s32 0, %v548
      %v696 = vsel %vm694, %v695, %v548
      %v697 = vshrl.u32 %v696, 4
      %v698 = vand.u32 %v696, 15
      %v699 = vsub.s32 0, %v698
      %v700 = vsel %vm694, %v699, %v698
      %vm701 = vcmp.lt.s32.totalorder %v549, 0
      %v702 = vsub.s32 0, %v549
      %v703 = vsel %vm701, %v702, %v549
      %v704 = vshrl.u32 %v703, 4
      %v705 = vand.u32 %v703, 15
      %v706 = vsub.s32 0, %v705
      %v707 = vsel %vm701, %v706, %v705
      %vm708 = vcmp.lt.s32.totalorder %v550, 0
      %v709 = vsub.s32 0, %v550
      %v710 = vsel %vm708, %v709, %v550
      %v711 = vshrl.u32 %v710, 4
      %v712 = vand.u32 %v710, 15
      %v713 = vsub.s32 0, %v712
      %v714 = vsel %vm708, %v713, %v712
      %vm715 = vcmp.lt.s32.totalorder %v551, 0
      %v716 = vsub.s32 0, %v551
      %v717 = vsel %vm715, %v716, %v551
      %v718 = vshrl.u32 %v717, 4
      %v719 = vand.u32 %v717, 15
      %v720 = vsub.s32 0, %v719
      %v721 = vsel %vm715, %v720, %v719
      %vm722 = vcmp.lt.s32.totalorder %v552, 0
      %v723 = vsub.s32 0, %v552
      %v724 = vsel %vm722, %v723, %v552
      %v725 = vshrl.u32 %v724, 4
      %v726 = vand.u32 %v724, 15
      %v727 = vsub.s32 0, %v726
      %v728 = vsel %vm722, %v727, %v726
      %vm729 = vcmp.lt.s32.totalorder %v553, 0
      %v730 = vsub.s32 0, %v553
      %v731 = vsel %vm729, %v730, %v553
      %v732 = vshrl.u32 %v731, 4
      %v733 = vand.u32 %v731, 15
      %v734 = vsub.s32 0, %v733
      %v735 = vsel %vm729, %v734, %v733
      %vm736 = vcmp.lt.s32.totalorder %v554, 0
      %v737 = vsub.s32 0, %v554
      %v738 = vsel %vm736, %v737, %v554
      %v739 = vshrl.u32 %v738, 4
      %v740 = vand.u32 %v738, 15
      %v741 = vsub.s32 0, %v740
      %v742 = vsel %vm736, %v741, %v740
      %vm743 = vcmp.lt.s32.totalorder %v555, 0
      %v744 = vsub.s32 0, %v555
      %v745 = vsel %vm743, %v744, %v555
      %v746 = vshrl.u32 %v745, 4
      %v747 = vand.u32 %v745, 15
      %v748 = vsub.s32 0, %v747
      %v749 = vsel %vm743, %v748, %v747
      %vm750 = vcmp.lt.s32.totalorder %v556, 0
      %v751 = vsub.s32 0, %v556
      %v752 = vsel %vm750, %v751, %v556
      %v753 = vshrl.u32 %v752, 4
      %v754 = vand.u32 %v752, 15
      %v755 = vsub.s32 0, %v754
      %v756 = vsel %vm750, %v755, %v754
      %vm757 = vcmp.lt.s32.totalorder %v557, 0
      %v758 = vsub.s32 0, %v557
      %v759 = vsel %vm757, %v758, %v557
      %v760 = vshrl.u32 %v759, 4
      %v761 = vand.u32 %v759, 15
      %v762 = vsub.s32 0, %v761
      %v763 = vsel %vm757, %v762, %v761
      %vm764 = vcmp.lt.s32.totalorder %v558, 0
      %v765 = vsub.s32 0, %v558
      %v766 = vsel %vm764, %v765, %v558
      %v767 = vshrl.u32 %v766, 4
      %v768 = vand.u32 %v766, 15
      %v769 = vsub.s32 0, %v768
      %v770 = vsel %vm764, %v769, %v768
      %vm771 = vcmp.lt.s32.totalorder %v559, 0
      %v772 = vsub.s32 0, %v559
      %v773 = vsel %vm771, %v772, %v559
      %v774 = vshrl.u32 %v773, 4
      %v775 = vand.u32 %v773, 15
      %v776 = vsub.s32 0, %v775
      %v777 = vsel %vm771, %v776, %v775
      %vm778 = vcmp.lt.s32.totalorder %v560, 0
      %v779 = vsub.s32 0, %v560
      %v780 = vsel %vm778, %v779, %v560
      %v781 = vshrl.u32 %v780, 4
      %v782 = vand.u32 %v780, 15
      %v783 = vsub.s32 0, %v782
      %v784 = vsel %vm778, %v783, %v782
      %vm785 = vcmp.ne.s32.totalorder %v567, 0
      %vm786 = vcmp.ne.s32.totalorder %v574, 0
      %vm787 = vcmp.ne.s32.totalorder %v581, 0
      %vm788 = vcmp.ne.s32.totalorder %v588, 0
      %vm789 = vcmp.ne.s32.totalorder %v595, 0
      %vm790 = vcmp.ne.s32.totalorder %v602, 0
      %vm791 = vcmp.ne.s32.totalorder %v609, 0
      %vm792 = vcmp.ne.s32.totalorder %v616, 0
      %vm793 = vcmp.ne.s32.totalorder %v623, 0
      %vm794 = vcmp.ne.s32.totalorder %v630, 0
      %vm795 = vcmp.ne.s32.totalorder %v637, 0
      %vm796 = vcmp.ne.s32.totalorder %v644, 0
      %vm797 = vcmp.ne.s32.totalorder %v651, 0
      %vm798 = vcmp.ne.s32.totalorder %v658, 0
      %vm799 = vcmp.ne.s32.totalorder %v665, 0
      %vm800 = vcmp.ne.s32.totalorder %v672, 0
      %vm801 = vcmp.ne.s32.totalorder %v679, 0
      %vm802 = vcmp.ne.s32.totalorder %v686, 0
      %vm803 = vcmp.ne.s32.totalorder %v693, 0
      %vm804 = vcmp.ne.s32.totalorder %v700, 0
      %vm805 = vcmp.ne.s32.totalorder %v707, 0
      %vm806 = vcmp.ne.s32.totalorder %v714, 0
      %vm807 = vcmp.ne.s32.totalorder %v721, 0
      %vm808 = vcmp.ne.s32.totalorder %v728, 0
      %vm809 = vcmp.ne.s32.totalorder %v735, 0
      %vm810 = vcmp.ne.s32.totalorder %v742, 0
      %vm811 = vcmp.ne.s32.totalorder %v749, 0
      %vm812 = vcmp.ne.s32.totalorder %v756, 0
      %vm813 = vcmp.ne.s32.totalorder %v763, 0
      %vm814 = vcmp.ne.s32.totalorder %v770, 0
      %vm815 = vcmp.ne.s32.totalorder %v777, 0
      %vm816 = vcmp.ne.s32.totalorder %v784, 0
      %vm817 = vcmp.lt.s32.totalorder %v567, 0
      %vm818 = vcmp.lt.s32.totalorder %v574, 0
      %vm819 = vcmp.lt.s32.totalorder %v581, 0
      %vm820 = vcmp.lt.s32.totalorder %v588, 0
      %vm821 = vcmp.lt.s32.totalorder %v595, 0
      %vm822 = vcmp.lt.s32.totalorder %v602, 0
      %vm823 = vcmp.lt.s32.totalorder %v609, 0
      %vm824 = vcmp.lt.s32.totalorder %v616, 0
      %vm825 = vcmp.lt.s32.totalorder %v623, 0
      %vm826 = vcmp.lt.s32.totalorder %v630, 0
      %vm827 = vcmp.lt.s32.totalorder %v637, 0
      %vm828 = vcmp.lt.s32.totalorder %v644, 0
      %vm829 = vcmp.lt.s32.totalorder %v651, 0
      %vm830 = vcmp.lt.s32.totalorder %v658, 0
      %vm831 = vcmp.lt.s32.totalorder %v665, 0
      %vm832 = vcmp.lt.s32.totalorder %v672, 0
      %vm833 = vcmp.lt.s32.totalorder %v679, 0
      %vm834 = vcmp.lt.s32.totalorder %v686, 0
      %vm835 = vcmp.lt.s32.totalorder %v693, 0
      %vm836 = vcmp.lt.s32.totalorder %v700, 0
      %vm837 = vcmp.lt.s32.totalorder %v707, 0
      %vm838 = vcmp.lt.s32.totalorder %v714, 0
      %vm839 = vcmp.lt.s32.totalorder %v721, 0
      %vm840 = vcmp.lt.s32.totalorder %v728, 0
      %vm841 = vcmp.lt.s32.totalorder %v735, 0
      %vm842 = vcmp.lt.s32.totalorder %v742, 0
      %vm843 = vcmp.lt.s32.totalorder %v749, 0
      %vm844 = vcmp.lt.s32.totalorder %v756, 0
      %vm845 = vcmp.lt.s32.totalorder %v763, 0
      %vm846 = vcmp.lt.s32.totalorder %v770, 0
      %vm847 = vcmp.lt.s32.totalorder %v777, 0
      %vm848 = vcmp.lt.s32.totalorder %v784, 0
      %vm849 = vmand %vm817, %vm785
      %vm850 = vmand %vm818, %vm786
      %vm851 = vmand %vm819, %vm787
      %vm852 = vmand %vm820, %vm788
      %vm853 = vmand %vm821, %vm789
      %vm854 = vmand %vm822, %vm790
      %vm855 = vmand %vm823, %vm791
      %vm856 = vmand %vm824, %vm792
      %vm857 = vmand %vm825, %vm793
      %vm858 = vmand %vm826, %vm794
      %vm859 = vmand %vm827, %vm795
      %vm860 = vmand %vm828, %vm796
      %vm861 = vmand %vm829, %vm797
      %vm862 = vmand %vm830, %vm798
      %vm863 = vmand %vm831, %vm799
      %vm864 = vmand %vm832, %vm800
      %vm865 = vmand %vm833, %vm801
      %vm866 = vmand %vm834, %vm802
      %vm867 = vmand %vm835, %vm803
      %vm868 = vmand %vm836, %vm804
      %vm869 = vmand %vm837, %vm805
      %vm870 = vmand %vm838, %vm806
      %vm871 = vmand %vm839, %vm807
      %vm872 = vmand %vm840, %vm808
      %vm873 = vmand %vm841, %vm809
      %vm874 = vmand %vm842, %vm810
      %vm875 = vmand %vm843, %vm811
      %vm876 = vmand %vm844, %vm812
      %vm877 = vmand %vm845, %vm813
      %vm878 = vmand %vm846, %vm814
      %vm879 = vmand %vm847, %vm815
      %vm880 = vmand %vm848, %vm816
      %v881 = vadd.s32 %v567, 16
      %v882 = vadd.s32 %v574, 16
      %v883 = vadd.s32 %v581, 16
      %v884 = vadd.s32 %v588, 16
      %v885 = vadd.s32 %v595, 16
      %v886 = vadd.s32 %v602, 16
      %v887 = vadd.s32 %v609, 16
      %v888 = vadd.s32 %v616, 16
      %v889 = vadd.s32 %v623, 16
      %v890 = vadd.s32 %v630, 16
      %v891 = vadd.s32 %v637, 16
      %v892 = vadd.s32 %v644, 16
      %v893 = vadd.s32 %v651, 16
      %v894 = vadd.s32 %v658, 16
      %v895 = vadd.s32 %v665, 16
      %v896 = vadd.s32 %v672, 16
      %v897 = vadd.s32 %v679, 16
      %v898 = vadd.s32 %v686, 16
      %v899 = vadd.s32 %v693, 16
      %v900 = vadd.s32 %v700, 16
      %v901 = vadd.s32 %v707, 16
      %v902 = vadd.s32 %v714, 16
      %v903 = vadd.s32 %v721, 16
      %v904 = vadd.s32 %v728, 16
      %v905 = vadd.s32 %v735, 16
      %v906 = vadd.s32 %v742, 16
      %v907 = vadd.s32 %v749, 16
      %v908 = vadd.s32 %v756, 16
      %v909 = vadd.s32 %v763, 16
      %v910 = vadd.s32 %v770, 16
      %v911 = vadd.s32 %v777, 16
      %v912 = vadd.s32 %v784, 16
      %v913 = vsel %vm849, %v881, %v567
      %v914 = vsel %vm850, %v882, %v574
      %v915 = vsel %vm851, %v883, %v581
      %v916 = vsel %vm852, %v884, %v588
      %v917 = vsel %vm853, %v885, %v595
      %v918 = vsel %vm854, %v886, %v602
      %v919 = vsel %vm855, %v887, %v609
      %v920 = vsel %vm856, %v888, %v616
      %v921 = vsel %vm857, %v889, %v623
      %v922 = vsel %vm858, %v890, %v630
      %v923 = vsel %vm859, %v891, %v637
      %v924 = vsel %vm860, %v892, %v644
      %v925 = vsel %vm861, %v893, %v651
      %v926 = vsel %vm862, %v894, %v658
      %v927 = vsel %vm863, %v895, %v665
      %v928 = vsel %vm864, %v896, %v672
      %v929 = vsel %vm865, %v897, %v679
      %v930 = vsel %vm866, %v898, %v686
      %v931 = vsel %vm867, %v899, %v693
      %v932 = vsel %vm868, %v900, %v700
      %v933 = vsel %vm869, %v901, %v707
      %v934 = vsel %vm870, %v902, %v714
      %v935 = vsel %vm871, %v903, %v721
      %v936 = vsel %vm872, %v904, %v728
      %v937 = vsel %vm873, %v905, %v735
      %v938 = vsel %vm874, %v906, %v742
      %v939 = vsel %vm875, %v907, %v749
      %v940 = vsel %vm876, %v908, %v756
      %v941 = vsel %vm877, %v909, %v763
      %v942 = vsel %vm878, %v910, %v770
      %v943 = vsel %vm879, %v911, %v777
      %v944 = vsel %vm880, %v912, %v784
      %v945 = vld [vmem:[#allocation2] sm:$0xff]
      %v946 = vld [vmem:[#allocation2 + $0x8] sm:$0xff]
      %v947 = vld [vmem:[#allocation2 + $0x10] sm:$0xff]
      %v948 = vld [vmem:[#allocation2 + $0x18] sm:$0xff]
      %v949 = vld [vmem:[#allocation2 + $0x20] sm:$0xff]
      %v950 = vld [vmem:[#allocation2 + $0x28] sm:$0xff]
      %v951 = vld [vmem:[#allocation2 + $0x30] sm:$0xff]
      %v952 = vld [vmem:[#allocation2 + $0x38] sm:$0xff]
      %v953 = vld [vmem:[#allocation2 + $0x40] sm:$0xff]
      %v954 = vld [vmem:[#allocation2 + $0x48] sm:$0xff]
      %v955 = vld [vmem:[#allocation2 + $0x50] sm:$0xff]
      %v956 = vld [vmem:[#allocation2 + $0x58] sm:$0xff]
      %v957 = vld [vmem:[#allocation2 + $0x60] sm:$0xff]
      %v958 = vld [vmem:[#allocation2 + $0x68] sm:$0xff]
      %v959 = vld [vmem:[#allocation2 + $0x70] sm:$0xff]
      %v960 = vld [vmem:[#allocation2 + $0x78] sm:$0xff]
      %v961 = vld [vmem:[#allocation2 + $0x80] sm:$0xff]
      %v962 = vld [vmem:[#allocation2 + $0x88] sm:$0xff]
      %v963 = vld [vmem:[#allocation2 + $0x90] sm:$0xff]
      %v964 = vld [vmem:[#allocation2 + $0x98] sm:$0xff]
      %v965 = vld [vmem:[#allocation2 + $0xa0] sm:$0xff]
      %v966 = vld [vmem:[#allocation2 + $0xa8] sm:$0xff]
      %v967 = vld [vmem:[#allocation2 + $0xb0] sm:$0xff]
      %v968 = vld [vmem:[#allocation2 + $0xb8] sm:$0xff]
      %v969 = vld [vmem:[#allocation2 + $0xc0] sm:$0xff]
      %v970 = vld [vmem:[#allocation2 + $0xc8] sm:$0xff]
      %v971 = vld [vmem:[#allocation2 + $0xd0] sm:$0xff]
      %v972 = vld [vmem:[#allocation2 + $0xd8] sm:$0xff]
      %v973 = vld [vmem:[#allocation2 + $0xe0] sm:$0xff]
      %v974 = vld [vmem:[#allocation2 + $0xe8] sm:$0xff]
      %v975 = vld [vmem:[#allocation2 + $0xf0] sm:$0xff]
      %v976 = vld [vmem:[#allocation2 + $0xf8] sm:$0xff]
      %vm977 = vcmp.ge.s32.totalorder %v913, 1
      %vm978 = vcmp.ge.s32.totalorder %v914, 1
      %vm979 = vcmp.ge.s32.totalorder %v915, 1
      %vm980 = vcmp.ge.s32.totalorder %v916, 1
      %vm981 = vcmp.ge.s32.totalorder %v917, 1
      %vm982 = vcmp.ge.s32.totalorder %v918, 1
      %vm983 = vcmp.ge.s32.totalorder %v919, 1
      %vm984 = vcmp.ge.s32.totalorder %v920, 1
      %vm985 = vcmp.ge.s32.totalorder %v921, 1
      %vm986 = vcmp.ge.s32.totalorder %v922, 1
      %vm987 = vcmp.ge.s32.totalorder %v923, 1
      %vm988 = vcmp.ge.s32.totalorder %v924, 1
      %vm989 = vcmp.ge.s32.totalorder %v925, 1
      %vm990 = vcmp.ge.s32.totalorder %v926, 1
      %vm991 = vcmp.ge.s32.totalorder %v927, 1
      %vm992 = vcmp.ge.s32.totalorder %v928, 1
      %vm993 = vcmp.ge.s32.totalorder %v929, 1
      %vm994 = vcmp.ge.s32.totalorder %v930, 1
      %vm995 = vcmp.ge.s32.totalorder %v931, 1
      %vm996 = vcmp.ge.s32.totalorder %v932, 1
      %vm997 = vcmp.ge.s32.totalorder %v933, 1
      %vm998 = vcmp.ge.s32.totalorder %v934, 1
      %vm999 = vcmp.ge.s32.totalorder %v935, 1
      %vm1000 = vcmp.ge.s32.totalorder %v936, 1
      %vm1001 = vcmp.ge.s32.totalorder %v937, 1
      %vm1002 = vcmp.ge.s32.totalorder %v938, 1
      %vm1003 = vcmp.ge.s32.totalorder %v939, 1
      %vm1004 = vcmp.ge.s32.totalorder %v940, 1
      %vm1005 = vcmp.ge.s32.totalorder %v941, 1
      %vm1006 = vcmp.ge.s32.totalorder %v942, 1
      %vm1007 = vcmp.ge.s32.totalorder %v943, 1
      %vm1008 = vcmp.ge.s32.totalorder %v944, 1
      %v1009 = vsel %vm977, %v945, 0.0
      %v1010 = vsel %vm978, %v946, 0.0
      %v1011 = vsel %vm979, %v947, 0.0
      %v1012 = vsel %vm980, %v948, 0.0
      %v1013 = vsel %vm981, %v949, 0.0
      %v1014 = vsel %vm982, %v950, 0.0
      %v1015 = vsel %vm983, %v951, 0.0
      %v1016 = vsel %vm984, %v952, 0.0
      %v1017 = vsel %vm985, %v953, 0.0
      %v1018 = vsel %vm986, %v954, 0.0
      %v1019 = vsel %vm987, %v955, 0.0
      %v1020 = vsel %vm988, %v956, 0.0
      %v1021 = vsel %vm989, %v957, 0.0
      %v1022 = vsel %vm990, %v958, 0.0
      %v1023 = vsel %vm991, %v959, 0.0
      %v1024 = vsel %vm992, %v960, 0.0
      %v1025 = vsel %vm993, %v961, 0.0
      %v1026 = vsel %vm994, %v962, 0.0
      %v1027 = vsel %vm995, %v963, 0.0
      %v1028 = vsel %vm996, %v964, 0.0
      %v1029 = vsel %vm997, %v965, 0.0
      %v1030 = vsel %vm998, %v966, 0.0
      %v1031 = vsel %vm999, %v967, 0.0
      %v1032 = vsel %vm1000, %v968, 0.0
      %v1033 = vsel %vm1001, %v969, 0.0
      %v1034 = vsel %vm1002, %v970, 0.0
      %v1035 = vsel %vm1003, %v971, 0.0
      %v1036 = vsel %vm1004, %v972, 0.0
      %v1037 = vsel %vm1005, %v973, 0.0
      %v1038 = vsel %vm1006, %v974, 0.0
      %v1039 = vsel %vm1007, %v975, 0.0
      %v1040 = vsel %vm1008, %v976, 0.0
      %v1041 = vpack.c.bf16 %v1010, %v1009
      %v1042 = vpack.c.bf16 %v1012, %v1011
      %v1043 = vpack.c.bf16 %v1014, %v1013
      %v1044 = vpack.c.bf16 %v1016, %v1015
      %v1045 = vpack.c.bf16 %v1018, %v1017
      %v1046 = vpack.c.bf16 %v1020, %v1019
      %v1047 = vpack.c.bf16 %v1022, %v1021
      %v1048 = vpack.c.bf16 %v1024, %v1023
      %v1049 = vpack.c.bf16 %v1026, %v1025
      %v1050 = vpack.c.bf16 %v1028, %v1027
      %v1051 = vpack.c.bf16 %v1030, %v1029
      %v1052 = vpack.c.bf16 %v1032, %v1031
      %v1053 = vpack.c.bf16 %v1034, %v1033
      %v1054 = vpack.c.bf16 %v1036, %v1035
      %v1055 = vpack.c.bf16 %v1038, %v1037
      %v1056 = vpack.c.bf16 %v1040, %v1039
      %v1057 = vld [vmem:[%s4] sm:$0xf]
      %v1058 = vld [vmem:[%s4 + $0x4] sm:$0xf]
      %v1059 = vld [vmem:[%s4 + $0x8] sm:$0xf]
      %v1060 = vld [vmem:[%s4 + $0xc] sm:$0xf]
      %v1061 = vld [vmem:[%s4 + $0x10] sm:$0xf]
      %v1062 = vld [vmem:[%s4 + $0x14] sm:$0xf]
      %v1063 = vld [vmem:[%s4 + $0x18] sm:$0xf]
      %v1064 = vld [vmem:[%s4 + $0x1c] sm:$0xf]
      %v1065 = vld [vmem:[%s4 + $0x20] sm:$0xf]
      %v1066 = vld [vmem:[%s4 + $0x24] sm:$0xf]
      %v1067 = vld [vmem:[%s4 + $0x28] sm:$0xf]
      %v1068 = vld [vmem:[%s4 + $0x2c] sm:$0xf]
      %v1069 = vld [vmem:[%s4 + $0x30] sm:$0xf]
      %v1070 = vld [vmem:[%s4 + $0x34] sm:$0xf]
      %v1071 = vld [vmem:[%s4 + $0x38] sm:$0xf]
      %v1072 = vld [vmem:[%s4 + $0x3c] sm:$0xf]
      %v1073 = vld [vmem:[#allocation2 + $0x1] sm:$0xff]
      %v1074 = vld [vmem:[#allocation2 + $0x9] sm:$0xff]
      %v1075 = vld [vmem:[#allocation2 + $0x11] sm:$0xff]
      %v1076 = vld [vmem:[#allocation2 + $0x19] sm:$0xff]
      %v1077 = vld [vmem:[#allocation2 + $0x21] sm:$0xff]
      %v1078 = vld [vmem:[#allocation2 + $0x29] sm:$0xff]
      %v1079 = vld [vmem:[#allocation2 + $0x31] sm:$0xff]
      %v1080 = vld [vmem:[#allocation2 + $0x39] sm:$0xff]
      %v1081 = vld [vmem:[#allocation2 + $0x41] sm:$0xff]
      %v1082 = vld [vmem:[#allocation2 + $0x49] sm:$0xff]
      %v1083 = vld [vmem:[#allocation2 + $0x51] sm:$0xff]
      %v1084 = vld [vmem:[#allocation2 + $0x59] sm:$0xff]
      %v1085 = vld [vmem:[#allocation2 + $0x61] sm:$0xff]
      %v1086 = vld [vmem:[#allocation2 + $0x69] sm:$0xff]
      %v1087 = vld [vmem:[#allocation2 + $0x71] sm:$0xff]
      %v1088 = vld [vmem:[#allocation2 + $0x79] sm:$0xff]
      %v1089 = vld [vmem:[#allocation2 + $0x81] sm:$0xff]
      %v1090 = vld [vmem:[#allocation2 + $0x89] sm:$0xff]
      %v1091 = vld [vmem:[#allocation2 + $0x91] sm:$0xff]
      %v1092 = vld [vmem:[#allocation2 + $0x99] sm:$0xff]
      %v1093 = vld [vmem:[#allocation2 + $0xa1] sm:$0xff]
      %v1094 = vld [vmem:[#allocation2 + $0xa9] sm:$0xff]
      %v1095 = vld [vmem:[#allocation2 + $0xb1] sm:$0xff]
      %v1096 = vld [vmem:[#allocation2 + $0xb9] sm:$0xff]
      %v1097 = vld [vmem:[#allocation2 + $0xc1] sm:$0xff]
      %v1098 = vld [vmem:[#allocation2 + $0xc9] sm:$0xff]
      %v1099 = vld [vmem:[#allocation2 + $0xd1] sm:$0xff]
      %v1100 = vld [vmem:[#allocation2 + $0xd9] sm:$0xff]
      %v1101 = vld [vmem:[#allocation2 + $0xe1] sm:$0xff]
      %v1102 = vld [vmem:[#allocation2 + $0xe9] sm:$0xff]
      %v1103 = vld [vmem:[#allocation2 + $0xf1] sm:$0xff]
      %v1104 = vld [vmem:[#allocation2 + $0xf9] sm:$0xff]
      %v1105 = vpack.c.bf16 %v1074, %v1073
      %v1106 = vpack.c.bf16 %v1076, %v1075
      %v1107 = vpack.c.bf16 %v1078, %v1077
      %v1108 = vpack.c.bf16 %v1080, %v1079
      %v1109 = vpack.c.bf16 %v1082, %v1081
      %v1110 = vpack.c.bf16 %v1084, %v1083
      %v1111 = vpack.c.bf16 %v1086, %v1085
      %v1112 = vpack.c.bf16 %v1088, %v1087
      %v1113 = vpack.c.bf16 %v1090, %v1089
      %v1114 = vpack.c.bf16 %v1092, %v1091
      %v1115 = vpack.c.bf16 %v1094, %v1093
      %v1116 = vpack.c.bf16 %v1096, %v1095
      %v1117 = vpack.c.bf16 %v1098, %v1097
      %v1118 = vpack.c.bf16 %v1100, %v1099
      %v1119 = vpack.c.bf16 %v1102, %v1101
      %v1120 = vpack.c.bf16 %v1104, %v1103
      %s1121 = scalar_lea.vmem %s4, 64
      %v1122 = vld [vmem:[%s1121] sm:$0xf]
      %v1123 = vld [vmem:[%s1121 + $0x4] sm:$0xf]
      %v1124 = vld [vmem:[%s1121 + $0x8] sm:$0xf]
      %v1125 = vld [vmem:[%s1121 + $0xc] sm:$0xf]
      %v1126 = vld [vmem:[%s1121 + $0x10] sm:$0xf]
      %v1127 = vld [vmem:[%s1121 + $0x14] sm:$0xf]
      %v1128 = vld [vmem:[%s1121 + $0x18] sm:$0xf]
      %v1129 = vld [vmem:[%s1121 + $0x1c] sm:$0xf]
      %v1130 = vld [vmem:[%s1121 + $0x20] sm:$0xf]
      %v1131 = vld [vmem:[%s1121 + $0x24] sm:$0xf]
      %v1132 = vld [vmem:[%s1121 + $0x28] sm:$0xf]
      %v1133 = vld [vmem:[%s1121 + $0x2c] sm:$0xf]
      %v1134 = vld [vmem:[%s1121 + $0x30] sm:$0xf]
      %v1135 = vld [vmem:[%s1121 + $0x34] sm:$0xf]
      %v1136 = vld [vmem:[%s1121 + $0x38] sm:$0xf]
      %v1137 = vld [vmem:[%s1121 + $0x3c] sm:$0xf]
      %v1154 = vunpack.c.l.b16 %v1122
      %v1155 = vunpack.c.l.b16 %v1123
      %v1156 = vunpack.c.l.b16 %v1124
      %v1157 = vunpack.c.l.b16 %v1125
      %v1158 = vunpack.c.l.b16 %v1126
      %v1159 = vunpack.c.l.b16 %v1127
      %v1160 = vunpack.c.l.b16 %v1128
      %v1161 = vunpack.c.l.b16 %v1129
      %v1162 = vunpack.c.l.b16 %v1130
      %v1163 = vunpack.c.l.b16 %v1131
      %v1164 = vunpack.c.l.b16 %v1132
      %v1165 = vunpack.c.l.b16 %v1133
      %v1166 = vunpack.c.l.b16 %v1134
      %v1167 = vunpack.c.l.b16 %v1135
      %v1168 = vunpack.c.l.b16 %v1136
      %v1169 = vunpack.c.l.b16 %v1137
      %v1170 = vpack.c.b16 %v1155, %v1154
      %v1171 = vpack.c.b16 %v1157, %v1156
      %v1172 = vpack.c.b16 %v1159, %v1158
      %v1173 = vpack.c.b16 %v1161, %v1160
      %v1174 = vpack.c.b16 %v1163, %v1162
      %v1175 = vpack.c.b16 %v1165, %v1164
      %v1176 = vpack.c.b16 %v1167, %v1166
      %v1177 = vpack.c.b16 %v1169, %v1168
      %1186 = vmatprep.subr.bf16.mxu0 0
      %1187 = vmatpush1.bf16.msra.mxu0 %v1170
      %1188 = vmatprep.subr.bf16.mxu0 0
      %1189 = vmatpush1.bf16.msra.mxu0 %v1171
      %1190 = vmatprep.subr.bf16.mxu0 0
      %1191 = vmatpush1.bf16.msra.mxu0 %v1172
      %1192 = vmatprep.subr.bf16.mxu0 0
      %1193 = vmatpush1.bf16.msra.mxu0 %v1173
      %1194 = vmatprep.subr.bf16.mxu0 0
      %1195 = vmatpush1.bf16.msra.mxu0 %v1174
      %1196 = vmatprep.subr.bf16.mxu0 0
      %1197 = vmatpush1.bf16.msra.mxu0 %v1175
      %1198 = vmatprep.subr.bf16.mxu0 0
      %1199 = vmatpush1.bf16.msra.mxu0 %v1176
      %1200 = vmatprep.subr.bf16.mxu0 0
      %1201 = vmatpush1.bf16.msra.mxu0 %v1177
      %1202 = vmatprep.subr.bf16.mxu0 0
      %1203 = vmatpush1.bf16.msra.mxu0 0
      %1204 = vmatprep.subr.bf16.mxu0 0
      %1205 = vmatpush1.bf16.msra.mxu0 0
      %1206 = vmatprep.subr.bf16.mxu0 0
      %1207 = vmatpush1.bf16.msra.mxu0 0
      %1208 = vmatprep.subr.bf16.mxu0 0
      %1209 = vmatpush1.bf16.msra.mxu0 0
      %1210 = vmatprep.subr.bf16.mxu0 0
      %1211 = vmatpush1.bf16.msra.mxu0 0
      %1212 = vmatprep.subr.bf16.mxu0 0
      %1213 = vmatpush1.bf16.msra.mxu0 0
      %1214 = vmatprep.subr.bf16.mxu0 0
      %1215 = vmatpush1.bf16.msra.mxu0 0
      %1216 = vmatprep.subr.bf16.mxu0 0
      %1217 = vmatpush1.bf16.msra.mxu0 0
      %1218 = vmatprep.mubr.bf16.mxu0 0
      %1219 = vmatmul.mubr.bf16.gmra.mrb[0].mxu0 %v1105
      %v1220 = vpop.f32.mrb[0].mxu0
      %v1221 = vadd.f32 0.0, %v1220
      %v1222 = vpop.f32.mrb[0].mxu0
      %v1223 = vpop.f32.mrb[0].mxu0
      %v1224 = vadd.f32 0.0, %v1223
      %v1225 = vpop.f32.mrb[0].mxu0
      %1226 = vmatprep.mubr.bf16.mxu0 0
      %1227 = vmatmul.mubr.bf16.gmra.mrb[0].mxu0 %v1106
      %v1228 = vpop.f32.mrb[0].mxu0
      %v1229 = vadd.f32 0.0, %v1228
      %v1230 = vpop.f32.mrb[0].mxu0
      %v1231 = vpop.f32.mrb[0].mxu0
      %v1232 = vadd.f32 0.0, %v1231
      %v1233 = vpop.f32.mrb[0].mxu0
      %1234 = vmatprep.mubr.bf16.mxu0 0
      %1235 = vmatmul.mubr.bf16.gmra.mrb[0].mxu0 %v1107
      %v1236 = vpop.f32.mrb[0].mxu0
      %v1237 = vadd.f32 0.0, %v1236
      %v1238 = vpop.f32.mrb[0].mxu0
      %v1239 = vpop.f32.mrb[0].mxu0
      %v1240 = vadd.f32 0.0, %v1239
      %v1241 = vpop.f32.mrb[0].mxu0
      %1242 = vmatprep.mubr.bf16.mxu0 0
      %1243 = vmatmul.mubr.bf16.gmra.mrb[0].mxu0 %v1108
      %v1244 = vpop.f32.mrb[0].mxu0
      %v1245 = vadd.f32 0.0, %v1244
      %v1246 = vpop.f32.mrb[0].mxu0
      %v1247 = vpop.f32.mrb[0].mxu0
      %v1248 = vadd.f32 0.0, %v1247
      %v1249 = vpop.f32.mrb[0].mxu0
      %1250 = vmatprep.mubr.bf16.mxu0 0
      %1251 = vmatmul.mubr.bf16.gmra.mrb[0].mxu0 %v1109
      %v1252 = vpop.f32.mrb[0].mxu0
      %v1253 = vadd.f32 0.0, %v1252
      %v1254 = vpop.f32.mrb[0].mxu0
      %v1255 = vpop.f32.mrb[0].mxu0
      %v1256 = vadd.f32 0.0, %v1255
      %v1257 = vpop.f32.mrb[0].mxu0
      %1258 = vmatprep.mubr.bf16.mxu0 0
      %1259 = vmatmul.mubr.bf16.gmra.mrb[0].mxu0 %v1110
      %v1260 = vpop.f32.mrb[0].mxu0
      %v1261 = vadd.f32 0.0, %v1260
      %v1262 = vpop.f32.mrb[0].mxu0
      %v1263 = vpop.f32.mrb[0].mxu0
      %v1264 = vadd.f32 0.0, %v1263
      %v1265 = vpop.f32.mrb[0].mxu0
      %1266 = vmatprep.mubr.bf16.mxu0 0
      %1267 = vmatmul.mubr.bf16.gmra.mrb[0].mxu0 %v1111
      %v1268 = vpop.f32.mrb[0].mxu0
      %v1269 = vadd.f32 0.0, %v1268
      %v1270 = vpop.f32.mrb[0].mxu0
      %v1271 = vpop.f32.mrb[0].mxu0
      %v1272 = vadd.f32 0.0, %v1271
      %v1273 = vpop.f32.mrb[0].mxu0
      %1274 = vmatprep.mubr.bf16.mxu0 0
      %1275 = vmatmul.mubr.bf16.gmra.mrb[0].mxu0 %v1112
      %v1276 = vpop.f32.mrb[0].mxu0
      %v1277 = vadd.f32 0.0, %v1276
      %v1278 = vpop.f32.mrb[0].mxu0
      %v1279 = vpop.f32.mrb[0].mxu0
      %v1280 = vadd.f32 0.0, %v1279
      %v1281 = vpop.f32.mrb[0].mxu0
      %1282 = vmatprep.mubr.bf16.mxu0 0
      %1283 = vmatmul.mubr.bf16.gmra.mrb[0].mxu0 %v1113
      %v1284 = vpop.f32.mrb[0].mxu0
      %v1285 = vadd.f32 0.0, %v1284
      %v1286 = vpop.f32.mrb[0].mxu0
      %v1287 = vpop.f32.mrb[0].mxu0
      %v1288 = vadd.f32 0.0, %v1287
      %v1289 = vpop.f32.mrb[0].mxu0
      %1290 = vmatprep.mubr.bf16.mxu0 0
      %1291 = vmatmul.mubr.bf16.gmra.mrb[0].mxu0 %v1114
      %v1292 = vpop.f32.mrb[0].mxu0
      %v1293 = vadd.f32 0.0, %v1292
      %v1294 = vpop.f32.mrb[0].mxu0
      %v1295 = vpop.f32.mrb[0].mxu0
      %v1296 = vadd.f32 0.0, %v1295
      %v1297 = vpop.f32.mrb[0].mxu0
      %1298 = vmatprep.mubr.bf16.mxu0 0
      %1299 = vmatmul.mubr.bf16.gmra.mrb[0].mxu0 %v1115
      %v1300 = vpop.f32.mrb[0].mxu0
      %v1301 = vadd.f32 0.0, %v1300
      %v1302 = vpop.f32.mrb[0].mxu0
      %v1303 = vpop.f32.mrb[0].mxu0
      %v1304 = vadd.f32 0.0, %v1303
      %v1305 = vpop.f32.mrb[0].mxu0
      %1306 = vmatprep.mubr.bf16.mxu0 0
      %1307 = vmatmul.mubr.bf16.gmra.mrb[0].mxu0 %v1116
      %v1308 = vpop.f32.mrb[0].mxu0
      %v1309 = vadd.f32 0.0, %v1308
      %v1310 = vpop.f32.mrb[0].mxu0
      %v1311 = vpop.f32.mrb[0].mxu0
      %v1312 = vadd.f32 0.0, %v1311
      %v1313 = vpop.f32.mrb[0].mxu0
      %1314 = vmatprep.mubr.bf16.mxu0 0
      %1315 = vmatmul.mubr.bf16.gmra.mrb[0].mxu0 %v1117
      %v1316 = vpop.f32.mrb[0].mxu0
      %v1317 = vadd.f32 0.0, %v1316
      %v1318 = vpop.f32.mrb[0].mxu0
      %v1319 = vpop.f32.mrb[0].mxu0
      %v1320 = vadd.f32 0.0, %v1319
      %v1321 = vpop.f32.mrb[0].mxu0
      %1322 = vmatprep.mubr.bf16.mxu0 0
      %1323 = vmatmul.mubr.bf16.gmra.mrb[0].mxu0 %v1118
      %v1324 = vpop.f32.mrb[0].mxu0
      %v1325 = vadd.f32 0.0, %v1324
      %v1326 = vpop.f32.mrb[0].mxu0
      %v1327 = vpop.f32.mrb[0].mxu0
      %v1328 = vadd.f32 0.0, %v1327
      %v1329 = vpop.f32.mrb[0].mxu0
      %1330 = vmatprep.mubr.bf16.mxu0 0
      %1331 = vmatmul.mubr.bf16.gmra.mrb[0].mxu0 %v1119
      %v1332 = vpop.f32.mrb[0].mxu0
      %v1333 = vadd.f32 0.0, %v1332
      %v1334 = vpop.f32.mrb[0].mxu0
      %v1335 = vpop.f32.mrb[0].mxu0
      %v1336 = vadd.f32 0.0, %v1335
      %v1337 = vpop.f32.mrb[0].mxu0
      %1338 = vmatprep.mubr.bf16.mxu0 0
      %1339 = vmatmul.mubr.bf16.gmra.mrb[0].mxu0 %v1120
      %v1340 = vpop.f32.mrb[0].mxu0
      %v1341 = vadd.f32 0.0, %v1340
      %v1342 = vpop.f32.mrb[0].mxu0
      %v1343 = vpop.f32.mrb[0].mxu0
      %v1344 = vadd.f32 0.0, %v1343
      %v1345 = vpop.f32.mrb[0].mxu0
      %1346 = vdwg.mxu0
      %v1363 = vunpack.c.l.b16 %v1057
      %v1364 = vunpack.c.l.b16 %v1058
      %v1365 = vunpack.c.l.b16 %v1059
      %v1366 = vunpack.c.l.b16 %v1060
      %v1367 = vunpack.c.l.b16 %v1061
      %v1368 = vunpack.c.l.b16 %v1062
      %v1369 = vunpack.c.l.b16 %v1063
      %v1370 = vunpack.c.l.b16 %v1064
      %v1371 = vunpack.c.l.b16 %v1065
      %v1372 = vunpack.c.l.b16 %v1066
      %v1373 = vunpack.c.l.b16 %v1067
      %v1374 = vunpack.c.l.b16 %v1068
      %v1375 = vunpack.c.l.b16 %v1069
      %v1376 = vunpack.c.l.b16 %v1070
      %v1377 = vunpack.c.l.b16 %v1071
      %v1378 = vunpack.c.l.b16 %v1072
      %v1379 = vpack.c.b16 %v1364, %v1363
      %v1380 = vpack.c.b16 %v1366, %v1365
      %v1381 = vpack.c.b16 %v1368, %v1367
      %v1382 = vpack.c.b16 %v1370, %v1369
      %v1383 = vpack.c.b16 %v1372, %v1371
      %v1384 = vpack.c.b16 %v1374, %v1373
      %v1385 = vpack.c.b16 %v1376, %v1375
      %v1386 = vpack.c.b16 %v1378, %v1377
      %1395 = vmatprep.subr.bf16.mxu0 0
      %1396 = vmatpush1.bf16.msra.mxu0 %v1379
      %1397 = vmatprep.subr.bf16.mxu0 0
      %1398 = vmatpush1.bf16.msra.mxu0 %v1380
      %1399 = vmatprep.subr.bf16.mxu0 0
      %1400 = vmatpush1.bf16.msra.mxu0 %v1381
      %1401 = vmatprep.subr.bf16.mxu0 0
      %1402 = vmatpush1.bf16.msra.mxu0 %v1382
      %1403 = vmatprep.subr.bf16.mxu0 0
      %1404 = vmatpush1.bf16.msra.mxu0 %v1383
      %1405 = vmatprep.subr.bf16.mxu0 0
      %1406 = vmatpush1.bf16.msra.mxu0 %v1384
      %1407 = vmatprep.subr.bf16.mxu0 0
      %1408 = vmatpush1.bf16.msra.mxu0 %v1385
      %1409 = vmatprep.subr.bf16.mxu0 0
      %1410 = vmatpush1.bf16.msra.mxu0 %v1386
      %1411 = vmatprep.subr.bf16.mxu0 0
      %1412 = vmatpush1.bf16.msra.mxu0 0
      %1413 = vmatprep.subr.bf16.mxu0 0
      %1414 = vmatpush1.bf16.msra.mxu0 0
      %1415 = vmatprep.subr.bf16.mxu0 0
      %1416 = vmatpush1.bf16.msra.mxu0 0
      %1417 = vmatprep.subr.bf16.mxu0 0
      %1418 = vmatpush1.bf16.msra.mxu0 0
      %1419 = vmatprep.subr.bf16.mxu0 0
      %1420 = vmatpush1.bf16.msra.mxu0 0
      %1421 = vmatprep.subr.bf16.mxu0 0
      %1422 = vmatpush1.bf16.msra.mxu0 0
      %1423 = vmatprep.subr.bf16.mxu0 0
      %1424 = vmatpush1.bf16.msra.mxu0 0
      %1425 = vmatprep.subr.bf16.mxu0 0
      %1426 = vmatpush1.bf16.msra.mxu0 0
      %1427 = vmatprep.mubr.bf16.mxu0 0
      %1428 = vmatmul.mubr.bf16.gmra.mrb[0].mxu0 %v1041
      %v1429 = vpop.f32.mrb[0].mxu0
      %v1430 = vadd.f32 %v1221, %v1429
      %v1431 = vpop.f32.mrb[0].mxu0
      %v1432 = vpop.f32.mrb[0].mxu0
      %v1433 = vadd.f32 %v1224, %v1432
      %v1434 = vpop.f32.mrb[0].mxu0
      %1435 = vmatprep.mubr.bf16.mxu0 0
      %1436 = vmatmul.mubr.bf16.gmra.mrb[0].mxu0 %v1042
      %v1437 = vpop.f32.mrb[0].mxu0
      %v1438 = vadd.f32 %v1229, %v1437
      %v1439 = vpop.f32.mrb[0].mxu0
      %v1440 = vpop.f32.mrb[0].mxu0
      %v1441 = vadd.f32 %v1232, %v1440
      %v1442 = vpop.f32.mrb[0].mxu0
      %1443 = vmatprep.mubr.bf16.mxu0 0
      %1444 = vmatmul.mubr.bf16.gmra.mrb[0].mxu0 %v1043
      %v1445 = vpop.f32.mrb[0].mxu0
      %v1446 = vadd.f32 %v1237, %v1445
      %v1447 = vpop.f32.mrb[0].mxu0
      %v1448 = vpop.f32.mrb[0].mxu0
      %v1449 = vadd.f32 %v1240, %v1448
      %v1450 = vpop.f32.mrb[0].mxu0
      %1451 = vmatprep.mubr.bf16.mxu0 0
      %1452 = vmatmul.mubr.bf16.gmra.mrb[0].mxu0 %v1044
      %v1453 = vpop.f32.mrb[0].mxu0
      %v1454 = vadd.f32 %v1245, %v1453
      %v1455 = vpop.f32.mrb[0].mxu0
      %v1456 = vpop.f32.mrb[0].mxu0
      %v1457 = vadd.f32 %v1248, %v1456
      %v1458 = vpop.f32.mrb[0].mxu0
      %1459 = vmatprep.mubr.bf16.mxu0 0
      %1460 = vmatmul.mubr.bf16.gmra.mrb[0].mxu0 %v1045
      %v1461 = vpop.f32.mrb[0].mxu0
      %v1462 = vadd.f32 %v1253, %v1461
      %v1463 = vpop.f32.mrb[0].mxu0
      %v1464 = vpop.f32.mrb[0].mxu0
      %v1465 = vadd.f32 %v1256, %v1464
      %v1466 = vpop.f32.mrb[0].mxu0
      %1467 = vmatprep.mubr.bf16.mxu0 0
      %1468 = vmatmul.mubr.bf16.gmra.mrb[0].mxu0 %v1046
      %v1469 = vpop.f32.mrb[0].mxu0
      %v1470 = vadd.f32 %v1261, %v1469
      %v1471 = vpop.f32.mrb[0].mxu0
      %v1472 = vpop.f32.mrb[0].mxu0
      %v1473 = vadd.f32 %v1264, %v1472
      %v1474 = vpop.f32.mrb[0].mxu0
      %1475 = vmatprep.mubr.bf16.mxu0 0
      %1476 = vmatmul.mubr.bf16.gmra.mrb[0].mxu0 %v1047
      %v1477 = vpop.f32.mrb[0].mxu0
      %v1478 = vadd.f32 %v1269, %v1477
      %v1479 = vpop.f32.mrb[0].mxu0
      %v1480 = vpop.f32.mrb[0].mxu0
      %v1481 = vadd.f32 %v1272, %v1480
      %v1482 = vpop.f32.mrb[0].mxu0
      %1483 = vmatprep.mubr.bf16.mxu0 0
      %1484 = vmatmul.mubr.bf16.gmra.mrb[0].mxu0 %v1048
      %v1485 = vpop.f32.mrb[0].mxu0
      %v1486 = vadd.f32 %v1277, %v1485
      %v1487 = vpop.f32.mrb[0].mxu0
      %v1488 = vpop.f32.mrb[0].mxu0
      %v1489 = vadd.f32 %v1280, %v1488
      %v1490 = vpop.f32.mrb[0].mxu0
      %1491 = vmatprep.mubr.bf16.mxu0 0
      %1492 = vmatmul.mubr.bf16.gmra.mrb[0].mxu0 %v1049
      %v1493 = vpop.f32.mrb[0].mxu0
      %v1494 = vadd.f32 %v1285, %v1493
      %v1495 = vpop.f32.mrb[0].mxu0
      %v1496 = vpop.f32.mrb[0].mxu0
      %v1497 = vadd.f32 %v1288, %v1496
      %v1498 = vpop.f32.mrb[0].mxu0
      %1499 = vmatprep.mubr.bf16.mxu0 0
      %1500 = vmatmul.mubr.bf16.gmra.mrb[0].mxu0 %v1050
      %v1501 = vpop.f32.mrb[0].mxu0
      %v1502 = vadd.f32 %v1293, %v1501
      %v1503 = vpop.f32.mrb[0].mxu0
      %v1504 = vpop.f32.mrb[0].mxu0
      %v1505 = vadd.f32 %v1296, %v1504
      %v1506 = vpop.f32.mrb[0].mxu0
      %1507 = vmatprep.mubr.bf16.mxu0 0
      %1508 = vmatmul.mubr.bf16.gmra.mrb[0].mxu0 %v1051
      %v1509 = vpop.f32.mrb[0].mxu0
      %v1510 = vadd.f32 %v1301, %v1509
      %v1511 = vpop.f32.mrb[0].mxu0
      %v1512 = vpop.f32.mrb[0].mxu0
      %v1513 = vadd.f32 %v1304, %v1512
      %v1514 = vpop.f32.mrb[0].mxu0
      %1515 = vmatprep.mubr.bf16.mxu0 0
      %1516 = vmatmul.mubr.bf16.gmra.mrb[0].mxu0 %v1052
      %v1517 = vpop.f32.mrb[0].mxu0
      %v1518 = vadd.f32 %v1309, %v1517
      %v1519 = vpop.f32.mrb[0].mxu0
      %v1520 = vpop.f32.mrb[0].mxu0
      %v1521 = vadd.f32 %v1312, %v1520
      %v1522 = vpop.f32.mrb[0].mxu0
      %1523 = vmatprep.mubr.bf16.mxu0 0
      %1524 = vmatmul.mubr.bf16.gmra.mrb[0].mxu0 %v1053
      %v1525 = vpop.f32.mrb[0].mxu0
      %v1526 = vadd.f32 %v1317, %v1525
      %v1527 = vpop.f32.mrb[0].mxu0
      %v1528 = vpop.f32.mrb[0].mxu0
      %v1529 = vadd.f32 %v1320, %v1528
      %v1530 = vpop.f32.mrb[0].mxu0
      %1531 = vmatprep.mubr.bf16.mxu0 0
      %1532 = vmatmul.mubr.bf16.gmra.mrb[0].mxu0 %v1054
      %v1533 = vpop.f32.mrb[0].mxu0
      %v1534 = vadd.f32 %v1325, %v1533
      %v1535 = vpop.f32.mrb[0].mxu0
      %v1536 = vpop.f32.mrb[0].mxu0
      %v1537 = vadd.f32 %v1328, %v1536
      %v1538 = vpop.f32.mrb[0].mxu0
      %1539 = vmatprep.mubr.bf16.mxu0 0
      %1540 = vmatmul.mubr.bf16.gmra.mrb[0].mxu0 %v1055
      %v1541 = vpop.f32.mrb[0].mxu0
      %v1542 = vadd.f32 %v1333, %v1541
      %v1543 = vpop.f32.mrb[0].mxu0
      %v1544 = vpop.f32.mrb[0].mxu0
      %v1545 = vadd.f32 %v1336, %v1544
      %v1546 = vpop.f32.mrb[0].mxu0
      %1547 = vmatprep.mubr.bf16.mxu0 0
      %1548 = vmatmul.mubr.bf16.gmra.mrb[0].mxu0 %v1056
      %v1549 = vpop.f32.mrb[0].mxu0
      %v1550 = vadd.f32 %v1341, %v1549
      %v1551 = vpop.f32.mrb[0].mxu0
      %v1552 = vpop.f32.mrb[0].mxu0
      %v1553 = vadd.f32 %v1344, %v1552
      %v1554 = vpop.f32.mrb[0].mxu0
      %1555 = vdwg.mxu0
      %v1556 = vld [vmem:[#allocation2 + $0x2] sm:$0xff]
      %v1557 = vld [vmem:[#allocation2 + $0xa] sm:$0xff]
      %v1558 = vld [vmem:[#allocation2 + $0x12] sm:$0xff]
      %v1559 = vld [vmem:[#allocation2 + $0x1a] sm:$0xff]
      %v1560 = vld [vmem:[#allocation2 + $0x22] sm:$0xff]
      %v1561 = vld [vmem:[#allocation2 + $0x2a] sm:$0xff]
      %v1562 = vld [vmem:[#allocation2 + $0x32] sm:$0xff]
      %v1563 = vld [vmem:[#allocation2 + $0x3a] sm:$0xff]
      %v1564 = vld [vmem:[#allocation2 + $0x42] sm:$0xff]
      %v1565 = vld [vmem:[#allocation2 + $0x4a] sm:$0xff]
      %v1566 = vld [vmem:[#allocation2 + $0x52] sm:$0xff]
      %v1567 = vld [vmem:[#allocation2 + $0x5a] sm:$0xff]
      %v1568 = vld [vmem:[#allocation2 + $0x62] sm:$0xff]
      %v1569 = vld [vmem:[#allocation2 + $0x6a] sm:$0xff]
      %v1570 = vld [vmem:[#allocation2 + $0x72] sm:$0xff]
      %v1571 = vld [vmem:[#allocation2 + $0x7a] sm:$0xff]
      %v1572 = vld [vmem:[#allocation2 + $0x82] sm:$0xff]
      %v1573 = vld [vmem:[#allocation2 + $0x8a] sm:$0xff]
      %v1574 = vld [vmem:[#allocation2 + $0x92] sm:$0xff]
      %v1575 = vld [vmem:[#allocation2 + $0x9a] sm:$0xff]
      %v1576 = vld [vmem:[#allocation2 + $0xa2] sm:$0xff]
      %v1577 = vld [vmem:[#allocation2 + $0xaa] sm:$0xff]
      %v1578 = vld [vmem:[#allocation2 + $0xb2] sm:$0xff]
      %v1579 = vld [vmem:[#allocation2 + $0xba] sm:$0xff]
      %v1580 = vld [vmem:[#allocation2 + $0xc2] sm:$0xff]
      %v1581 = vld [vmem:[#allocation2 + $0xca] sm:$0xff]
      %v1582 = vld [vmem:[#allocation2 + $0xd2] sm:$0xff]
      %v1583 = vld [vmem:[#allocation2 + $0xda] sm:$0xff]
      %v1584 = vld [vmem:[#allocation2 + $0xe2] sm:$0xff]
      %v1585 = vld [vmem:[#allocation2 + $0xea] sm:$0xff]
      %v1586 = vld [vmem:[#allocation2 + $0xf2] sm:$0xff]
      %v1587 = vld [vmem:[#allocation2 + $0xfa] sm:$0xff]
      %vm1588 = vcmp.le.s32.totalorder %v913, 14
      %vm1589 = vcmp.le.s32.totalorder %v914, 14
      %vm1590 = vcmp.le.s32.totalorder %v915, 14
      %vm1591 = vcmp.le.s32.totalorder %v916, 14
      %vm1592 = vcmp.le.s32.totalorder %v917, 14
      %vm1593 = vcmp.le.s32.totalorder %v918, 14
      %vm1594 = vcmp.le.s32.totalorder %v919, 14
      %vm1595 = vcmp.le.s32.totalorder %v920, 14
      %vm1596 = vcmp.le.s32.totalorder %v921, 14
      %vm1597 = vcmp.le.s32.totalorder %v922, 14
      %vm1598 = vcmp.le.s32.totalorder %v923, 14
      %vm1599 = vcmp.le.s32.totalorder %v924, 14
      %vm1600 = vcmp.le.s32.totalorder %v925, 14
      %vm1601 = vcmp.le.s32.totalorder %v926, 14
      %vm1602 = vcmp.le.s32.totalorder %v927, 14
      %vm1603 = vcmp.le.s32.totalorder %v928, 14
      %vm1604 = vcmp.le.s32.totalorder %v929, 14
      %vm1605 = vcmp.le.s32.totalorder %v930, 14
      %vm1606 = vcmp.le.s32.totalorder %v931, 14
      %vm1607 = vcmp.le.s32.totalorder %v932, 14
      %vm1608 = vcmp.le.s32.totalorder %v933, 14
      %vm1609 = vcmp.le.s32.totalorder %v934, 14
      %vm1610 = vcmp.le.s32.totalorder %v935, 14
      %vm1611 = vcmp.le.s32.totalorder %v936, 14
      %vm1612 = vcmp.le.s32.totalorder %v937, 14
      %vm1613 = vcmp.le.s32.totalorder %v938, 14
      %vm1614 = vcmp.le.s32.totalorder %v939, 14
      %vm1615 = vcmp.le.s32.totalorder %v940, 14
      %vm1616 = vcmp.le.s32.totalorder %v941, 14
      %vm1617 = vcmp.le.s32.totalorder %v942, 14
      %vm1618 = vcmp.le.s32.totalorder %v943, 14
      %vm1619 = vcmp.le.s32.totalorder %v944, 14
      %v1620 = vsel %vm1588, %v1556, 0.0
      %v1621 = vsel %vm1589, %v1557, 0.0
      %v1622 = vsel %vm1590, %v1558, 0.0
      %v1623 = vsel %vm1591, %v1559, 0.0
      %v1624 = vsel %vm1592, %v1560, 0.0
      %v1625 = vsel %vm1593, %v1561, 0.0
      %v1626 = vsel %vm1594, %v1562, 0.0
      %v1627 = vsel %vm1595, %v1563, 0.0
      %v1628 = vsel %vm1596, %v1564, 0.0
      %v1629 = vsel %vm1597, %v1565, 0.0
      %v1630 = vsel %vm1598, %v1566, 0.0
      %v1631 = vsel %vm1599, %v1567, 0.0
      %v1632 = vsel %vm1600, %v1568, 0.0
      %v1633 = vsel %vm1601, %v1569, 0.0
      %v1634 = vsel %vm1602, %v1570, 0.0
      %v1635 = vsel %vm1603, %v1571, 0.0
      %v1636 = vsel %vm1604, %v1572, 0.0
      %v1637 = vsel %vm1605, %v1573, 0.0
      %v1638 = vsel %vm1606, %v1574, 0.0
      %v1639 = vsel %vm1607, %v1575, 0.0
      %v1640 = vsel %vm1608, %v1576, 0.0
      %v1641 = vsel %vm1609, %v1577, 0.0
      %v1642 = vsel %vm1610, %v1578, 0.0
      %v1643 = vsel %vm1611, %v1579, 0.0
      %v1644 = vsel %vm1612, %v1580, 0.0
      %v1645 = vsel %vm1613, %v1581, 0.0
      %v1646 = vsel %vm1614, %v1582, 0.0
      %v1647 = vsel %vm1615, %v1583, 0.0
      %v1648 = vsel %vm1616, %v1584, 0.0
      %v1649 = vsel %vm1617, %v1585, 0.0
      %v1650 = vsel %vm1618, %v1586, 0.0
      %v1651 = vsel %vm1619, %v1587, 0.0
      %v1652 = vpack.c.bf16 %v1621, %v1620
      %v1653 = vpack.c.bf16 %v1623, %v1622
      %v1654 = vpack.c.bf16 %v1625, %v1624
      %v1655 = vpack.c.bf16 %v1627, %v1626
      %v1656 = vpack.c.bf16 %v1629, %v1628
      %v1657 = vpack.c.bf16 %v1631, %v1630
      %v1658 = vpack.c.bf16 %v1633, %v1632
      %v1659 = vpack.c.bf16 %v1635, %v1634
      %v1660 = vpack.c.bf16 %v1637, %v1636
      %v1661 = vpack.c.bf16 %v1639, %v1638
      %v1662 = vpack.c.bf16 %v1641, %v1640
      %v1663 = vpack.c.bf16 %v1643, %v1642
      %v1664 = vpack.c.bf16 %v1645, %v1644
      %v1665 = vpack.c.bf16 %v1647, %v1646
      %v1666 = vpack.c.bf16 %v1649, %v1648
      %v1667 = vpack.c.bf16 %v1651, %v1650
      %s1668 = scalar_lea.vmem %s4, 128
      %v1669 = vld [vmem:[%s1668] sm:$0xf]
      %v1670 = vld [vmem:[%s1668 + $0x4] sm:$0xf]
      %v1671 = vld [vmem:[%s1668 + $0x8] sm:$0xf]
      %v1672 = vld [vmem:[%s1668 + $0xc] sm:$0xf]
      %v1673 = vld [vmem:[%s1668 + $0x10] sm:$0xf]
      %v1674 = vld [vmem:[%s1668 + $0x14] sm:$0xf]
      %v1675 = vld [vmem:[%s1668 + $0x18] sm:$0xf]
      %v1676 = vld [vmem:[%s1668 + $0x1c] sm:$0xf]
      %v1677 = vld [vmem:[%s1668 + $0x20] sm:$0xf]
      %v1678 = vld [vmem:[%s1668 + $0x24] sm:$0xf]
      %v1679 = vld [vmem:[%s1668 + $0x28] sm:$0xf]
      %v1680 = vld [vmem:[%s1668 + $0x2c] sm:$0xf]
      %v1681 = vld [vmem:[%s1668 + $0x30] sm:$0xf]
      %v1682 = vld [vmem:[%s1668 + $0x34] sm:$0xf]
      %v1683 = vld [vmem:[%s1668 + $0x38] sm:$0xf]
      %v1684 = vld [vmem:[%s1668 + $0x3c] sm:$0xf]
      %v1701 = vunpack.c.l.b16 %v1669
      %v1702 = vunpack.c.l.b16 %v1670
      %v1703 = vunpack.c.l.b16 %v1671
      %v1704 = vunpack.c.l.b16 %v1672
      %v1705 = vunpack.c.l.b16 %v1673
      %v1706 = vunpack.c.l.b16 %v1674
      %v1707 = vunpack.c.l.b16 %v1675
      %v1708 = vunpack.c.l.b16 %v1676
      %v1709 = vunpack.c.l.b16 %v1677
      %v1710 = vunpack.c.l.b16 %v1678
      %v1711 = vunpack.c.l.b16 %v1679
      %v1712 = vunpack.c.l.b16 %v1680
      %v1713 = vunpack.c.l.b16 %v1681
      %v1714 = vunpack.c.l.b16 %v1682
      %v1715 = vunpack.c.l.b16 %v1683
      %v1716 = vunpack.c.l.b16 %v1684
      %v1717 = vpack.c.b16 %v1702, %v1701
      %v1718 = vpack.c.b16 %v1704, %v1703
      %v1719 = vpack.c.b16 %v1706, %v1705
      %v1720 = vpack.c.b16 %v1708, %v1707
      %v1721 = vpack.c.b16 %v1710, %v1709
      %v1722 = vpack.c.b16 %v1712, %v1711
      %v1723 = vpack.c.b16 %v1714, %v1713
      %v1724 = vpack.c.b16 %v1716, %v1715
      %1733 = vmatprep.subr.bf16.mxu0 0
      %1734 = vmatpush1.bf16.msra.mxu0 %v1717
      %1735 = vmatprep.subr.bf16.mxu0 0
      %1736 = vmatpush1.bf16.msra.mxu0 %v1718
      %1737 = vmatprep.subr.bf16.mxu0 0
      %1738 = vmatpush1.bf16.msra.mxu0 %v1719
      %1739 = vmatprep.subr.bf16.mxu0 0
      %1740 = vmatpush1.bf16.msra.mxu0 %v1720
      %1741 = vmatprep.subr.bf16.mxu0 0
      %1742 = vmatpush1.bf16.msra.mxu0 %v1721
      %1743 = vmatprep.subr.bf16.mxu0 0
      %1744 = vmatpush1.bf16.msra.mxu0 %v1722
      %1745 = vmatprep.subr.bf16.mxu0 0
      %1746 = vmatpush1.bf16.msra.mxu0 %v1723
      %1747 = vmatprep.subr.bf16.mxu0 0
      %1748 = vmatpush1.bf16.msra.mxu0 %v1724
      %1749 = vmatprep.subr.bf16.mxu0 0
      %1750 = vmatpush1.bf16.msra.mxu0 0
      %1751 = vmatprep.subr.bf16.mxu0 0
      %1752 = vmatpush1.bf16.msra.mxu0 0
      %1753 = vmatprep.subr.bf16.mxu0 0
      %1754 = vmatpush1.bf16.msra.mxu0 0
      %1755 = vmatprep.subr.bf16.mxu0 0
      %1756 = vmatpush1.bf16.msra.mxu0 0
      %1757 = vmatprep.subr.bf16.mxu0 0
      %1758 = vmatpush1.bf16.msra.mxu0 0
      %1759 = vmatprep.subr.bf16.mxu0 0
      %1760 = vmatpush1.bf16.msra.mxu0 0
      %1761 = vmatprep.subr.bf16.mxu0 0
      %1762 = vmatpush1.bf16.msra.mxu0 0
      %1763 = vmatprep.subr.bf16.mxu0 0
      %1764 = vmatpush1.bf16.msra.mxu0 0
      %1765 = vmatprep.mubr.bf16.mxu0 0
      %1766 = vmatmul.mubr.bf16.gmra.mrb[0].mxu0 %v1652
      %v1767 = vpop.f32.mrb[0].mxu0
      %v1768 = vadd.f32 0.0, %v1767
      %v1769 = vpop.f32.mrb[0].mxu0
      %v1770 = vpop.f32.mrb[0].mxu0
      %v1771 = vadd.f32 0.0, %v1770
      %v1772 = vpop.f32.mrb[0].mxu0
      %1773 = vmatprep.mubr.bf16.mxu0 0
      %1774 = vmatmul.mubr.bf16.gmra.mrb[0].mxu0 %v1653
      %v1775 = vpop.f32.mrb[0].mxu0
      %v1776 = vadd.f32 0.0, %v1775
      %v1777 = vpop.f32.mrb[0].mxu0
      %v1778 = vpop.f32.mrb[0].mxu0
      %v1779 = vadd.f32 0.0, %v1778
      %v1780 = vpop.f32.mrb[0].mxu0
      %1781 = vmatprep.mubr.bf16.mxu0 0
      %1782 = vmatmul.mubr.bf16.gmra.mrb[0].mxu0 %v1654
      %v1783 = vpop.f32.mrb[0].mxu0
      %v1784 = vadd.f32 0.0, %v1783
      %v1785 = vpop.f32.mrb[0].mxu0
      %v1786 = vpop.f32.mrb[0].mxu0
      %v1787 = vadd.f32 0.0, %v1786
      %v1788 = vpop.f32.mrb[0].mxu0
      %1789 = vmatprep.mubr.bf16.mxu0 0
      %1790 = vmatmul.mubr.bf16.gmra.mrb[0].mxu0 %v1655
      %v1791 = vpop.f32.mrb[0].mxu0
      %v1792 = vadd.f32 0.0, %v1791
      %v1793 = vpop.f32.mrb[0].mxu0
      %v1794 = vpop.f32.mrb[0].mxu0
      %v1795 = vadd.f32 0.0, %v1794
      %v1796 = vpop.f32.mrb[0].mxu0
      %1797 = vmatprep.mubr.bf16.mxu0 0
      %1798 = vmatmul.mubr.bf16.gmra.mrb[0].mxu0 %v1656
      %v1799 = vpop.f32.mrb[0].mxu0
      %v1800 = vadd.f32 0.0, %v1799
      %v1801 = vpop.f32.mrb[0].mxu0
      %v1802 = vpop.f32.mrb[0].mxu0
      %v1803 = vadd.f32 0.0, %v1802
      %v1804 = vpop.f32.mrb[0].mxu0
      %1805 = vmatprep.mubr.bf16.mxu0 0
      %1806 = vmatmul.mubr.bf16.gmra.mrb[0].mxu0 %v1657
      %v1807 = vpop.f32.mrb[0].mxu0
      %v1808 = vadd.f32 0.0, %v1807
      %v1809 = vpop.f32.mrb[0].mxu0
      %v1810 = vpop.f32.mrb[0].mxu0
      %v1811 = vadd.f32 0.0, %v1810
      %v1812 = vpop.f32.mrb[0].mxu0
      %1813 = vmatprep.mubr.bf16.mxu0 0
      %1814 = vmatmul.mubr.bf16.gmra.mrb[0].mxu0 %v1658
      %v1815 = vpop.f32.mrb[0].mxu0
      %v1816 = vadd.f32 0.0, %v1815
      %v1817 = vpop.f32.mrb[0].mxu0
      %v1818 = vpop.f32.mrb[0].mxu0
      %v1819 = vadd.f32 0.0, %v1818
      %v1820 = vpop.f32.mrb[0].mxu0
      %1821 = vmatprep.mubr.bf16.mxu0 0
      %1822 = vmatmul.mubr.bf16.gmra.mrb[0].mxu0 %v1659
      %v1823 = vpop.f32.mrb[0].mxu0
      %v1824 = vadd.f32 0.0, %v1823
      %v1825 = vpop.f32.mrb[0].mxu0
      %v1826 = vpop.f32.mrb[0].mxu0
      %v1827 = vadd.f32 0.0, %v1826
      %v1828 = vpop.f32.mrb[0].mxu0
      %1829 = vmatprep.mubr.bf16.mxu0 0
      %1830 = vmatmul.mubr.bf16.gmra.mrb[0].mxu0 %v1660
      %v1831 = vpop.f32.mrb[0].mxu0
      %v1832 = vadd.f32 0.0, %v1831
      %v1833 = vpop.f32.mrb[0].mxu0
      %v1834 = vpop.f32.mrb[0].mxu0
      %v1835 = vadd.f32 0.0, %v1834
      %v1836 = vpop.f32.mrb[0].mxu0
      %1837 = vmatprep.mubr.bf16.mxu0 0
      %1838 = vmatmul.mubr.bf16.gmra.mrb[0].mxu0 %v1661
      %v1839 = vpop.f32.mrb[0].mxu0
      %v1840 = vadd.f32 0.0, %v1839
      %v1841 = vpop.f32.mrb[0].mxu0
      %v1842 = vpop.f32.mrb[0].mxu0
      %v1843 = vadd.f32 0.0, %v1842
      %v1844 = vpop.f32.mrb[0].mxu0
      %1845 = vmatprep.mubr.bf16.mxu0 0
      %1846 = vmatmul.mubr.bf16.gmra.mrb[0].mxu0 %v1662
      %v1847 = vpop.f32.mrb[0].mxu0
      %v1848 = vadd.f32 0.0, %v1847
      %v1849 = vpop.f32.mrb[0].mxu0
      %v1850 = vpop.f32.mrb[0].mxu0
      %v1851 = vadd.f32 0.0, %v1850
      %v1852 = vpop.f32.mrb[0].mxu0
      %1853 = vmatprep.mubr.bf16.mxu0 0
      %1854 = vmatmul.mubr.bf16.gmra.mrb[0].mxu0 %v1663
      %v1855 = vpop.f32.mrb[0].mxu0
      %v1856 = vadd.f32 0.0, %v1855
      %v1857 = vpop.f32.mrb[0].mxu0
      %v1858 = vpop.f32.mrb[0].mxu0
      %v1859 = vadd.f32 0.0, %v1858
      %v1860 = vpop.f32.mrb[0].mxu0
      %1861 = vmatprep.mubr.bf16.mxu0 0
      %1862 = vmatmul.mubr.bf16.gmra.mrb[0].mxu0 %v1664
      %v1863 = vpop.f32.mrb[0].mxu0
      %v1864 = vadd.f32 0.0, %v1863
      %v1865 = vpop.f32.mrb[0].mxu0
      %v1866 = vpop.f32.mrb[0].mxu0
      %v1867 = vadd.f32 0.0, %v1866
      %v1868 = vpop.f32.mrb[0].mxu0
      %1869 = vmatprep.mubr.bf16.mxu0 0
      %1870 = vmatmul.mubr.bf16.gmra.mrb[0].mxu0 %v1665
      %v1871 = vpop.f32.mrb[0].mxu0
      %v1872 = vadd.f32 0.0, %v1871
      %v1873 = vpop.f32.mrb[0].mxu0
      %v1874 = vpop.f32.mrb[0].mxu0
      %v1875 = vadd.f32 0.0, %v1874
      %v1876 = vpop.f32.mrb[0].mxu0
      %1877 = vmatprep.mubr.bf16.mxu0 0
      %1878 = vmatmul.mubr.bf16.gmra.mrb[0].mxu0 %v1666
      %v1879 = vpop.f32.mrb[0].mxu0
      %v1880 = vadd.f32 0.0, %v1879
      %v1881 = vpop.f32.mrb[0].mxu0
      %v1882 = vpop.f32.mrb[0].mxu0
      %v1883 = vadd.f32 0.0, %v1882
      %v1884 = vpop.f32.mrb[0].mxu0
      %1885 = vmatprep.mubr.bf16.mxu0 0
      %1886 = vmatmul.mubr.bf16.gmra.mrb[0].mxu0 %v1667
      %v1887 = vpop.f32.mrb[0].mxu0
      %v1888 = vadd.f32 0.0, %v1887
      %v1889 = vpop.f32.mrb[0].mxu0
      %v1890 = vpop.f32.mrb[0].mxu0
      %v1891 = vadd.f32 0.0, %v1890
      %v1892 = vpop.f32.mrb[0].mxu0
      %1893 = vdwg.mxu0
      %v1894 = vadd.f32 %v1430, %v1768
      %v1895 = vadd.f32 %v1433, %v1771
      %v1896 = vadd.f32 %v1438, %v1776
      %v1897 = vadd.f32 %v1441, %v1779
      %v1898 = vadd.f32 %v1446, %v1784
      %v1899 = vadd.f32 %v1449, %v1787
      %v1900 = vadd.f32 %v1454, %v1792
      %v1901 = vadd.f32 %v1457, %v1795
      %v1902 = vadd.f32 %v1462, %v1800
      %v1903 = vadd.f32 %v1465, %v1803
      %v1904 = vadd.f32 %v1470, %v1808
      %v1905 = vadd.f32 %v1473, %v1811
      %v1906 = vadd.f32 %v1478, %v1816
      %v1907 = vadd.f32 %v1481, %v1819
      %v1908 = vadd.f32 %v1486, %v1824
      %v1909 = vadd.f32 %v1489, %v1827
      %v1910 = vadd.f32 %v1494, %v1832
      %v1911 = vadd.f32 %v1497, %v1835
      %v1912 = vadd.f32 %v1502, %v1840
      %v1913 = vadd.f32 %v1505, %v1843
      %v1914 = vadd.f32 %v1510, %v1848
      %v1915 = vadd.f32 %v1513, %v1851
      %v1916 = vadd.f32 %v1518, %v1856
      %v1917 = vadd.f32 %v1521, %v1859
      %v1918 = vadd.f32 %v1526, %v1864
      %v1919 = vadd.f32 %v1529, %v1867
      %v1920 = vadd.f32 %v1534, %v1872
      %v1921 = vadd.f32 %v1537, %v1875
      %v1922 = vadd.f32 %v1542, %v1880
      %v1923 = vadd.f32 %v1545, %v1883
      %v1924 = vadd.f32 %v1550, %v1888
      %v1925 = vadd.f32 %v1553, %v1891
      %v1926 = vld [vmem:[#allocation2 + $0x10] sm:$0xff]
      %v1927 = vld [vmem:[#allocation2 + $0x18] sm:$0xff]
      %v1928 = vld [vmem:[#allocation2 + $0x20] sm:$0xff]
      %v1929 = vld [vmem:[#allocation2 + $0x28] sm:$0xff]
      %v1930 = vld [vmem:[#allocation2 + $0x30] sm:$0xff]
      %v1931 = vld [vmem:[#allocation2 + $0x38] sm:$0xff]
      %v1932 = vld [vmem:[#allocation2 + $0x40] sm:$0xff]
      %v1933 = vld [vmem:[#allocation2 + $0x48] sm:$0xff]
      %v1934 = vld [vmem:[#allocation2 + $0x50] sm:$0xff]
      %v1935 = vld [vmem:[#allocation2 + $0x58] sm:$0xff]
      %v1936 = vld [vmem:[#allocation2 + $0x60] sm:$0xff]
      %v1937 = vld [vmem:[#allocation2 + $0x68] sm:$0xff]
      %v1938 = vld [vmem:[#allocation2 + $0x70] sm:$0xff]
      %v1939 = vld [vmem:[#allocation2 + $0x78] sm:$0xff]
      %v1940 = vld [vmem:[#allocation2 + $0x80] sm:$0xff]
      %v1941 = vld [vmem:[#allocation2 + $0x88] sm:$0xff]
      %v1942 = vld [vmem:[#allocation2 + $0x90] sm:$0xff]
      %v1943 = vld [vmem:[#allocation2 + $0x98] sm:$0xff]
      %v1944 = vld [vmem:[#allocation2 + $0xa0] sm:$0xff]
      %v1945 = vld [vmem:[#allocation2 + $0xa8] sm:$0xff]
      %v1946 = vld [vmem:[#allocation2 + $0xb0] sm:$0xff]
      %v1947 = vld [vmem:[#allocation2 + $0xb8] sm:$0xff]
      %v1948 = vld [vmem:[#allocation2 + $0xc0] sm:$0xff]
      %v1949 = vld [vmem:[#allocation2 + $0xc8] sm:$0xff]
      %v1950 = vld [vmem:[#allocation2 + $0xd0] sm:$0xff]
      %v1951 = vld [vmem:[#allocation2 + $0xd8] sm:$0xff]
      %v1952 = vld [vmem:[#allocation2 + $0xe0] sm:$0xff]
      %v1953 = vld [vmem:[#allocation2 + $0xe8] sm:$0xff]
      %v1954 = vld [vmem:[#allocation2 + $0xf0] sm:$0xff]
      %v1955 = vld [vmem:[#allocation2 + $0xf8] sm:$0xff]
      %v1956 = vld [vmem:[#allocation2 + $0x100] sm:$0xff]
      %v1957 = vld [vmem:[#allocation2 + $0x108] sm:$0xff]
      %v1958 = vsel %vm977, %v1926, 0.0
      %v1959 = vsel %vm978, %v1927, 0.0
      %v1960 = vsel %vm979, %v1928, 0.0
      %v1961 = vsel %vm980, %v1929, 0.0
      %v1962 = vsel %vm981, %v1930, 0.0
      %v1963 = vsel %vm982, %v1931, 0.0
      %v1964 = vsel %vm983, %v1932, 0.0
      %v1965 = vsel %vm984, %v1933, 0.0
      %v1966 = vsel %vm985, %v1934, 0.0
      %v1967 = vsel %vm986, %v1935, 0.0
      %v1968 = vsel %vm987, %v1936, 0.0
      %v1969 = vsel %vm988, %v1937, 0.0
      %v1970 = vsel %vm989, %v1938, 0.0
      %v1971 = vsel %vm990, %v1939, 0.0
      %v1972 = vsel %vm991, %v1940, 0.0
      %v1973 = vsel %vm992, %v1941, 0.0
      %v1974 = vsel %vm993, %v1942, 0.0
      %v1975 = vsel %vm994, %v1943, 0.0
      %v1976 = vsel %vm995, %v1944, 0.0
      %v1977 = vsel %vm996, %v1945, 0.0
      %v1978 = vsel %vm997, %v1946, 0.0
      %v1979 = vsel %vm998, %v1947, 0.0
      %v1980 = vsel %vm999, %v1948, 0.0
      %v1981 = vsel %vm1000, %v1949, 0.0
      %v1982 = vsel %vm1001, %v1950, 0.0
      %v1983 = vsel %vm1002, %v1951, 0.0
      %v1984 = vsel %vm1003, %v1952, 0.0
      %v1985 = vsel %vm1004, %v1953, 0.0
      %v1986 = vsel %vm1005, %v1954, 0.0
      %v1987 = vsel %vm1006, %v1955, 0.0
      %v1988 = vsel %vm1007, %v1956, 0.0
      %v1989 = vsel %vm1008, %v1957, 0.0
      %v1990 = vpack.c.bf16 %v1959, %v1958
      %v1991 = vpack.c.bf16 %v1961, %v1960
      %v1992 = vpack.c.bf16 %v1963, %v1962
      %v1993 = vpack.c.bf16 %v1965, %v1964
      %v1994 = vpack.c.bf16 %v1967, %v1966
      %v1995 = vpack.c.bf16 %v1969, %v1968
      %v1996 = vpack.c.bf16 %v1971, %v1970
      %v1997 = vpack.c.bf16 %v1973, %v1972
      %v1998 = vpack.c.bf16 %v1975, %v1974
      %v1999 = vpack.c.bf16 %v1977, %v1976
      %v2000 = vpack.c.bf16 %v1979, %v1978
      %v2001 = vpack.c.bf16 %v1981, %v1980
      %v2002 = vpack.c.bf16 %v1983, %v1982
      %v2003 = vpack.c.bf16 %v1985, %v1984
      %v2004 = vpack.c.bf16 %v1987, %v1986
      %v2005 = vpack.c.bf16 %v1989, %v1988
      %s2006 = scalar_lea.vmem %s4, 192
      %v2007 = vld [vmem:[%s2006] sm:$0xf]
      %v2008 = vld [vmem:[%s2006 + $0x4] sm:$0xf]
      %v2009 = vld [vmem:[%s2006 + $0x8] sm:$0xf]
      %v2010 = vld [vmem:[%s2006 + $0xc] sm:$0xf]
      %v2011 = vld [vmem:[%s2006 + $0x10] sm:$0xf]
      %v2012 = vld [vmem:[%s2006 + $0x14] sm:$0xf]
      %v2013 = vld [vmem:[%s2006 + $0x18] sm:$0xf]
      %v2014 = vld [vmem:[%s2006 + $0x1c] sm:$0xf]
      %v2015 = vld [vmem:[%s2006 + $0x20] sm:$0xf]
      %v2016 = vld [vmem:[%s2006 + $0x24] sm:$0xf]
      %v2017 = vld [vmem:[%s2006 + $0x28] sm:$0xf]
      %v2018 = vld [vmem:[%s2006 + $0x2c] sm:$0xf]
      %v2019 = vld [vmem:[%s2006 + $0x30] sm:$0xf]
      %v2020 = vld [vmem:[%s2006 + $0x34] sm:$0xf]
      %v2021 = vld [vmem:[%s2006 + $0x38] sm:$0xf]
      %v2022 = vld [vmem:[%s2006 + $0x3c] sm:$0xf]
      %v2039 = vunpack.c.l.b16 %v2007
      %v2040 = vunpack.c.l.b16 %v2008
      %v2041 = vunpack.c.l.b16 %v2009
      %v2042 = vunpack.c.l.b16 %v2010
      %v2043 = vunpack.c.l.b16 %v2011
      %v2044 = vunpack.c.l.b16 %v2012
      %v2045 = vunpack.c.l.b16 %v2013
      %v2046 = vunpack.c.l.b16 %v2014
      %v2047 = vunpack.c.l.b16 %v2015
      %v2048 = vunpack.c.l.b16 %v2016
      %v2049 = vunpack.c.l.b16 %v2017
      %v2050 = vunpack.c.l.b16 %v2018
      %v2051 = vunpack.c.l.b16 %v2019
      %v2052 = vunpack.c.l.b16 %v2020
      %v2053 = vunpack.c.l.b16 %v2021
      %v2054 = vunpack.c.l.b16 %v2022
      %v2055 = vpack.c.b16 %v2040, %v2039
      %v2056 = vpack.c.b16 %v2042, %v2041
      %v2057 = vpack.c.b16 %v2044, %v2043
      %v2058 = vpack.c.b16 %v2046, %v2045
      %v2059 = vpack.c.b16 %v2048, %v2047
      %v2060 = vpack.c.b16 %v2050, %v2049
      %v2061 = vpack.c.b16 %v2052, %v2051
      %v2062 = vpack.c.b16 %v2054, %v2053
      %2071 = vmatprep.subr.bf16.mxu0 0
      %2072 = vmatpush1.bf16.msra.mxu0 %v2055
      %2073 = vmatprep.subr.bf16.mxu0 0
      %2074 = vmatpush1.bf16.msra.mxu0 %v2056
      %2075 = vmatprep.subr.bf16.mxu0 0
      %2076 = vmatpush1.bf16.msra.mxu0 %v2057
      %2077 = vmatprep.subr.bf16.mxu0 0
      %2078 = vmatpush1.bf16.msra.mxu0 %v2058
      %2079 = vmatprep.subr.bf16.mxu0 0
      %2080 = vmatpush1.bf16.msra.mxu0 %v2059
      %2081 = vmatprep.subr.bf16.mxu0 0
      %2082 = vmatpush1.bf16.msra.mxu0 %v2060
      %2083 = vmatprep.subr.bf16.mxu0 0
      %2084 = vmatpush1.bf16.msra.mxu0 %v2061
      %2085 = vmatprep.subr.bf16.mxu0 0
      %2086 = vmatpush1.bf16.msra.mxu0 %v2062
      %2087 = vmatprep.subr.bf16.mxu0 0
      %2088 = vmatpush1.bf16.msra.mxu0 0
      %2089 = vmatprep.subr.bf16.mxu0 0
      %2090 = vmatpush1.bf16.msra.mxu0 0
      %2091 = vmatprep.subr.bf16.mxu0 0
      %2092 = vmatpush1.bf16.msra.mxu0 0
      %2093 = vmatprep.subr.bf16.mxu0 0
      %2094 = vmatpush1.bf16.msra.mxu0 0
      %2095 = vmatprep.subr.bf16.mxu0 0
      %2096 = vmatpush1.bf16.msra.mxu0 0
      %2097 = vmatprep.subr.bf16.mxu0 0
      %2098 = vmatpush1.bf16.msra.mxu0 0
      %2099 = vmatprep.subr.bf16.mxu0 0
      %2100 = vmatpush1.bf16.msra.mxu0 0
      %2101 = vmatprep.subr.bf16.mxu0 0
      %2102 = vmatpush1.bf16.msra.mxu0 0
      %2103 = vmatprep.mubr.bf16.mxu0 0
      %2104 = vmatmul.mubr.bf16.gmra.mrb[0].mxu0 %v1990
      %v2105 = vpop.f32.mrb[0].mxu0
      %v2106 = vadd.f32 0.0, %v2105
      %v2107 = vpop.f32.mrb[0].mxu0
      %v2108 = vpop.f32.mrb[0].mxu0
      %v2109 = vadd.f32 0.0, %v2108
      %v2110 = vpop.f32.mrb[0].mxu0
      %2111 = vmatprep.mubr.bf16.mxu0 0
      %2112 = vmatmul.mubr.bf16.gmra.mrb[0].mxu0 %v1991
      %v2113 = vpop.f32.mrb[0].mxu0
      %v2114 = vadd.f32 0.0, %v2113
      %v2115 = vpop.f32.mrb[0].mxu0
      %v2116 = vpop.f32.mrb[0].mxu0
      %v2117 = vadd.f32 0.0, %v2116
      %v2118 = vpop.f32.mrb[0].mxu0
      %2119 = vmatprep.mubr.bf16.mxu0 0
      %2120 = vmatmul.mubr.bf16.gmra.mrb[0].mxu0 %v1992
      %v2121 = vpop.f32.mrb[0].mxu0
      %v2122 = vadd.f32 0.0, %v2121
      %v2123 = vpop.f32.mrb[0].mxu0
      %v2124 = vpop.f32.mrb[0].mxu0
      %v2125 = vadd.f32 0.0, %v2124
      %v2126 = vpop.f32.mrb[0].mxu0
      %2127 = vmatprep.mubr.bf16.mxu0 0
      %2128 = vmatmul.mubr.bf16.gmra.mrb[0].mxu0 %v1993
      %v2129 = vpop.f32.mrb[0].mxu0
      %v2130 = vadd.f32 0.0, %v2129
      %v2131 = vpop.f32.mrb[0].mxu0
      %v2132 = vpop.f32.mrb[0].mxu0
      %v2133 = vadd.f32 0.0, %v2132
      %v2134 = vpop.f32.mrb[0].mxu0
      %2135 = vmatprep.mubr.bf16.mxu0 0
      %2136 = vmatmul.mubr.bf16.gmra.mrb[0].mxu0 %v1994
      %v2137 = vpop.f32.mrb[0].mxu0
      %v2138 = vadd.f32 0.0, %v2137
      %v2139 = vpop.f32.mrb[0].mxu0
      %v2140 = vpop.f32.mrb[0].mxu0
      %v2141 = vadd.f32 0.0, %v2140
      %v2142 = vpop.f32.mrb[0].mxu0
      %2143 = vmatprep.mubr.bf16.mxu0 0
      %2144 = vmatmul.mubr.bf16.gmra.mrb[0].mxu0 %v1995
      %v2145 = vpop.f32.mrb[0].mxu0
      %v2146 = vadd.f32 0.0, %v2145
      %v2147 = vpop.f32.mrb[0].mxu0
      %v2148 = vpop.f32.mrb[0].mxu0
      %v2149 = vadd.f32 0.0, %v2148
      %v2150 = vpop.f32.mrb[0].mxu0
      %2151 = vmatprep.mubr.bf16.mxu0 0
      %2152 = vmatmul.mubr.bf16.gmra.mrb[0].mxu0 %v1996
      %v2153 = vpop.f32.mrb[0].mxu0
      %v2154 = vadd.f32 0.0, %v2153
      %v2155 = vpop.f32.mrb[0].mxu0
      %v2156 = vpop.f32.mrb[0].mxu0
      %v2157 = vadd.f32 0.0, %v2156
      %v2158 = vpop.f32.mrb[0].mxu0
      %2159 = vmatprep.mubr.bf16.mxu0 0
      %2160 = vmatmul.mubr.bf16.gmra.mrb[0].mxu0 %v1997
      %v2161 = vpop.f32.mrb[0].mxu0
      %v2162 = vadd.f32 0.0, %v2161
      %v2163 = vpop.f32.mrb[0].mxu0
      %v2164 = vpop.f32.mrb[0].mxu0
      %v2165 = vadd.f32 0.0, %v2164
      %v2166 = vpop.f32.mrb[0].mxu0
      %2167 = vmatprep.mubr.bf16.mxu0 0
      %2168 = vmatmul.mubr.bf16.gmra.mrb[0].mxu0 %v1998
      %v2169 = vpop.f32.mrb[0].mxu0
      %v2170 = vadd.f32 0.0, %v2169
      %v2171 = vpop.f32.mrb[0].mxu0
      %v2172 = vpop.f32.mrb[0].mxu0
      %v2173 = vadd.f32 0.0, %v2172
      %v2174 = vpop.f32.mrb[0].mxu0
      %2175 = vmatprep.mubr.bf16.mxu0 0
      %2176 = vmatmul.mubr.bf16.gmra.mrb[0].mxu0 %v1999
      %v2177 = vpop.f32.mrb[0].mxu0
      %v2178 = vadd.f32 0.0, %v2177
      %v2179 = vpop.f32.mrb[0].mxu0
      %v2180 = vpop.f32.mrb[0].mxu0
      %v2181 = vadd.f32 0.0, %v2180
      %v2182 = vpop.f32.mrb[0].mxu0
      %2183 = vmatprep.mubr.bf16.mxu0 0
      %2184 = vmatmul.mubr.bf16.gmra.mrb[0].mxu0 %v2000
      %v2185 = vpop.f32.mrb[0].mxu0
      %v2186 = vadd.f32 0.0, %v2185
      %v2187 = vpop.f32.mrb[0].mxu0
      %v2188 = vpop.f32.mrb[0].mxu0
      %v2189 = vadd.f32 0.0, %v2188
      %v2190 = vpop.f32.mrb[0].mxu0
      %2191 = vmatprep.mubr.bf16.mxu0 0
      %2192 = vmatmul.mubr.bf16.gmra.mrb[0].mxu0 %v2001
      %v2193 = vpop.f32.mrb[0].mxu0
      %v2194 = vadd.f32 0.0, %v2193
      %v2195 = vpop.f32.mrb[0].mxu0
      %v2196 = vpop.f32.mrb[0].mxu0
      %v2197 = vadd.f32 0.0, %v2196
      %v2198 = vpop.f32.mrb[0].mxu0
      %2199 = vmatprep.mubr.bf16.mxu0 0
      %2200 = vmatmul.mubr.bf16.gmra.mrb[0].mxu0 %v2002
      %v2201 = vpop.f32.mrb[0].mxu0
      %v2202 = vadd.f32 0.0, %v2201
      %v2203 = vpop.f32.mrb[0].mxu0
      %v2204 = vpop.f32.mrb[0].mxu0
      %v2205 = vadd.f32 0.0, %v2204
      %v2206 = vpop.f32.mrb[0].mxu0
      %2207 = vmatprep.mubr.bf16.mxu0 0
      %2208 = vmatmul.mubr.bf16.gmra.mrb[0].mxu0 %v2003
      %v2209 = vpop.f32.mrb[0].mxu0
      %v2210 = vadd.f32 0.0, %v2209
      %v2211 = vpop.f32.mrb[0].mxu0
      %v2212 = vpop.f32.mrb[0].mxu0
      %v2213 = vadd.f32 0.0, %v2212
      %v2214 = vpop.f32.mrb[0].mxu0
      %2215 = vmatprep.mubr.bf16.mxu0 0
      %2216 = vmatmul.mubr.bf16.gmra.mrb[0].mxu0 %v2004
      %v2217 = vpop.f32.mrb[0].mxu0
      %v2218 = vadd.f32 0.0, %v2217
      %v2219 = vpop.f32.mrb[0].mxu0
      %v2220 = vpop.f32.mrb[0].mxu0
      %v2221 = vadd.f32 0.0, %v2220
      %v2222 = vpop.f32.mrb[0].mxu0
      %2223 = vmatprep.mubr.bf16.mxu0 0
      %2224 = vmatmul.mubr.bf16.gmra.mrb[0].mxu0 %v2005
      %v2225 = vpop.f32.mrb[0].mxu0
      %v2226 = vadd.f32 0.0, %v2225
      %v2227 = vpop.f32.mrb[0].mxu0
      %v2228 = vpop.f32.mrb[0].mxu0
      %v2229 = vadd.f32 0.0, %v2228
      %v2230 = vpop.f32.mrb[0].mxu0
      %2231 = vdwg.mxu0
      %v2232 = vadd.f32 %v1894, %v2106
      %v2233 = vadd.f32 %v1895, %v2109
      %v2234 = vadd.f32 %v1896, %v2114
      %v2235 = vadd.f32 %v1897, %v2117
      %v2236 = vadd.f32 %v1898, %v2122
      %v2237 = vadd.f32 %v1899, %v2125
      %v2238 = vadd.f32 %v1900, %v2130
      %v2239 = vadd.f32 %v1901, %v2133
      %v2240 = vadd.f32 %v1902, %v2138
      %v2241 = vadd.f32 %v1903, %v2141
      %v2242 = vadd.f32 %v1904, %v2146
      %v2243 = vadd.f32 %v1905, %v2149
      %v2244 = vadd.f32 %v1906, %v2154
      %v2245 = vadd.f32 %v1907, %v2157
      %v2246 = vadd.f32 %v1908, %v2162
      %v2247 = vadd.f32 %v1909, %v2165
      %v2248 = vadd.f32 %v1910, %v2170
      %v2249 = vadd.f32 %v1911, %v2173
      %v2250 = vadd.f32 %v1912, %v2178
      %v2251 = vadd.f32 %v1913, %v2181
      %v2252 = vadd.f32 %v1914, %v2186
      %v2253 = vadd.f32 %v1915, %v2189
      %v2254 = vadd.f32 %v1916, %v2194
      %v2255 = vadd.f32 %v1917, %v2197
      %v2256 = vadd.f32 %v1918, %v2202
      %v2257 = vadd.f32 %v1919, %v2205
      %v2258 = vadd.f32 %v1920, %v2210
      %v2259 = vadd.f32 %v1921, %v2213
      %v2260 = vadd.f32 %v1922, %v2218
      %v2261 = vadd.f32 %v1923, %v2221
      %v2262 = vadd.f32 %v1924, %v2226
      %v2263 = vadd.f32 %v1925, %v2229
      %v2264 = vld [vmem:[#allocation2 + $0x11] sm:$0xff]
      %v2265 = vld [vmem:[#allocation2 + $0x19] sm:$0xff]
      %v2266 = vld [vmem:[#allocation2 + $0x21] sm:$0xff]
      %v2267 = vld [vmem:[#allocation2 + $0x29] sm:$0xff]
      %v2268 = vld [vmem:[#allocation2 + $0x31] sm:$0xff]
      %v2269 = vld [vmem:[#allocation2 + $0x39] sm:$0xff]
      %v2270 = vld [vmem:[#allocation2 + $0x41] sm:$0xff]
      %v2271 = vld [vmem:[#allocation2 + $0x49] sm:$0xff]
      %v2272 = vld [vmem:[#allocation2 + $0x51] sm:$0xff]
      %v2273 = vld [vmem:[#allocation2 + $0x59] sm:$0xff]
      %v2274 = vld [vmem:[#allocation2 + $0x61] sm:$0xff]
      %v2275 = vld [vmem:[#allocation2 + $0x69] sm:$0xff]
      %v2276 = vld [vmem:[#allocation2 + $0x71] sm:$0xff]
      %v2277 = vld [vmem:[#allocation2 + $0x79] sm:$0xff]
      %v2278 = vld [vmem:[#allocation2 + $0x81] sm:$0xff]
      %v2279 = vld [vmem:[#allocation2 + $0x89] sm:$0xff]
      %v2280 = vld [vmem:[#allocation2 + $0x91] sm:$0xff]
      %v2281 = vld [vmem:[#allocation2 + $0x99] sm:$0xff]
      %v2282 = vld [vmem:[#allocation2 + $0xa1] sm:$0xff]
      %v2283 = vld [vmem:[#allocation2 + $0xa9] sm:$0xff]
      %v2284 = vld [vmem:[#allocation2 + $0xb1] sm:$0xff]
      %v2285 = vld [vmem:[#allocation2 + $0xb9] sm:$0xff]
      %v2286 = vld [vmem:[#allocation2 + $0xc1] sm:$0xff]
      %v2287 = vld [vmem:[#allocation2 + $0xc9] sm:$0xff]
      %v2288 = vld [vmem:[#allocation2 + $0xd1] sm:$0xff]
      %v2289 = vld [vmem:[#allocation2 + $0xd9] sm:$0xff]
      %v2290 = vld [vmem:[#allocation2 + $0xe1] sm:$0xff]
      %v2291 = vld [vmem:[#allocation2 + $0xe9] sm:$0xff]
      %v2292 = vld [vmem:[#allocation2 + $0xf1] sm:$0xff]
      %v2293 = vld [vmem:[#allocation2 + $0xf9] sm:$0xff]
      %v2294 = vld [vmem:[#allocation2 + $0x101] sm:$0xff]
      %v2295 = vld [vmem:[#allocation2 + $0x109] sm:$0xff]
      %v2296 = vpack.c.bf16 %v2265, %v2264
      %v2297 = vpack.c.bf16 %v2267, %v2266
      %v2298 = vpack.c.bf16 %v2269, %v2268
      %v2299 = vpack.c.bf16 %v2271, %v2270
      %v2300 = vpack.c.bf16 %v2273, %v2272
      %v2301 = vpack.c.bf16 %v2275, %v2274
      %v2302 = vpack.c.bf16 %v2277, %v2276
      %v2303 = vpack.c.bf16 %v2279, %v2278
      %v2304 = vpack.c.bf16 %v2281, %v2280
      %v2305 = vpack.c.bf16 %v2283, %v2282
      %v2306 = vpack.c.bf16 %v2285, %v2284
      %v2307 = vpack.c.bf16 %v2287, %v2286
      %v2308 = vpack.c.bf16 %v2289, %v2288
      %v2309 = vpack.c.bf16 %v2291, %v2290
      %v2310 = vpack.c.bf16 %v2293, %v2292
      %v2311 = vpack.c.bf16 %v2295, %v2294
      %s2312 = scalar_lea.vmem %s4, 256
      %v2313 = vld [vmem:[%s2312] sm:$0xf]
      %v2314 = vld [vmem:[%s2312 + $0x4] sm:$0xf]
      %v2315 = vld [vmem:[%s2312 + $0x8] sm:$0xf]
      %v2316 = vld [vmem:[%s2312 + $0xc] sm:$0xf]
      %v2317 = vld [vmem:[%s2312 + $0x10] sm:$0xf]
      %v2318 = vld [vmem:[%s2312 + $0x14] sm:$0xf]
      %v2319 = vld [vmem:[%s2312 + $0x18] sm:$0xf]
      %v2320 = vld [vmem:[%s2312 + $0x1c] sm:$0xf]
      %v2321 = vld [vmem:[%s2312 + $0x20] sm:$0xf]
      %v2322 = vld [vmem:[%s2312 + $0x24] sm:$0xf]
      %v2323 = vld [vmem:[%s2312 + $0x28] sm:$0xf]
      %v2324 = vld [vmem:[%s2312 + $0x2c] sm:$0xf]
      %v2325 = vld [vmem:[%s2312 + $0x30] sm:$0xf]
      %v2326 = vld [vmem:[%s2312 + $0x34] sm:$0xf]
      %v2327 = vld [vmem:[%s2312 + $0x38] sm:$0xf]
      %v2328 = vld [vmem:[%s2312 + $0x3c] sm:$0xf]
      %v2345 = vunpack.c.l.b16 %v2313
      %v2346 = vunpack.c.l.b16 %v2314
      %v2347 = vunpack.c.l.b16 %v2315
      %v2348 = vunpack.c.l.b16 %v2316
      %v2349 = vunpack.c.l.b16 %v2317
      %v2350 = vunpack.c.l.b16 %v2318
      %v2351 = vunpack.c.l.b16 %v2319
      %v2352 = vunpack.c.l.b16 %v2320
      %v2353 = vunpack.c.l.b16 %v2321
      %v2354 = vunpack.c.l.b16 %v2322
      %v2355 = vunpack.c.l.b16 %v2323
      %v2356 = vunpack.c.l.b16 %v2324
      %v2357 = vunpack.c.l.b16 %v2325
      %v2358 = vunpack.c.l.b16 %v2326
      %v2359 = vunpack.c.l.b16 %v2327
      %v2360 = vunpack.c.l.b16 %v2328
      %v2361 = vpack.c.b16 %v2346, %v2345
      %v2362 = vpack.c.b16 %v2348, %v2347
      %v2363 = vpack.c.b16 %v2350, %v2349
      %v2364 = vpack.c.b16 %v2352, %v2351
      %v2365 = vpack.c.b16 %v2354, %v2353
      %v2366 = vpack.c.b16 %v2356, %v2355
      %v2367 = vpack.c.b16 %v2358, %v2357
      %v2368 = vpack.c.b16 %v2360, %v2359
      %2377 = vmatprep.subr.bf16.mxu0 0
      %2378 = vmatpush1.bf16.msra.mxu0 %v2361
      %2379 = vmatprep.subr.bf16.mxu0 0
      %2380 = vmatpush1.bf16.msra.mxu0 %v2362
      %2381 = vmatprep.subr.bf16.mxu0 0
      %2382 = vmatpush1.bf16.msra.mxu0 %v2363
      %2383 = vmatprep.subr.bf16.mxu0 0
      %2384 = vmatpush1.bf16.msra.mxu0 %v2364
      %2385 = vmatprep.subr.bf16.mxu0 0
      %2386 = vmatpush1.bf16.msra.mxu0 %v2365
      %2387 = vmatprep.subr.bf16.mxu0 0
      %2388 = vmatpush1.bf16.msra.mxu0 %v2366
      %2389 = vmatprep.subr.bf16.mxu0 0
      %2390 = vmatpush1.bf16.msra.mxu0 %v2367
      %2391 = vmatprep.subr.bf16.mxu0 0
      %2392 = vmatpush1.bf16.msra.mxu0 %v2368
      %2393 = vmatprep.subr.bf16.mxu0 0
      %2394 = vmatpush1.bf16.msra.mxu0 0
      %2395 = vmatprep.subr.bf16.mxu0 0
      %2396 = vmatpush1.bf16.msra.mxu0 0
      %2397 = vmatprep.subr.bf16.mxu0 0
      %2398 = vmatpush1.bf16.msra.mxu0 0
      %2399 = vmatprep.subr.bf16.mxu0 0
      %2400 = vmatpush1.bf16.msra.mxu0 0
      %2401 = vmatprep.subr.bf16.mxu0 0
      %2402 = vmatpush1.bf16.msra.mxu0 0
      %2403 = vmatprep.subr.bf16.mxu0 0
      %2404 = vmatpush1.bf16.msra.mxu0 0
      %2405 = vmatprep.subr.bf16.mxu0 0
      %2406 = vmatpush1.bf16.msra.mxu0 0
      %2407 = vmatprep.subr.bf16.mxu0 0
      %2408 = vmatpush1.bf16.msra.mxu0 0
      %2409 = vmatprep.mubr.bf16.mxu0 0
      %2410 = vmatmul.mubr.bf16.gmra.mrb[0].mxu0 %v2296
      %v2411 = vpop.f32.mrb[0].mxu0
      %v2412 = vadd.f32 0.0, %v2411
      %v2413 = vpop.f32.mrb[0].mxu0
      %v2414 = vpop.f32.mrb[0].mxu0
      %v2415 = vadd.f32 0.0, %v2414
      %v2416 = vpop.f32.mrb[0].mxu0
      %2417 = vmatprep.mubr.bf16.mxu0 0
      %2418 = vmatmul.mubr.bf16.gmra.mrb[0].mxu0 %v2297
      %v2419 = vpop.f32.mrb[0].mxu0
      %v2420 = vadd.f32 0.0, %v2419
      %v2421 = vpop.f32.mrb[0].mxu0
      %v2422 = vpop.f32.mrb[0].mxu0
      %v2423 = vadd.f32 0.0, %v2422
      %v2424 = vpop.f32.mrb[0].mxu0
      %2425 = vmatprep.mubr.bf16.mxu0 0
      %2426 = vmatmul.mubr.bf16.gmra.mrb[0].mxu0 %v2298
      %v2427 = vpop.f32.mrb[0].mxu0
      %v2428 = vadd.f32 0.0, %v2427
      %v2429 = vpop.f32.mrb[0].mxu0
      %v2430 = vpop.f32.mrb[0].mxu0
      %v2431 = vadd.f32 0.0, %v2430
      %v2432 = vpop.f32.mrb[0].mxu0
      %2433 = vmatprep.mubr.bf16.mxu0 0
      %2434 = vmatmul.mubr.bf16.gmra.mrb[0].mxu0 %v2299
      %v2435 = vpop.f32.mrb[0].mxu0
      %v2436 = vadd.f32 0.0, %v2435
      %v2437 = vpop.f32.mrb[0].mxu0
      %v2438 = vpop.f32.mrb[0].mxu0
      %v2439 = vadd.f32 0.0, %v2438
      %v2440 = vpop.f32.mrb[0].mxu0
      %2441 = vmatprep.mubr.bf16.mxu0 0
      %2442 = vmatmul.mubr.bf16.gmra.mrb[0].mxu0 %v2300
      %v2443 = vpop.f32.mrb[0].mxu0
      %v2444 = vadd.f32 0.0, %v2443
      %v2445 = vpop.f32.mrb[0].mxu0
      %v2446 = vpop.f32.mrb[0].mxu0
      %v2447 = vadd.f32 0.0, %v2446
      %v2448 = vpop.f32.mrb[0].mxu0
      %2449 = vmatprep.mubr.bf16.mxu0 0
      %2450 = vmatmul.mubr.bf16.gmra.mrb[0].mxu0 %v2301
      %v2451 = vpop.f32.mrb[0].mxu0
      %v2452 = vadd.f32 0.0, %v2451
      %v2453 = vpop.f32.mrb[0].mxu0
      %v2454 = vpop.f32.mrb[0].mxu0
      %v2455 = vadd.f32 0.0, %v2454
      %v2456 = vpop.f32.mrb[0].mxu0
      %2457 = vmatprep.mubr.bf16.mxu0 0
      %2458 = vmatmul.mubr.bf16.gmra.mrb[0].mxu0 %v2302
      %v2459 = vpop.f32.mrb[0].mxu0
      %v2460 = vadd.f32 0.0, %v2459
      %v2461 = vpop.f32.mrb[0].mxu0
      %v2462 = vpop.f32.mrb[0].mxu0
      %v2463 = vadd.f32 0.0, %v2462
      %v2464 = vpop.f32.mrb[0].mxu0
      %2465 = vmatprep.mubr.bf16.mxu0 0
      %2466 = vmatmul.mubr.bf16.gmra.mrb[0].mxu0 %v2303
      %v2467 = vpop.f32.mrb[0].mxu0
      %v2468 = vadd.f32 0.0, %v2467
      %v2469 = vpop.f32.mrb[0].mxu0
      %v2470 = vpop.f32.mrb[0].mxu0
      %v2471 = vadd.f32 0.0, %v2470
      %v2472 = vpop.f32.mrb[0].mxu0
      %2473 = vmatprep.mubr.bf16.mxu0 0
      %2474 = vmatmul.mubr.bf16.gmra.mrb[0].mxu0 %v2304
      %v2475 = vpop.f32.mrb[0].mxu0
      %v2476 = vadd.f32 0.0, %v2475
      %v2477 = vpop.f32.mrb[0].mxu0
      %v2478 = vpop.f32.mrb[0].mxu0
      %v2479 = vadd.f32 0.0, %v2478
      %v2480 = vpop.f32.mrb[0].mxu0
      %2481 = vmatprep.mubr.bf16.mxu0 0
      %2482 = vmatmul.mubr.bf16.gmra.mrb[0].mxu0 %v2305
      %v2483 = vpop.f32.mrb[0].mxu0
      %v2484 = vadd.f32 0.0, %v2483
      %v2485 = vpop.f32.mrb[0].mxu0
      %v2486 = vpop.f32.mrb[0].mxu0
      %v2487 = vadd.f32 0.0, %v2486
      %v2488 = vpop.f32.mrb[0].mxu0
      %2489 = vmatprep.mubr.bf16.mxu0 0
      %2490 = vmatmul.mubr.bf16.gmra.mrb[0].mxu0 %v2306
      %v2491 = vpop.f32.mrb[0].mxu0
      %v2492 = vadd.f32 0.0, %v2491
      %v2493 = vpop.f32.mrb[0].mxu0
      %v2494 = vpop.f32.mrb[0].mxu0
      %v2495 = vadd.f32 0.0, %v2494
      %v2496 = vpop.f32.mrb[0].mxu0
      %2497 = vmatprep.mubr.bf16.mxu0 0
      %2498 = vmatmul.mubr.bf16.gmra.mrb[0].mxu0 %v2307
      %v2499 = vpop.f32.mrb[0].mxu0
      %v2500 = vadd.f32 0.0, %v2499
      %v2501 = vpop.f32.mrb[0].mxu0
      %v2502 = vpop.f32.mrb[0].mxu0
      %v2503 = vadd.f32 0.0, %v2502
      %v2504 = vpop.f32.mrb[0].mxu0
      %2505 = vmatprep.mubr.bf16.mxu0 0
      %2506 = vmatmul.mubr.bf16.gmra.mrb[0].mxu0 %v2308
      %v2507 = vpop.f32.mrb[0].mxu0
      %v2508 = vadd.f32 0.0, %v2507
      %v2509 = vpop.f32.mrb[0].mxu0
      %v2510 = vpop.f32.mrb[0].mxu0
      %v2511 = vadd.f32 0.0, %v2510
      %v2512 = vpop.f32.mrb[0].mxu0
      %2513 = vmatprep.mubr.bf16.mxu0 0
      %2514 = vmatmul.mubr.bf16.gmra.mrb[0].mxu0 %v2309
      %v2515 = vpop.f32.mrb[0].mxu0
      %v2516 = vadd.f32 0.0, %v2515
      %v2517 = vpop.f32.mrb[0].mxu0
      %v2518 = vpop.f32.mrb[0].mxu0
      %v2519 = vadd.f32 0.0, %v2518
      %v2520 = vpop.f32.mrb[0].mxu0
      %2521 = vmatprep.mubr.bf16.mxu0 0
      %2522 = vmatmul.mubr.bf16.gmra.mrb[0].mxu0 %v2310
      %v2523 = vpop.f32.mrb[0].mxu0
      %v2524 = vadd.f32 0.0, %v2523
      %v2525 = vpop.f32.mrb[0].mxu0
      %v2526 = vpop.f32.mrb[0].mxu0
      %v2527 = vadd.f32 0.0, %v2526
      %v2528 = vpop.f32.mrb[0].mxu0
      %2529 = vmatprep.mubr.bf16.mxu0 0
      %2530 = vmatmul.mubr.bf16.gmra.mrb[0].mxu0 %v2311
      %v2531 = vpop.f32.mrb[0].mxu0
      %v2532 = vadd.f32 0.0, %v2531
      %v2533 = vpop.f32.mrb[0].mxu0
      %v2534 = vpop.f32.mrb[0].mxu0
      %v2535 = vadd.f32 0.0, %v2534
      %v2536 = vpop.f32.mrb[0].mxu0
      %2537 = vdwg.mxu0
      %v2538 = vadd.f32 %v2232, %v2412
      %v2539 = vadd.f32 %v2233, %v2415
      %v2540 = vadd.f32 %v2234, %v2420
      %v2541 = vadd.f32 %v2235, %v2423
      %v2542 = vadd.f32 %v2236, %v2428
      %v2543 = vadd.f32 %v2237, %v2431
      %v2544 = vadd.f32 %v2238, %v2436
      %v2545 = vadd.f32 %v2239, %v2439
      %v2546 = vadd.f32 %v2240, %v2444
      %v2547 = vadd.f32 %v2241, %v2447
      %v2548 = vadd.f32 %v2242, %v2452
      %v2549 = vadd.f32 %v2243, %v2455
      %v2550 = vadd.f32 %v2244, %v2460
      %v2551 = vadd.f32 %v2245, %v2463
      %v2552 = vadd.f32 %v2246, %v2468
      %v2553 = vadd.f32 %v2247, %v2471
      %v2554 = vadd.f32 %v2248, %v2476
      %v2555 = vadd.f32 %v2249, %v2479
      %v2556 = vadd.f32 %v2250, %v2484
      %v2557 = vadd.f32 %v2251, %v2487
      %v2558 = vadd.f32 %v2252, %v2492
      %v2559 = vadd.f32 %v2253, %v2495
      %v2560 = vadd.f32 %v2254, %v2500
      %v2561 = vadd.f32 %v2255, %v2503
      %v2562 = vadd.f32 %v2256, %v2508
      %v2563 = vadd.f32 %v2257, %v2511
      %v2564 = vadd.f32 %v2258, %v2516
      %v2565 = vadd.f32 %v2259, %v2519
      %v2566 = vadd.f32 %v2260, %v2524
      %v2567 = vadd.f32 %v2261, %v2527
      %v2568 = vadd.f32 %v2262, %v2532
      %v2569 = vadd.f32 %v2263, %v2535
      %v2570 = vld [vmem:[#allocation2 + $0x12] sm:$0xff]
      %v2571 = vld [vmem:[#allocation2 + $0x1a] sm:$0xff]
      %v2572 = vld [vmem:[#allocation2 + $0x22] sm:$0xff]
      %v2573 = vld [vmem:[#allocation2 + $0x2a] sm:$0xff]
      %v2574 = vld [vmem:[#allocation2 + $0x32] sm:$0xff]
      %v2575 = vld [vmem:[#allocation2 + $0x3a] sm:$0xff]
      %v2576 = vld [vmem:[#allocation2 + $0x42] sm:$0xff]
      %v2577 = vld [vmem:[#allocation2 + $0x4a] sm:$0xff]
      %v2578 = vld [vmem:[#allocation2 + $0x52] sm:$0xff]
      %v2579 = vld [vmem:[#allocation2 + $0x5a] sm:$0xff]
      %v2580 = vld [vmem:[#allocation2 + $0x62] sm:$0xff]
      %v2581 = vld [vmem:[#allocation2 + $0x6a] sm:$0xff]
      %v2582 = vld [vmem:[#allocation2 + $0x72] sm:$0xff]
      %v2583 = vld [vmem:[#allocation2 + $0x7a] sm:$0xff]
      %v2584 = vld [vmem:[#allocation2 + $0x82] sm:$0xff]
      %v2585 = vld [vmem:[#allocation2 + $0x8a] sm:$0xff]
      %v2586 = vld [vmem:[#allocation2 + $0x92] sm:$0xff]
      %v2587 = vld [vmem:[#allocation2 + $0x9a] sm:$0xff]
      %v2588 = vld [vmem:[#allocation2 + $0xa2] sm:$0xff]
      %v2589 = vld [vmem:[#allocation2 + $0xaa] sm:$0xff]
      %v2590 = vld [vmem:[#allocation2 + $0xb2] sm:$0xff]
      %v2591 = vld [vmem:[#allocation2 + $0xba] sm:$0xff]
      %v2592 = vld [vmem:[#allocation2 + $0xc2] sm:$0xff]
      %v2593 = vld [vmem:[#allocation2 + $0xca] sm:$0xff]
      %v2594 = vld [vmem:[#allocation2 + $0xd2] sm:$0xff]
      %v2595 = vld [vmem:[#allocation2 + $0xda] sm:$0xff]
      %v2596 = vld [vmem:[#allocation2 + $0xe2] sm:$0xff]
      %v2597 = vld [vmem:[#allocation2 + $0xea] sm:$0xff]
      %v2598 = vld [vmem:[#allocation2 + $0xf2] sm:$0xff]
      %v2599 = vld [vmem:[#allocation2 + $0xfa] sm:$0xff]
      %v2600 = vld [vmem:[#allocation2 + $0x102] sm:$0xff]
      %v2601 = vld [vmem:[#allocation2 + $0x10a] sm:$0xff]
      %v2602 = vsel %vm1588, %v2570, 0.0
      %v2603 = vsel %vm1589, %v2571, 0.0
      %v2604 = vsel %vm1590, %v2572, 0.0
      %v2605 = vsel %vm1591, %v2573, 0.0
      %v2606 = vsel %vm1592, %v2574, 0.0
      %v2607 = vsel %vm1593, %v2575, 0.0
      %v2608 = vsel %vm1594, %v2576, 0.0
      %v2609 = vsel %vm1595, %v2577, 0.0
      %v2610 = vsel %vm1596, %v2578, 0.0
      %v2611 = vsel %vm1597, %v2579, 0.0
      %v2612 = vsel %vm1598, %v2580, 0.0
      %v2613 = vsel %vm1599, %v2581, 0.0
      %v2614 = vsel %vm1600, %v2582, 0.0
      %v2615 = vsel %vm1601, %v2583, 0.0
      %v2616 = vsel %vm1602, %v2584, 0.0
      %v2617 = vsel %vm1603, %v2585, 0.0
      %v2618 = vsel %vm1604, %v2586, 0.0
      %v2619 = vsel %vm1605, %v2587, 0.0
      %v2620 = vsel %vm1606, %v2588, 0.0
      %v2621 = vsel %vm1607, %v2589, 0.0
      %v2622 = vsel %vm1608, %v2590, 0.0
      %v2623 = vsel %vm1609, %v2591, 0.0
      %v2624 = vsel %vm1610, %v2592, 0.0
      %v2625 = vsel %vm1611, %v2593, 0.0
      %v2626 = vsel %vm1612, %v2594, 0.0
      %v2627 = vsel %vm1613, %v2595, 0.0
      %v2628 = vsel %vm1614, %v2596, 0.0
      %v2629 = vsel %vm1615, %v2597, 0.0
      %v2630 = vsel %vm1616, %v2598, 0.0
      %v2631 = vsel %vm1617, %v2599, 0.0
      %v2632 = vsel %vm1618, %v2600, 0.0
      %v2633 = vsel %vm1619, %v2601, 0.0
      %v2634 = vpack.c.bf16 %v2603, %v2602
      %v2635 = vpack.c.bf16 %v2605, %v2604
      %v2636 = vpack.c.bf16 %v2607, %v2606
      %v2637 = vpack.c.bf16 %v2609, %v2608
      %v2638 = vpack.c.bf16 %v2611, %v2610
      %v2639 = vpack.c.bf16 %v2613, %v2612
      %v2640 = vpack.c.bf16 %v2615, %v2614
      %v2641 = vpack.c.bf16 %v2617, %v2616
      %v2642 = vpack.c.bf16 %v2619, %v2618
      %v2643 = vpack.c.bf16 %v2621, %v2620
      %v2644 = vpack.c.bf16 %v2623, %v2622
      %v2645 = vpack.c.bf16 %v2625, %v2624
      %v2646 = vpack.c.bf16 %v2627, %v2626
      %v2647 = vpack.c.bf16 %v2629, %v2628
      %v2648 = vpack.c.bf16 %v2631, %v2630
      %v2649 = vpack.c.bf16 %v2633, %v2632
      %s2650 = scalar_lea.vmem %s4, 320
      %v2651 = vld [vmem:[%s2650] sm:$0xf]
      %v2652 = vld [vmem:[%s2650 + $0x4] sm:$0xf]
      %v2653 = vld [vmem:[%s2650 + $0x8] sm:$0xf]
      %v2654 = vld [vmem:[%s2650 + $0xc] sm:$0xf]
      %v2655 = vld [vmem:[%s2650 + $0x10] sm:$0xf]
      %v2656 = vld [vmem:[%s2650 + $0x14] sm:$0xf]
      %v2657 = vld [vmem:[%s2650 + $0x18] sm:$0xf]
      %v2658 = vld [vmem:[%s2650 + $0x1c] sm:$0xf]
      %v2659 = vld [vmem:[%s2650 + $0x20] sm:$0xf]
      %v2660 = vld [vmem:[%s2650 + $0x24] sm:$0xf]
      %v2661 = vld [vmem:[%s2650 + $0x28] sm:$0xf]
      %v2662 = vld [vmem:[%s2650 + $0x2c] sm:$0xf]
      %v2663 = vld [vmem:[%s2650 + $0x30] sm:$0xf]
      %v2664 = vld [vmem:[%s2650 + $0x34] sm:$0xf]
      %v2665 = vld [vmem:[%s2650 + $0x38] sm:$0xf]
      %v2666 = vld [vmem:[%s2650 + $0x3c] sm:$0xf]
      %v2683 = vunpack.c.l.b16 %v2651
      %v2684 = vunpack.c.l.b16 %v2652
      %v2685 = vunpack.c.l.b16 %v2653
      %v2686 = vunpack.c.l.b16 %v2654
      %v2687 = vunpack.c.l.b16 %v2655
      %v2688 = vunpack.c.l.b16 %v2656
      %v2689 = vunpack.c.l.b16 %v2657
      %v2690 = vunpack.c.l.b16 %v2658
      %v2691 = vunpack.c.l.b16 %v2659
      %v2692 = vunpack.c.l.b16 %v2660
      %v2693 = vunpack.c.l.b16 %v2661
      %v2694 = vunpack.c.l.b16 %v2662
      %v2695 = vunpack.c.l.b16 %v2663
      %v2696 = vunpack.c.l.b16 %v2664
      %v2697 = vunpack.c.l.b16 %v2665
      %v2698 = vunpack.c.l.b16 %v2666
      %v2699 = vpack.c.b16 %v2684, %v2683
      %v2700 = vpack.c.b16 %v2686, %v2685
      %v2701 = vpack.c.b16 %v2688, %v2687
      %v2702 = vpack.c.b16 %v2690, %v2689
      %v2703 = vpack.c.b16 %v2692, %v2691
      %v2704 = vpack.c.b16 %v2694, %v2693
      %v2705 = vpack.c.b16 %v2696, %v2695
      %v2706 = vpack.c.b16 %v2698, %v2697
      %2715 = vmatprep.subr.bf16.mxu0 0
      %2716 = vmatpush1.bf16.msra.mxu0 %v2699
      %2717 = vmatprep.subr.bf16.mxu0 0
      %2718 = vmatpush1.bf16.msra.mxu0 %v2700
      %2719 = vmatprep.subr.bf16.mxu0 0
      %2720 = vmatpush1.bf16.msra.mxu0 %v2701
      %2721 = vmatprep.subr.bf16.mxu0 0
      %2722 = vmatpush1.bf16.msra.mxu0 %v2702
      %2723 = vmatprep.subr.bf16.mxu0 0
      %2724 = vmatpush1.bf16.msra.mxu0 %v2703
      %2725 = vmatprep.subr.bf16.mxu0 0
      %2726 = vmatpush1.bf16.msra.mxu0 %v2704
      %2727 = vmatprep.subr.bf16.mxu0 0
      %2728 = vmatpush1.bf16.msra.mxu0 %v2705
      %2729 = vmatprep.subr.bf16.mxu0 0
      %2730 = vmatpush1.bf16.msra.mxu0 %v2706
      %2731 = vmatprep.subr.bf16.mxu0 0
      %2732 = vmatpush1.bf16.msra.mxu0 0
      %2733 = vmatprep.subr.bf16.mxu0 0
      %2734 = vmatpush1.bf16.msra.mxu0 0
      %2735 = vmatprep.subr.bf16.mxu0 0
      %2736 = vmatpush1.bf16.msra.mxu0 0
      %2737 = vmatprep.subr.bf16.mxu0 0
      %2738 = vmatpush1.bf16.msra.mxu0 0
      %2739 = vmatprep.subr.bf16.mxu0 0
      %2740 = vmatpush1.bf16.msra.mxu0 0
      %2741 = vmatprep.subr.bf16.mxu0 0
      %2742 = vmatpush1.bf16.msra.mxu0 0
      %2743 = vmatprep.subr.bf16.mxu0 0
      %2744 = vmatpush1.bf16.msra.mxu0 0
      %2745 = vmatprep.subr.bf16.mxu0 0
      %2746 = vmatpush1.bf16.msra.mxu0 0
      %2747 = vmatprep.mubr.bf16.mxu0 0
      %2748 = vmatmul.mubr.bf16.gmra.mrb[0].mxu0 %v2634
      %v2749 = vpop.f32.mrb[0].mxu0
      %v2750 = vadd.f32 0.0, %v2749
      %v2751 = vpop.f32.mrb[0].mxu0
      %v2752 = vpop.f32.mrb[0].mxu0
      %v2753 = vadd.f32 0.0, %v2752
      %v2754 = vpop.f32.mrb[0].mxu0
      %2755 = vmatprep.mubr.bf16.mxu0 0
      %2756 = vmatmul.mubr.bf16.gmra.mrb[0].mxu0 %v2635
      %v2757 = vpop.f32.mrb[0].mxu0
      %v2758 = vadd.f32 0.0, %v2757
      %v2759 = vpop.f32.mrb[0].mxu0
      %v2760 = vpop.f32.mrb[0].mxu0
      %v2761 = vadd.f32 0.0, %v2760
      %v2762 = vpop.f32.mrb[0].mxu0
      %2763 = vmatprep.mubr.bf16.mxu0 0
      %2764 = vmatmul.mubr.bf16.gmra.mrb[0].mxu0 %v2636
      %v2765 = vpop.f32.mrb[0].mxu0
      %v2766 = vadd.f32 0.0, %v2765
      %v2767 = vpop.f32.mrb[0].mxu0
      %v2768 = vpop.f32.mrb[0].mxu0
      %v2769 = vadd.f32 0.0, %v2768
      %v2770 = vpop.f32.mrb[0].mxu0
      %2771 = vmatprep.mubr.bf16.mxu0 0
      %2772 = vmatmul.mubr.bf16.gmra.mrb[0].mxu0 %v2637
      %v2773 = vpop.f32.mrb[0].mxu0
      %v2774 = vadd.f32 0.0, %v2773
      %v2775 = vpop.f32.mrb[0].mxu0
      %v2776 = vpop.f32.mrb[0].mxu0
      %v2777 = vadd.f32 0.0, %v2776
      %v2778 = vpop.f32.mrb[0].mxu0
      %2779 = vmatprep.mubr.bf16.mxu0 0
      %2780 = vmatmul.mubr.bf16.gmra.mrb[0].mxu0 %v2638
      %v2781 = vpop.f32.mrb[0].mxu0
      %v2782 = vadd.f32 0.0, %v2781
      %v2783 = vpop.f32.mrb[0].mxu0
      %v2784 = vpop.f32.mrb[0].mxu0
      %v2785 = vadd.f32 0.0, %v2784
      %v2786 = vpop.f32.mrb[0].mxu0
      %2787 = vmatprep.mubr.bf16.mxu0 0
      %2788 = vmatmul.mubr.bf16.gmra.mrb[0].mxu0 %v2639
      %v2789 = vpop.f32.mrb[0].mxu0
      %v2790 = vadd.f32 0.0, %v2789
      %v2791 = vpop.f32.mrb[0].mxu0
      %v2792 = vpop.f32.mrb[0].mxu0
      %v2793 = vadd.f32 0.0, %v2792
      %v2794 = vpop.f32.mrb[0].mxu0
      %2795 = vmatprep.mubr.bf16.mxu0 0
      %2796 = vmatmul.mubr.bf16.gmra.mrb[0].mxu0 %v2640
      %v2797 = vpop.f32.mrb[0].mxu0
      %v2798 = vadd.f32 0.0, %v2797
      %v2799 = vpop.f32.mrb[0].mxu0
      %v2800 = vpop.f32.mrb[0].mxu0
      %v2801 = vadd.f32 0.0, %v2800
      %v2802 = vpop.f32.mrb[0].mxu0
      %2803 = vmatprep.mubr.bf16.mxu0 0
      %2804 = vmatmul.mubr.bf16.gmra.mrb[0].mxu0 %v2641
      %v2805 = vpop.f32.mrb[0].mxu0
      %v2806 = vadd.f32 0.0, %v2805
      %v2807 = vpop.f32.mrb[0].mxu0
      %v2808 = vpop.f32.mrb[0].mxu0
      %v2809 = vadd.f32 0.0, %v2808
      %v2810 = vpop.f32.mrb[0].mxu0
      %2811 = vmatprep.mubr.bf16.mxu0 0
      %2812 = vmatmul.mubr.bf16.gmra.mrb[0].mxu0 %v2642
      %v2813 = vpop.f32.mrb[0].mxu0
      %v2814 = vadd.f32 0.0, %v2813
      %v2815 = vpop.f32.mrb[0].mxu0
      %v2816 = vpop.f32.mrb[0].mxu0
      %v2817 = vadd.f32 0.0, %v2816
      %v2818 = vpop.f32.mrb[0].mxu0
      %2819 = vmatprep.mubr.bf16.mxu0 0
      %2820 = vmatmul.mubr.bf16.gmra.mrb[0].mxu0 %v2643
      %v2821 = vpop.f32.mrb[0].mxu0
      %v2822 = vadd.f32 0.0, %v2821
      %v2823 = vpop.f32.mrb[0].mxu0
      %v2824 = vpop.f32.mrb[0].mxu0
      %v2825 = vadd.f32 0.0, %v2824
      %v2826 = vpop.f32.mrb[0].mxu0
      %2827 = vmatprep.mubr.bf16.mxu0 0
      %2828 = vmatmul.mubr.bf16.gmra.mrb[0].mxu0 %v2644
      %v2829 = vpop.f32.mrb[0].mxu0
      %v2830 = vadd.f32 0.0, %v2829
      %v2831 = vpop.f32.mrb[0].mxu0
      %v2832 = vpop.f32.mrb[0].mxu0
      %v2833 = vadd.f32 0.0, %v2832
      %v2834 = vpop.f32.mrb[0].mxu0
      %2835 = vmatprep.mubr.bf16.mxu0 0
      %2836 = vmatmul.mubr.bf16.gmra.mrb[0].mxu0 %v2645
      %v2837 = vpop.f32.mrb[0].mxu0
      %v2838 = vadd.f32 0.0, %v2837
      %v2839 = vpop.f32.mrb[0].mxu0
      %v2840 = vpop.f32.mrb[0].mxu0
      %v2841 = vadd.f32 0.0, %v2840
      %v2842 = vpop.f32.mrb[0].mxu0
      %2843 = vmatprep.mubr.bf16.mxu0 0
      %2844 = vmatmul.mubr.bf16.gmra.mrb[0].mxu0 %v2646
      %v2845 = vpop.f32.mrb[0].mxu0
      %v2846 = vadd.f32 0.0, %v2845
      %v2847 = vpop.f32.mrb[0].mxu0
      %v2848 = vpop.f32.mrb[0].mxu0
      %v2849 = vadd.f32 0.0, %v2848
      %v2850 = vpop.f32.mrb[0].mxu0
      %2851 = vmatprep.mubr.bf16.mxu0 0
      %2852 = vmatmul.mubr.bf16.gmra.mrb[0].mxu0 %v2647
      %v2853 = vpop.f32.mrb[0].mxu0
      %v2854 = vadd.f32 0.0, %v2853
      %v2855 = vpop.f32.mrb[0].mxu0
      %v2856 = vpop.f32.mrb[0].mxu0
      %v2857 = vadd.f32 0.0, %v2856
      %v2858 = vpop.f32.mrb[0].mxu0
      %2859 = vmatprep.mubr.bf16.mxu0 0
      %2860 = vmatmul.mubr.bf16.gmra.mrb[0].mxu0 %v2648
      %v2861 = vpop.f32.mrb[0].mxu0
      %v2862 = vadd.f32 0.0, %v2861
      %v2863 = vpop.f32.mrb[0].mxu0
      %v2864 = vpop.f32.mrb[0].mxu0
      %v2865 = vadd.f32 0.0, %v2864
      %v2866 = vpop.f32.mrb[0].mxu0
      %2867 = vmatprep.mubr.bf16.mxu0 0
      %2868 = vmatmul.mubr.bf16.gmra.mrb[0].mxu0 %v2649
      %v2869 = vpop.f32.mrb[0].mxu0
      %v2870 = vadd.f32 0.0, %v2869
      %v2871 = vpop.f32.mrb[0].mxu0
      %v2872 = vpop.f32.mrb[0].mxu0
      %v2873 = vadd.f32 0.0, %v2872
      %v2874 = vpop.f32.mrb[0].mxu0
      %2875 = vdwg.mxu0
      %v2876 = vadd.f32 %v2538, %v2750
      %v2877 = vadd.f32 %v2539, %v2753
      %v2878 = vadd.f32 %v2540, %v2758
      %v2879 = vadd.f32 %v2541, %v2761
      %v2880 = vadd.f32 %v2542, %v2766
      %v2881 = vadd.f32 %v2543, %v2769
      %v2882 = vadd.f32 %v2544, %v2774
      %v2883 = vadd.f32 %v2545, %v2777
      %v2884 = vadd.f32 %v2546, %v2782
      %v2885 = vadd.f32 %v2547, %v2785
      %v2886 = vadd.f32 %v2548, %v2790
      %v2887 = vadd.f32 %v2549, %v2793
      %v2888 = vadd.f32 %v2550, %v2798
      %v2889 = vadd.f32 %v2551, %v2801
      %v2890 = vadd.f32 %v2552, %v2806
      %v2891 = vadd.f32 %v2553, %v2809
      %v2892 = vadd.f32 %v2554, %v2814
      %v2893 = vadd.f32 %v2555, %v2817
      %v2894 = vadd.f32 %v2556, %v2822
      %v2895 = vadd.f32 %v2557, %v2825
      %v2896 = vadd.f32 %v2558, %v2830
      %v2897 = vadd.f32 %v2559, %v2833
      %v2898 = vadd.f32 %v2560, %v2838
      %v2899 = vadd.f32 %v2561, %v2841
      %v2900 = vadd.f32 %v2562, %v2846
      %v2901 = vadd.f32 %v2563, %v2849
      %v2902 = vadd.f32 %v2564, %v2854
      %v2903 = vadd.f32 %v2565, %v2857
      %v2904 = vadd.f32 %v2566, %v2862
      %v2905 = vadd.f32 %v2567, %v2865
      %v2906 = vadd.f32 %v2568, %v2870
      %v2907 = vadd.f32 %v2569, %v2873
      %v2908 = vld [vmem:[#allocation2 + $0x20] sm:$0xff]
      %v2909 = vld [vmem:[#allocation2 + $0x28] sm:$0xff]
      %v2910 = vld [vmem:[#allocation2 + $0x30] sm:$0xff]
      %v2911 = vld [vmem:[#allocation2 + $0x38] sm:$0xff]
      %v2912 = vld [vmem:[#allocation2 + $0x40] sm:$0xff]
      %v2913 = vld [vmem:[#allocation2 + $0x48] sm:$0xff]
      %v2914 = vld [vmem:[#allocation2 + $0x50] sm:$0xff]
      %v2915 = vld [vmem:[#allocation2 + $0x58] sm:$0xff]
      %v2916 = vld [vmem:[#allocation2 + $0x60] sm:$0xff]
      %v2917 = vld [vmem:[#allocation2 + $0x68] sm:$0xff]
      %v2918 = vld [vmem:[#allocation2 + $0x70] sm:$0xff]
      %v2919 = vld [vmem:[#allocation2 + $0x78] sm:$0xff]
      %v2920 = vld [vmem:[#allocation2 + $0x80] sm:$0xff]
      %v2921 = vld [vmem:[#allocation2 + $0x88] sm:$0xff]
      %v2922 = vld [vmem:[#allocation2 + $0x90] sm:$0xff]
      %v2923 = vld [vmem:[#allocation2 + $0x98] sm:$0xff]
      %v2924 = vld [vmem:[#allocation2 + $0xa0] sm:$0xff]
      %v2925 = vld [vmem:[#allocation2 + $0xa8] sm:$0xff]
      %v2926 = vld [vmem:[#allocation2 + $0xb0] sm:$0xff]
      %v2927 = vld [vmem:[#allocation2 + $0xb8] sm:$0xff]
      %v2928 = vld [vmem:[#allocation2 + $0xc0] sm:$0xff]
      %v2929 = vld [vmem:[#allocation2 + $0xc8] sm:$0xff]
      %v2930 = vld [vmem:[#allocation2 + $0xd0] sm:$0xff]
      %v2931 = vld [vmem:[#allocation2 + $0xd8] sm:$0xff]
      %v2932 = vld [vmem:[#allocation2 + $0xe0] sm:$0xff]
      %v2933 = vld [vmem:[#allocation2 + $0xe8] sm:$0xff]
      %v2934 = vld [vmem:[#allocation2 + $0xf0] sm:$0xff]
      %v2935 = vld [vmem:[#allocation2 + $0xf8] sm:$0xff]
      %v2936 = vld [vmem:[#allocation2 + $0x100] sm:$0xff]
      %v2937 = vld [vmem:[#allocation2 + $0x108] sm:$0xff]
      %v2938 = vld [vmem:[#allocation2 + $0x110] sm:$0xff]
      %v2939 = vld [vmem:[#allocation2 + $0x118] sm:$0xff]
      %v2940 = vsel %vm977, %v2908, 0.0
      %v2941 = vsel %vm978, %v2909, 0.0
      %v2942 = vsel %vm979, %v2910, 0.0
      %v2943 = vsel %vm980, %v2911, 0.0
      %v2944 = vsel %vm981, %v2912, 0.0
      %v2945 = vsel %vm982, %v2913, 0.0
      %v2946 = vsel %vm983, %v2914, 0.0
      %v2947 = vsel %vm984, %v2915, 0.0
      %v2948 = vsel %vm985, %v2916, 0.0
      %v2949 = vsel %vm986, %v2917, 0.0
      %v2950 = vsel %vm987, %v2918, 0.0
      %v2951 = vsel %vm988, %v2919, 0.0
      %v2952 = vsel %vm989, %v2920, 0.0
      %v2953 = vsel %vm990, %v2921, 0.0
      %v2954 = vsel %vm991, %v2922, 0.0
      %v2955 = vsel %vm992, %v2923, 0.0
      %v2956 = vsel %vm993, %v2924, 0.0
      %v2957 = vsel %vm994, %v2925, 0.0
      %v2958 = vsel %vm995, %v2926, 0.0
      %v2959 = vsel %vm996, %v2927, 0.0
      %v2960 = vsel %vm997, %v2928, 0.0
      %v2961 = vsel %vm998, %v2929, 0.0
      %v2962 = vsel %vm999, %v2930, 0.0
      %v2963 = vsel %vm1000, %v2931, 0.0
      %v2964 = vsel %vm1001, %v2932, 0.0
      %v2965 = vsel %vm1002, %v2933, 0.0
      %v2966 = vsel %vm1003, %v2934, 0.0
      %v2967 = vsel %vm1004, %v2935, 0.0
      %v2968 = vsel %vm1005, %v2936, 0.0
      %v2969 = vsel %vm1006, %v2937, 0.0
      %v2970 = vsel %vm1007, %v2938, 0.0
      %v2971 = vsel %vm1008, %v2939, 0.0
      %v2972 = vpack.c.bf16 %v2941, %v2940
      %v2973 = vpack.c.bf16 %v2943, %v2942
      %v2974 = vpack.c.bf16 %v2945, %v2944
      %v2975 = vpack.c.bf16 %v2947, %v2946
      %v2976 = vpack.c.bf16 %v2949, %v2948
      %v2977 = vpack.c.bf16 %v2951, %v2950
      %v2978 = vpack.c.bf16 %v2953, %v2952
      %v2979 = vpack.c.bf16 %v2955, %v2954
      %v2980 = vpack.c.bf16 %v2957, %v2956
      %v2981 = vpack.c.bf16 %v2959, %v2958
      %v2982 = vpack.c.bf16 %v2961, %v2960
      %v2983 = vpack.c.bf16 %v2963, %v2962
      %v2984 = vpack.c.bf16 %v2965, %v2964
      %v2985 = vpack.c.bf16 %v2967, %v2966
      %v2986 = vpack.c.bf16 %v2969, %v2968
      %v2987 = vpack.c.bf16 %v2971, %v2970
      %s2988 = scalar_lea.vmem %s4, 384
      %v2989 = vld [vmem:[%s2988] sm:$0xf]
      %v2990 = vld [vmem:[%s2988 + $0x4] sm:$0xf]
      %v2991 = vld [vmem:[%s2988 + $0x8] sm:$0xf]
      %v2992 = vld [vmem:[%s2988 + $0xc] sm:$0xf]
      %v2993 = vld [vmem:[%s2988 + $0x10] sm:$0xf]
      %v2994 = vld [vmem:[%s2988 + $0x14] sm:$0xf]
      %v2995 = vld [vmem:[%s2988 + $0x18] sm:$0xf]
      %v2996 = vld [vmem:[%s2988 + $0x1c] sm:$0xf]
      %v2997 = vld [vmem:[%s2988 + $0x20] sm:$0xf]
      %v2998 = vld [vmem:[%s2988 + $0x24] sm:$0xf]
      %v2999 = vld [vmem:[%s2988 + $0x28] sm:$0xf]
      %v3000 = vld [vmem:[%s2988 + $0x2c] sm:$0xf]
      %v3001 = vld [vmem:[%s2988 + $0x30] sm:$0xf]
      %v3002 = vld [vmem:[%s2988 + $0x34] sm:$0xf]
      %v3003 = vld [vmem:[%s2988 + $0x38] sm:$0xf]
      %v3004 = vld [vmem:[%s2988 + $0x3c] sm:$0xf]
      %v3021 = vunpack.c.l.b16 %v2989
      %v3022 = vunpack.c.l.b16 %v2990
      %v3023 = vunpack.c.l.b16 %v2991
      %v3024 = vunpack.c.l.b16 %v2992
      %v3025 = vunpack.c.l.b16 %v2993
      %v3026 = vunpack.c.l.b16 %v2994
      %v3027 = vunpack.c.l.b16 %v2995
      %v3028 = vunpack.c.l.b16 %v2996
      %v3029 = vunpack.c.l.b16 %v2997
      %v3030 = vunpack.c.l.b16 %v2998
      %v3031 = vunpack.c.l.b16 %v2999
      %v3032 = vunpack.c.l.b16 %v3000
      %v3033 = vunpack.c.l.b16 %v3001
      %v3034 = vunpack.c.l.b16 %v3002
      %v3035 = vunpack.c.l.b16 %v3003
      %v3036 = vunpack.c.l.b16 %v3004
      %v3037 = vpack.c.b16 %v3022, %v3021
      %v3038 = vpack.c.b16 %v3024, %v3023
      %v3039 = vpack.c.b16 %v3026, %v3025
      %v3040 = vpack.c.b16 %v3028, %v3027
      %v3041 = vpack.c.b16 %v3030, %v3029
      %v3042 = vpack.c.b16 %v3032, %v3031
      %v3043 = vpack.c.b16 %v3034, %v3033
      %v3044 = vpack.c.b16 %v3036, %v3035
      %3053 = vmatprep.subr.bf16.mxu0 0
      %3054 = vmatpush1.bf16.msra.mxu0 %v3037
      %3055 = vmatprep.subr.bf16.mxu0 0
      %3056 = vmatpush1.bf16.msra.mxu0 %v3038
      %3057 = vmatprep.subr.bf16.mxu0 0
      %3058 = vmatpush1.bf16.msra.mxu0 %v3039
      %3059 = vmatprep.subr.bf16.mxu0 0
      %3060 = vmatpush1.bf16.msra.mxu0 %v3040
      %3061 = vmatprep.subr.bf16.mxu0 0
      %3062 = vmatpush1.bf16.msra.mxu0 %v3041
      %3063 = vmatprep.subr.bf16.mxu0 0
      %3064 = vmatpush1.bf16.msra.mxu0 %v3042
      %3065 = vmatprep.subr.bf16.mxu0 0
      %3066 = vmatpush1.bf16.msra.mxu0 %v3043
      %3067 = vmatprep.subr.bf16.mxu0 0
      %3068 = vmatpush1.bf16.msra.mxu0 %v3044
      %3069 = vmatprep.subr.bf16.mxu0 0
      %3070 = vmatpush1.bf16.msra.mxu0 0
      %3071 = vmatprep.subr.bf16.mxu0 0
      %3072 = vmatpush1.bf16.msra.mxu0 0
      %3073 = vmatprep.subr.bf16.mxu0 0
      %3074 = vmatpush1.bf16.msra.mxu0 0
      %3075 = vmatprep.subr.bf16.mxu0 0
      %3076 = vmatpush1.bf16.msra.mxu0 0
      %3077 = vmatprep.subr.bf16.mxu0 0
      %3078 = vmatpush1.bf16.msra.mxu0 0
      %3079 = vmatprep.subr.bf16.mxu0 0
      %3080 = vmatpush1.bf16.msra.mxu0 0
      %3081 = vmatprep.subr.bf16.mxu0 0
      %3082 = vmatpush1.bf16.msra.mxu0 0
      %3083 = vmatprep.subr.bf16.mxu0 0
      %3084 = vmatpush1.bf16.msra.mxu0 0
      %3085 = vmatprep.mubr.bf16.mxu0 0
      %3086 = vmatmul.mubr.bf16.gmra.mrb[0].mxu0 %v2972
      %v3087 = vpop.f32.mrb[0].mxu0
      %v3088 = vadd.f32 0.0, %v3087
      %v3089 = vpop.f32.mrb[0].mxu0
      %v3090 = vpop.f32.mrb[0].mxu0
      %v3091 = vadd.f32 0.0, %v3090
      %v3092 = vpop.f32.mrb[0].mxu0
      %3093 = vmatprep.mubr.bf16.mxu0 0
      %3094 = vmatmul.mubr.bf16.gmra.mrb[0].mxu0 %v2973
      %v3095 = vpop.f32.mrb[0].mxu0
      %v3096 = vadd.f32 0.0, %v3095
      %v3097 = vpop.f32.mrb[0].mxu0
      %v3098 = vpop.f32.mrb[0].mxu0
      %v3099 = vadd.f32 0.0, %v3098
      %v3100 = vpop.f32.mrb[0].mxu0
      %3101 = vmatprep.mubr.bf16.mxu0 0
      %3102 = vmatmul.mubr.bf16.gmra.mrb[0].mxu0 %v2974
      %v3103 = vpop.f32.mrb[0].mxu0
      %v3104 = vadd.f32 0.0, %v3103
      %v3105 = vpop.f32.mrb[0].mxu0
      %v3106 = vpop.f32.mrb[0].mxu0
      %v3107 = vadd.f32 0.0, %v3106
      %v3108 = vpop.f32.mrb[0].mxu0
      %3109 = vmatprep.mubr.bf16.mxu0 0
      %3110 = vmatmul.mubr.bf16.gmra.mrb[0].mxu0 %v2975
      %v3111 = vpop.f32.mrb[0].mxu0
      %v3112 = vadd.f32 0.0, %v3111
      %v3113 = vpop.f32.mrb[0].mxu0
      %v3114 = vpop.f32.mrb[0].mxu0
      %v3115 = vadd.f32 0.0, %v3114
      %v3116 = vpop.f32.mrb[0].mxu0
      %3117 = vmatprep.mubr.bf16.mxu0 0
      %3118 = vmatmul.mubr.bf16.gmra.mrb[0].mxu0 %v2976
      %v3119 = vpop.f32.mrb[0].mxu0
      %v3120 = vadd.f32 0.0, %v3119
      %v3121 = vpop.f32.mrb[0].mxu0
      %v3122 = vpop.f32.mrb[0].mxu0
      %v3123 = vadd.f32 0.0, %v3122
      %v3124 = vpop.f32.mrb[0].mxu0
      %3125 = vmatprep.mubr.bf16.mxu0 0
      %3126 = vmatmul.mubr.bf16.gmra.mrb[0].mxu0 %v2977
      %v3127 = vpop.f32.mrb[0].mxu0
      %v3128 = vadd.f32 0.0, %v3127
      %v3129 = vpop.f32.mrb[0].mxu0
      %v3130 = vpop.f32.mrb[0].mxu0
      %v3131 = vadd.f32 0.0, %v3130
      %v3132 = vpop.f32.mrb[0].mxu0
      %3133 = vmatprep.mubr.bf16.mxu0 0
      %3134 = vmatmul.mubr.bf16.gmra.mrb[0].mxu0 %v2978
      %v3135 = vpop.f32.mrb[0].mxu0
      %v3136 = vadd.f32 0.0, %v3135
      %v3137 = vpop.f32.mrb[0].mxu0
      %v3138 = vpop.f32.mrb[0].mxu0
      %v3139 = vadd.f32 0.0, %v3138
      %v3140 = vpop.f32.mrb[0].mxu0
      %3141 = vmatprep.mubr.bf16.mxu0 0
      %3142 = vmatmul.mubr.bf16.gmra.mrb[0].mxu0 %v2979
      %v3143 = vpop.f32.mrb[0].mxu0
      %v3144 = vadd.f32 0.0, %v3143
      %v3145 = vpop.f32.mrb[0].mxu0
      %v3146 = vpop.f32.mrb[0].mxu0
      %v3147 = vadd.f32 0.0, %v3146
      %v3148 = vpop.f32.mrb[0].mxu0
      %3149 = vmatprep.mubr.bf16.mxu0 0
      %3150 = vmatmul.mubr.bf16.gmra.mrb[0].mxu0 %v2980
      %v3151 = vpop.f32.mrb[0].mxu0
      %v3152 = vadd.f32 0.0, %v3151
      %v3153 = vpop.f32.mrb[0].mxu0
      %v3154 = vpop.f32.mrb[0].mxu0
      %v3155 = vadd.f32 0.0, %v3154
      %v3156 = vpop.f32.mrb[0].mxu0
      %3157 = vmatprep.mubr.bf16.mxu0 0
      %3158 = vmatmul.mubr.bf16.gmra.mrb[0].mxu0 %v2981
      %v3159 = vpop.f32.mrb[0].mxu0
      %v3160 = vadd.f32 0.0, %v3159
      %v3161 = vpop.f32.mrb[0].mxu0
      %v3162 = vpop.f32.mrb[0].mxu0
      %v3163 = vadd.f32 0.0, %v3162
      %v3164 = vpop.f32.mrb[0].mxu0
      %3165 = vmatprep.mubr.bf16.mxu0 0
      %3166 = vmatmul.mubr.bf16.gmra.mrb[0].mxu0 %v2982
      %v3167 = vpop.f32.mrb[0].mxu0
      %v3168 = vadd.f32 0.0, %v3167
      %v3169 = vpop.f32.mrb[0].mxu0
      %v3170 = vpop.f32.mrb[0].mxu0
      %v3171 = vadd.f32 0.0, %v3170
      %v3172 = vpop.f32.mrb[0].mxu0
      %3173 = vmatprep.mubr.bf16.mxu0 0
      %3174 = vmatmul.mubr.bf16.gmra.mrb[0].mxu0 %v2983
      %v3175 = vpop.f32.mrb[0].mxu0
      %v3176 = vadd.f32 0.0, %v3175
      %v3177 = vpop.f32.mrb[0].mxu0
      %v3178 = vpop.f32.mrb[0].mxu0
      %v3179 = vadd.f32 0.0, %v3178
      %v3180 = vpop.f32.mrb[0].mxu0
      %3181 = vmatprep.mubr.bf16.mxu0 0
      %3182 = vmatmul.mubr.bf16.gmra.mrb[0].mxu0 %v2984
      %v3183 = vpop.f32.mrb[0].mxu0
      %v3184 = vadd.f32 0.0, %v3183
      %v3185 = vpop.f32.mrb[0].mxu0
      %v3186 = vpop.f32.mrb[0].mxu0
      %v3187 = vadd.f32 0.0, %v3186
      %v3188 = vpop.f32.mrb[0].mxu0
      %3189 = vmatprep.mubr.bf16.mxu0 0
      %3190 = vmatmul.mubr.bf16.gmra.mrb[0].mxu0 %v2985
      %v3191 = vpop.f32.mrb[0].mxu0
      %v3192 = vadd.f32 0.0, %v3191
      %v3193 = vpop.f32.mrb[0].mxu0
      %v3194 = vpop.f32.mrb[0].mxu0
      %v3195 = vadd.f32 0.0, %v3194
      %v3196 = vpop.f32.mrb[0].mxu0
      %3197 = vmatprep.mubr.bf16.mxu0 0
      %3198 = vmatmul.mubr.bf16.gmra.mrb[0].mxu0 %v2986
      %v3199 = vpop.f32.mrb[0].mxu0
      %v3200 = vadd.f32 0.0, %v3199
      %v3201 = vpop.f32.mrb[0].mxu0
      %v3202 = vpop.f32.mrb[0].mxu0
      %v3203 = vadd.f32 0.0, %v3202
      %v3204 = vpop.f32.mrb[0].mxu0
      %3205 = vmatprep.mubr.bf16.mxu0 0
      %3206 = vmatmul.mubr.bf16.gmra.mrb[0].mxu0 %v2987
      %v3207 = vpop.f32.mrb[0].mxu0
      %v3208 = vadd.f32 0.0, %v3207
      %v3209 = vpop.f32.mrb[0].mxu0
      %v3210 = vpop.f32.mrb[0].mxu0
      %v3211 = vadd.f32 0.0, %v3210
      %v3212 = vpop.f32.mrb[0].mxu0
      %3213 = vdwg.mxu0
      %v3214 = vadd.f32 %v2876, %v3088
      %v3215 = vadd.f32 %v2877, %v3091
      %v3216 = vadd.f32 %v2878, %v3096
      %v3217 = vadd.f32 %v2879, %v3099
      %v3218 = vadd.f32 %v2880, %v3104
      %v3219 = vadd.f32 %v2881, %v3107
      %v3220 = vadd.f32 %v2882, %v3112
      %v3221 = vadd.f32 %v2883, %v3115
      %v3222 = vadd.f32 %v2884, %v3120
      %v3223 = vadd.f32 %v2885, %v3123
      %v3224 = vadd.f32 %v2886, %v3128
      %v3225 = vadd.f32 %v2887, %v3131
      %v3226 = vadd.f32 %v2888, %v3136
      %v3227 = vadd.f32 %v2889, %v3139
      %v3228 = vadd.f32 %v2890, %v3144
      %v3229 = vadd.f32 %v2891, %v3147
      %v3230 = vadd.f32 %v2892, %v3152
      %v3231 = vadd.f32 %v2893, %v3155
      %v3232 = vadd.f32 %v2894, %v3160
      %v3233 = vadd.f32 %v2895, %v3163
      %v3234 = vadd.f32 %v2896, %v3168
      %v3235 = vadd.f32 %v2897, %v3171
      %v3236 = vadd.f32 %v2898, %v3176
      %v3237 = vadd.f32 %v2899, %v3179
      %v3238 = vadd.f32 %v2900, %v3184
      %v3239 = vadd.f32 %v2901, %v3187
      %v3240 = vadd.f32 %v2902, %v3192
      %v3241 = vadd.f32 %v2903, %v3195
      %v3242 = vadd.f32 %v2904, %v3200
      %v3243 = vadd.f32 %v2905, %v3203
      %v3244 = vadd.f32 %v2906, %v3208
      %v3245 = vadd.f32 %v2907, %v3211
      %v3246 = vld [vmem:[#allocation2 + $0x21] sm:$0xff]
      %v3247 = vld [vmem:[#allocation2 + $0x29] sm:$0xff]
      %v3248 = vld [vmem:[#allocation2 + $0x31] sm:$0xff]
      %v3249 = vld [vmem:[#allocation2 + $0x39] sm:$0xff]
      %v3250 = vld [vmem:[#allocation2 + $0x41] sm:$0xff]
      %v3251 = vld [vmem:[#allocation2 + $0x49] sm:$0xff]
      %v3252 = vld [vmem:[#allocation2 + $0x51] sm:$0xff]
      %v3253 = vld [vmem:[#allocation2 + $0x59] sm:$0xff]
      %v3254 = vld [vmem:[#allocation2 + $0x61] sm:$0xff]
      %v3255 = vld [vmem:[#allocation2 + $0x69] sm:$0xff]
      %v3256 = vld [vmem:[#allocation2 + $0x71] sm:$0xff]
      %v3257 = vld [vmem:[#allocation2 + $0x79] sm:$0xff]
      %v3258 = vld [vmem:[#allocation2 + $0x81] sm:$0xff]
      %v3259 = vld [vmem:[#allocation2 + $0x89] sm:$0xff]
      %v3260 = vld [vmem:[#allocation2 + $0x91] sm:$0xff]
      %v3261 = vld [vmem:[#allocation2 + $0x99] sm:$0xff]
      %v3262 = vld [vmem:[#allocation2 + $0xa1] sm:$0xff]
      %v3263 = vld [vmem:[#allocation2 + $0xa9] sm:$0xff]
      %v3264 = vld [vmem:[#allocation2 + $0xb1] sm:$0xff]
      %v3265 = vld [vmem:[#allocation2 + $0xb9] sm:$0xff]
      %v3266 = vld [vmem:[#allocation2 + $0xc1] sm:$0xff]
      %v3267 = vld [vmem:[#allocation2 + $0xc9] sm:$0xff]
      %v3268 = vld [vmem:[#allocation2 + $0xd1] sm:$0xff]
      %v3269 = vld [vmem:[#allocation2 + $0xd9] sm:$0xff]
      %v3270 = vld [vmem:[#allocation2 + $0xe1] sm:$0xff]
      %v3271 = vld [vmem:[#allocation2 + $0xe9] sm:$0xff]
      %v3272 = vld [vmem:[#allocation2 + $0xf1] sm:$0xff]
      %v3273 = vld [vmem:[#allocation2 + $0xf9] sm:$0xff]
      %v3274 = vld [vmem:[#allocation2 + $0x101] sm:$0xff]
      %v3275 = vld [vmem:[#allocation2 + $0x109] sm:$0xff]
      %v3276 = vld [vmem:[#allocation2 + $0x111] sm:$0xff]
      %v3277 = vld [vmem:[#allocation2 + $0x119] sm:$0xff]
      %v3278 = vpack.c.bf16 %v3247, %v3246
      %v3279 = vpack.c.bf16 %v3249, %v3248
      %v3280 = vpack.c.bf16 %v3251, %v3250
      %v3281 = vpack.c.bf16 %v3253, %v3252
      %v3282 = vpack.c.bf16 %v3255, %v3254
      %v3283 = vpack.c.bf16 %v3257, %v3256
      %v3284 = vpack.c.bf16 %v3259, %v3258
      %v3285 = vpack.c.bf16 %v3261, %v3260
      %v3286 = vpack.c.bf16 %v3263, %v3262
      %v3287 = vpack.c.bf16 %v3265, %v3264
      %v3288 = vpack.c.bf16 %v3267, %v3266
      %v3289 = vpack.c.bf16 %v3269, %v3268
      %v3290 = vpack.c.bf16 %v3271, %v3270
      %v3291 = vpack.c.bf16 %v3273, %v3272
      %v3292 = vpack.c.bf16 %v3275, %v3274
      %v3293 = vpack.c.bf16 %v3277, %v3276
      %s3294 = scalar_lea.vmem %s4, 448
      %v3295 = vld [vmem:[%s3294] sm:$0xf]
      %v3296 = vld [vmem:[%s3294 + $0x4] sm:$0xf]
      %v3297 = vld [vmem:[%s3294 + $0x8] sm:$0xf]
      %v3298 = vld [vmem:[%s3294 + $0xc] sm:$0xf]
      %v3299 = vld [vmem:[%s3294 + $0x10] sm:$0xf]
      %v3300 = vld [vmem:[%s3294 + $0x14] sm:$0xf]
      %v3301 = vld [vmem:[%s3294 + $0x18] sm:$0xf]
      %v3302 = vld [vmem:[%s3294 + $0x1c] sm:$0xf]
      %v3303 = vld [vmem:[%s3294 + $0x20] sm:$0xf]
      %v3304 = vld [vmem:[%s3294 + $0x24] sm:$0xf]
      %v3305 = vld [vmem:[%s3294 + $0x28] sm:$0xf]
      %v3306 = vld [vmem:[%s3294 + $0x2c] sm:$0xf]
      %v3307 = vld [vmem:[%s3294 + $0x30] sm:$0xf]
      %v3308 = vld [vmem:[%s3294 + $0x34] sm:$0xf]
      %v3309 = vld [vmem:[%s3294 + $0x38] sm:$0xf]
      %v3310 = vld [vmem:[%s3294 + $0x3c] sm:$0xf]
      %v3327 = vunpack.c.l.b16 %v3295
      %v3328 = vunpack.c.l.b16 %v3296
      %v3329 = vunpack.c.l.b16 %v3297
      %v3330 = vunpack.c.l.b16 %v3298
      %v3331 = vunpack.c.l.b16 %v3299
      %v3332 = vunpack.c.l.b16 %v3300
      %v3333 = vunpack.c.l.b16 %v3301
      %v3334 = vunpack.c.l.b16 %v3302
      %v3335 = vunpack.c.l.b16 %v3303
      %v3336 = vunpack.c.l.b16 %v3304
      %v3337 = vunpack.c.l.b16 %v3305
      %v3338 = vunpack.c.l.b16 %v3306
      %v3339 = vunpack.c.l.b16 %v3307
      %v3340 = vunpack.c.l.b16 %v3308
      %v3341 = vunpack.c.l.b16 %v3309
      %v3342 = vunpack.c.l.b16 %v3310
      %v3343 = vpack.c.b16 %v3328, %v3327
      %v3344 = vpack.c.b16 %v3330, %v3329
      %v3345 = vpack.c.b16 %v3332, %v3331
      %v3346 = vpack.c.b16 %v3334, %v3333
      %v3347 = vpack.c.b16 %v3336, %v3335
      %v3348 = vpack.c.b16 %v3338, %v3337
      %v3349 = vpack.c.b16 %v3340, %v3339
      %v3350 = vpack.c.b16 %v3342, %v3341
      %3359 = vmatprep.subr.bf16.mxu0 0
      %3360 = vmatpush1.bf16.msra.mxu0 %v3343
      %3361 = vmatprep.subr.bf16.mxu0 0
      %3362 = vmatpush1.bf16.msra.mxu0 %v3344
      %3363 = vmatprep.subr.bf16.mxu0 0
      %3364 = vmatpush1.bf16.msra.mxu0 %v3345
      %3365 = vmatprep.subr.bf16.mxu0 0
      %3366 = vmatpush1.bf16.msra.mxu0 %v3346
      %3367 = vmatprep.subr.bf16.mxu0 0
      %3368 = vmatpush1.bf16.msra.mxu0 %v3347
      %3369 = vmatprep.subr.bf16.mxu0 0
      %3370 = vmatpush1.bf16.msra.mxu0 %v3348
      %3371 = vmatprep.subr.bf16.mxu0 0
      %3372 = vmatpush1.bf16.msra.mxu0 %v3349
      %3373 = vmatprep.subr.bf16.mxu0 0
      %3374 = vmatpush1.bf16.msra.mxu0 %v3350
      %3375 = vmatprep.subr.bf16.mxu0 0
      %3376 = vmatpush1.bf16.msra.mxu0 0
      %3377 = vmatprep.subr.bf16.mxu0 0
      %3378 = vmatpush1.bf16.msra.mxu0 0
      %3379 = vmatprep.subr.bf16.mxu0 0
      %3380 = vmatpush1.bf16.msra.mxu0 0
      %3381 = vmatprep.subr.bf16.mxu0 0
      %3382 = vmatpush1.bf16.msra.mxu0 0
      %3383 = vmatprep.subr.bf16.mxu0 0
      %3384 = vmatpush1.bf16.msra.mxu0 0
      %3385 = vmatprep.subr.bf16.mxu0 0
      %3386 = vmatpush1.bf16.msra.mxu0 0
      %3387 = vmatprep.subr.bf16.mxu0 0
      %3388 = vmatpush1.bf16.msra.mxu0 0
      %3389 = vmatprep.subr.bf16.mxu0 0
      %3390 = vmatpush1.bf16.msra.mxu0 0
      %3391 = vmatprep.mubr.bf16.mxu0 0
      %3392 = vmatmul.mubr.bf16.gmra.mrb[0].mxu0 %v3278
      %v3393 = vpop.f32.mrb[0].mxu0
      %v3394 = vadd.f32 0.0, %v3393
      %v3395 = vpop.f32.mrb[0].mxu0
      %v3396 = vpop.f32.mrb[0].mxu0
      %v3397 = vadd.f32 0.0, %v3396
      %v3398 = vpop.f32.mrb[0].mxu0
      %3399 = vmatprep.mubr.bf16.mxu0 0
      %3400 = vmatmul.mubr.bf16.gmra.mrb[0].mxu0 %v3279
      %v3401 = vpop.f32.mrb[0].mxu0
      %v3402 = vadd.f32 0.0, %v3401
      %v3403 = vpop.f32.mrb[0].mxu0
      %v3404 = vpop.f32.mrb[0].mxu0
      %v3405 = vadd.f32 0.0, %v3404
      %v3406 = vpop.f32.mrb[0].mxu0
      %3407 = vmatprep.mubr.bf16.mxu0 0
      %3408 = vmatmul.mubr.bf16.gmra.mrb[0].mxu0 %v3280
      %v3409 = vpop.f32.mrb[0].mxu0
      %v3410 = vadd.f32 0.0, %v3409
      %v3411 = vpop.f32.mrb[0].mxu0
      %v3412 = vpop.f32.mrb[0].mxu0
      %v3413 = vadd.f32 0.0, %v3412
      %v3414 = vpop.f32.mrb[0].mxu0
      %3415 = vmatprep.mubr.bf16.mxu0 0
      %3416 = vmatmul.mubr.bf16.gmra.mrb[0].mxu0 %v3281
      %v3417 = vpop.f32.mrb[0].mxu0
      %v3418 = vadd.f32 0.0, %v3417
      %v3419 = vpop.f32.mrb[0].mxu0
      %v3420 = vpop.f32.mrb[0].mxu0
      %v3421 = vadd.f32 0.0, %v3420
      %v3422 = vpop.f32.mrb[0].mxu0
      %3423 = vmatprep.mubr.bf16.mxu0 0
      %3424 = vmatmul.mubr.bf16.gmra.mrb[0].mxu0 %v3282
      %v3425 = vpop.f32.mrb[0].mxu0
      %v3426 = vadd.f32 0.0, %v3425
      %v3427 = vpop.f32.mrb[0].mxu0
      %v3428 = vpop.f32.mrb[0].mxu0
      %v3429 = vadd.f32 0.0, %v3428
      %v3430 = vpop.f32.mrb[0].mxu0
      %3431 = vmatprep.mubr.bf16.mxu0 0
      %3432 = vmatmul.mubr.bf16.gmra.mrb[0].mxu0 %v3283
      %v3433 = vpop.f32.mrb[0].mxu0
      %v3434 = vadd.f32 0.0, %v3433
      %v3435 = vpop.f32.mrb[0].mxu0
      %v3436 = vpop.f32.mrb[0].mxu0
      %v3437 = vadd.f32 0.0, %v3436
      %v3438 = vpop.f32.mrb[0].mxu0
      %3439 = vmatprep.mubr.bf16.mxu0 0
      %3440 = vmatmul.mubr.bf16.gmra.mrb[0].mxu0 %v3284
      %v3441 = vpop.f32.mrb[0].mxu0
      %v3442 = vadd.f32 0.0, %v3441
      %v3443 = vpop.f32.mrb[0].mxu0
      %v3444 = vpop.f32.mrb[0].mxu0
      %v3445 = vadd.f32 0.0, %v3444
      %v3446 = vpop.f32.mrb[0].mxu0
      %3447 = vmatprep.mubr.bf16.mxu0 0
      %3448 = vmatmul.mubr.bf16.gmra.mrb[0].mxu0 %v3285
      %v3449 = vpop.f32.mrb[0].mxu0
      %v3450 = vadd.f32 0.0, %v3449
      %v3451 = vpop.f32.mrb[0].mxu0
      %v3452 = vpop.f32.mrb[0].mxu0
      %v3453 = vadd.f32 0.0, %v3452
      %v3454 = vpop.f32.mrb[0].mxu0
      %3455 = vmatprep.mubr.bf16.mxu0 0
      %3456 = vmatmul.mubr.bf16.gmra.mrb[0].mxu0 %v3286
      %v3457 = vpop.f32.mrb[0].mxu0
      %v3458 = vadd.f32 0.0, %v3457
      %v3459 = vpop.f32.mrb[0].mxu0
      %v3460 = vpop.f32.mrb[0].mxu0
      %v3461 = vadd.f32 0.0, %v3460
      %v3462 = vpop.f32.mrb[0].mxu0
      %3463 = vmatprep.mubr.bf16.mxu0 0
      %3464 = vmatmul.mubr.bf16.gmra.mrb[0].mxu0 %v3287
      %v3465 = vpop.f32.mrb[0].mxu0
      %v3466 = vadd.f32 0.0, %v3465
      %v3467 = vpop.f32.mrb[0].mxu0
      %v3468 = vpop.f32.mrb[0].mxu0
      %v3469 = vadd.f32 0.0, %v3468
      %v3470 = vpop.f32.mrb[0].mxu0
      %3471 = vmatprep.mubr.bf16.mxu0 0
      %3472 = vmatmul.mubr.bf16.gmra.mrb[0].mxu0 %v3288
      %v3473 = vpop.f32.mrb[0].mxu0
      %v3474 = vadd.f32 0.0, %v3473
      %v3475 = vpop.f32.mrb[0].mxu0
      %v3476 = vpop.f32.mrb[0].mxu0
      %v3477 = vadd.f32 0.0, %v3476
      %v3478 = vpop.f32.mrb[0].mxu0
      %3479 = vmatprep.mubr.bf16.mxu0 0
      %3480 = vmatmul.mubr.bf16.gmra.mrb[0].mxu0 %v3289
      %v3481 = vpop.f32.mrb[0].mxu0
      %v3482 = vadd.f32 0.0, %v3481
      %v3483 = vpop.f32.mrb[0].mxu0
      %v3484 = vpop.f32.mrb[0].mxu0
      %v3485 = vadd.f32 0.0, %v3484
      %v3486 = vpop.f32.mrb[0].mxu0
      %3487 = vmatprep.mubr.bf16.mxu0 0
      %3488 = vmatmul.mubr.bf16.gmra.mrb[0].mxu0 %v3290
      %v3489 = vpop.f32.mrb[0].mxu0
      %v3490 = vadd.f32 0.0, %v3489
      %v3491 = vpop.f32.mrb[0].mxu0
      %v3492 = vpop.f32.mrb[0].mxu0
      %v3493 = vadd.f32 0.0, %v3492
      %v3494 = vpop.f32.mrb[0].mxu0
      %3495 = vmatprep.mubr.bf16.mxu0 0
      %3496 = vmatmul.mubr.bf16.gmra.mrb[0].mxu0 %v3291
      %v3497 = vpop.f32.mrb[0].mxu0
      %v3498 = vadd.f32 0.0, %v3497
      %v3499 = vpop.f32.mrb[0].mxu0
      %v3500 = vpop.f32.mrb[0].mxu0
      %v3501 = vadd.f32 0.0, %v3500
      %v3502 = vpop.f32.mrb[0].mxu0
      %3503 = vmatprep.mubr.bf16.mxu0 0
      %3504 = vmatmul.mubr.bf16.gmra.mrb[0].mxu0 %v3292
      %v3505 = vpop.f32.mrb[0].mxu0
      %v3506 = vadd.f32 0.0, %v3505
      %v3507 = vpop.f32.mrb[0].mxu0
      %v3508 = vpop.f32.mrb[0].mxu0
      %v3509 = vadd.f32 0.0, %v3508
      %v3510 = vpop.f32.mrb[0].mxu0
      %3511 = vmatprep.mubr.bf16.mxu0 0
      %3512 = vmatmul.mubr.bf16.gmra.mrb[0].mxu0 %v3293
      %v3513 = vpop.f32.mrb[0].mxu0
      %v3514 = vadd.f32 0.0, %v3513
      %v3515 = vpop.f32.mrb[0].mxu0
      %v3516 = vpop.f32.mrb[0].mxu0
      %v3517 = vadd.f32 0.0, %v3516
      %v3518 = vpop.f32.mrb[0].mxu0
      %3519 = vdwg.mxu0
      %v3520 = vadd.f32 %v3214, %v3394
      %v3521 = vadd.f32 %v3215, %v3397
      %v3522 = vadd.f32 %v3216, %v3402
      %v3523 = vadd.f32 %v3217, %v3405
      %v3524 = vadd.f32 %v3218, %v3410
      %v3525 = vadd.f32 %v3219, %v3413
      %v3526 = vadd.f32 %v3220, %v3418
      %v3527 = vadd.f32 %v3221, %v3421
      %v3528 = vadd.f32 %v3222, %v3426
      %v3529 = vadd.f32 %v3223, %v3429
      %v3530 = vadd.f32 %v3224, %v3434
      %v3531 = vadd.f32 %v3225, %v3437
      %v3532 = vadd.f32 %v3226, %v3442
      %v3533 = vadd.f32 %v3227, %v3445
      %v3534 = vadd.f32 %v3228, %v3450
      %v3535 = vadd.f32 %v3229, %v3453
      %v3536 = vadd.f32 %v3230, %v3458
      %v3537 = vadd.f32 %v3231, %v3461
      %v3538 = vadd.f32 %v3232, %v3466
      %v3539 = vadd.f32 %v3233, %v3469
      %v3540 = vadd.f32 %v3234, %v3474
      %v3541 = vadd.f32 %v3235, %v3477
      %v3542 = vadd.f32 %v3236, %v3482
      %v3543 = vadd.f32 %v3237, %v3485
      %v3544 = vadd.f32 %v3238, %v3490
      %v3545 = vadd.f32 %v3239, %v3493
      %v3546 = vadd.f32 %v3240, %v3498
      %v3547 = vadd.f32 %v3241, %v3501
      %v3548 = vadd.f32 %v3242, %v3506
      %v3549 = vadd.f32 %v3243, %v3509
      %v3550 = vadd.f32 %v3244, %v3514
      %v3551 = vadd.f32 %v3245, %v3517
      %v3552 = vld [vmem:[#allocation2 + $0x22] sm:$0xff]
      %v3553 = vld [vmem:[#allocation2 + $0x2a] sm:$0xff]
      %v3554 = vld [vmem:[#allocation2 + $0x32] sm:$0xff]
      %v3555 = vld [vmem:[#allocation2 + $0x3a] sm:$0xff]
      %v3556 = vld [vmem:[#allocation2 + $0x42] sm:$0xff]
      %v3557 = vld [vmem:[#allocation2 + $0x4a] sm:$0xff]
      %v3558 = vld [vmem:[#allocation2 + $0x52] sm:$0xff]
      %v3559 = vld [vmem:[#allocation2 + $0x5a] sm:$0xff]
      %v3560 = vld [vmem:[#allocation2 + $0x62] sm:$0xff]
      %v3561 = vld [vmem:[#allocation2 + $0x6a] sm:$0xff]
      %v3562 = vld [vmem:[#allocation2 + $0x72] sm:$0xff]
      %v3563 = vld [vmem:[#allocation2 + $0x7a] sm:$0xff]
      %v3564 = vld [vmem:[#allocation2 + $0x82] sm:$0xff]
      %v3565 = vld [vmem:[#allocation2 + $0x8a] sm:$0xff]
      %v3566 = vld [vmem:[#allocation2 + $0x92] sm:$0xff]
      %v3567 = vld [vmem:[#allocation2 + $0x9a] sm:$0xff]
      %v3568 = vld [vmem:[#allocation2 + $0xa2] sm:$0xff]
      %v3569 = vld [vmem:[#allocation2 + $0xaa] sm:$0xff]
      %v3570 = vld [vmem:[#allocation2 + $0xb2] sm:$0xff]
      %v3571 = vld [vmem:[#allocation2 + $0xba] sm:$0xff]
      %v3572 = vld [vmem:[#allocation2 + $0xc2] sm:$0xff]
      %v3573 = vld [vmem:[#allocation2 + $0xca] sm:$0xff]
      %v3574 = vld [vmem:[#allocation2 + $0xd2] sm:$0xff]
      %v3575 = vld [vmem:[#allocation2 + $0xda] sm:$0xff]
      %v3576 = vld [vmem:[#allocation2 + $0xe2] sm:$0xff]
      %v3577 = vld [vmem:[#allocation2 + $0xea] sm:$0xff]
      %v3578 = vld [vmem:[#allocation2 + $0xf2] sm:$0xff]
      %v3579 = vld [vmem:[#allocation2 + $0xfa] sm:$0xff]
      %v3580 = vld [vmem:[#allocation2 + $0x102] sm:$0xff]
      %v3581 = vld [vmem:[#allocation2 + $0x10a] sm:$0xff]
      %v3582 = vld [vmem:[#allocation2 + $0x112] sm:$0xff]
      %v3583 = vld [vmem:[#allocation2 + $0x11a] sm:$0xff]
      %v3584 = vsel %vm1588, %v3552, 0.0
      %v3585 = vsel %vm1589, %v3553, 0.0
      %v3586 = vsel %vm1590, %v3554, 0.0
      %v3587 = vsel %vm1591, %v3555, 0.0
      %v3588 = vsel %vm1592, %v3556, 0.0
      %v3589 = vsel %vm1593, %v3557, 0.0
      %v3590 = vsel %vm1594, %v3558, 0.0
      %v3591 = vsel %vm1595, %v3559, 0.0
      %v3592 = vsel %vm1596, %v3560, 0.0
      %v3593 = vsel %vm1597, %v3561, 0.0
      %v3594 = vsel %vm1598, %v3562, 0.0
      %v3595 = vsel %vm1599, %v3563, 0.0
      %v3596 = vsel %vm1600, %v3564, 0.0
      %v3597 = vsel %vm1601, %v3565, 0.0
      %v3598 = vsel %vm1602, %v3566, 0.0
      %v3599 = vsel %vm1603, %v3567, 0.0
      %v3600 = vsel %vm1604, %v3568, 0.0
      %v3601 = vsel %vm1605, %v3569, 0.0
      %v3602 = vsel %vm1606, %v3570, 0.0
      %v3603 = vsel %vm1607, %v3571, 0.0
      %v3604 = vsel %vm1608, %v3572, 0.0
      %v3605 = vsel %vm1609, %v3573, 0.0
      %v3606 = vsel %vm1610, %v3574, 0.0
      %v3607 = vsel %vm1611, %v3575, 0.0
      %v3608 = vsel %vm1612, %v3576, 0.0
      %v3609 = vsel %vm1613, %v3577, 0.0
      %v3610 = vsel %vm1614, %v3578, 0.0
      %v3611 = vsel %vm1615, %v3579, 0.0
      %v3612 = vsel %vm1616, %v3580, 0.0
      %v3613 = vsel %vm1617, %v3581, 0.0
      %v3614 = vsel %vm1618, %v3582, 0.0
      %v3615 = vsel %vm1619, %v3583, 0.0
      %v3616 = vpack.c.bf16 %v3585, %v3584
      %v3617 = vpack.c.bf16 %v3587, %v3586
      %v3618 = vpack.c.bf16 %v3589, %v3588
      %v3619 = vpack.c.bf16 %v3591, %v3590
      %v3620 = vpack.c.bf16 %v3593, %v3592
      %v3621 = vpack.c.bf16 %v3595, %v3594
      %v3622 = vpack.c.bf16 %v3597, %v3596
      %v3623 = vpack.c.bf16 %v3599, %v3598
      %v3624 = vpack.c.bf16 %v3601, %v3600
      %v3625 = vpack.c.bf16 %v3603, %v3602
      %v3626 = vpack.c.bf16 %v3605, %v3604
      %v3627 = vpack.c.bf16 %v3607, %v3606
      %v3628 = vpack.c.bf16 %v3609, %v3608
      %v3629 = vpack.c.bf16 %v3611, %v3610
      %v3630 = vpack.c.bf16 %v3613, %v3612
      %v3631 = vpack.c.bf16 %v3615, %v3614
      %s3632 = scalar_lea.vmem %s4, 512
      %v3633 = vld [vmem:[%s3632] sm:$0xf]
      %v3634 = vld [vmem:[%s3632 + $0x4] sm:$0xf]
      %v3635 = vld [vmem:[%s3632 + $0x8] sm:$0xf]
      %v3636 = vld [vmem:[%s3632 + $0xc] sm:$0xf]
      %v3637 = vld [vmem:[%s3632 + $0x10] sm:$0xf]
      %v3638 = vld [vmem:[%s3632 + $0x14] sm:$0xf]
      %v3639 = vld [vmem:[%s3632 + $0x18] sm:$0xf]
      %v3640 = vld [vmem:[%s3632 + $0x1c] sm:$0xf]
      %v3641 = vld [vmem:[%s3632 + $0x20] sm:$0xf]
      %v3642 = vld [vmem:[%s3632 + $0x24] sm:$0xf]
      %v3643 = vld [vmem:[%s3632 + $0x28] sm:$0xf]
      %v3644 = vld [vmem:[%s3632 + $0x2c] sm:$0xf]
      %v3645 = vld [vmem:[%s3632 + $0x30] sm:$0xf]
      %v3646 = vld [vmem:[%s3632 + $0x34] sm:$0xf]
      %v3647 = vld [vmem:[%s3632 + $0x38] sm:$0xf]
      %v3648 = vld [vmem:[%s3632 + $0x3c] sm:$0xf]
      %v3665 = vunpack.c.l.b16 %v3633
      %v3666 = vunpack.c.l.b16 %v3634
      %v3667 = vunpack.c.l.b16 %v3635
      %v3668 = vunpack.c.l.b16 %v3636
      %v3669 = vunpack.c.l.b16 %v3637
      %v3670 = vunpack.c.l.b16 %v3638
      %v3671 = vunpack.c.l.b16 %v3639
      %v3672 = vunpack.c.l.b16 %v3640
      %v3673 = vunpack.c.l.b16 %v3641
      %v3674 = vunpack.c.l.b16 %v3642
      %v3675 = vunpack.c.l.b16 %v3643
      %v3676 = vunpack.c.l.b16 %v3644
      %v3677 = vunpack.c.l.b16 %v3645
      %v3678 = vunpack.c.l.b16 %v3646
      %v3679 = vunpack.c.l.b16 %v3647
      %v3680 = vunpack.c.l.b16 %v3648
      %v3681 = vpack.c.b16 %v3666, %v3665
      %v3682 = vpack.c.b16 %v3668, %v3667
      %v3683 = vpack.c.b16 %v3670, %v3669
      %v3684 = vpack.c.b16 %v3672, %v3671
      %v3685 = vpack.c.b16 %v3674, %v3673
      %v3686 = vpack.c.b16 %v3676, %v3675
      %v3687 = vpack.c.b16 %v3678, %v3677
      %v3688 = vpack.c.b16 %v3680, %v3679
      %3697 = vmatprep.subr.bf16.mxu0 0
      %3698 = vmatpush1.bf16.msra.mxu0 %v3681
      %3699 = vmatprep.subr.bf16.mxu0 0
      %3700 = vmatpush1.bf16.msra.mxu0 %v3682
      %3701 = vmatprep.subr.bf16.mxu0 0
      %3702 = vmatpush1.bf16.msra.mxu0 %v3683
      %3703 = vmatprep.subr.bf16.mxu0 0
      %3704 = vmatpush1.bf16.msra.mxu0 %v3684
      %3705 = vmatprep.subr.bf16.mxu0 0
      %3706 = vmatpush1.bf16.msra.mxu0 %v3685
      %3707 = vmatprep.subr.bf16.mxu0 0
      %3708 = vmatpush1.bf16.msra.mxu0 %v3686
      %3709 = vmatprep.subr.bf16.mxu0 0
      %3710 = vmatpush1.bf16.msra.mxu0 %v3687
      %3711 = vmatprep.subr.bf16.mxu0 0
      %3712 = vmatpush1.bf16.msra.mxu0 %v3688
      %3713 = vmatprep.subr.bf16.mxu0 0
      %3714 = vmatpush1.bf16.msra.mxu0 0
      %3715 = vmatprep.subr.bf16.mxu0 0
      %3716 = vmatpush1.bf16.msra.mxu0 0
      %3717 = vmatprep.subr.bf16.mxu0 0
      %3718 = vmatpush1.bf16.msra.mxu0 0
      %3719 = vmatprep.subr.bf16.mxu0 0
      %3720 = vmatpush1.bf16.msra.mxu0 0
      %3721 = vmatprep.subr.bf16.mxu0 0
      %3722 = vmatpush1.bf16.msra.mxu0 0
      %3723 = vmatprep.subr.bf16.mxu0 0
      %3724 = vmatpush1.bf16.msra.mxu0 0
      %3725 = vmatprep.subr.bf16.mxu0 0
      %3726 = vmatpush1.bf16.msra.mxu0 0
      %3727 = vmatprep.subr.bf16.mxu0 0
      %3728 = vmatpush1.bf16.msra.mxu0 0
      %3729 = vmatprep.mubr.bf16.mxu0 0
      %3730 = vmatmul.mubr.bf16.gmra.mrb[0].mxu0 %v3616
      %v3731 = vpop.f32.mrb[0].mxu0
      %v3732 = vadd.f32 0.0, %v3731
      %v3733 = vpop.f32.mrb[0].mxu0
      %v3734 = vpop.f32.mrb[0].mxu0
      %v3735 = vadd.f32 0.0, %v3734
      %v3736 = vpop.f32.mrb[0].mxu0
      %3737 = vmatprep.mubr.bf16.mxu0 0
      %3738 = vmatmul.mubr.bf16.gmra.mrb[0].mxu0 %v3617
      %v3739 = vpop.f32.mrb[0].mxu0
      %v3740 = vadd.f32 0.0, %v3739
      %v3741 = vpop.f32.mrb[0].mxu0
      %v3742 = vpop.f32.mrb[0].mxu0
      %v3743 = vadd.f32 0.0, %v3742
      %v3744 = vpop.f32.mrb[0].mxu0
      %3745 = vmatprep.mubr.bf16.mxu0 0
      %3746 = vmatmul.mubr.bf16.gmra.mrb[0].mxu0 %v3618
      %v3747 = vpop.f32.mrb[0].mxu0
      %v3748 = vadd.f32 0.0, %v3747
      %v3749 = vpop.f32.mrb[0].mxu0
      %v3750 = vpop.f32.mrb[0].mxu0
      %v3751 = vadd.f32 0.0, %v3750
      %v3752 = vpop.f32.mrb[0].mxu0
      %3753 = vmatprep.mubr.bf16.mxu0 0
      %3754 = vmatmul.mubr.bf16.gmra.mrb[0].mxu0 %v3619
      %v3755 = vpop.f32.mrb[0].mxu0
      %v3756 = vadd.f32 0.0, %v3755
      %v3757 = vpop.f32.mrb[0].mxu0
      %v3758 = vpop.f32.mrb[0].mxu0
      %v3759 = vadd.f32 0.0, %v3758
      %v3760 = vpop.f32.mrb[0].mxu0
      %3761 = vmatprep.mubr.bf16.mxu0 0
      %3762 = vmatmul.mubr.bf16.gmra.mrb[0].mxu0 %v3620
      %v3763 = vpop.f32.mrb[0].mxu0
      %v3764 = vadd.f32 0.0, %v3763
      %v3765 = vpop.f32.mrb[0].mxu0
      %v3766 = vpop.f32.mrb[0].mxu0
      %v3767 = vadd.f32 0.0, %v3766
      %v3768 = vpop.f32.mrb[0].mxu0
      %3769 = vmatprep.mubr.bf16.mxu0 0
      %3770 = vmatmul.mubr.bf16.gmra.mrb[0].mxu0 %v3621
      %v3771 = vpop.f32.mrb[0].mxu0
      %v3772 = vadd.f32 0.0, %v3771
      %v3773 = vpop.f32.mrb[0].mxu0
      %v3774 = vpop.f32.mrb[0].mxu0
      %v3775 = vadd.f32 0.0, %v3774
      %v3776 = vpop.f32.mrb[0].mxu0
      %3777 = vmatprep.mubr.bf16.mxu0 0
      %3778 = vmatmul.mubr.bf16.gmra.mrb[0].mxu0 %v3622
      %v3779 = vpop.f32.mrb[0].mxu0
      %v3780 = vadd.f32 0.0, %v3779
      %v3781 = vpop.f32.mrb[0].mxu0
      %v3782 = vpop.f32.mrb[0].mxu0
      %v3783 = vadd.f32 0.0, %v3782
      %v3784 = vpop.f32.mrb[0].mxu0
      %3785 = vmatprep.mubr.bf16.mxu0 0
      %3786 = vmatmul.mubr.bf16.gmra.mrb[0].mxu0 %v3623
      %v3787 = vpop.f32.mrb[0].mxu0
      %v3788 = vadd.f32 0.0, %v3787
      %v3789 = vpop.f32.mrb[0].mxu0
      %v3790 = vpop.f32.mrb[0].mxu0
      %v3791 = vadd.f32 0.0, %v3790
      %v3792 = vpop.f32.mrb[0].mxu0
      %3793 = vmatprep.mubr.bf16.mxu0 0
      %3794 = vmatmul.mubr.bf16.gmra.mrb[0].mxu0 %v3624
      %v3795 = vpop.f32.mrb[0].mxu0
      %v3796 = vadd.f32 0.0, %v3795
      %v3797 = vpop.f32.mrb[0].mxu0
      %v3798 = vpop.f32.mrb[0].mxu0
      %v3799 = vadd.f32 0.0, %v3798
      %v3800 = vpop.f32.mrb[0].mxu0
      %3801 = vmatprep.mubr.bf16.mxu0 0
      %3802 = vmatmul.mubr.bf16.gmra.mrb[0].mxu0 %v3625
      %v3803 = vpop.f32.mrb[0].mxu0
      %v3804 = vadd.f32 0.0, %v3803
      %v3805 = vpop.f32.mrb[0].mxu0
      %v3806 = vpop.f32.mrb[0].mxu0
      %v3807 = vadd.f32 0.0, %v3806
      %v3808 = vpop.f32.mrb[0].mxu0
      %3809 = vmatprep.mubr.bf16.mxu0 0
      %3810 = vmatmul.mubr.bf16.gmra.mrb[0].mxu0 %v3626
      %v3811 = vpop.f32.mrb[0].mxu0
      %v3812 = vadd.f32 0.0, %v3811
      %v3813 = vpop.f32.mrb[0].mxu0
      %v3814 = vpop.f32.mrb[0].mxu0
      %v3815 = vadd.f32 0.0, %v3814
      %v3816 = vpop.f32.mrb[0].mxu0
      %3817 = vmatprep.mubr.bf16.mxu0 0
      %3818 = vmatmul.mubr.bf16.gmra.mrb[0].mxu0 %v3627
      %v3819 = vpop.f32.mrb[0].mxu0
      %v3820 = vadd.f32 0.0, %v3819
      %v3821 = vpop.f32.mrb[0].mxu0
      %v3822 = vpop.f32.mrb[0].mxu0
      %v3823 = vadd.f32 0.0, %v3822
      %v3824 = vpop.f32.mrb[0].mxu0
      %3825 = vmatprep.mubr.bf16.mxu0 0
      %3826 = vmatmul.mubr.bf16.gmra.mrb[0].mxu0 %v3628
      %v3827 = vpop.f32.mrb[0].mxu0
      %v3828 = vadd.f32 0.0, %v3827
      %v3829 = vpop.f32.mrb[0].mxu0
      %v3830 = vpop.f32.mrb[0].mxu0
      %v3831 = vadd.f32 0.0, %v3830
      %v3832 = vpop.f32.mrb[0].mxu0
      %3833 = vmatprep.mubr.bf16.mxu0 0
      %3834 = vmatmul.mubr.bf16.gmra.mrb[0].mxu0 %v3629
      %v3835 = vpop.f32.mrb[0].mxu0
      %v3836 = vadd.f32 0.0, %v3835
      %v3837 = vpop.f32.mrb[0].mxu0
      %v3838 = vpop.f32.mrb[0].mxu0
      %v3839 = vadd.f32 0.0, %v3838
      %v3840 = vpop.f32.mrb[0].mxu0
      %3841 = vmatprep.mubr.bf16.mxu0 0
      %3842 = vmatmul.mubr.bf16.gmra.mrb[0].mxu0 %v3630
      %v3843 = vpop.f32.mrb[0].mxu0
      %v3844 = vadd.f32 0.0, %v3843
      %v3845 = vpop.f32.mrb[0].mxu0
      %v3846 = vpop.f32.mrb[0].mxu0
      %v3847 = vadd.f32 0.0, %v3846
      %v3848 = vpop.f32.mrb[0].mxu0
      %3849 = vmatprep.mubr.bf16.mxu0 0
      %3850 = vmatmul.mubr.bf16.gmra.mrb[0].mxu0 %v3631
      %v3851 = vpop.f32.mrb[0].mxu0
      %v3852 = vadd.f32 0.0, %v3851
      %v3853 = vpop.f32.mrb[0].mxu0
      %v3854 = vpop.f32.mrb[0].mxu0
      %v3855 = vadd.f32 0.0, %v3854
      %v3856 = vpop.f32.mrb[0].mxu0
      %3857 = vdwg.mxu0
      %v3858 = vadd.f32 %v3520, %v3732
      %v3859 = vadd.f32 %v3521, %v3735
      %v3860 = vadd.f32 %v3522, %v3740
      %v3861 = vadd.f32 %v3523, %v3743
      %v3862 = vadd.f32 %v3524, %v3748
      %v3863 = vadd.f32 %v3525, %v3751
      %v3864 = vadd.f32 %v3526, %v3756
      %v3865 = vadd.f32 %v3527, %v3759
      %v3866 = vadd.f32 %v3528, %v3764
      %v3867 = vadd.f32 %v3529, %v3767
      %v3868 = vadd.f32 %v3530, %v3772
      %v3869 = vadd.f32 %v3531, %v3775
      %v3870 = vadd.f32 %v3532, %v3780
      %v3871 = vadd.f32 %v3533, %v3783
      %v3872 = vadd.f32 %v3534, %v3788
      %v3873 = vadd.f32 %v3535, %v3791
      %v3874 = vadd.f32 %v3536, %v3796
      %v3875 = vadd.f32 %v3537, %v3799
      %v3876 = vadd.f32 %v3538, %v3804
      %v3877 = vadd.f32 %v3539, %v3807
      %v3878 = vadd.f32 %v3540, %v3812
      %v3879 = vadd.f32 %v3541, %v3815
      %v3880 = vadd.f32 %v3542, %v3820
      %v3881 = vadd.f32 %v3543, %v3823
      %v3882 = vadd.f32 %v3544, %v3828
      %v3883 = vadd.f32 %v3545, %v3831
      %v3884 = vadd.f32 %v3546, %v3836
      %v3885 = vadd.f32 %v3547, %v3839
      %v3886 = vadd.f32 %v3548, %v3844
      %v3887 = vadd.f32 %v3549, %v3847
      %v3888 = vadd.f32 %v3550, %v3852
      %v3889 = vadd.f32 %v3551, %v3855
      %v3890 = vadd.f32 %v3858, %v3859
      %v3891 = vadd.f32 %v3890, %v3860
      %v3892 = vadd.f32 %v3891, %v3861
      %v3893 = vadd.f32 %v3892, %v3862
      %v3894 = vadd.f32 %v3893, %v3863
      %v3895 = vadd.f32 %v3894, %v3864
      %v3896 = vadd.f32 %v3895, %v3865
      %v3897 = vadd.f32 %v3896, %v3866
      %v3898 = vadd.f32 %v3897, %v3867
      %v3899 = vadd.f32 %v3898, %v3868
      %v3900 = vadd.f32 %v3899, %v3869
      %v3901 = vadd.f32 %v3900, %v3870
      %v3902 = vadd.f32 %v3901, %v3871
      %v3903 = vadd.f32 %v3902, %v3872
      %v3904 = vadd.f32 %v3903, %v3873
      %v3905 = vadd.f32 %v3904, %v3874
      %v3906 = vadd.f32 %v3905, %v3875
      %v3907 = vadd.f32 %v3906, %v3876
      %v3908 = vadd.f32 %v3907, %v3877
      %v3909 = vadd.f32 %v3908, %v3878
      %v3910 = vadd.f32 %v3909, %v3879
      %v3911 = vadd.f32 %v3910, %v3880
      %v3912 = vadd.f32 %v3911, %v3881
      %v3913 = vadd.f32 %v3912, %v3882
      %v3914 = vadd.f32 %v3913, %v3883
      %v3915 = vadd.f32 %v3914, %v3884
      %v3916 = vadd.f32 %v3915, %v3885
      %v3917 = vadd.f32 %v3916, %v3886
      %v3918 = vadd.f32 %v3917, %v3887
      %v3919 = vadd.f32 %v3918, %v3888
      %v3920 = vadd.f32 %v3919, %v3889
      %v3921 = vrot.slane %v3920, 4
      %v3922 = vadd.f32 %v3920, %v3921
      %v3923 = vrot.slane %v3922, 2
      %v3924 = vadd.f32 %v3922, %v3923
      %v3925 = vrot.slane %v3924, 1
      %v3926 = vadd.f32 %v3924, %v3925
      %3927 = vst [vmem:[%s312] sm:$0x1] %v3926
      %v3928 = vmul.f32 %v3858, %v3858
      %v3929 = vmul.f32 %v3859, %v3859
      %v3930 = vmul.f32 %v3860, %v3860
      %v3931 = vmul.f32 %v3861, %v3861
      %v3932 = vmul.f32 %v3862, %v3862
      %v3933 = vmul.f32 %v3863, %v3863
      %v3934 = vmul.f32 %v3864, %v3864
      %v3935 = vmul.f32 %v3865, %v3865
      %v3936 = vmul.f32 %v3866, %v3866
      %v3937 = vmul.f32 %v3867, %v3867
      %v3938 = vmul.f32 %v3868, %v3868
      %v3939 = vmul.f32 %v3869, %v3869
      %v3940 = vmul.f32 %v3870, %v3870
      %v3941 = vmul.f32 %v3871, %v3871
      %v3942 = vmul.f32 %v3872, %v3872
      %v3943 = vmul.f32 %v3873, %v3873
      %v3944 = vmul.f32 %v3874, %v3874
      %v3945 = vmul.f32 %v3875, %v3875
      %v3946 = vmul.f32 %v3876, %v3876
      %v3947 = vmul.f32 %v3877, %v3877
      %v3948 = vmul.f32 %v3878, %v3878
      %v3949 = vmul.f32 %v3879, %v3879
      %v3950 = vmul.f32 %v3880, %v3880
      %v3951 = vmul.f32 %v3881, %v3881
      %v3952 = vmul.f32 %v3882, %v3882
      %v3953 = vmul.f32 %v3883, %v3883
      %v3954 = vmul.f32 %v3884, %v3884
      %v3955 = vmul.f32 %v3885, %v3885
      %v3956 = vmul.f32 %v3886, %v3886
      %v3957 = vmul.f32 %v3887, %v3887
      %v3958 = vmul.f32 %v3888, %v3888
      %v3959 = vmul.f32 %v3889, %v3889
      %v3960 = vadd.f32 %v3928, %v3929
      %v3961 = vadd.f32 %v3960, %v3930
      %v3962 = vadd.f32 %v3961, %v3931
      %v3963 = vadd.f32 %v3962, %v3932
      %v3964 = vadd.f32 %v3963, %v3933
      %v3965 = vadd.f32 %v3964, %v3934
      %v3966 = vadd.f32 %v3965, %v3935
      %v3967 = vadd.f32 %v3966, %v3936
      %v3968 = vadd.f32 %v3967, %v3937
      %v3969 = vadd.f32 %v3968, %v3938
      %v3970 = vadd.f32 %v3969, %v3939
      %v3971 = vadd.f32 %v3970, %v3940
      %v3972 = vadd.f32 %v3971, %v3941
      %v3973 = vadd.f32 %v3972, %v3942
      %v3974 = vadd.f32 %v3973, %v3943
      %v3975 = vadd.f32 %v3974, %v3944
      %v3976 = vadd.f32 %v3975, %v3945
      %v3977 = vadd.f32 %v3976, %v3946
      %v3978 = vadd.f32 %v3977, %v3947
      %v3979 = vadd.f32 %v3978, %v3948
      %v3980 = vadd.f32 %v3979, %v3949
      %v3981 = vadd.f32 %v3980, %v3950
      %v3982 = vadd.f32 %v3981, %v3951
      %v3983 = vadd.f32 %v3982, %v3952
      %v3984 = vadd.f32 %v3983, %v3953
      %v3985 = vadd.f32 %v3984, %v3954
      %v3986 = vadd.f32 %v3985, %v3955
      %v3987 = vadd.f32 %v3986, %v3956
      %v3988 = vadd.f32 %v3987, %v3957
      %v3989 = vadd.f32 %v3988, %v3958
      %v3990 = vadd.f32 %v3989, %v3959
      %v3991 = vrot.slane %v3990, 4
      %v3992 = vadd.f32 %v3990, %v3991
      %v3993 = vrot.slane %v3992, 2
      %v3994 = vadd.f32 %v3992, %v3993
      %v3995 = vrot.slane %v3994, 1
      %v3996 = vadd.f32 %v3994, %v3995
      %3997 = vst [vmem:[%s315] sm:$0x1] %v3996
      %v3998 = vlaneseq
      %v3999 = vand.u32 %v3998, 127
      %vm4000 = vcmp.ge.s32.totalorder %v3999, 4
      %vm4001 = vcmp.lt.s32.totalorder %v3999, 8
      %vm4002 = vmand %vm4000, %vm4001
      %v4003 = vld [vmem:[%s299] sm:$0xff]
      %v4004 = vld [vmem:[%s299 + $0x8] sm:$0xff]
      %v4005 = vld [vmem:[%s299 + $0x10] sm:$0xff]
      %v4006 = vld [vmem:[%s299 + $0x18] sm:$0xff]
      %v4007 = vld [vmem:[%s299 + $0x20] sm:$0xff]
      %v4008 = vld [vmem:[%s299 + $0x28] sm:$0xff]
      %v4009 = vld [vmem:[%s299 + $0x30] sm:$0xff]
      %v4010 = vld [vmem:[%s299 + $0x38] sm:$0xff]
      %v4011 = vld [vmem:[%s299 + $0x40] sm:$0xff]
      %v4012 = vld [vmem:[%s299 + $0x48] sm:$0xff]
      %v4013 = vld [vmem:[%s299 + $0x50] sm:$0xff]
      %v4014 = vld [vmem:[%s299 + $0x58] sm:$0xff]
      %v4015 = vld [vmem:[%s299 + $0x60] sm:$0xff]
      %v4016 = vld [vmem:[%s299 + $0x68] sm:$0xff]
      %v4017 = vld [vmem:[%s299 + $0x70] sm:$0xff]
      %v4018 = vld [vmem:[%s299 + $0x78] sm:$0xff]
      %v4019 = vld [vmem:[%s299 + $0x80] sm:$0xff]
      %v4020 = vld [vmem:[%s299 + $0x88] sm:$0xff]
      %v4021 = vld [vmem:[%s299 + $0x90] sm:$0xff]
      %v4022 = vld [vmem:[%s299 + $0x98] sm:$0xff]
      %v4023 = vld [vmem:[%s299 + $0xa0] sm:$0xff]
      %v4024 = vld [vmem:[%s299 + $0xa8] sm:$0xff]
      %v4025 = vld [vmem:[%s299 + $0xb0] sm:$0xff]
      %v4026 = vld [vmem:[%s299 + $0xb8] sm:$0xff]
      %v4027 = vld [vmem:[%s299 + $0xc0] sm:$0xff]
      %v4028 = vld [vmem:[%s299 + $0xc8] sm:$0xff]
      %v4029 = vld [vmem:[%s299 + $0xd0] sm:$0xff]
      %v4030 = vld [vmem:[%s299 + $0xd8] sm:$0xff]
      %v4031 = vld [vmem:[%s299 + $0xe0] sm:$0xff]
      %v4032 = vld [vmem:[%s299 + $0xe8] sm:$0xff]
      %v4033 = vld [vmem:[%s299 + $0xf0] sm:$0xff]
      %v4034 = vld [vmem:[%s299 + $0xf8] sm:$0xff]
      %v4035 = vsel %vm4002, %v3858, %v4003
      %v4036 = vsel %vm4002, %v3859, %v4004
      %v4037 = vsel %vm4002, %v3860, %v4005
      %v4038 = vsel %vm4002, %v3861, %v4006
      %v4039 = vsel %vm4002, %v3862, %v4007
      %v4040 = vsel %vm4002, %v3863, %v4008
      %v4041 = vsel %vm4002, %v3864, %v4009
      %v4042 = vsel %vm4002, %v3865, %v4010
      %v4043 = vsel %vm4002, %v3866, %v4011
      %v4044 = vsel %vm4002, %v3867, %v4012
      %v4045 = vsel %vm4002, %v3868, %v4013
      %v4046 = vsel %vm4002, %v3869, %v4014
      %v4047 = vsel %vm4002, %v3870, %v4015
      %v4048 = vsel %vm4002, %v3871, %v4016
      %v4049 = vsel %vm4002, %v3872, %v4017
      %v4050 = vsel %vm4002, %v3873, %v4018
      %v4051 = vsel %vm4002, %v3874, %v4019
      %v4052 = vsel %vm4002, %v3875, %v4020
      %v4053 = vsel %vm4002, %v3876, %v4021
      %v4054 = vsel %vm4002, %v3877, %v4022
      %v4055 = vsel %vm4002, %v3878, %v4023
      %v4056 = vsel %vm4002, %v3879, %v4024
      %v4057 = vsel %vm4002, %v3880, %v4025
      %v4058 = vsel %vm4002, %v3881, %v4026
      %v4059 = vsel %vm4002, %v3882, %v4027
      %v4060 = vsel %vm4002, %v3883, %v4028
      %v4061 = vsel %vm4002, %v3884, %v4029
      %v4062 = vsel %vm4002, %v3885, %v4030
      %v4063 = vsel %vm4002, %v3886, %v4031
      %v4064 = vsel %vm4002, %v3887, %v4032
      %v4065 = vsel %vm4002, %v3888, %v4033
      %v4066 = vsel %vm4002, %v3889, %v4034
      %4067 = vst [vmem:[%s309] sm:$0xff] %v4035
      %4068 = vst [vmem:[%s309 + $0x8] sm:$0xff] %v4036
      %4069 = vst [vmem:[%s309 + $0x10] sm:$0xff] %v4037
      %4070 = vst [vmem:[%s309 + $0x18] sm:$0xff] %v4038
      %4071 = vst [vmem:[%s309 + $0x20] sm:$0xff] %v4039
      %4072 = vst [vmem:[%s309 + $0x28] sm:$0xff] %v4040
      %4073 = vst [vmem:[%s309 + $0x30] sm:$0xff] %v4041
      %4074 = vst [vmem:[%s309 + $0x38] sm:$0xff] %v4042
      %4075 = vst [vmem:[%s309 + $0x40] sm:$0xff] %v4043
      %4076 = vst [vmem:[%s309 + $0x48] sm:$0xff] %v4044
      %4077 = vst [vmem:[%s309 + $0x50] sm:$0xff] %v4045
      %4078 = vst [vmem:[%s309 + $0x58] sm:$0xff] %v4046
      %4079 = vst [vmem:[%s309 + $0x60] sm:$0xff] %v4047
      %4080 = vst [vmem:[%s309 + $0x68] sm:$0xff] %v4048
      %4081 = vst [vmem:[%s309 + $0x70] sm:$0xff] %v4049
      %4082 = vst [vmem:[%s309 + $0x78] sm:$0xff] %v4050
      %4083 = vst [vmem:[%s309 + $0x80] sm:$0xff] %v4051
      %4084 = vst [vmem:[%s309 + $0x88] sm:$0xff] %v4052
      %4085 = vst [vmem:[%s309 + $0x90] sm:$0xff] %v4053
      %4086 = vst [vmem:[%s309 + $0x98] sm:$0xff] %v4054
      %4087 = vst [vmem:[%s309 + $0xa0] sm:$0xff] %v4055
      %4088 = vst [vmem:[%s309 + $0xa8] sm:$0xff] %v4056
      %4089 = vst [vmem:[%s309 + $0xb0] sm:$0xff] %v4057
      %4090 = vst [vmem:[%s309 + $0xb8] sm:$0xff] %v4058
      %4091 = vst [vmem:[%s309 + $0xc0] sm:$0xff] %v4059
      %4092 = vst [vmem:[%s309 + $0xc8] sm:$0xff] %v4060
      %4093 = vst [vmem:[%s309 + $0xd0] sm:$0xff] %v4061
      %4094 = vst [vmem:[%s309 + $0xd8] sm:$0xff] %v4062
      %4095 = vst [vmem:[%s309 + $0xe0] sm:$0xff] %v4063
      %4096 = vst [vmem:[%s309 + $0xe8] sm:$0xff] %v4064
      %4097 = vst [vmem:[%s309 + $0xf0] sm:$0xff] %v4065
      %4098 = vst [vmem:[%s309 + $0xf8] sm:$0xff] %v4066
      %p4099 = scmp.lt.s32.totalorder %s19, 1
      %s4100 = scalar_select %p4099, %s19, 1
      %s4101 = smul.addr %s4100, 32
      %s4102 = smul.addr %s4101, 8
      %s4103 = scalar_lea.vmem %s5, %s4102
      %p4104 = scmp.lt.s32.totalorder %s19, 1
      %s4105 = scalar_select %p4104, %s19, 1
      %s4106 = scalar_lea.vmem %s6, %s4105
      %p4107 = scmp.lt.s32.totalorder %s19, 1
      %s4108 = scalar_select %p4107, %s19, 1
      %s4109 = scalar_lea.vmem %s7, %s4108
      // Predicated region
      $region41: #{dense_block_forward.7} parent=39 // pred_check
        %p4110 = pneg %p152
      $region42: #{dense_block_forward.7} parent=39 // pred_check_branch
        %4112 = sbr.rel (%p4110) target = $region44
      $region43: #{dense_block_forward.7} parent=39 // pred_region
        _
      $region44: #{dense_block_forward.7} parent=39 // pred_fallthru
        _
      // Predicated region
      $region45: #{dense_block_forward.7} parent=39 // pred_check
        %p4113 = pneg %p178
      $region46: #{dense_block_forward.7} parent=39 // pred_check_branch
        %4115 = sbr.rel (%p4113) target = $region48
      $region47: #{dense_block_forward.7} parent=39 // pred_region
        _
      $region48: #{dense_block_forward.7} parent=39 // pred_fallthru
        _
      // Predicated region
      $region49: #{dense_block_forward.7} parent=39 // pred_check
        %p4116 = pneg %p204
      $region50: #{dense_block_forward.7} parent=39 // pred_check_branch
        %4118 = sbr.rel (%p4116) target = $region52
      $region51: #{dense_block_forward.7} parent=39 // pred_region
        _
      $region52: #{dense_block_forward.7} parent=39 // pred_fallthru
        _
    $region40: #{dense_block_forward.7} parent=5 // pred_fallthru
      _
    %p4119 = scmp.le.s32.totalorder 2, %s14
    // Predicated region
    $region53: #{dense_block_forward.7} parent=5 // pred_check
      %p4120 = pneg %p4119
    $region54: #{dense_block_forward.7} parent=5 // pred_check_branch
      %4122 = sbr.rel (%p4120) target = $region56
    $region55: #{dense_block_forward.7} parent=5 // pred_region
      %s4123 = ssub.s32 %s14, 2
      // Predicated region
      $region57: #{dense_block_forward.7} parent=55 // pred_check
        %p4124 = pneg %p158
      $region58: #{dense_block_forward.7} parent=55 // pred_check_branch
        %4126 = sbr.rel (%p4124) target = $region60
      $region59: #{dense_block_forward.7} parent=55 // pred_region
        %p4127 = scmp.lt.s32.totalorder %s20, 1
        %s4128 = scalar_select %p4127, %s20, 1
        %s4129 = smul.addr %s4128, 32
        %s4130 = smul.addr %s4129, 8
        %s4131 = scalar_lea.vmem %s5, %s4130
      $region60: #{dense_block_forward.7} parent=55 // pred_fallthru
        _
      // Predicated region
      $region61: #{dense_block_forward.7} parent=55 // pred_check
        %p4132 = pneg %p184
      $region62: #{dense_block_forward.7} parent=55 // pred_check_branch
        %4134 = sbr.rel (%p4132) target = $region64
      $region63: #{dense_block_forward.7} parent=55 // pred_region
        %p4135 = scmp.lt.s32.totalorder %s20, 1
        %s4136 = scalar_select %p4135, %s20, 1
        %s4137 = scalar_lea.vmem %s6, %s4136
      $region64: #{dense_block_forward.7} parent=55 // pred_fallthru
        _
      // Predicated region
      $region65: #{dense_block_forward.7} parent=55 // pred_check
        %p4138 = pneg %p210
      $region66: #{dense_block_forward.7} parent=55 // pred_check_branch
        %4140 = sbr.rel (%p4138) target = $region68
      $region67: #{dense_block_forward.7} parent=55 // pred_region
        %p4141 = scmp.lt.s32.totalorder %s20, 1
        %s4142 = scalar_select %p4141, %s20, 1
        %s4143 = scalar_lea.vmem %s7, %s4142
      $region68: #{dense_block_forward.7} parent=55 // pred_fallthru
        _
    $region56: #{dense_block_forward.7} parent=5 // pred_fallthru
      _
  $region6: #{dense_block_forward.7} parent=0 // loop_footer
    %s18 = sadd.s32 1, %s14
  $region7: #{dense_block_forward.7} parent=0 // loop_footer_branch
    %13 = sbr.rel target = $region3
  $region8: #{dense_block_forward.7} parent=0 // loop_exit
    _

// kernel: dense_block_forward.9
$region0: #{dense_block_forward.9}
  #allocation0 [shape = 'u32[]', space=smem, size = 0x4, offset = 0x4, fixed_abs, tag = 'smem constant byte address 0x4 - core index']
  #allocation1 [shape = 'u32[144,128]{1,0:T(1,128)}', space=vmem, size = 0x12000, scoped, tag = 'internal scratch']
  #allocation2 [shape = 'f32[290,128]{1,0:T(8,128)}', space=vmem, size = 0x25000, scoped, tag = 'scratch operand']
  %s0 = inlined_call_operand.vmem [shape: f32[2,256,128], index: 0, kind: input, shape index: {}, may-alias: {0,5}]
  %s1 = inlined_call_operand.vmem [shape: f32[2,256,128], index: 1, kind: input, shape index: {}]
  %s2 = inlined_call_operand.vmem [shape: f32[1,128], index: 2, kind: input, shape index: {}]
  %s3 = inlined_call_operand.vmem [shape: f32[1,128], index: 3, kind: input, shape index: {}]
  %s4 = inlined_call_operand.vmem [shape: bf16[9,128,128], index: 4, kind: input, shape index: {}]
  %s5 = inlined_call_operand.vmem [shape: f32[2,256,128], index: 5, kind: output, shape index: {0}, may-alias: {0,5}]
  %s6 = inlined_call_operand.hbm [shape: f32[2,1,128], index: 6, kind: output, shape index: {1}]
  %s7 = inlined_call_operand.hbm [shape: f32[2,1,128], index: 7, kind: output, shape index: {2}]
  %8 = xla_tuple %s5, %s6, %s7
  %s9 = sld [smem:[#allocation0]]
  $region69: #{dense_block_forward.9} parent=0
    _
  %s11 = ssub.s32 1, %s9
  %s12 = scalar_select 0, %s11, %s9
  $region1: #{dense_block_forward.9} parent=0
    #allocation3 [shape = 'u8[1024]{0}', space=vmem, size = 0x400, scoped, tag = 'output window, operand 1']
    #allocation4 [shape = 's32[2]{0}', space=sflag, size = 0x8, scoped, tag = 'scoped memory for dense_block_forward.9']
    #allocation5 [shape = 'u8[1024]{0}', space=vmem, size = 0x400, scoped, tag = 'output window, operand 2']
    #allocation6 [shape = 's32[2]{0}', space=sflag, size = 0x8, scoped, tag = 'scoped memory for dense_block_forward.9']
    %13 = vsyncpa [#allocation4], 0
    %s14 = scalar_lea.sflag [#allocation4], 1
    %15 = vsyncpa %s14, 0
    %16 = vsyncpa [#allocation6], 0
    %s17 = scalar_lea.sflag [#allocation6], 1
    %18 = vsyncpa %s17, 0
    loop: start=0, step=1, limit=4
    $region2: #{dense_block_forward.9} parent=1 // loop_pre_header
      _
    $region3: #{dense_block_forward.9} parent=1 // loop_header
      %s20 = sphi 0, %s24
      %p21 = scmp.ge.s32.totalorder %s20, 4
      %s30 = sphi 0, %s32
      %s33 = sphi 0, %s30
      %s34 = sphi 0, %s33
      %s50 = sphi 0, %s34
      %s56 = sphi 0, %s58
      %s59 = sphi 0, %s56
      %s60 = sphi 0, %s59
      %s76 = sphi 0, %s60
      %s80 = sphi 0, %s80
      %s82 = sphi 0, %s80
      %s83 = sphi 0, %s82
      %s97 = sphi 0, %s83
      %s101 = sphi 0, %s101
      %s103 = sphi 0, %s101
      %s104 = sphi 0, %s103
      %s118 = sphi 0, %s104
      %s122 = sphi 0, %s122
      %s124 = sphi 0, %s122
      %s125 = sphi 0, %s124
      %s139 = sphi 0, %s125
      %s145 = sphi 0, %s147
      %s148 = sphi 0, %s145
      %s149 = sphi 0, %s148
      %s165 = sphi 0, %s149
      %s171 = sphi 0, %s173
      %s174 = sphi 0, %s171
      %s175 = sphi 0, %s174
      %s191 = sphi 0, %s175
      %s197 = sphi 0, %s199
      %s200 = sphi 0, %s197
      %s201 = sphi 0, %s200
      %s217 = sphi 0, %s201
    $region4: #{dense_block_forward.9} parent=1 // loop_header_branch
      %23 = sbr.rel (%p21) target = $region8
    $region5: #{dense_block_forward.9} parent=1 // loop_body
      %s25 = ssub.s32 %s20, 1
      %s26 = ssub.s32 %s20, 2
      %s27 = sadd.s32 %s20, 1
      %s28 = ssub.s32 %s20, %s27
      %p29 = scmp.eq.s32.totalorder %s28, 0
      %s31 = sadd.s32 %s30, 1
      %s32 = scalar_select %p29, %s30, %s31
      %p35 = pneg %p29
      %p36 = scmp.eq.s32.totalorder %s20, 1
      %p37 = por %p35, %p36
      %p38 = scmp.ne.s32.totalorder %s30, %s33
      %p39 = scmp.eq.s32.totalorder %s20, 0
      %p40 = por %p38, %p39
      %p41 = scmp.ne.s32.totalorder %s30, %s33
      %p42 = scmp.eq.s32.totalorder %s25, 1
      %p43 = por %p41, %p42
      %p44 = scmp.ne.s32.totalorder %s33, %s34
      %p45 = scmp.eq.s32.totalorder %s25, 0
      %p46 = por %p44, %p45
      %p47 = scmp.ne.s32.totalorder %s33, %s34
      %p48 = scmp.eq.s32.totalorder %s26, 1
      %p49 = por %p47, %p48
      %p51 = scmp.ne.s32.totalorder %s34, %s50
      %p52 = scmp.eq.s32.totalorder %s26, 0
      %p53 = por %p51, %p52
      %s54 = ssub.s32 %s20, %s27
      %p55 = scmp.eq.s32.totalorder %s54, 0
      %s57 = sadd.s32 %s56, 1
      %s58 = scalar_select %p55, %s56, %s57
      %p61 = pneg %p55
      %p62 = scmp.eq.s32.totalorder %s20, 1
      %p63 = por %p61, %p62
      %p64 = scmp.ne.s32.totalorder %s56, %s59
      %p65 = scmp.eq.s32.totalorder %s20, 0
      %p66 = por %p64, %p65
      %p67 = scmp.ne.s32.totalorder %s56, %s59
      %p68 = scmp.eq.s32.totalorder %s25, 1
      %p69 = por %p67, %p68
      %p70 = scmp.ne.s32.totalorder %s59, %s60
      %p71 = scmp.eq.s32.totalorder %s25, 0
      %p72 = por %p70, %p71
      %p73 = scmp.ne.s32.totalorder %s59, %s60
      %p74 = scmp.eq.s32.totalorder %s26, 1
      %p75 = por %p73, %p74
      %p77 = scmp.ne.s32.totalorder %s60, %s76
      %p78 = scmp.eq.s32.totalorder %s26, 0
      %p79 = por %p77, %p78
      %s81 = sadd.s32 %s80, 1
      %p84 = scmp.eq.s32.totalorder %s20, 1
      %p85 = scmp.ne.s32.totalorder %s80, %s82
      %p86 = scmp.eq.s32.totalorder %s20, 0
      %p87 = por %p85, %p86
      %p88 = scmp.ne.s32.totalorder %s80, %s82
      %p89 = scmp.eq.s32.totalorder %s25, 1
      %p90 = por %p88, %p89
      %p91 = scmp.ne.s32.totalorder %s82, %s83
      %p92 = scmp.eq.s32.totalorder %s25, 0
      %p93 = por %p91, %p92
      %p94 = scmp.ne.s32.totalorder %s82, %s83
      %p95 = scmp.eq.s32.totalorder %s26, 1
      %p96 = por %p94, %p95
      %p98 = scmp.ne.s32.totalorder %s83, %s97
      %p99 = scmp.eq.s32.totalorder %s26, 0
      %p100 = por %p98, %p99
      %s102 = sadd.s32 %s101, 1
      %p105 = scmp.eq.s32.totalorder %s20, 1
      %p106 = scmp.ne.s32.totalorder %s101, %s103
      %p107 = scmp.eq.s32.totalorder %s20, 0
      %p108 = por %p106, %p107
      %p109 = scmp.ne.s32.totalorder %s101, %s103
      %p110 = scmp.eq.s32.totalorder %s25, 1
      %p111 = por %p109, %p110
      %p112 = scmp.ne.s32.totalorder %s103, %s104
      %p113 = scmp.eq.s32.totalorder %s25, 0
      %p114 = por %p112, %p113
      %p115 = scmp.ne.s32.totalorder %s103, %s104
      %p116 = scmp.eq.s32.totalorder %s26, 1
      %p117 = por %p115, %p116
      %p119 = scmp.ne.s32.totalorder %s104, %s118
      %p120 = scmp.eq.s32.totalorder %s26, 0
      %p121 = por %p119, %p120
      %s123 = sadd.s32 %s122, 1
      %p126 = scmp.eq.s32.totalorder %s20, 1
      %p127 = scmp.ne.s32.totalorder %s122, %s124
      %p128 = scmp.eq.s32.totalorder %s20, 0
      %p129 = por %p127, %p128
      %p130 = scmp.ne.s32.totalorder %s122, %s124
      %p131 = scmp.eq.s32.totalorder %s25, 1
      %p132 = por %p130, %p131
      %p133 = scmp.ne.s32.totalorder %s124, %s125
      %p134 = scmp.eq.s32.totalorder %s25, 0
      %p135 = por %p133, %p134
      %p136 = scmp.ne.s32.totalorder %s124, %s125
      %p137 = scmp.eq.s32.totalorder %s26, 1
      %p138 = por %p136, %p137
      %p140 = scmp.ne.s32.totalorder %s125, %s139
      %p141 = scmp.eq.s32.totalorder %s26, 0
      %p142 = por %p140, %p141
      %s143 = ssub.s32 %s20, %s27
      %p144 = scmp.eq.s32.totalorder %s143, 0
      %s146 = sadd.s32 %s145, 1
      %s147 = scalar_select %p144, %s145, %s146
      %p150 = pneg %p144
      %p151 = scmp.eq.s32.totalorder %s20, 1
      %p152 = por %p150, %p151
      %p153 = scmp.ne.s32.totalorder %s145, %s148
      %p154 = scmp.eq.s32.totalorder %s20, 0
      %p155 = por %p153, %p154
      %p156 = scmp.ne.s32.totalorder %s145, %s148
      %p157 = scmp.eq.s32.totalorder %s25, 1
      %p158 = por %p156, %p157
      %p159 = scmp.ne.s32.totalorder %s148, %s149
      %p160 = scmp.eq.s32.totalorder %s25, 0
      %p161 = por %p159, %p160
      %p162 = scmp.ne.s32.totalorder %s148, %s149
      %p163 = scmp.eq.s32.totalorder %s26, 1
      %p164 = por %p162, %p163
      %p166 = scmp.ne.s32.totalorder %s149, %s165
      %p167 = scmp.eq.s32.totalorder %s26, 0
      %p168 = por %p166, %p167
      %s169 = ssub.s32 %s20, %s27
      %p170 = scmp.eq.s32.totalorder %s169, 0
      %s172 = sadd.s32 %s171, 1
      %s173 = scalar_select %p170, %s171, %s172
      %p176 = pneg %p170
      %p177 = scmp.eq.s32.totalorder %s20, 1
      %p178 = por %p176, %p177
      %p179 = scmp.ne.s32.totalorder %s171, %s174
      %p180 = scmp.eq.s32.totalorder %s20, 0
      %p181 = por %p179, %p180
      %p182 = scmp.ne.s32.totalorder %s171, %s174
      %p183 = scmp.eq.s32.totalorder %s25, 1
      %p184 = por %p182, %p183
      %p185 = scmp.ne.s32.totalorder %s174, %s175
      %p186 = scmp.eq.s32.totalorder %s25, 0
      %p187 = por %p185, %p186
      %p188 = scmp.ne.s32.totalorder %s174, %s175
      %p189 = scmp.eq.s32.totalorder %s26, 1
      %p190 = por %p188, %p189
      %p192 = scmp.ne.s32.totalorder %s175, %s191
      %p193 = scmp.eq.s32.totalorder %s26, 0
      %p194 = por %p192, %p193
      %s195 = ssub.s32 %s20, %s27
      %p196 = scmp.eq.s32.totalorder %s195, 0
      %s198 = sadd.s32 %s197, 1
      %s199 = scalar_select %p196, %s197, %s198
      %p202 = pneg %p196
      %p203 = scmp.eq.s32.totalorder %s20, 1
      %p204 = por %p202, %p203
      %p205 = scmp.ne.s32.totalorder %s197, %s200
      %p206 = scmp.eq.s32.totalorder %s20, 0
      %p207 = por %p205, %p206
      %p208 = scmp.ne.s32.totalorder %s197, %s200
      %p209 = scmp.eq.s32.totalorder %s25, 1
      %p210 = por %p208, %p209
      %p211 = scmp.ne.s32.totalorder %s200, %s201
      %p212 = scmp.eq.s32.totalorder %s25, 0
      %p213 = por %p211, %p212
      %p214 = scmp.ne.s32.totalorder %s200, %s201
      %p215 = scmp.eq.s32.totalorder %s26, 1
      %p216 = por %p214, %p215
      %p218 = scmp.ne.s32.totalorder %s201, %s217
      %p219 = scmp.eq.s32.totalorder %s26, 0
      %p220 = por %p218, %p219
      %p221 = scmp.le.s32.totalorder 1, %s20
      %p222 = scmp.lt.s32.totalorder %s20, 3
      %p223 = pnand %p221, %p222
      %p224 = pneg %p223
      // Predicated region
      $region9: #{dense_block_forward.9} parent=5 // pred_check
        _
      $region10: #{dense_block_forward.9} parent=5 // pred_check_branch
        %226 = sbr.rel (%p223) target = $region12
      $region11: #{dense_block_forward.9} parent=5 // pred_region
        %s227 = ssub.s32 %s20, 1
        // Predicated region
        $region13: #{dense_block_forward.9} parent=11 // pred_check
          %p228 = pneg %p93
        $region14: #{dense_block_forward.9} parent=11 // pred_check_branch
          %230 = sbr.rel (%p228) target = $region16
        $region15: #{dense_block_forward.9} parent=11 // pred_region
          _
        $region16: #{dense_block_forward.9} parent=11 // pred_fallthru
          _
        // Predicated region
        $region17: #{dense_block_forward.9} parent=11 // pred_check
          %p231 = pneg %p114
        $region18: #{dense_block_forward.9} parent=11 // pred_check_branch
          %233 = sbr.rel (%p231) target = $region20
        $region19: #{dense_block_forward.9} parent=11 // pred_region
          _
        $region20: #{dense_block_forward.9} parent=11 // pred_fallthru
          _
        // Predicated region
        $region21: #{dense_block_forward.9} parent=11 // pred_check
          %p234 = pneg %p135
        $region22: #{dense_block_forward.9} parent=11 // pred_check_branch
          %236 = sbr.rel (%p234) target = $region24
        $region23: #{dense_block_forward.9} parent=11 // pred_region
          _
        $region24: #{dense_block_forward.9} parent=11 // pred_fallthru
          _
      $region12: #{dense_block_forward.9} parent=5 // pred_fallthru
        _
      %p237 = scmp.lt.s32.totalorder %s20, 2
      // Predicated region
      $region25: #{dense_block_forward.9} parent=5 // pred_check
        %p238 = pneg %p237
      $region26: #{dense_block_forward.9} parent=5 // pred_check_branch
        %240 = sbr.rel (%p238) target = $region28
      $region27: #{dense_block_forward.9} parent=5 // pred_region
        // Predicated region
        $region29: #{dense_block_forward.9} parent=27 // pred_check
          %p241 = pneg %p40
        $region30: #{dense_block_forward.9} parent=27 // pred_check_branch
          %243 = sbr.rel (%p241) target = $region32
        $region31: #{dense_block_forward.9} parent=27 // pred_region
          %p244 = scmp.lt.s32.totalorder %s20, 1
          %s245 = scalar_select %p244, %s20, 1
          %s246 = smul.addr %s245, 32
          %s247 = smul.addr %s246, 8
          %s248 = scalar_lea.vmem %s0, %s247
        $region32: #{dense_block_forward.9} parent=27 // pred_fallthru
          _
        // Predicated region
        $region33: #{dense_block_forward.9} parent=27 // pred_check
          %p249 = pneg %p66
        $region34: #{dense_block_forward.9} parent=27 // pred_check_branch
          %251 = sbr.rel (%p249) target = $region36
        $region35: #{dense_block_forward.9} parent=27 // pred_region
          %p252 = scmp.lt.s32.totalorder %s20, 1
          %s253 = scalar_select %p252, %s20, 1
          %s254 = smul.addr %s253, 32
          %s255 = smul.addr %s254, 8
          %s256 = scalar_lea.vmem %s1, %s255
        $region36: #{dense_block_forward.9} parent=27 // pred_fallthru
          _
      $region28: #{dense_block_forward.9} parent=5 // pred_fallthru
        _
      %p257 = scmp.le.s32.totalorder 1, %s20
      %p258 = scmp.lt.s32.totalorder %s20, 3
      %p259 = pnand %p257, %p258
      %p260 = pneg %p259
      // Predicated region
      $region37: #{dense_block_forward.9} parent=5 // pred_check
        _
      $region38: #{dense_block_forward.9} parent=5 // pred_check_branch
        %262 = sbr.rel (%p259) target = $region40
      $region39: #{dense_block_forward.9} parent=5 // pred_region
        %s263 = ssub.s32 %s20, 1
        %p264 = scmp.lt.s32.totalorder %s25, 1
        %s265 = scalar_select %p264, %s25, 1
        %s266 = smul.addr %s265, 32
        %s267 = smul.addr %s266, 8
        %s268 = scalar_lea.vmem %s0, %s267
        %p269 = pneg %p46
        %p270 = pneg %p43
        %p271 = scmp.lt.s32.totalorder %s25, 1
        %s272 = scalar_select %p271, %s25, 1
        %s273 = smul.addr %s272, 32
        %s274 = smul.addr %s273, 8
        %s275 = scalar_lea.vmem %s1, %s274
        %p276 = pneg %p72
        %p277 = pneg %p69
        %p278 = pneg %p93
        %p279 = pneg %p90
        %p280 = pneg %p114
        %p281 = pneg %p111
        %p282 = pneg %p135
        %p283 = pneg %p132
        %p284 = pneg %p161
        %p285 = pneg %p158
        %p286 = scmp.lt.s32.totalorder %s25, 1
        %s287 = scalar_select %p286, %s25, 1
        %s288 = smul.addr %s287, 32
        %s289 = smul.addr %s288, 8
        %s290 = scalar_lea.vmem %s5, %s289
        %p291 = pneg %p187
        %p292 = pneg %p184
        %s293 = sand.u32 %s174, 1
        %s294 = scalar_lea.sflag [#allocation4], %s293
        %s295 = sand.u32 %s174, 1
        %s296 = scalar_lea.vmem [#allocation3], %s295
        %p297 = pneg %p213
        %p298 = pneg %p210
        %s299 = sand.u32 %s200, 1
        %s300 = scalar_lea.sflag [#allocation6], %s299
        %s301 = sand.u32 %s200, 1
        %s302 = scalar_lea.vmem [#allocation5], %s301
        %p303 = scmp.lt.s32.totalorder %s25, 1
        %s304 = scalar_select %p303, %s25, 1
        %s305 = smul.addr %s304, 32
        %s306 = smul.addr %s305, 8
        %s307 = scalar_lea.vmem %s0, %s306
        %p308 = scmp.lt.s32.totalorder %s25, 1
        %s309 = scalar_select %p308, %s25, 1
        %s310 = smul.addr %s309, 32
        %s311 = smul.addr %s310, 8
        %s312 = scalar_lea.vmem %s1, %s311
        %p313 = scmp.lt.s32.totalorder %s25, 1
        %s314 = scalar_select %p313, %s25, 1
        %s315 = smul.addr %s314, 32
        %s316 = smul.addr %s315, 8
        %s317 = scalar_lea.vmem %s5, %s316
        %319 = vst [vmem:[#allocation2] sm:$0xff] 0.0
        %320 = vst [vmem:[#allocation2 + $0x8] sm:$0xff] 0.0
        %321 = vst [vmem:[#allocation2 + $0x10] sm:$0xff] 0.0
        %322 = vst [vmem:[#allocation2 + $0x18] sm:$0xff] 0.0
        %323 = vst [vmem:[#allocation2 + $0x20] sm:$0xff] 0.0
        %324 = vst [vmem:[#allocation2 + $0x28] sm:$0xff] 0.0
        %325 = vst [vmem:[#allocation2 + $0x30] sm:$0xff] 0.0
        %326 = vst [vmem:[#allocation2 + $0x38] sm:$0xff] 0.0
        %327 = vst [vmem:[#allocation2 + $0x40] sm:$0xff] 0.0
        %328 = vst [vmem:[#allocation2 + $0x48] sm:$0xff] 0.0
        %329 = vst [vmem:[#allocation2 + $0x50] sm:$0xff] 0.0
        %330 = vst [vmem:[#allocation2 + $0x58] sm:$0xff] 0.0
        %331 = vst [vmem:[#allocation2 + $0x60] sm:$0xff] 0.0
        %332 = vst [vmem:[#allocation2 + $0x68] sm:$0xff] 0.0
        %333 = vst [vmem:[#allocation2 + $0x70] sm:$0xff] 0.0
        %334 = vst [vmem:[#allocation2 + $0x78] sm:$0xff] 0.0
        %335 = vst [vmem:[#allocation2 + $0x80] sm:$0xff] 0.0
        %336 = vst [vmem:[#allocation2 + $0x88] sm:$0xff] 0.0
        %337 = vst [vmem:[#allocation2 + $0x90] sm:$0xff] 0.0
        %338 = vst [vmem:[#allocation2 + $0x98] sm:$0xff] 0.0
        %339 = vst [vmem:[#allocation2 + $0xa0] sm:$0xff] 0.0
        %340 = vst [vmem:[#allocation2 + $0xa8] sm:$0xff] 0.0
        %341 = vst [vmem:[#allocation2 + $0xb0] sm:$0xff] 0.0
        %342 = vst [vmem:[#allocation2 + $0xb8] sm:$0xff] 0.0
        %343 = vst [vmem:[#allocation2 + $0xc0] sm:$0xff] 0.0
        %344 = vst [vmem:[#allocation2 + $0xc8] sm:$0xff] 0.0
        %345 = vst [vmem:[#allocation2 + $0xd0] sm:$0xff] 0.0
        %346 = vst [vmem:[#allocation2 + $0xd8] sm:$0xff] 0.0
        %347 = vst [vmem:[#allocation2 + $0xe0] sm:$0xff] 0.0
        %348 = vst [vmem:[#allocation2 + $0xe8] sm:$0xff] 0.0
        %349 = vst [vmem:[#allocation2 + $0xf0] sm:$0xff] 0.0
        %350 = vst [vmem:[#allocation2 + $0xf8] sm:$0xff] 0.0
        %351 = vst [vmem:[#allocation2 + $0x100] sm:$0xff] 0.0
        %352 = vst [vmem:[#allocation2 + $0x108] sm:$0xff] 0.0
        %353 = vst [vmem:[#allocation2 + $0x110] sm:$0xff] 0.0
        %354 = vst [vmem:[#allocation2 + $0x118] sm:$0xff] 0.0
        %355 = vst [vmem:[#allocation2 + $0x120] sm:$0x3] 0.0
        %v356 = vld [vmem:[%s312] sm:$0xff]
        %v357 = vld [vmem:[%s312 + $0x8] sm:$0xff]
        %v358 = vld [vmem:[%s312 + $0x10] sm:$0xff]
        %v359 = vld [vmem:[%s312 + $0x18] sm:$0xff]
        %v360 = vld [vmem:[%s312 + $0x20] sm:$0xff]
        %v361 = vld [vmem:[%s312 + $0x28] sm:$0xff]
        %v362 = vld [vmem:[%s312 + $0x30] sm:$0xff]
        %v363 = vld [vmem:[%s312 + $0x38] sm:$0xff]
        %v364 = vld [vmem:[%s312 + $0x40] sm:$0xff]
        %v365 = vld [vmem:[%s312 + $0x48] sm:$0xff]
        %v366 = vld [vmem:[%s312 + $0x50] sm:$0xff]
        %v367 = vld [vmem:[%s312 + $0x58] sm:$0xff]
        %v368 = vld [vmem:[%s312 + $0x60] sm:$0xff]
        %v369 = vld [vmem:[%s312 + $0x68] sm:$0xff]
        %v370 = vld [vmem:[%s312 + $0x70] sm:$0xff]
        %v371 = vld [vmem:[%s312 + $0x78] sm:$0xff]
        %v372 = vld [vmem:[%s312 + $0x80] sm:$0xff]
        %v373 = vld [vmem:[%s312 + $0x88] sm:$0xff]
        %v374 = vld [vmem:[%s312 + $0x90] sm:$0xff]
        %v375 = vld [vmem:[%s312 + $0x98] sm:$0xff]
        %v376 = vld [vmem:[%s312 + $0xa0] sm:$0xff]
        %v377 = vld [vmem:[%s312 + $0xa8] sm:$0xff]
        %v378 = vld [vmem:[%s312 + $0xb0] sm:$0xff]
        %v379 = vld [vmem:[%s312 + $0xb8] sm:$0xff]
        %v380 = vld [vmem:[%s312 + $0xc0] sm:$0xff]
        %v381 = vld [vmem:[%s312 + $0xc8] sm:$0xff]
        %v382 = vld [vmem:[%s312 + $0xd0] sm:$0xff]
        %v383 = vld [vmem:[%s312 + $0xd8] sm:$0xff]
        %v384 = vld [vmem:[%s312 + $0xe0] sm:$0xff]
        %v385 = vld [vmem:[%s312 + $0xe8] sm:$0xff]
        %v386 = vld [vmem:[%s312 + $0xf0] sm:$0xff]
        %v387 = vld [vmem:[%s312 + $0xf8] sm:$0xff]
        %v388 = vld [vmem:[%s2] sm:$0x1]
        %v390 = vlaneseq
        %v391 = vshrl.u32 %v390, 7
        %v392 = vsub.s32 0, %v391
        %v393 = vrot.slane %v388, %v392
        %v395 = vmul.f32 %v356, %v393
        %v396 = vmul.f32 %v357, %v393
        %v397 = vmul.f32 %v358, %v393
        %v398 = vmul.f32 %v359, %v393
        %v399 = vmul.f32 %v360, %v393
        %v400 = vmul.f32 %v361, %v393
        %v401 = vmul.f32 %v362, %v393
        %v402 = vmul.f32 %v363, %v393
        %v403 = vmul.f32 %v364, %v393
        %v404 = vmul.f32 %v365, %v393
        %v405 = vmul.f32 %v366, %v393
        %v406 = vmul.f32 %v367, %v393
        %v407 = vmul.f32 %v368, %v393
        %v408 = vmul.f32 %v369, %v393
        %v409 = vmul.f32 %v370, %v393
        %v410 = vmul.f32 %v371, %v393
        %v411 = vmul.f32 %v372, %v393
        %v412 = vmul.f32 %v373, %v393
        %v413 = vmul.f32 %v374, %v393
        %v414 = vmul.f32 %v375, %v393
        %v415 = vmul.f32 %v376, %v393
        %v416 = vmul.f32 %v377, %v393
        %v417 = vmul.f32 %v378, %v393
        %v418 = vmul.f32 %v379, %v393
        %v419 = vmul.f32 %v380, %v393
        %v420 = vmul.f32 %v381, %v393
        %v421 = vmul.f32 %v382, %v393
        %v422 = vmul.f32 %v383, %v393
        %v423 = vmul.f32 %v384, %v393
        %v424 = vmul.f32 %v385, %v393
        %v425 = vmul.f32 %v386, %v393
        %v426 = vmul.f32 %v387, %v393
        %v427 = vld [vmem:[%s3] sm:$0x1]
        %v429 = vlaneseq
        %v430 = vshrl.u32 %v429, 7
        %v431 = vsub.s32 0, %v430
        %v432 = vrot.slane %v427, %v431
        %v434 = vadd.f32 %v395, %v432
        %v435 = vadd.f32 %v396, %v432
        %v436 = vadd.f32 %v397, %v432
        %v437 = vadd.f32 %v398, %v432
        %v438 = vadd.f32 %v399, %v432
        %v439 = vadd.f32 %v400, %v432
        %v440 = vadd.f32 %v401, %v432
        %v441 = vadd.f32 %v402, %v432
        %v442 = vadd.f32 %v403, %v432
        %v443 = vadd.f32 %v404, %v432
        %v444 = vadd.f32 %v405, %v432
        %v445 = vadd.f32 %v406, %v432
        %v446 = vadd.f32 %v407, %v432
        %v447 = vadd.f32 %v408, %v432
        %v448 = vadd.f32 %v409, %v432
        %v449 = vadd.f32 %v410, %v432
        %v450 = vadd.f32 %v411, %v432
        %v451 = vadd.f32 %v412, %v432
        %v452 = vadd.f32 %v413, %v432
        %v453 = vadd.f32 %v414, %v432
        %v454 = vadd.f32 %v415, %v432
        %v455 = vadd.f32 %v416, %v432
        %v456 = vadd.f32 %v417, %v432
        %v457 = vadd.f32 %v418, %v432
        %v458 = vadd.f32 %v419, %v432
        %v459 = vadd.f32 %v420, %v432
        %v460 = vadd.f32 %v421, %v432
        %v461 = vadd.f32 %v422, %v432
        %v462 = vadd.f32 %v423, %v432
        %v463 = vadd.f32 %v424, %v432
        %v464 = vadd.f32 %v425, %v432
        %v465 = vadd.f32 %v426, %v432
        %v466 = vmax.f32 %v434, 0.0
        %v467 = vmax.f32 %v435, 0.0
        %v468 = vmax.f32 %v436, 0.0
        %v469 = vmax.f32 %v437, 0.0
        %v470 = vmax.f32 %v438, 0.0
        %v471 = vmax.f32 %v439, 0.0
        %v472 = vmax.f32 %v440, 0.0
        %v473 = vmax.f32 %v441, 0.0
        %v474 = vmax.f32 %v442, 0.0
        %v475 = vmax.f32 %v443, 0.0
        %v476 = vmax.f32 %v444, 0.0
        %v477 = vmax.f32 %v445, 0.0
        %v478 = vmax.f32 %v446, 0.0
        %v479 = vmax.f32 %v447, 0.0
        %v480 = vmax.f32 %v448, 0.0
        %v481 = vmax.f32 %v449, 0.0
        %v482 = vmax.f32 %v450, 0.0
        %v483 = vmax.f32 %v451, 0.0
        %v484 = vmax.f32 %v452, 0.0
        %v485 = vmax.f32 %v453, 0.0
        %v486 = vmax.f32 %v454, 0.0
        %v487 = vmax.f32 %v455, 0.0
        %v488 = vmax.f32 %v456, 0.0
        %v489 = vmax.f32 %v457, 0.0
        %v490 = vmax.f32 %v458, 0.0
        %v491 = vmax.f32 %v459, 0.0
        %v492 = vmax.f32 %v460, 0.0
        %v493 = vmax.f32 %v461, 0.0
        %v494 = vmax.f32 %v462, 0.0
        %v495 = vmax.f32 %v463, 0.0
        %v496 = vmax.f32 %v464, 0.0
        %v497 = vmax.f32 %v465, 0.0
        %498 = vst [vmem:[#allocation2 + $0x11] sm:$0xff] %v466
        %499 = vst [vmem:[#allocation2 + $0x19] sm:$0xff] %v467
        %500 = vst [vmem:[#allocation2 + $0x21] sm:$0xff] %v468
        %501 = vst [vmem:[#allocation2 + $0x29] sm:$0xff] %v469
        %502 = vst [vmem:[#allocation2 + $0x31] sm:$0xff] %v470
        %503 = vst [vmem:[#allocation2 + $0x39] sm:$0xff] %v471
        %504 = vst [vmem:[#allocation2 + $0x41] sm:$0xff] %v472
        %505 = vst [vmem:[#allocation2 + $0x49] sm:$0xff] %v473
        %506 = vst [vmem:[#allocation2 + $0x51] sm:$0xff] %v474
        %507 = vst [vmem:[#allocation2 + $0x59] sm:$0xff] %v475
        %508 = vst [vmem:[#allocation2 + $0x61] sm:$0xff] %v476
        %509 = vst [vmem:[#allocation2 + $0x69] sm:$0xff] %v477
        %510 = vst [vmem:[#allocation2 + $0x71] sm:$0xff] %v478
        %511 = vst [vmem:[#allocation2 + $0x79] sm:$0xff] %v479
        %512 = vst [vmem:[#allocation2 + $0x81] sm:$0xff] %v480
        %513 = vst [vmem:[#allocation2 + $0x89] sm:$0xff] %v481
        %514 = vst [vmem:[#allocation2 + $0x91] sm:$0xff] %v482
        %515 = vst [vmem:[#allocation2 + $0x99] sm:$0xff] %v483
        %516 = vst [vmem:[#allocation2 + $0xa1] sm:$0xff] %v484
        %517 = vst [vmem:[#allocation2 + $0xa9] sm:$0xff] %v485
        %518 = vst [vmem:[#allocation2 + $0xb1] sm:$0xff] %v486
        %519 = vst [vmem:[#allocation2 + $0xb9] sm:$0xff] %v487
        %520 = vst [vmem:[#allocation2 + $0xc1] sm:$0xff] %v488
        %521 = vst [vmem:[#allocation2 + $0xc9] sm:$0xff] %v489
        %522 = vst [vmem:[#allocation2 + $0xd1] sm:$0xff] %v490
        %523 = vst [vmem:[#allocation2 + $0xd9] sm:$0xff] %v491
        %524 = vst [vmem:[#allocation2 + $0xe1] sm:$0xff] %v492
        %525 = vst [vmem:[#allocation2 + $0xe9] sm:$0xff] %v493
        %526 = vst [vmem:[#allocation2 + $0xf1] sm:$0xff] %v494
        %527 = vst [vmem:[#allocation2 + $0xf9] sm:$0xff] %v495
        %528 = vst [vmem:[#allocation2 + $0x101] sm:$0xff] %v496
        %529 = vst [vmem:[#allocation2 + $0x109] sm:$0xff] %v497
        %v530 = vlaneseq
        %v531 = vshrl.u32 %v530, 7
        %v532 = vadd.s32 %v531, 8
        %v533 = vadd.s32 %v531, 16
        %v534 = vadd.s32 %v531, 24
        %v535 = vadd.s32 %v531, 32
        %v536 = vadd.s32 %v531, 40
        %v537 = vadd.s32 %v531, 48
        %v538 = vadd.s32 %v531, 56
        %v539 = vadd.s32 %v531, 64
        %v540 = vadd.s32 %v531, 72
        %v541 = vadd.s32 %v531, 80
        %v542 = vadd.s32 %v531, 88
        %v543 = vadd.s32 %v531, 96
        %v544 = vadd.s32 %v531, 104
        %v545 = vadd.s32 %v531, 112
        %v546 = vadd.s32 %v531, 120
        %v547 = vadd.s32 %v531, 128
        %v548 = vadd.s32 %v531, 136
        %v549 = vadd.s32 %v531, 144
        %v550 = vadd.s32 %v531, 152
        %v551 = vadd.s32 %v531, 160
        %v552 = vadd.s32 %v531, 168
        %v553 = vadd.s32 %v531, 176
        %v554 = vadd.s32 %v531, 184
        %v555 = vadd.s32 %v531, 192
        %v556 = vadd.s32 %v531, 200
        %v557 = vadd.s32 %v531, 208
        %v558 = vadd.s32 %v531, 216
        %v559 = vadd.s32 %v531, 224
        %v560 = vadd.s32 %v531, 232
        %v561 = vadd.s32 %v531, 240
        %v562 = vadd.s32 %v531, 248
        %vm563 = vcmp.lt.s32.totalorder %v531, 0
        %v564 = vsub.s32 0, %v531
        %v565 = vsel %vm563, %v564, %v531
        %v566 = vshrl.u32 %v565, 4
        %v567 = vand.u32 %v565, 15
        %v568 = vsub.s32 0, %v567
        %v569 = vsel %vm563, %v568, %v567
        %vm570 = vcmp.lt.s32.totalorder %v532, 0
        %v571 = vsub.s32 0, %v532
        %v572 = vsel %vm570, %v571, %v532
        %v573 = vshrl.u32 %v572, 4
        %v574 = vand.u32 %v572, 15
        %v575 = vsub.s32 0, %v574
        %v576 = vsel %vm570, %v575, %v574
        %vm577 = vcmp.lt.s32.totalorder %v533, 0
        %v578 = vsub.s32 0, %v533
        %v579 = vsel %vm577, %v578, %v533
        %v580 = vshrl.u32 %v579, 4
        %v581 = vand.u32 %v579, 15
        %v582 = vsub.s32 0, %v581
        %v583 = vsel %vm577, %v582, %v581
        %vm584 = vcmp.lt.s32.totalorder %v534, 0
        %v585 = vsub.s32 0, %v534
        %v586 = vsel %vm584, %v585, %v534
        %v587 = vshrl.u32 %v586, 4
        %v588 = vand.u32 %v586, 15
        %v589 = vsub.s32 0, %v588
        %v590 = vsel %vm584, %v589, %v588
        %vm591 = vcmp.lt.s32.totalorder %v535, 0
        %v592 = vsub.s32 0, %v535
        %v593 = vsel %vm591, %v592, %v535
        %v594 = vshrl.u32 %v593, 4
        %v595 = vand.u32 %v593, 15
        %v596 = vsub.s32 0, %v595
        %v597 = vsel %vm591, %v596, %v595
        %vm598 = vcmp.lt.s32.totalorder %v536, 0
        %v599 = vsub.s32 0, %v536
        %v600 = vsel %vm598, %v599, %v536
        %v601 = vshrl.u32 %v600, 4
        %v602 = vand.u32 %v600, 15
        %v603 = vsub.s32 0, %v602
        %v604 = vsel %vm598, %v603, %v602
        %vm605 = vcmp.lt.s32.totalorder %v537, 0
        %v606 = vsub.s32 0, %v537
        %v607 = vsel %vm605, %v606, %v537
        %v608 = vshrl.u32 %v607, 4
        %v609 = vand.u32 %v607, 15
        %v610 = vsub.s32 0, %v609
        %v611 = vsel %vm605, %v610, %v609
        %vm612 = vcmp.lt.s32.totalorder %v538, 0
        %v613 = vsub.s32 0, %v538
        %v614 = vsel %vm612, %v613, %v538
        %v615 = vshrl.u32 %v614, 4
        %v616 = vand.u32 %v614, 15
        %v617 = vsub.s32 0, %v616
        %v618 = vsel %vm612, %v617, %v616
        %vm619 = vcmp.lt.s32.totalorder %v539, 0
        %v620 = vsub.s32 0, %v539
        %v621 = vsel %vm619, %v620, %v539
        %v622 = vshrl.u32 %v621, 4
        %v623 = vand.u32 %v621, 15
        %v624 = vsub.s32 0, %v623
        %v625 = vsel %vm619, %v624, %v623
        %vm626 = vcmp.lt.s32.totalorder %v540, 0
        %v627 = vsub.s32 0, %v540
        %v628 = vsel %vm626, %v627, %v540
        %v629 = vshrl.u32 %v628, 4
        %v630 = vand.u32 %v628, 15
        %v631 = vsub.s32 0, %v630
        %v632 = vsel %vm626, %v631, %v630
        %vm633 = vcmp.lt.s32.totalorder %v541, 0
        %v634 = vsub.s32 0, %v541
        %v635 = vsel %vm633, %v634, %v541
        %v636 = vshrl.u32 %v635, 4
        %v637 = vand.u32 %v635, 15
        %v638 = vsub.s32 0, %v637
        %v639 = vsel %vm633, %v638, %v637
        %vm640 = vcmp.lt.s32.totalorder %v542, 0
        %v641 = vsub.s32 0, %v542
        %v642 = vsel %vm640, %v641, %v542
        %v643 = vshrl.u32 %v642, 4
        %v644 = vand.u32 %v642, 15
        %v645 = vsub.s32 0, %v644
        %v646 = vsel %vm640, %v645, %v644
        %vm647 = vcmp.lt.s32.totalorder %v543, 0
        %v648 = vsub.s32 0, %v543
        %v649 = vsel %vm647, %v648, %v543
        %v650 = vshrl.u32 %v649, 4
        %v651 = vand.u32 %v649, 15
        %v652 = vsub.s32 0, %v651
        %v653 = vsel %vm647, %v652, %v651
        %vm654 = vcmp.lt.s32.totalorder %v544, 0
        %v655 = vsub.s32 0, %v544
        %v656 = vsel %vm654, %v655, %v544
        %v657 = vshrl.u32 %v656, 4
        %v658 = vand.u32 %v656, 15
        %v659 = vsub.s32 0, %v658
        %v660 = vsel %vm654, %v659, %v658
        %vm661 = vcmp.lt.s32.totalorder %v545, 0
        %v662 = vsub.s32 0, %v545
        %v663 = vsel %vm661, %v662, %v545
        %v664 = vshrl.u32 %v663, 4
        %v665 = vand.u32 %v663, 15
        %v666 = vsub.s32 0, %v665
        %v667 = vsel %vm661, %v666, %v665
        %vm668 = vcmp.lt.s32.totalorder %v546, 0
        %v669 = vsub.s32 0, %v546
        %v670 = vsel %vm668, %v669, %v546
        %v671 = vshrl.u32 %v670, 4
        %v672 = vand.u32 %v670, 15
        %v673 = vsub.s32 0, %v672
        %v674 = vsel %vm668, %v673, %v672
        %vm675 = vcmp.lt.s32.totalorder %v547, 0
        %v676 = vsub.s32 0, %v547
        %v677 = vsel %vm675, %v676, %v547
        %v678 = vshrl.u32 %v677, 4
        %v679 = vand.u32 %v677, 15
        %v680 = vsub.s32 0, %v679
        %v681 = vsel %vm675, %v680, %v679
        %vm682 = vcmp.lt.s32.totalorder %v548, 0
        %v683 = vsub.s32 0, %v548
        %v684 = vsel %vm682, %v683, %v548
        %v685 = vshrl.u32 %v684, 4
        %v686 = vand.u32 %v684, 15
        %v687 = vsub.s32 0, %v686
        %v688 = vsel %vm682, %v687, %v686
        %vm689 = vcmp.lt.s32.totalorder %v549, 0
        %v690 = vsub.s32 0, %v549
        %v691 = vsel %vm689, %v690, %v549
        %v692 = vshrl.u32 %v691, 4
        %v693 = vand.u32 %v691, 15
        %v694 = vsub.s32 0, %v693
        %v695 = vsel %vm689, %v694, %v693
        %vm696 = vcmp.lt.s32.totalorder %v550, 0
        %v697 = vsub.s32 0, %v550
        %v698 = vsel %vm696, %v697, %v550
        %v699 = vshrl.u32 %v698, 4
        %v700 = vand.u32 %v698, 15
        %v701 = vsub.s32 0, %v700
        %v702 = vsel %vm696, %v701, %v700
        %vm703 = vcmp.lt.s32.totalorder %v551, 0
        %v704 = vsub.s32 0, %v551
        %v705 = vsel %vm703, %v704, %v551
        %v706 = vshrl.u32 %v705, 4
        %v707 = vand.u32 %v705, 15
        %v708 = vsub.s32 0, %v707
        %v709 = vsel %vm703, %v708, %v707
        %vm710 = vcmp.lt.s32.totalorder %v552, 0
        %v711 = vsub.s32 0, %v552
        %v712 = vsel %vm710, %v711, %v552
        %v713 = vshrl.u32 %v712, 4
        %v714 = vand.u32 %v712, 15
        %v715 = vsub.s32 0, %v714
        %v716 = vsel %vm710, %v715, %v714
        %vm717 = vcmp.lt.s32.totalorder %v553, 0
        %v718 = vsub.s32 0, %v553
        %v719 = vsel %vm717, %v718, %v553
        %v720 = vshrl.u32 %v719, 4
        %v721 = vand.u32 %v719, 15
        %v722 = vsub.s32 0, %v721
        %v723 = vsel %vm717, %v722, %v721
        %vm724 = vcmp.lt.s32.totalorder %v554, 0
        %v725 = vsub.s32 0, %v554
        %v726 = vsel %vm724, %v725, %v554
        %v727 = vshrl.u32 %v726, 4
        %v728 = vand.u32 %v726, 15
        %v729 = vsub.s32 0, %v728
        %v730 = vsel %vm724, %v729, %v728
        %vm731 = vcmp.lt.s32.totalorder %v555, 0
        %v732 = vsub.s32 0, %v555
        %v733 = vsel %vm731, %v732, %v555
        %v734 = vshrl.u32 %v733, 4
        %v735 = vand.u32 %v733, 15
        %v736 = vsub.s32 0, %v735
        %v737 = vsel %vm731, %v736, %v735
        %vm738 = vcmp.lt.s32.totalorder %v556, 0
        %v739 = vsub.s32 0, %v556
        %v740 = vsel %vm738, %v739, %v556
        %v741 = vshrl.u32 %v740, 4
        %v742 = vand.u32 %v740, 15
        %v743 = vsub.s32 0, %v742
        %v744 = vsel %vm738, %v743, %v742
        %vm745 = vcmp.lt.s32.totalorder %v557, 0
        %v746 = vsub.s32 0, %v557
        %v747 = vsel %vm745, %v746, %v557
        %v748 = vshrl.u32 %v747, 4
        %v749 = vand.u32 %v747, 15
        %v750 = vsub.s32 0, %v749
        %v751 = vsel %vm745, %v750, %v749
        %vm752 = vcmp.lt.s32.totalorder %v558, 0
        %v753 = vsub.s32 0, %v558
        %v754 = vsel %vm752, %v753, %v558
        %v755 = vshrl.u32 %v754, 4
        %v756 = vand.u32 %v754, 15
        %v757 = vsub.s32 0, %v756
        %v758 = vsel %vm752, %v757, %v756
        %vm759 = vcmp.lt.s32.totalorder %v559, 0
        %v760 = vsub.s32 0, %v559
        %v761 = vsel %vm759, %v760, %v559
        %v762 = vshrl.u32 %v761, 4
        %v763 = vand.u32 %v761, 15
        %v764 = vsub.s32 0, %v763
        %v765 = vsel %vm759, %v764, %v763
        %vm766 = vcmp.lt.s32.totalorder %v560, 0
        %v767 = vsub.s32 0, %v560
        %v768 = vsel %vm766, %v767, %v560
        %v769 = vshrl.u32 %v768, 4
        %v770 = vand.u32 %v768, 15
        %v771 = vsub.s32 0, %v770
        %v772 = vsel %vm766, %v771, %v770
        %vm773 = vcmp.lt.s32.totalorder %v561, 0
        %v774 = vsub.s32 0, %v561
        %v775 = vsel %vm773, %v774, %v561
        %v776 = vshrl.u32 %v775, 4
        %v777 = vand.u32 %v775, 15
        %v778 = vsub.s32 0, %v777
        %v779 = vsel %vm773, %v778, %v777
        %vm780 = vcmp.lt.s32.totalorder %v562, 0
        %v781 = vsub.s32 0, %v562
        %v782 = vsel %vm780, %v781, %v562
        %v783 = vshrl.u32 %v782, 4
        %v784 = vand.u32 %v782, 15
        %v785 = vsub.s32 0, %v784
        %v786 = vsel %vm780, %v785, %v784
        %vm787 = vcmp.ne.s32.totalorder %v569, 0
        %vm788 = vcmp.ne.s32.totalorder %v576, 0
        %vm789 = vcmp.ne.s32.totalorder %v583, 0
        %vm790 = vcmp.ne.s32.totalorder %v590, 0
        %vm791 = vcmp.ne.s32.totalorder %v597, 0
        %vm792 = vcmp.ne.s32.totalorder %v604, 0
        %vm793 = vcmp.ne.s32.totalorder %v611, 0
        %vm794 = vcmp.ne.s32.totalorder %v618, 0
        %vm795 = vcmp.ne.s32.totalorder %v625, 0
        %vm796 = vcmp.ne.s32.totalorder %v632, 0
        %vm797 = vcmp.ne.s32.totalorder %v639, 0
        %vm798 = vcmp.ne.s32.totalorder %v646, 0
        %vm799 = vcmp.ne.s32.totalorder %v653, 0
        %vm800 = vcmp.ne.s32.totalorder %v660, 0
        %vm801 = vcmp.ne.s32.totalorder %v667, 0
        %vm802 = vcmp.ne.s32.totalorder %v674, 0
        %vm803 = vcmp.ne.s32.totalorder %v681, 0
        %vm804 = vcmp.ne.s32.totalorder %v688, 0
        %vm805 = vcmp.ne.s32.totalorder %v695, 0
        %vm806 = vcmp.ne.s32.totalorder %v702, 0
        %vm807 = vcmp.ne.s32.totalorder %v709, 0
        %vm808 = vcmp.ne.s32.totalorder %v716, 0
        %vm809 = vcmp.ne.s32.totalorder %v723, 0
        %vm810 = vcmp.ne.s32.totalorder %v730, 0
        %vm811 = vcmp.ne.s32.totalorder %v737, 0
        %vm812 = vcmp.ne.s32.totalorder %v744, 0
        %vm813 = vcmp.ne.s32.totalorder %v751, 0
        %vm814 = vcmp.ne.s32.totalorder %v758, 0
        %vm815 = vcmp.ne.s32.totalorder %v765, 0
        %vm816 = vcmp.ne.s32.totalorder %v772, 0
        %vm817 = vcmp.ne.s32.totalorder %v779, 0
        %vm818 = vcmp.ne.s32.totalorder %v786, 0
        %vm819 = vcmp.lt.s32.totalorder %v569, 0
        %vm820 = vcmp.lt.s32.totalorder %v576, 0
        %vm821 = vcmp.lt.s32.totalorder %v583, 0
        %vm822 = vcmp.lt.s32.totalorder %v590, 0
        %vm823 = vcmp.lt.s32.totalorder %v597, 0
        %vm824 = vcmp.lt.s32.totalorder %v604, 0
        %vm825 = vcmp.lt.s32.totalorder %v611, 0
        %vm826 = vcmp.lt.s32.totalorder %v618, 0
        %vm827 = vcmp.lt.s32.totalorder %v625, 0
        %vm828 = vcmp.lt.s32.totalorder %v632, 0
        %vm829 = vcmp.lt.s32.totalorder %v639, 0
        %vm830 = vcmp.lt.s32.totalorder %v646, 0
        %vm831 = vcmp.lt.s32.totalorder %v653, 0
        %vm832 = vcmp.lt.s32.totalorder %v660, 0
        %vm833 = vcmp.lt.s32.totalorder %v667, 0
        %vm834 = vcmp.lt.s32.totalorder %v674, 0
        %vm835 = vcmp.lt.s32.totalorder %v681, 0
        %vm836 = vcmp.lt.s32.totalorder %v688, 0
        %vm837 = vcmp.lt.s32.totalorder %v695, 0
        %vm838 = vcmp.lt.s32.totalorder %v702, 0
        %vm839 = vcmp.lt.s32.totalorder %v709, 0
        %vm840 = vcmp.lt.s32.totalorder %v716, 0
        %vm841 = vcmp.lt.s32.totalorder %v723, 0
        %vm842 = vcmp.lt.s32.totalorder %v730, 0
        %vm843 = vcmp.lt.s32.totalorder %v737, 0
        %vm844 = vcmp.lt.s32.totalorder %v744, 0
        %vm845 = vcmp.lt.s32.totalorder %v751, 0
        %vm846 = vcmp.lt.s32.totalorder %v758, 0
        %vm847 = vcmp.lt.s32.totalorder %v765, 0
        %vm848 = vcmp.lt.s32.totalorder %v772, 0
        %vm849 = vcmp.lt.s32.totalorder %v779, 0
        %vm850 = vcmp.lt.s32.totalorder %v786, 0
        %vm851 = vmand %vm819, %vm787
        %vm852 = vmand %vm820, %vm788
        %vm853 = vmand %vm821, %vm789
        %vm854 = vmand %vm822, %vm790
        %vm855 = vmand %vm823, %vm791
        %vm856 = vmand %vm824, %vm792
        %vm857 = vmand %vm825, %vm793
        %vm858 = vmand %vm826, %vm794
        %vm859 = vmand %vm827, %vm795
        %vm860 = vmand %vm828, %vm796
        %vm861 = vmand %vm829, %vm797
        %vm862 = vmand %vm830, %vm798
        %vm863 = vmand %vm831, %vm799
        %vm864 = vmand %vm832, %vm800
        %vm865 = vmand %vm833, %vm801
        %vm866 = vmand %vm834, %vm802
        %vm867 = vmand %vm835, %vm803
        %vm868 = vmand %vm836, %vm804
        %vm869 = vmand %vm837, %vm805
        %vm870 = vmand %vm838, %vm806
        %vm871 = vmand %vm839, %vm807
        %vm872 = vmand %vm840, %vm808
        %vm873 = vmand %vm841, %vm809
        %vm874 = vmand %vm842, %vm810
        %vm875 = vmand %vm843, %vm811
        %vm876 = vmand %vm844, %vm812
        %vm877 = vmand %vm845, %vm813
        %vm878 = vmand %vm846, %vm814
        %vm879 = vmand %vm847, %vm815
        %vm880 = vmand %vm848, %vm816
        %vm881 = vmand %vm849, %vm817
        %vm882 = vmand %vm850, %vm818
        %v883 = vadd.s32 %v569, 16
        %v884 = vadd.s32 %v576, 16
        %v885 = vadd.s32 %v583, 16
        %v886 = vadd.s32 %v590, 16
        %v887 = vadd.s32 %v597, 16
        %v888 = vadd.s32 %v604, 16
        %v889 = vadd.s32 %v611, 16
        %v890 = vadd.s32 %v618, 16
        %v891 = vadd.s32 %v625, 16
        %v892 = vadd.s32 %v632, 16
        %v893 = vadd.s32 %v639, 16
        %v894 = vadd.s32 %v646, 16
        %v895 = vadd.s32 %v653, 16
        %v896 = vadd.s32 %v660, 16
        %v897 = vadd.s32 %v667, 16
        %v898 = vadd.s32 %v674, 16
        %v899 = vadd.s32 %v681, 16
        %v900 = vadd.s32 %v688, 16
        %v901 = vadd.s32 %v695, 16
        %v902 = vadd.s32 %v702, 16
        %v903 = vadd.s32 %v709, 16
        %v904 = vadd.s32 %v716, 16
        %v905 = vadd.s32 %v723, 16
        %v906 = vadd.s32 %v730, 16
        %v907 = vadd.s32 %v737, 16
        %v908 = vadd.s32 %v744, 16
        %v909 = vadd.s32 %v751, 16
        %v910 = vadd.s32 %v758, 16
        %v911 = vadd.s32 %v765, 16
        %v912 = vadd.s32 %v772, 16
        %v913 = vadd.s32 %v779, 16
        %v914 = vadd.s32 %v786, 16
        %v915 = vsel %vm851, %v883, %v569
        %v916 = vsel %vm852, %v884, %v576
        %v917 = vsel %vm853, %v885, %v583
        %v918 = vsel %vm854, %v886, %v590
        %v919 = vsel %vm855, %v887, %v597
        %v920 = vsel %vm856, %v888, %v604
        %v921 = vsel %vm857, %v889, %v611
        %v922 = vsel %vm858, %v890, %v618
        %v923 = vsel %vm859, %v891, %v625
        %v924 = vsel %vm860, %v892, %v632
        %v925 = vsel %vm861, %v893, %v639
        %v926 = vsel %vm862, %v894, %v646
        %v927 = vsel %vm863, %v895, %v653
        %v928 = vsel %vm864, %v896, %v660
        %v929 = vsel %vm865, %v897, %v667
        %v930 = vsel %vm866, %v898, %v674
        %v931 = vsel %vm867, %v899, %v681
        %v932 = vsel %vm868, %v900, %v688
        %v933 = vsel %vm869, %v901, %v695
        %v934 = vsel %vm870, %v902, %v702
        %v935 = vsel %vm871, %v903, %v709
        %v936 = vsel %vm872, %v904, %v716
        %v937 = vsel %vm873, %v905, %v723
        %v938 = vsel %vm874, %v906, %v730
        %v939 = vsel %vm875, %v907, %v737
        %v940 = vsel %vm876, %v908, %v744
        %v941 = vsel %vm877, %v909, %v751
        %v942 = vsel %vm878, %v910, %v758
        %v943 = vsel %vm879, %v911, %v765
        %v944 = vsel %vm880, %v912, %v772
        %v945 = vsel %vm881, %v913, %v779
        %v946 = vsel %vm882, %v914, %v786
        %v947 = vld [vmem:[#allocation2] sm:$0xff]
        %v948 = vld [vmem:[#allocation2 + $0x8] sm:$0xff]
        %v949 = vld [vmem:[#allocation2 + $0x10] sm:$0xff]
        %v950 = vld [vmem:[#allocation2 + $0x18] sm:$0xff]
        %v951 = vld [vmem:[#allocation2 + $0x20] sm:$0xff]
        %v952 = vld [vmem:[#allocation2 + $0x28] sm:$0xff]
        %v953 = vld [vmem:[#allocation2 + $0x30] sm:$0xff]
        %v954 = vld [vmem:[#allocation2 + $0x38] sm:$0xff]
        %v955 = vld [vmem:[#allocation2 + $0x40] sm:$0xff]
        %v956 = vld [vmem:[#allocation2 + $0x48] sm:$0xff]
        %v957 = vld [vmem:[#allocation2 + $0x50] sm:$0xff]
        %v958 = vld [vmem:[#allocation2 + $0x58] sm:$0xff]
        %v959 = vld [vmem:[#allocation2 + $0x60] sm:$0xff]
        %v960 = vld [vmem:[#allocation2 + $0x68] sm:$0xff]
        %v961 = vld [vmem:[#allocation2 + $0x70] sm:$0xff]
        %v962 = vld [vmem:[#allocation2 + $0x78] sm:$0xff]
        %v963 = vld [vmem:[#allocation2 + $0x80] sm:$0xff]
        %v964 = vld [vmem:[#allocation2 + $0x88] sm:$0xff]
        %v965 = vld [vmem:[#allocation2 + $0x90] sm:$0xff]
        %v966 = vld [vmem:[#allocation2 + $0x98] sm:$0xff]
        %v967 = vld [vmem:[#allocation2 + $0xa0] sm:$0xff]
        %v968 = vld [vmem:[#allocation2 + $0xa8] sm:$0xff]
        %v969 = vld [vmem:[#allocation2 + $0xb0] sm:$0xff]
        %v970 = vld [vmem:[#allocation2 + $0xb8] sm:$0xff]
        %v971 = vld [vmem:[#allocation2 + $0xc0] sm:$0xff]
        %v972 = vld [vmem:[#allocation2 + $0xc8] sm:$0xff]
        %v973 = vld [vmem:[#allocation2 + $0xd0] sm:$0xff]
        %v974 = vld [vmem:[#allocation2 + $0xd8] sm:$0xff]
        %v975 = vld [vmem:[#allocation2 + $0xe0] sm:$0xff]
        %v976 = vld [vmem:[#allocation2 + $0xe8] sm:$0xff]
        %v977 = vld [vmem:[#allocation2 + $0xf0] sm:$0xff]
        %v978 = vld [vmem:[#allocation2 + $0xf8] sm:$0xff]
        %vm979 = vcmp.ge.s32.totalorder %v915, 1
        %vm980 = vcmp.ge.s32.totalorder %v916, 1
        %vm981 = vcmp.ge.s32.totalorder %v917, 1
        %vm982 = vcmp.ge.s32.totalorder %v918, 1
        %vm983 = vcmp.ge.s32.totalorder %v919, 1
        %vm984 = vcmp.ge.s32.totalorder %v920, 1
        %vm985 = vcmp.ge.s32.totalorder %v921, 1
        %vm986 = vcmp.ge.s32.totalorder %v922, 1
        %vm987 = vcmp.ge.s32.totalorder %v923, 1
        %vm988 = vcmp.ge.s32.totalorder %v924, 1
        %vm989 = vcmp.ge.s32.totalorder %v925, 1
        %vm990 = vcmp.ge.s32.totalorder %v926, 1
        %vm991 = vcmp.ge.s32.totalorder %v927, 1
        %vm992 = vcmp.ge.s32.totalorder %v928, 1
        %vm993 = vcmp.ge.s32.totalorder %v929, 1
        %vm994 = vcmp.ge.s32.totalorder %v930, 1
        %vm995 = vcmp.ge.s32.totalorder %v931, 1
        %vm996 = vcmp.ge.s32.totalorder %v932, 1
        %vm997 = vcmp.ge.s32.totalorder %v933, 1
        %vm998 = vcmp.ge.s32.totalorder %v934, 1
        %vm999 = vcmp.ge.s32.totalorder %v935, 1
        %vm1000 = vcmp.ge.s32.totalorder %v936, 1
        %vm1001 = vcmp.ge.s32.totalorder %v937, 1
        %vm1002 = vcmp.ge.s32.totalorder %v938, 1
        %vm1003 = vcmp.ge.s32.totalorder %v939, 1
        %vm1004 = vcmp.ge.s32.totalorder %v940, 1
        %vm1005 = vcmp.ge.s32.totalorder %v941, 1
        %vm1006 = vcmp.ge.s32.totalorder %v942, 1
        %vm1007 = vcmp.ge.s32.totalorder %v943, 1
        %vm1008 = vcmp.ge.s32.totalorder %v944, 1
        %vm1009 = vcmp.ge.s32.totalorder %v945, 1
        %vm1010 = vcmp.ge.s32.totalorder %v946, 1
        %v1011 = vsel %vm979, %v947, 0.0
        %v1012 = vsel %vm980, %v948, 0.0
        %v1013 = vsel %vm981, %v949, 0.0
        %v1014 = vsel %vm982, %v950, 0.0
        %v1015 = vsel %vm983, %v951, 0.0
        %v1016 = vsel %vm984, %v952, 0.0
        %v1017 = vsel %vm985, %v953, 0.0
        %v1018 = vsel %vm986, %v954, 0.0
        %v1019 = vsel %vm987, %v955, 0.0
        %v1020 = vsel %vm988, %v956, 0.0
        %v1021 = vsel %vm989, %v957, 0.0
        %v1022 = vsel %vm990, %v958, 0.0
        %v1023 = vsel %vm991, %v959, 0.0
        %v1024 = vsel %vm992, %v960, 0.0
        %v1025 = vsel %vm993, %v961, 0.0
        %v1026 = vsel %vm994, %v962, 0.0
        %v1027 = vsel %vm995, %v963, 0.0
        %v1028 = vsel %vm996, %v964, 0.0
        %v1029 = vsel %vm997, %v965, 0.0
        %v1030 = vsel %vm998, %v966, 0.0
        %v1031 = vsel %vm999, %v967, 0.0
        %v1032 = vsel %vm1000, %v968, 0.0
        %v1033 = vsel %vm1001, %v969, 0.0
        %v1034 = vsel %vm1002, %v970, 0.0
        %v1035 = vsel %vm1003, %v971, 0.0
        %v1036 = vsel %vm1004, %v972, 0.0
        %v1037 = vsel %vm1005, %v973, 0.0
        %v1038 = vsel %vm1006, %v974, 0.0
        %v1039 = vsel %vm1007, %v975, 0.0
        %v1040 = vsel %vm1008, %v976, 0.0
        %v1041 = vsel %vm1009, %v977, 0.0
        %v1042 = vsel %vm1010, %v978, 0.0
        %v1043 = vpack.c.bf16 %v1012, %v1011
        %v1044 = vpack.c.bf16 %v1014, %v1013
        %v1045 = vpack.c.bf16 %v1016, %v1015
        %v1046 = vpack.c.bf16 %v1018, %v1017
        %v1047 = vpack.c.bf16 %v1020, %v1019
        %v1048 = vpack.c.bf16 %v1022, %v1021
        %v1049 = vpack.c.bf16 %v1024, %v1023
        %v1050 = vpack.c.bf16 %v1026, %v1025
        %v1051 = vpack.c.bf16 %v1028, %v1027
        %v1052 = vpack.c.bf16 %v1030, %v1029
        %v1053 = vpack.c.bf16 %v1032, %v1031
        %v1054 = vpack.c.bf16 %v1034, %v1033
        %v1055 = vpack.c.bf16 %v1036, %v1035
        %v1056 = vpack.c.bf16 %v1038, %v1037
        %v1057 = vpack.c.bf16 %v1040, %v1039
        %v1058 = vpack.c.bf16 %v1042, %v1041
        %v1059 = vld [vmem:[%s4] sm:$0xf]
        %v1060 = vld [vmem:[%s4 + $0x4] sm:$0xf]
        %v1061 = vld [vmem:[%s4 + $0x8] sm:$0xf]
        %v1062 = vld [vmem:[%s4 + $0xc] sm:$0xf]
        %v1063 = vld [vmem:[%s4 + $0x10] sm:$0xf]
        %v1064 = vld [vmem:[%s4 + $0x14] sm:$0xf]
        %v1065 = vld [vmem:[%s4 + $0x18] sm:$0xf]
        %v1066 = vld [vmem:[%s4 + $0x1c] sm:$0xf]
        %v1067 = vld [vmem:[%s4 + $0x20] sm:$0xf]
        %v1068 = vld [vmem:[%s4 + $0x24] sm:$0xf]
        %v1069 = vld [vmem:[%s4 + $0x28] sm:$0xf]
        %v1070 = vld [vmem:[%s4 + $0x2c] sm:$0xf]
        %v1071 = vld [vmem:[%s4 + $0x30] sm:$0xf]
        %v1072 = vld [vmem:[%s4 + $0x34] sm:$0xf]
        %v1073 = vld [vmem:[%s4 + $0x38] sm:$0xf]
        %v1074 = vld [vmem:[%s4 + $0x3c] sm:$0xf]
        %v1075 = vld [vmem:[#allocation2 + $0x1] sm:$0xff]
        %v1076 = vld [vmem:[#allocation2 + $0x9] sm:$0xff]
        %v1077 = vld [vmem:[#allocation2 + $0x11] sm:$0xff]
        %v1078 = vld [vmem:[#allocation2 + $0x19] sm:$0xff]
        %v1079 = vld [vmem:[#allocation2 + $0x21] sm:$0xff]
        %v1080 = vld [vmem:[#allocation2 + $0x29] sm:$0xff]
        %v1081 = vld [vmem:[#allocation2 + $0x31] sm:$0xff]
        %v1082 = vld [vmem:[#allocation2 + $0x39] sm:$0xff]
        %v1083 = vld [vmem:[#allocation2 + $0x41] sm:$0xff]
        %v1084 = vld [vmem:[#allocation2 + $0x49] sm:$0xff]
        %v1085 = vld [vmem:[#allocation2 + $0x51] sm:$0xff]
        %v1086 = vld [vmem:[#allocation2 + $0x59] sm:$0xff]
        %v1087 = vld [vmem:[#allocation2 + $0x61] sm:$0xff]
        %v1088 = vld [vmem:[#allocation2 + $0x69] sm:$0xff]
        %v1089 = vld [vmem:[#allocation2 + $0x71] sm:$0xff]
        %v1090 = vld [vmem:[#allocation2 + $0x79] sm:$0xff]
        %v1091 = vld [vmem:[#allocation2 + $0x81] sm:$0xff]
        %v1092 = vld [vmem:[#allocation2 + $0x89] sm:$0xff]
        %v1093 = vld [vmem:[#allocation2 + $0x91] sm:$0xff]
        %v1094 = vld [vmem:[#allocation2 + $0x99] sm:$0xff]
        %v1095 = vld [vmem:[#allocation2 + $0xa1] sm:$0xff]
        %v1096 = vld [vmem:[#allocation2 + $0xa9] sm:$0xff]
        %v1097 = vld [vmem:[#allocation2 + $0xb1] sm:$0xff]
        %v1098 = vld [vmem:[#allocation2 + $0xb9] sm:$0xff]
        %v1099 = vld [vmem:[#allocation2 + $0xc1] sm:$0xff]
        %v1100 = vld [vmem:[#allocation2 + $0xc9] sm:$0xff]
        %v1101 = vld [vmem:[#allocation2 + $0xd1] sm:$0xff]
        %v1102 = vld [vmem:[#allocation2 + $0xd9] sm:$0xff]
        %v1103 = vld [vmem:[#allocation2 + $0xe1] sm:$0xff]
        %v1104 = vld [vmem:[#allocation2 + $0xe9] sm:$0xff]
        %v1105 = vld [vmem:[#allocation2 + $0xf1] sm:$0xff]
        %v1106 = vld [vmem:[#allocation2 + $0xf9] sm:$0xff]
        %v1107 = vpack.c.bf16 %v1076, %v1075
        %v1108 = vpack.c.bf16 %v1078, %v1077
        %v1109 = vpack.c.bf16 %v1080, %v1079
        %v1110 = vpack.c.bf16 %v1082, %v1081
        %v1111 = vpack.c.bf16 %v1084, %v1083
        %v1112 = vpack.c.bf16 %v1086, %v1085
        %v1113 = vpack.c.bf16 %v1088, %v1087
        %v1114 = vpack.c.bf16 %v1090, %v1089
        %v1115 = vpack.c.bf16 %v1092, %v1091
        %v1116 = vpack.c.bf16 %v1094, %v1093
        %v1117 = vpack.c.bf16 %v1096, %v1095
        %v1118 = vpack.c.bf16 %v1098, %v1097
        %v1119 = vpack.c.bf16 %v1100, %v1099
        %v1120 = vpack.c.bf16 %v1102, %v1101
        %v1121 = vpack.c.bf16 %v1104, %v1103
        %v1122 = vpack.c.bf16 %v1106, %v1105
        %s1123 = scalar_lea.vmem %s4, 64
        %v1124 = vld [vmem:[%s1123] sm:$0xf]
        %v1125 = vld [vmem:[%s1123 + $0x4] sm:$0xf]
        %v1126 = vld [vmem:[%s1123 + $0x8] sm:$0xf]
        %v1127 = vld [vmem:[%s1123 + $0xc] sm:$0xf]
        %v1128 = vld [vmem:[%s1123 + $0x10] sm:$0xf]
        %v1129 = vld [vmem:[%s1123 + $0x14] sm:$0xf]
        %v1130 = vld [vmem:[%s1123 + $0x18] sm:$0xf]
        %v1131 = vld [vmem:[%s1123 + $0x1c] sm:$0xf]
        %v1132 = vld [vmem:[%s1123 + $0x20] sm:$0xf]
        %v1133 = vld [vmem:[%s1123 + $0x24] sm:$0xf]
        %v1134 = vld [vmem:[%s1123 + $0x28] sm:$0xf]
        %v1135 = vld [vmem:[%s1123 + $0x2c] sm:$0xf]
        %v1136 = vld [vmem:[%s1123 + $0x30] sm:$0xf]
        %v1137 = vld [vmem:[%s1123 + $0x34] sm:$0xf]
        %v1138 = vld [vmem:[%s1123 + $0x38] sm:$0xf]
        %v1139 = vld [vmem:[%s1123 + $0x3c] sm:$0xf]
        %v1156 = vunpack.c.l.b16 %v1124
        %v1157 = vunpack.c.l.b16 %v1125
        %v1158 = vunpack.c.l.b16 %v1126
        %v1159 = vunpack.c.l.b16 %v1127
        %v1160 = vunpack.c.l.b16 %v1128
        %v1161 = vunpack.c.l.b16 %v1129
        %v1162 = vunpack.c.l.b16 %v1130
        %v1163 = vunpack.c.l.b16 %v1131
        %v1164 = vunpack.c.l.b16 %v1132
        %v1165 = vunpack.c.l.b16 %v1133
        %v1166 = vunpack.c.l.b16 %v1134
        %v1167 = vunpack.c.l.b16 %v1135
        %v1168 = vunpack.c.l.b16 %v1136
        %v1169 = vunpack.c.l.b16 %v1137
        %v1170 = vunpack.c.l.b16 %v1138
        %v1171 = vunpack.c.l.b16 %v1139
        %v1172 = vpack.c.b16 %v1157, %v1156
        %v1173 = vpack.c.b16 %v1159, %v1158
        %v1174 = vpack.c.b16 %v1161, %v1160
        %v1175 = vpack.c.b16 %v1163, %v1162
        %v1176 = vpack.c.b16 %v1165, %v1164
        %v1177 = vpack.c.b16 %v1167, %v1166
        %v1178 = vpack.c.b16 %v1169, %v1168
        %v1179 = vpack.c.b16 %v1171, %v1170
        %1188 = vmatprep.subr.bf16.mxu0 0
        %1189 = vmatpush1.bf16.msra.mxu0 %v1172
        %1190 = vmatprep.subr.bf16.mxu0 0
        %1191 = vmatpush1.bf16.msra.mxu0 %v1173
        %1192 = vmatprep.subr.bf16.mxu0 0
        %1193 = vmatpush1.bf16.msra.mxu0 %v1174
        %1194 = vmatprep.subr.bf16.mxu0 0
        %1195 = vmatpush1.bf16.msra.mxu0 %v1175
        %1196 = vmatprep.subr.bf16.mxu0 0
        %1197 = vmatpush1.bf16.msra.mxu0 %v1176
        %1198 = vmatprep.subr.bf16.mxu0 0
        %1199 = vmatpush1.bf16.msra.mxu0 %v1177
        %1200 = vmatprep.subr.bf16.mxu0 0
        %1201 = vmatpush1.bf16.msra.mxu0 %v1178
        %1202 = vmatprep.subr.bf16.mxu0 0
        %1203 = vmatpush1.bf16.msra.mxu0 %v1179
        %1204 = vmatprep.subr.bf16.mxu0 0
        %1205 = vmatpush1.bf16.msra.mxu0 0
        %1206 = vmatprep.subr.bf16.mxu0 0
        %1207 = vmatpush1.bf16.msra.mxu0 0
        %1208 = vmatprep.subr.bf16.mxu0 0
        %1209 = vmatpush1.bf16.msra.mxu0 0
        %1210 = vmatprep.subr.bf16.mxu0 0
        %1211 = vmatpush1.bf16.msra.mxu0 0
        %1212 = vmatprep.subr.bf16.mxu0 0
        %1213 = vmatpush1.bf16.msra.mxu0 0
        %1214 = vmatprep.subr.bf16.mxu0 0
        %1215 = vmatpush1.bf16.msra.mxu0 0
        %1216 = vmatprep.subr.bf16.mxu0 0
        %1217 = vmatpush1.bf16.msra.mxu0 0
        %1218 = vmatprep.subr.bf16.mxu0 0
        %1219 = vmatpush1.bf16.msra.mxu0 0
        %1220 = vmatprep.mubr.bf16.mxu0 0
        %1221 = vmatmul.mubr.bf16.gmra.mrb[0].mxu0 %v1107
        %v1222 = vpop.f32.mrb[0].mxu0
        %v1223 = vadd.f32 0.0, %v1222
        %v1224 = vpop.f32.mrb[0].mxu0
        %v1225 = vpop.f32.mrb[0].mxu0
        %v1226 = vadd.f32 0.0, %v1225
        %v1227 = vpop.f32.mrb[0].mxu0
        %1228 = vmatprep.mubr.bf16.mxu0 0
        %1229 = vmatmul.mubr.bf16.gmra.mrb[0].mxu0 %v1108
        %v1230 = vpop.f32.mrb[0].mxu0
        %v1231 = vadd.f32 0.0, %v1230
        %v1232 = vpop.f32.mrb[0].mxu0
        %v1233 = vpop.f32.mrb[0].mxu0
        %v1234 = vadd.f32 0.0, %v1233
        %v1235 = vpop.f32.mrb[0].mxu0
        %1236 = vmatprep.mubr.bf16.mxu0 0
        %1237 = vmatmul.mubr.bf16.gmra.mrb[0].mxu0 %v1109
        %v1238 = vpop.f32.mrb[0].mxu0
        %v1239 = vadd.f32 0.0, %v1238
        %v1240 = vpop.f32.mrb[0].mxu0
        %v1241 = vpop.f32.mrb[0].mxu0
        %v1242 = vadd.f32 0.0, %v1241
        %v1243 = vpop.f32.mrb[0].mxu0
        %1244 = vmatprep.mubr.bf16.mxu0 0
        %1245 = vmatmul.mubr.bf16.gmra.mrb[0].mxu0 %v1110
        %v1246 = vpop.f32.mrb[0].mxu0
        %v1247 = vadd.f32 0.0, %v1246
        %v1248 = vpop.f32.mrb[0].mxu0
        %v1249 = vpop.f32.mrb[0].mxu0
        %v1250 = vadd.f32 0.0, %v1249
        %v1251 = vpop.f32.mrb[0].mxu0
        %1252 = vmatprep.mubr.bf16.mxu0 0
        %1253 = vmatmul.mubr.bf16.gmra.mrb[0].mxu0 %v1111
        %v1254 = vpop.f32.mrb[0].mxu0
        %v1255 = vadd.f32 0.0, %v1254
        %v1256 = vpop.f32.mrb[0].mxu0
        %v1257 = vpop.f32.mrb[0].mxu0
        %v1258 = vadd.f32 0.0, %v1257
        %v1259 = vpop.f32.mrb[0].mxu0
        %1260 = vmatprep.mubr.bf16.mxu0 0
        %1261 = vmatmul.mubr.bf16.gmra.mrb[0].mxu0 %v1112
        %v1262 = vpop.f32.mrb[0].mxu0
        %v1263 = vadd.f32 0.0, %v1262
        %v1264 = vpop.f32.mrb[0].mxu0
        %v1265 = vpop.f32.mrb[0].mxu0
        %v1266 = vadd.f32 0.0, %v1265
        %v1267 = vpop.f32.mrb[0].mxu0
        %1268 = vmatprep.mubr.bf16.mxu0 0
        %1269 = vmatmul.mubr.bf16.gmra.mrb[0].mxu0 %v1113
        %v1270 = vpop.f32.mrb[0].mxu0
        %v1271 = vadd.f32 0.0, %v1270
        %v1272 = vpop.f32.mrb[0].mxu0
        %v1273 = vpop.f32.mrb[0].mxu0
        %v1274 = vadd.f32 0.0, %v1273
        %v1275 = vpop.f32.mrb[0].mxu0
        %1276 = vmatprep.mubr.bf16.mxu0 0
        %1277 = vmatmul.mubr.bf16.gmra.mrb[0].mxu0 %v1114
        %v1278 = vpop.f32.mrb[0].mxu0
        %v1279 = vadd.f32 0.0, %v1278
        %v1280 = vpop.f32.mrb[0].mxu0
        %v1281 = vpop.f32.mrb[0].mxu0
        %v1282 = vadd.f32 0.0, %v1281
        %v1283 = vpop.f32.mrb[0].mxu0
        %1284 = vmatprep.mubr.bf16.mxu0 0
        %1285 = vmatmul.mubr.bf16.gmra.mrb[0].mxu0 %v1115
        %v1286 = vpop.f32.mrb[0].mxu0
        %v1287 = vadd.f32 0.0, %v1286
        %v1288 = vpop.f32.mrb[0].mxu0
        %v1289 = vpop.f32.mrb[0].mxu0
        %v1290 = vadd.f32 0.0, %v1289
        %v1291 = vpop.f32.mrb[0].mxu0
        %1292 = vmatprep.mubr.bf16.mxu0 0
        %1293 = vmatmul.mubr.bf16.gmra.mrb[0].mxu0 %v1116
        %v1294 = vpop.f32.mrb[0].mxu0
        %v1295 = vadd.f32 0.0, %v1294
        %v1296 = vpop.f32.mrb[0].mxu0
        %v1297 = vpop.f32.mrb[0].mxu0
        %v1298 = vadd.f32 0.0, %v1297
        %v1299 = vpop.f32.mrb[0].mxu0
        %1300 = vmatprep.mubr.bf16.mxu0 0
        %1301 = vmatmul.mubr.bf16.gmra.mrb[0].mxu0 %v1117
        %v1302 = vpop.f32.mrb[0].mxu0
        %v1303 = vadd.f32 0.0, %v1302
        %v1304 = vpop.f32.mrb[0].mxu0
        %v1305 = vpop.f32.mrb[0].mxu0
        %v1306 = vadd.f32 0.0, %v1305
        %v1307 = vpop.f32.mrb[0].mxu0
        %1308 = vmatprep.mubr.bf16.mxu0 0
        %1309 = vmatmul.mubr.bf16.gmra.mrb[0].mxu0 %v1118
        %v1310 = vpop.f32.mrb[0].mxu0
        %v1311 = vadd.f32 0.0, %v1310
        %v1312 = vpop.f32.mrb[0].mxu0
        %v1313 = vpop.f32.mrb[0].mxu0
        %v1314 = vadd.f32 0.0, %v1313
        %v1315 = vpop.f32.mrb[0].mxu0
        %1316 = vmatprep.mubr.bf16.mxu0 0
        %1317 = vmatmul.mubr.bf16.gmra.mrb[0].mxu0 %v1119
        %v1318 = vpop.f32.mrb[0].mxu0
        %v1319 = vadd.f32 0.0, %v1318
        %v1320 = vpop.f32.mrb[0].mxu0
        %v1321 = vpop.f32.mrb[0].mxu0
        %v1322 = vadd.f32 0.0, %v1321
        %v1323 = vpop.f32.mrb[0].mxu0
        %1324 = vmatprep.mubr.bf16.mxu0 0
        %1325 = vmatmul.mubr.bf16.gmra.mrb[0].mxu0 %v1120
        %v1326 = vpop.f32.mrb[0].mxu0
        %v1327 = vadd.f32 0.0, %v1326
        %v1328 = vpop.f32.mrb[0].mxu0
        %v1329 = vpop.f32.mrb[0].mxu0
        %v1330 = vadd.f32 0.0, %v1329
        %v1331 = vpop.f32.mrb[0].mxu0
        %1332 = vmatprep.mubr.bf16.mxu0 0
        %1333 = vmatmul.mubr.bf16.gmra.mrb[0].mxu0 %v1121
        %v1334 = vpop.f32.mrb[0].mxu0
        %v1335 = vadd.f32 0.0, %v1334
        %v1336 = vpop.f32.mrb[0].mxu0
        %v1337 = vpop.f32.mrb[0].mxu0
        %v1338 = vadd.f32 0.0, %v1337
        %v1339 = vpop.f32.mrb[0].mxu0
        %1340 = vmatprep.mubr.bf16.mxu0 0
        %1341 = vmatmul.mubr.bf16.gmra.mrb[0].mxu0 %v1122
        %v1342 = vpop.f32.mrb[0].mxu0
        %v1343 = vadd.f32 0.0, %v1342
        %v1344 = vpop.f32.mrb[0].mxu0
        %v1345 = vpop.f32.mrb[0].mxu0
        %v1346 = vadd.f32 0.0, %v1345
        %v1347 = vpop.f32.mrb[0].mxu0
        %1348 = vdwg.mxu0
        %v1365 = vunpack.c.l.b16 %v1059
        %v1366 = vunpack.c.l.b16 %v1060
        %v1367 = vunpack.c.l.b16 %v1061
        %v1368 = vunpack.c.l.b16 %v1062
        %v1369 = vunpack.c.l.b16 %v1063
        %v1370 = vunpack.c.l.b16 %v1064
        %v1371 = vunpack.c.l.b16 %v1065
        %v1372 = vunpack.c.l.b16 %v1066
        %v1373 = vunpack.c.l.b16 %v1067
        %v1374 = vunpack.c.l.b16 %v1068
        %v1375 = vunpack.c.l.b16 %v1069
        %v1376 = vunpack.c.l.b16 %v1070
        %v1377 = vunpack.c.l.b16 %v1071
        %v1378 = vunpack.c.l.b16 %v1072
        %v1379 = vunpack.c.l.b16 %v1073
        %v1380 = vunpack.c.l.b16 %v1074
        %v1381 = vpack.c.b16 %v1366, %v1365
        %v1382 = vpack.c.b16 %v1368, %v1367
        %v1383 = vpack.c.b16 %v1370, %v1369
        %v1384 = vpack.c.b16 %v1372, %v1371
        %v1385 = vpack.c.b16 %v1374, %v1373
        %v1386 = vpack.c.b16 %v1376, %v1375
        %v1387 = vpack.c.b16 %v1378, %v1377
        %v1388 = vpack.c.b16 %v1380, %v1379
        %1397 = vmatprep.subr.bf16.mxu0 0
        %1398 = vmatpush1.bf16.msra.mxu0 %v1381
        %1399 = vmatprep.subr.bf16.mxu0 0
        %1400 = vmatpush1.bf16.msra.mxu0 %v1382
        %1401 = vmatprep.subr.bf16.mxu0 0
        %1402 = vmatpush1.bf16.msra.mxu0 %v1383
        %1403 = vmatprep.subr.bf16.mxu0 0
        %1404 = vmatpush1.bf16.msra.mxu0 %v1384
        %1405 = vmatprep.subr.bf16.mxu0 0
        %1406 = vmatpush1.bf16.msra.mxu0 %v1385
        %1407 = vmatprep.subr.bf16.mxu0 0
        %1408 = vmatpush1.bf16.msra.mxu0 %v1386
        %1409 = vmatprep.subr.bf16.mxu0 0
        %1410 = vmatpush1.bf16.msra.mxu0 %v1387
        %1411 = vmatprep.subr.bf16.mxu0 0
        %1412 = vmatpush1.bf16.msra.mxu0 %v1388
        %1413 = vmatprep.subr.bf16.mxu0 0
        %1414 = vmatpush1.bf16.msra.mxu0 0
        %1415 = vmatprep.subr.bf16.mxu0 0
        %1416 = vmatpush1.bf16.msra.mxu0 0
        %1417 = vmatprep.subr.bf16.mxu0 0
        %1418 = vmatpush1.bf16.msra.mxu0 0
        %1419 = vmatprep.subr.bf16.mxu0 0
        %1420 = vmatpush1.bf16.msra.mxu0 0
        %1421 = vmatprep.subr.bf16.mxu0 0
        %1422 = vmatpush1.bf16.msra.mxu0 0
        %1423 = vmatprep.subr.bf16.mxu0 0
        %1424 = vmatpush1.bf16.msra.mxu0 0
        %1425 = vmatprep.subr.bf16.mxu0 0
        %1426 = vmatpush1.bf16.msra.mxu0 0
        %1427 = vmatprep.subr.bf16.mxu0 0
        %1428 = vmatpush1.bf16.msra.mxu0 0
        %1429 = vmatprep.mubr.bf16.mxu0 0
        %1430 = vmatmul.mubr.bf16.gmra.mrb[0].mxu0 %v1043
        %v1431 = vpop.f32.mrb[0].mxu0
        %v1432 = vadd.f32 %v1223, %v1431
        %v1433 = vpop.f32.mrb[0].mxu0
        %v1434 = vpop.f32.mrb[0].mxu0
        %v1435 = vadd.f32 %v1226, %v1434
        %v1436 = vpop.f32.mrb[0].mxu0
        %1437 = vmatprep.mubr.bf16.mxu0 0
        %1438 = vmatmul.mubr.bf16.gmra.mrb[0].mxu0 %v1044
        %v1439 = vpop.f32.mrb[0].mxu0
        %v1440 = vadd.f32 %v1231, %v1439
        %v1441 = vpop.f32.mrb[0].mxu0
        %v1442 = vpop.f32.mrb[0].mxu0
        %v1443 = vadd.f32 %v1234, %v1442
        %v1444 = vpop.f32.mrb[0].mxu0
        %1445 = vmatprep.mubr.bf16.mxu0 0
        %1446 = vmatmul.mubr.bf16.gmra.mrb[0].mxu0 %v1045
        %v1447 = vpop.f32.mrb[0].mxu0
        %v1448 = vadd.f32 %v1239, %v1447
        %v1449 = vpop.f32.mrb[0].mxu0
        %v1450 = vpop.f32.mrb[0].mxu0
        %v1451 = vadd.f32 %v1242, %v1450
        %v1452 = vpop.f32.mrb[0].mxu0
        %1453 = vmatprep.mubr.bf16.mxu0 0
        %1454 = vmatmul.mubr.bf16.gmra.mrb[0].mxu0 %v1046
        %v1455 = vpop.f32.mrb[0].mxu0
        %v1456 = vadd.f32 %v1247, %v1455
        %v1457 = vpop.f32.mrb[0].mxu0
        %v1458 = vpop.f32.mrb[0].mxu0
        %v1459 = vadd.f32 %v1250, %v1458
        %v1460 = vpop.f32.mrb[0].mxu0
        %1461 = vmatprep.mubr.bf16.mxu0 0
        %1462 = vmatmul.mubr.bf16.gmra.mrb[0].mxu0 %v1047
        %v1463 = vpop.f32.mrb[0].mxu0
        %v1464 = vadd.f32 %v1255, %v1463
        %v1465 = vpop.f32.mrb[0].mxu0
        %v1466 = vpop.f32.mrb[0].mxu0
        %v1467 = vadd.f32 %v1258, %v1466
        %v1468 = vpop.f32.mrb[0].mxu0
        %1469 = vmatprep.mubr.bf16.mxu0 0
        %1470 = vmatmul.mubr.bf16.gmra.mrb[0].mxu0 %v1048
        %v1471 = vpop.f32.mrb[0].mxu0
        %v1472 = vadd.f32 %v1263, %v1471
        %v1473 = vpop.f32.mrb[0].mxu0
        %v1474 = vpop.f32.mrb[0].mxu0
        %v1475 = vadd.f32 %v1266, %v1474
        %v1476 = vpop.f32.mrb[0].mxu0
        %1477 = vmatprep.mubr.bf16.mxu0 0
        %1478 = vmatmul.mubr.bf16.gmra.mrb[0].mxu0 %v1049
        %v1479 = vpop.f32.mrb[0].mxu0
        %v1480 = vadd.f32 %v1271, %v1479
        %v1481 = vpop.f32.mrb[0].mxu0
        %v1482 = vpop.f32.mrb[0].mxu0
        %v1483 = vadd.f32 %v1274, %v1482
        %v1484 = vpop.f32.mrb[0].mxu0
        %1485 = vmatprep.mubr.bf16.mxu0 0
        %1486 = vmatmul.mubr.bf16.gmra.mrb[0].mxu0 %v1050
        %v1487 = vpop.f32.mrb[0].mxu0
        %v1488 = vadd.f32 %v1279, %v1487
        %v1489 = vpop.f32.mrb[0].mxu0
        %v1490 = vpop.f32.mrb[0].mxu0
        %v1491 = vadd.f32 %v1282, %v1490
        %v1492 = vpop.f32.mrb[0].mxu0
        %1493 = vmatprep.mubr.bf16.mxu0 0
        %1494 = vmatmul.mubr.bf16.gmra.mrb[0].mxu0 %v1051
        %v1495 = vpop.f32.mrb[0].mxu0
        %v1496 = vadd.f32 %v1287, %v1495
        %v1497 = vpop.f32.mrb[0].mxu0
        %v1498 = vpop.f32.mrb[0].mxu0
        %v1499 = vadd.f32 %v1290, %v1498
        %v1500 = vpop.f32.mrb[0].mxu0
        %1501 = vmatprep.mubr.bf16.mxu0 0
        %1502 = vmatmul.mubr.bf16.gmra.mrb[0].mxu0 %v1052
        %v1503 = vpop.f32.mrb[0].mxu0
        %v1504 = vadd.f32 %v1295, %v1503
        %v1505 = vpop.f32.mrb[0].mxu0
        %v1506 = vpop.f32.mrb[0].mxu0
        %v1507 = vadd.f32 %v1298, %v1506
        %v1508 = vpop.f32.mrb[0].mxu0
        %1509 = vmatprep.mubr.bf16.mxu0 0
        %1510 = vmatmul.mubr.bf16.gmra.mrb[0].mxu0 %v1053
        %v1511 = vpop.f32.mrb[0].mxu0
        %v1512 = vadd.f32 %v1303, %v1511
        %v1513 = vpop.f32.mrb[0].mxu0
        %v1514 = vpop.f32.mrb[0].mxu0
        %v1515 = vadd.f32 %v1306, %v1514
        %v1516 = vpop.f32.mrb[0].mxu0
        %1517 = vmatprep.mubr.bf16.mxu0 0
        %1518 = vmatmul.mubr.bf16.gmra.mrb[0].mxu0 %v1054
        %v1519 = vpop.f32.mrb[0].mxu0
        %v1520 = vadd.f32 %v1311, %v1519
        %v1521 = vpop.f32.mrb[0].mxu0
        %v1522 = vpop.f32.mrb[0].mxu0
        %v1523 = vadd.f32 %v1314, %v1522
        %v1524 = vpop.f32.mrb[0].mxu0
        %1525 = vmatprep.mubr.bf16.mxu0 0
        %1526 = vmatmul.mubr.bf16.gmra.mrb[0].mxu0 %v1055
        %v1527 = vpop.f32.mrb[0].mxu0
        %v1528 = vadd.f32 %v1319, %v1527
        %v1529 = vpop.f32.mrb[0].mxu0
        %v1530 = vpop.f32.mrb[0].mxu0
        %v1531 = vadd.f32 %v1322, %v1530
        %v1532 = vpop.f32.mrb[0].mxu0
        %1533 = vmatprep.mubr.bf16.mxu0 0
        %1534 = vmatmul.mubr.bf16.gmra.mrb[0].mxu0 %v1056
        %v1535 = vpop.f32.mrb[0].mxu0
        %v1536 = vadd.f32 %v1327, %v1535
        %v1537 = vpop.f32.mrb[0].mxu0
        %v1538 = vpop.f32.mrb[0].mxu0
        %v1539 = vadd.f32 %v1330, %v1538
        %v1540 = vpop.f32.mrb[0].mxu0
        %1541 = vmatprep.mubr.bf16.mxu0 0
        %1542 = vmatmul.mubr.bf16.gmra.mrb[0].mxu0 %v1057
        %v1543 = vpop.f32.mrb[0].mxu0
        %v1544 = vadd.f32 %v1335, %v1543
        %v1545 = vpop.f32.mrb[0].mxu0
        %v1546 = vpop.f32.mrb[0].mxu0
        %v1547 = vadd.f32 %v1338, %v1546
        %v1548 = vpop.f32.mrb[0].mxu0
        %1549 = vmatprep.mubr.bf16.mxu0 0
        %1550 = vmatmul.mubr.bf16.gmra.mrb[0].mxu0 %v1058
        %v1551 = vpop.f32.mrb[0].mxu0
        %v1552 = vadd.f32 %v1343, %v1551
        %v1553 = vpop.f32.mrb[0].mxu0
        %v1554 = vpop.f32.mrb[0].mxu0
        %v1555 = vadd.f32 %v1346, %v1554
        %v1556 = vpop.f32.mrb[0].mxu0
        %1557 = vdwg.mxu0
        %v1558 = vld [vmem:[#allocation2 + $0x2] sm:$0xff]
        %v1559 = vld [vmem:[#allocation2 + $0xa] sm:$0xff]
        %v1560 = vld [vmem:[#allocation2 + $0x12] sm:$0xff]
        %v1561 = vld [vmem:[#allocation2 + $0x1a] sm:$0xff]
        %v1562 = vld [vmem:[#allocation2 + $0x22] sm:$0xff]
        %v1563 = vld [vmem:[#allocation2 + $0x2a] sm:$0xff]
        %v1564 = vld [vmem:[#allocation2 + $0x32] sm:$0xff]
        %v1565 = vld [vmem:[#allocation2 + $0x3a] sm:$0xff]
        %v1566 = vld [vmem:[#allocation2 + $0x42] sm:$0xff]
        %v1567 = vld [vmem:[#allocation2 + $0x4a] sm:$0xff]
        %v1568 = vld [vmem:[#allocation2 + $0x52] sm:$0xff]
        %v1569 = vld [vmem:[#allocation2 + $0x5a] sm:$0xff]
        %v1570 = vld [vmem:[#allocation2 + $0x62] sm:$0xff]
        %v1571 = vld [vmem:[#allocation2 + $0x6a] sm:$0xff]
        %v1572 = vld [vmem:[#allocation2 + $0x72] sm:$0xff]
        %v1573 = vld [vmem:[#allocation2 + $0x7a] sm:$0xff]
        %v1574 = vld [vmem:[#allocation2 + $0x82] sm:$0xff]
        %v1575 = vld [vmem:[#allocation2 + $0x8a] sm:$0xff]
        %v1576 = vld [vmem:[#allocation2 + $0x92] sm:$0xff]
        %v1577 = vld [vmem:[#allocation2 + $0x9a] sm:$0xff]
        %v1578 = vld [vmem:[#allocation2 + $0xa2] sm:$0xff]
        %v1579 = vld [vmem:[#allocation2 + $0xaa] sm:$0xff]
        %v1580 = vld [vmem:[#allocation2 + $0xb2] sm:$0xff]
        %v1581 = vld [vmem:[#allocation2 + $0xba] sm:$0xff]
        %v1582 = vld [vmem:[#allocation2 + $0xc2] sm:$0xff]
        %v1583 = vld [vmem:[#allocation2 + $0xca] sm:$0xff]
        %v1584 = vld [vmem:[#allocation2 + $0xd2] sm:$0xff]
        %v1585 = vld [vmem:[#allocation2 + $0xda] sm:$0xff]
        %v1586 = vld [vmem:[#allocation2 + $0xe2] sm:$0xff]
        %v1587 = vld [vmem:[#allocation2 + $0xea] sm:$0xff]
        %v1588 = vld [vmem:[#allocation2 + $0xf2] sm:$0xff]
        %v1589 = vld [vmem:[#allocation2 + $0xfa] sm:$0xff]
        %vm1590 = vcmp.le.s32.totalorder %v915, 14
        %vm1591 = vcmp.le.s32.totalorder %v916, 14
        %vm1592 = vcmp.le.s32.totalorder %v917, 14
        %vm1593 = vcmp.le.s32.totalorder %v918, 14
        %vm1594 = vcmp.le.s32.totalorder %v919, 14
        %vm1595 = vcmp.le.s32.totalorder %v920, 14
        %vm1596 = vcmp.le.s32.totalorder %v921, 14
        %vm1597 = vcmp.le.s32.totalorder %v922, 14
        %vm1598 = vcmp.le.s32.totalorder %v923, 14
        %vm1599 = vcmp.le.s32.totalorder %v924, 14
        %vm1600 = vcmp.le.s32.totalorder %v925, 14
        %vm1601 = vcmp.le.s32.totalorder %v926, 14
        %vm1602 = vcmp.le.s32.totalorder %v927, 14
        %vm1603 = vcmp.le.s32.totalorder %v928, 14
        %vm1604 = vcmp.le.s32.totalorder %v929, 14
        %vm1605 = vcmp.le.s32.totalorder %v930, 14
        %vm1606 = vcmp.le.s32.totalorder %v931, 14
        %vm1607 = vcmp.le.s32.totalorder %v932, 14
        %vm1608 = vcmp.le.s32.totalorder %v933, 14
        %vm1609 = vcmp.le.s32.totalorder %v934, 14
        %vm1610 = vcmp.le.s32.totalorder %v935, 14
        %vm1611 = vcmp.le.s32.totalorder %v936, 14
        %vm1612 = vcmp.le.s32.totalorder %v937, 14
        %vm1613 = vcmp.le.s32.totalorder %v938, 14
        %vm1614 = vcmp.le.s32.totalorder %v939, 14
        %vm1615 = vcmp.le.s32.totalorder %v940, 14
        %vm1616 = vcmp.le.s32.totalorder %v941, 14
        %vm1617 = vcmp.le.s32.totalorder %v942, 14
        %vm1618 = vcmp.le.s32.totalorder %v943, 14
        %vm1619 = vcmp.le.s32.totalorder %v944, 14
        %vm1620 = vcmp.le.s32.totalorder %v945, 14
        %vm1621 = vcmp.le.s32.totalorder %v946, 14
        %v1622 = vsel %vm1590, %v1558, 0.0
        %v1623 = vsel %vm1591, %v1559, 0.0
        %v1624 = vsel %vm1592, %v1560, 0.0
        %v1625 = vsel %vm1593, %v1561, 0.0
        %v1626 = vsel %vm1594, %v1562, 0.0
        %v1627 = vsel %vm1595, %v1563, 0.0
        %v1628 = vsel %vm1596, %v1564, 0.0
        %v1629 = vsel %vm1597, %v1565, 0.0
        %v1630 = vsel %vm1598, %v1566, 0.0
        %v1631 = vsel %vm1599, %v1567, 0.0
        %v1632 = vsel %vm1600, %v1568, 0.0
        %v1633 = vsel %vm1601, %v1569, 0.0
        %v1634 = vsel %vm1602, %v1570, 0.0
        %v1635 = vsel %vm1603, %v1571, 0.0
        %v1636 = vsel %vm1604, %v1572, 0.0
        %v1637 = vsel %vm1605, %v1573, 0.0
        %v1638 = vsel %vm1606, %v1574, 0.0
        %v1639 = vsel %vm1607, %v1575, 0.0
        %v1640 = vsel %vm1608, %v1576, 0.0
        %v1641 = vsel %vm1609, %v1577, 0.0
        %v1642 = vsel %vm1610, %v1578, 0.0
        %v1643 = vsel %vm1611, %v1579, 0.0
        %v1644 = vsel %vm1612, %v1580, 0.0
        %v1645 = vsel %vm1613, %v1581, 0.0
        %v1646 = vsel %vm1614, %v1582, 0.0
        %v1647 = vsel %vm1615, %v1583, 0.0
        %v1648 = vsel %vm1616, %v1584, 0.0
        %v1649 = vsel %vm1617, %v1585, 0.0
        %v1650 = vsel %vm1618, %v1586, 0.0
        %v1651 = vsel %vm1619, %v1587, 0.0
        %v1652 = vsel %vm1620, %v1588, 0.0
        %v1653 = vsel %vm1621, %v1589, 0.0
        %v1654 = vpack.c.bf16 %v1623, %v1622
        %v1655 = vpack.c.bf16 %v1625, %v1624
        %v1656 = vpack.c.bf16 %v1627, %v1626
        %v1657 = vpack.c.bf16 %v1629, %v1628
        %v1658 = vpack.c.bf16 %v1631, %v1630
        %v1659 = vpack.c.bf16 %v1633, %v1632
        %v1660 = vpack.c.bf16 %v1635, %v1634
        %v1661 = vpack.c.bf16 %v1637, %v1636
        %v1662 = vpack.c.bf16 %v1639, %v1638
        %v1663 = vpack.c.bf16 %v1641, %v1640
        %v1664 = vpack.c.bf16 %v1643, %v1642
        %v1665 = vpack.c.bf16 %v1645, %v1644
        %v1666 = vpack.c.bf16 %v1647, %v1646
        %v1667 = vpack.c.bf16 %v1649, %v1648
        %v1668 = vpack.c.bf16 %v1651, %v1650
        %v1669 = vpack.c.bf16 %v1653, %v1652
        %s1670 = scalar_lea.vmem %s4, 128
        %v1671 = vld [vmem:[%s1670] sm:$0xf]
        %v1672 = vld [vmem:[%s1670 + $0x4] sm:$0xf]
        %v1673 = vld [vmem:[%s1670 + $0x8] sm:$0xf]
        %v1674 = vld [vmem:[%s1670 + $0xc] sm:$0xf]
        %v1675 = vld [vmem:[%s1670 + $0x10] sm:$0xf]
        %v1676 = vld [vmem:[%s1670 + $0x14] sm:$0xf]
        %v1677 = vld [vmem:[%s1670 + $0x18] sm:$0xf]
        %v1678 = vld [vmem:[%s1670 + $0x1c] sm:$0xf]
        %v1679 = vld [vmem:[%s1670 + $0x20] sm:$0xf]
        %v1680 = vld [vmem:[%s1670 + $0x24] sm:$0xf]
        %v1681 = vld [vmem:[%s1670 + $0x28] sm:$0xf]
        %v1682 = vld [vmem:[%s1670 + $0x2c] sm:$0xf]
        %v1683 = vld [vmem:[%s1670 + $0x30] sm:$0xf]
        %v1684 = vld [vmem:[%s1670 + $0x34] sm:$0xf]
        %v1685 = vld [vmem:[%s1670 + $0x38] sm:$0xf]
        %v1686 = vld [vmem:[%s1670 + $0x3c] sm:$0xf]
        %v1703 = vunpack.c.l.b16 %v1671
        %v1704 = vunpack.c.l.b16 %v1672
        %v1705 = vunpack.c.l.b16 %v1673
        %v1706 = vunpack.c.l.b16 %v1674
        %v1707 = vunpack.c.l.b16 %v1675
        %v1708 = vunpack.c.l.b16 %v1676
        %v1709 = vunpack.c.l.b16 %v1677
        %v1710 = vunpack.c.l.b16 %v1678
        %v1711 = vunpack.c.l.b16 %v1679
        %v1712 = vunpack.c.l.b16 %v1680
        %v1713 = vunpack.c.l.b16 %v1681
        %v1714 = vunpack.c.l.b16 %v1682
        %v1715 = vunpack.c.l.b16 %v1683
        %v1716 = vunpack.c.l.b16 %v1684
        %v1717 = vunpack.c.l.b16 %v1685
        %v1718 = vunpack.c.l.b16 %v1686
        %v1719 = vpack.c.b16 %v1704, %v1703
        %v1720 = vpack.c.b16 %v1706, %v1705
        %v1721 = vpack.c.b16 %v1708, %v1707
        %v1722 = vpack.c.b16 %v1710, %v1709
        %v1723 = vpack.c.b16 %v1712, %v1711
        %v1724 = vpack.c.b16 %v1714, %v1713
        %v1725 = vpack.c.b16 %v1716, %v1715
        %v1726 = vpack.c.b16 %v1718, %v1717
        %1735 = vmatprep.subr.bf16.mxu0 0
        %1736 = vmatpush1.bf16.msra.mxu0 %v1719
        %1737 = vmatprep.subr.bf16.mxu0 0
        %1738 = vmatpush1.bf16.msra.mxu0 %v1720
        %1739 = vmatprep.subr.bf16.mxu0 0
        %1740 = vmatpush1.bf16.msra.mxu0 %v1721
        %1741 = vmatprep.subr.bf16.mxu0 0
        %1742 = vmatpush1.bf16.msra.mxu0 %v1722
        %1743 = vmatprep.subr.bf16.mxu0 0
        %1744 = vmatpush1.bf16.msra.mxu0 %v1723
        %1745 = vmatprep.subr.bf16.mxu0 0
        %1746 = vmatpush1.bf16.msra.mxu0 %v1724
        %1747 = vmatprep.subr.bf16.mxu0 0
        %1748 = vmatpush1.bf16.msra.mxu0 %v1725
        %1749 = vmatprep.subr.bf16.mxu0 0
        %1750 = vmatpush1.bf16.msra.mxu0 %v1726
        %1751 = vmatprep.subr.bf16.mxu0 0
        %1752 = vmatpush1.bf16.msra.mxu0 0
        %1753 = vmatprep.subr.bf16.mxu0 0
        %1754 = vmatpush1.bf16.msra.mxu0 0
        %1755 = vmatprep.subr.bf16.mxu0 0
        %1756 = vmatpush1.bf16.msra.mxu0 0
        %1757 = vmatprep.subr.bf16.mxu0 0
        %1758 = vmatpush1.bf16.msra.mxu0 0
        %1759 = vmatprep.subr.bf16.mxu0 0
        %1760 = vmatpush1.bf16.msra.mxu0 0
        %1761 = vmatprep.subr.bf16.mxu0 0
        %1762 = vmatpush1.bf16.msra.mxu0 0
        %1763 = vmatprep.subr.bf16.mxu0 0
        %1764 = vmatpush1.bf16.msra.mxu0 0
        %1765 = vmatprep.subr.bf16.mxu0 0
        %1766 = vmatpush1.bf16.msra.mxu0 0
        %1767 = vmatprep.mubr.bf16.mxu0 0
        %1768 = vmatmul.mubr.bf16.gmra.mrb[0].mxu0 %v1654
        %v1769 = vpop.f32.mrb[0].mxu0
        %v1770 = vadd.f32 0.0, %v1769
        %v1771 = vpop.f32.mrb[0].mxu0
        %v1772 = vpop.f32.mrb[0].mxu0
        %v1773 = vadd.f32 0.0, %v1772
        %v1774 = vpop.f32.mrb[0].mxu0
        %1775 = vmatprep.mubr.bf16.mxu0 0
        %1776 = vmatmul.mubr.bf16.gmra.mrb[0].mxu0 %v1655
        %v1777 = vpop.f32.mrb[0].mxu0
        %v1778 = vadd.f32 0.0, %v1777
        %v1779 = vpop.f32.mrb[0].mxu0
        %v1780 = vpop.f32.mrb[0].mxu0
        %v1781 = vadd.f32 0.0, %v1780
        %v1782 = vpop.f32.mrb[0].mxu0
        %1783 = vmatprep.mubr.bf16.mxu0 0
        %1784 = vmatmul.mubr.bf16.gmra.mrb[0].mxu0 %v1656
        %v1785 = vpop.f32.mrb[0].mxu0
        %v1786 = vadd.f32 0.0, %v1785
        %v1787 = vpop.f32.mrb[0].mxu0
        %v1788 = vpop.f32.mrb[0].mxu0
        %v1789 = vadd.f32 0.0, %v1788
        %v1790 = vpop.f32.mrb[0].mxu0
        %1791 = vmatprep.mubr.bf16.mxu0 0
        %1792 = vmatmul.mubr.bf16.gmra.mrb[0].mxu0 %v1657
        %v1793 = vpop.f32.mrb[0].mxu0
        %v1794 = vadd.f32 0.0, %v1793
        %v1795 = vpop.f32.mrb[0].mxu0
        %v1796 = vpop.f32.mrb[0].mxu0
        %v1797 = vadd.f32 0.0, %v1796
        %v1798 = vpop.f32.mrb[0].mxu0
        %1799 = vmatprep.mubr.bf16.mxu0 0
        %1800 = vmatmul.mubr.bf16.gmra.mrb[0].mxu0 %v1658
        %v1801 = vpop.f32.mrb[0].mxu0
        %v1802 = vadd.f32 0.0, %v1801
        %v1803 = vpop.f32.mrb[0].mxu0
        %v1804 = vpop.f32.mrb[0].mxu0
        %v1805 = vadd.f32 0.0, %v1804
        %v1806 = vpop.f32.mrb[0].mxu0
        %1807 = vmatprep.mubr.bf16.mxu0 0
        %1808 = vmatmul.mubr.bf16.gmra.mrb[0].mxu0 %v1659
        %v1809 = vpop.f32.mrb[0].mxu0
        %v1810 = vadd.f32 0.0, %v1809
        %v1811 = vpop.f32.mrb[0].mxu0
        %v1812 = vpop.f32.mrb[0].mxu0
        %v1813 = vadd.f32 0.0, %v1812
        %v1814 = vpop.f32.mrb[0].mxu0
        %1815 = vmatprep.mubr.bf16.mxu0 0
        %1816 = vmatmul.mubr.bf16.gmra.mrb[0].mxu0 %v1660
        %v1817 = vpop.f32.mrb[0].mxu0
        %v1818 = vadd.f32 0.0, %v1817
        %v1819 = vpop.f32.mrb[0].mxu0
        %v1820 = vpop.f32.mrb[0].mxu0
        %v1821 = vadd.f32 0.0, %v1820
        %v1822 = vpop.f32.mrb[0].mxu0
        %1823 = vmatprep.mubr.bf16.mxu0 0
        %1824 = vmatmul.mubr.bf16.gmra.mrb[0].mxu0 %v1661
        %v1825 = vpop.f32.mrb[0].mxu0
        %v1826 = vadd.f32 0.0, %v1825
        %v1827 = vpop.f32.mrb[0].mxu0
        %v1828 = vpop.f32.mrb[0].mxu0
        %v1829 = vadd.f32 0.0, %v1828
        %v1830 = vpop.f32.mrb[0].mxu0
        %1831 = vmatprep.mubr.bf16.mxu0 0
        %1832 = vmatmul.mubr.bf16.gmra.mrb[0].mxu0 %v1662
        %v1833 = vpop.f32.mrb[0].mxu0
        %v1834 = vadd.f32 0.0, %v1833
        %v1835 = vpop.f32.mrb[0].mxu0
        %v1836 = vpop.f32.mrb[0].mxu0
        %v1837 = vadd.f32 0.0, %v1836
        %v1838 = vpop.f32.mrb[0].mxu0
        %1839 = vmatprep.mubr.bf16.mxu0 0
        %1840 = vmatmul.mubr.bf16.gmra.mrb[0].mxu0 %v1663
        %v1841 = vpop.f32.mrb[0].mxu0
        %v1842 = vadd.f32 0.0, %v1841
        %v1843 = vpop.f32.mrb[0].mxu0
        %v1844 = vpop.f32.mrb[0].mxu0
        %v1845 = vadd.f32 0.0, %v1844
        %v1846 = vpop.f32.mrb[0].mxu0
        %1847 = vmatprep.mubr.bf16.mxu0 0
        %1848 = vmatmul.mubr.bf16.gmra.mrb[0].mxu0 %v1664
        %v1849 = vpop.f32.mrb[0].mxu0
        %v1850 = vadd.f32 0.0, %v1849
        %v1851 = vpop.f32.mrb[0].mxu0
        %v1852 = vpop.f32.mrb[0].mxu0
        %v1853 = vadd.f32 0.0, %v1852
        %v1854 = vpop.f32.mrb[0].mxu0
        %1855 = vmatprep.mubr.bf16.mxu0 0
        %1856 = vmatmul.mubr.bf16.gmra.mrb[0].mxu0 %v1665
        %v1857 = vpop.f32.mrb[0].mxu0
        %v1858 = vadd.f32 0.0, %v1857
        %v1859 = vpop.f32.mrb[0].mxu0
        %v1860 = vpop.f32.mrb[0].mxu0
        %v1861 = vadd.f32 0.0, %v1860
        %v1862 = vpop.f32.mrb[0].mxu0
        %1863 = vmatprep.mubr.bf16.mxu0 0
        %1864 = vmatmul.mubr.bf16.gmra.mrb[0].mxu0 %v1666
        %v1865 = vpop.f32.mrb[0].mxu0
        %v1866 = vadd.f32 0.0, %v1865
        %v1867 = vpop.f32.mrb[0].mxu0
        %v1868 = vpop.f32.mrb[0].mxu0
        %v1869 = vadd.f32 0.0, %v1868
        %v1870 = vpop.f32.mrb[0].mxu0
        %1871 = vmatprep.mubr.bf16.mxu0 0
        %1872 = vmatmul.mubr.bf16.gmra.mrb[0].mxu0 %v1667
        %v1873 = vpop.f32.mrb[0].mxu0
        %v1874 = vadd.f32 0.0, %v1873
        %v1875 = vpop.f32.mrb[0].mxu0
        %v1876 = vpop.f32.mrb[0].mxu0
        %v1877 = vadd.f32 0.0, %v1876
        %v1878 = vpop.f32.mrb[0].mxu0
        %1879 = vmatprep.mubr.bf16.mxu0 0
        %1880 = vmatmul.mubr.bf16.gmra.mrb[0].mxu0 %v1668
        %v1881 = vpop.f32.mrb[0].mxu0
        %v1882 = vadd.f32 0.0, %v1881
        %v1883 = vpop.f32.mrb[0].mxu0
        %v1884 = vpop.f32.mrb[0].mxu0
        %v1885 = vadd.f32 0.0, %v1884
        %v1886 = vpop.f32.mrb[0].mxu0
        %1887 = vmatprep.mubr.bf16.mxu0 0
        %1888 = vmatmul.mubr.bf16.gmra.mrb[0].mxu0 %v1669
        %v1889 = vpop.f32.mrb[0].mxu0
        %v1890 = vadd.f32 0.0, %v1889
        %v1891 = vpop.f32.mrb[0].mxu0
        %v1892 = vpop.f32.mrb[0].mxu0
        %v1893 = vadd.f32 0.0, %v1892
        %v1894 = vpop.f32.mrb[0].mxu0
        %1895 = vdwg.mxu0
        %v1896 = vadd.f32 %v1432, %v1770
        %v1897 = vadd.f32 %v1435, %v1773
        %v1898 = vadd.f32 %v1440, %v1778
        %v1899 = vadd.f32 %v1443, %v1781
        %v1900 = vadd.f32 %v1448, %v1786
        %v1901 = vadd.f32 %v1451, %v1789
        %v1902 = vadd.f32 %v1456, %v1794
        %v1903 = vadd.f32 %v1459, %v1797
        %v1904 = vadd.f32 %v1464, %v1802
        %v1905 = vadd.f32 %v1467, %v1805
        %v1906 = vadd.f32 %v1472, %v1810
        %v1907 = vadd.f32 %v1475, %v1813
        %v1908 = vadd.f32 %v1480, %v1818
        %v1909 = vadd.f32 %v1483, %v1821
        %v1910 = vadd.f32 %v1488, %v1826
        %v1911 = vadd.f32 %v1491, %v1829
        %v1912 = vadd.f32 %v1496, %v1834
        %v1913 = vadd.f32 %v1499, %v1837
        %v1914 = vadd.f32 %v1504, %v1842
        %v1915 = vadd.f32 %v1507, %v1845
        %v1916 = vadd.f32 %v1512, %v1850
        %v1917 = vadd.f32 %v1515, %v1853
        %v1918 = vadd.f32 %v1520, %v1858
        %v1919 = vadd.f32 %v1523, %v1861
        %v1920 = vadd.f32 %v1528, %v1866
        %v1921 = vadd.f32 %v1531, %v1869
        %v1922 = vadd.f32 %v1536, %v1874
        %v1923 = vadd.f32 %v1539, %v1877
        %v1924 = vadd.f32 %v1544, %v1882
        %v1925 = vadd.f32 %v1547, %v1885
        %v1926 = vadd.f32 %v1552, %v1890
        %v1927 = vadd.f32 %v1555, %v1893
        %v1928 = vld [vmem:[#allocation2 + $0x10] sm:$0xff]
        %v1929 = vld [vmem:[#allocation2 + $0x18] sm:$0xff]
        %v1930 = vld [vmem:[#allocation2 + $0x20] sm:$0xff]
        %v1931 = vld [vmem:[#allocation2 + $0x28] sm:$0xff]
        %v1932 = vld [vmem:[#allocation2 + $0x30] sm:$0xff]
        %v1933 = vld [vmem:[#allocation2 + $0x38] sm:$0xff]
        %v1934 = vld [vmem:[#allocation2 + $0x40] sm:$0xff]
        %v1935 = vld [vmem:[#allocation2 + $0x48] sm:$0xff]
        %v1936 = vld [vmem:[#allocation2 + $0x50] sm:$0xff]
        %v1937 = vld [vmem:[#allocation2 + $0x58] sm:$0xff]
        %v1938 = vld [vmem:[#allocation2 + $0x60] sm:$0xff]
        %v1939 = vld [vmem:[#allocation2 + $0x68] sm:$0xff]
        %v1940 = vld [vmem:[#allocation2 + $0x70] sm:$0xff]
        %v1941 = vld [vmem:[#allocation2 + $0x78] sm:$0xff]
        %v1942 = vld [vmem:[#allocation2 + $0x80] sm:$0xff]
        %v1943 = vld [vmem:[#allocation2 + $0x88] sm:$0xff]
        %v1944 = vld [vmem:[#allocation2 + $0x90] sm:$0xff]
        %v1945 = vld [vmem:[#allocation2 + $0x98] sm:$0xff]
        %v1946 = vld [vmem:[#allocation2 + $0xa0] sm:$0xff]
        %v1947 = vld [vmem:[#allocation2 + $0xa8] sm:$0xff]
        %v1948 = vld [vmem:[#allocation2 + $0xb0] sm:$0xff]
        %v1949 = vld [vmem:[#allocation2 + $0xb8] sm:$0xff]
        %v1950 = vld [vmem:[#allocation2 + $0xc0] sm:$0xff]
        %v1951 = vld [vmem:[#allocation2 + $0xc8] sm:$0xff]
        %v1952 = vld [vmem:[#allocation2 + $0xd0] sm:$0xff]
        %v1953 = vld [vmem:[#allocation2 + $0xd8] sm:$0xff]
        %v1954 = vld [vmem:[#allocation2 + $0xe0] sm:$0xff]
        %v1955 = vld [vmem:[#allocation2 + $0xe8] sm:$0xff]
        %v1956 = vld [vmem:[#allocation2 + $0xf0] sm:$0xff]
        %v1957 = vld [vmem:[#allocation2 + $0xf8] sm:$0xff]
        %v1958 = vld [vmem:[#allocation2 + $0x100] sm:$0xff]
        %v1959 = vld [vmem:[#allocation2 + $0x108] sm:$0xff]
        %v1960 = vsel %vm979, %v1928, 0.0
        %v1961 = vsel %vm980, %v1929, 0.0
        %v1962 = vsel %vm981, %v1930, 0.0
        %v1963 = vsel %vm982, %v1931, 0.0
        %v1964 = vsel %vm983, %v1932, 0.0
        %v1965 = vsel %vm984, %v1933, 0.0
        %v1966 = vsel %vm985, %v1934, 0.0
        %v1967 = vsel %vm986, %v1935, 0.0
        %v1968 = vsel %vm987, %v1936, 0.0
        %v1969 = vsel %vm988, %v1937, 0.0
        %v1970 = vsel %vm989, %v1938, 0.0
        %v1971 = vsel %vm990, %v1939, 0.0
        %v1972 = vsel %vm991, %v1940, 0.0
        %v1973 = vsel %vm992, %v1941, 0.0
        %v1974 = vsel %vm993, %v1942, 0.0
        %v1975 = vsel %vm994, %v1943, 0.0
        %v1976 = vsel %vm995, %v1944, 0.0
        %v1977 = vsel %vm996, %v1945, 0.0
        %v1978 = vsel %vm997, %v1946, 0.0
        %v1979 = vsel %vm998, %v1947, 0.0
        %v1980 = vsel %vm999, %v1948, 0.0
        %v1981 = vsel %vm1000, %v1949, 0.0
        %v1982 = vsel %vm1001, %v1950, 0.0
        %v1983 = vsel %vm1002, %v1951, 0.0
        %v1984 = vsel %vm1003, %v1952, 0.0
        %v1985 = vsel %vm1004, %v1953, 0.0
        %v1986 = vsel %vm1005, %v1954, 0.0
        %v1987 = vsel %vm1006, %v1955, 0.0
        %v1988 = vsel %vm1007, %v1956, 0.0
        %v1989 = vsel %vm1008, %v1957, 0.0
        %v1990 = vsel %vm1009, %v1958, 0.0
        %v1991 = vsel %vm1010, %v1959, 0.0
        %v1992 = vpack.c.bf16 %v1961, %v1960
        %v1993 = vpack.c.bf16 %v1963, %v1962
        %v1994 = vpack.c.bf16 %v1965, %v1964
        %v1995 = vpack.c.bf16 %v1967, %v1966
        %v1996 = vpack.c.bf16 %v1969, %v1968
        %v1997 = vpack.c.bf16 %v1971, %v1970
        %v1998 = vpack.c.bf16 %v1973, %v1972
        %v1999 = vpack.c.bf16 %v1975, %v1974
        %v2000 = vpack.c.bf16 %v1977, %v1976
        %v2001 = vpack.c.bf16 %v1979, %v1978
        %v2002 = vpack.c.bf16 %v1981, %v1980
        %v2003 = vpack.c.bf16 %v1983, %v1982
        %v2004 = vpack.c.bf16 %v1985, %v1984
        %v2005 = vpack.c.bf16 %v1987, %v1986
        %v2006 = vpack.c.bf16 %v1989, %v1988
        %v2007 = vpack.c.bf16 %v1991, %v1990
        %s2008 = scalar_lea.vmem %s4, 192
        %v2009 = vld [vmem:[%s2008] sm:$0xf]
        %v2010 = vld [vmem:[%s2008 + $0x4] sm:$0xf]
        %v2011 = vld [vmem:[%s2008 + $0x8] sm:$0xf]
        %v2012 = vld [vmem:[%s2008 + $0xc] sm:$0xf]
        %v2013 = vld [vmem:[%s2008 + $0x10] sm:$0xf]
        %v2014 = vld [vmem:[%s2008 + $0x14] sm:$0xf]
        %v2015 = vld [vmem:[%s2008 + $0x18] sm:$0xf]
        %v2016 = vld [vmem:[%s2008 + $0x1c] sm:$0xf]
        %v2017 = vld [vmem:[%s2008 + $0x20] sm:$0xf]
        %v2018 = vld [vmem:[%s2008 + $0x24] sm:$0xf]
        %v2019 = vld [vmem:[%s2008 + $0x28] sm:$0xf]
        %v2020 = vld [vmem:[%s2008 + $0x2c] sm:$0xf]
        %v2021 = vld [vmem:[%s2008 + $0x30] sm:$0xf]
        %v2022 = vld [vmem:[%s2008 + $0x34] sm:$0xf]
        %v2023 = vld [vmem:[%s2008 + $0x38] sm:$0xf]
        %v2024 = vld [vmem:[%s2008 + $0x3c] sm:$0xf]
        %v2041 = vunpack.c.l.b16 %v2009
        %v2042 = vunpack.c.l.b16 %v2010
        %v2043 = vunpack.c.l.b16 %v2011
        %v2044 = vunpack.c.l.b16 %v2012
        %v2045 = vunpack.c.l.b16 %v2013
        %v2046 = vunpack.c.l.b16 %v2014
        %v2047 = vunpack.c.l.b16 %v2015
        %v2048 = vunpack.c.l.b16 %v2016
        %v2049 = vunpack.c.l.b16 %v2017
        %v2050 = vunpack.c.l.b16 %v2018
        %v2051 = vunpack.c.l.b16 %v2019
        %v2052 = vunpack.c.l.b16 %v2020
        %v2053 = vunpack.c.l.b16 %v2021
        %v2054 = vunpack.c.l.b16 %v2022
        %v2055 = vunpack.c.l.b16 %v2023
        %v2056 = vunpack.c.l.b16 %v2024
        %v2057 = vpack.c.b16 %v2042, %v2041
        %v2058 = vpack.c.b16 %v2044, %v2043
        %v2059 = vpack.c.b16 %v2046, %v2045
        %v2060 = vpack.c.b16 %v2048, %v2047
        %v2061 = vpack.c.b16 %v2050, %v2049
        %v2062 = vpack.c.b16 %v2052, %v2051
        %v2063 = vpack.c.b16 %v2054, %v2053
        %v2064 = vpack.c.b16 %v2056, %v2055
        %2073 = vmatprep.subr.bf16.mxu0 0
        %2074 = vmatpush1.bf16.msra.mxu0 %v2057
        %2075 = vmatprep.subr.bf16.mxu0 0
        %2076 = vmatpush1.bf16.msra.mxu0 %v2058
        %2077 = vmatprep.subr.bf16.mxu0 0
        %2078 = vmatpush1.bf16.msra.mxu0 %v2059
        %2079 = vmatprep.subr.bf16.mxu0 0
        %2080 = vmatpush1.bf16.msra.mxu0 %v2060
        %2081 = vmatprep.subr.bf16.mxu0 0
        %2082 = vmatpush1.bf16.msra.mxu0 %v2061
        %2083 = vmatprep.subr.bf16.mxu0 0
        %2084 = vmatpush1.bf16.msra.mxu0 %v2062
        %2085 = vmatprep.subr.bf16.mxu0 0
        %2086 = vmatpush1.bf16.msra.mxu0 %v2063
        %2087 = vmatprep.subr.bf16.mxu0 0
        %2088 = vmatpush1.bf16.msra.mxu0 %v2064
        %2089 = vmatprep.subr.bf16.mxu0 0
        %2090 = vmatpush1.bf16.msra.mxu0 0
        %2091 = vmatprep.subr.bf16.mxu0 0
        %2092 = vmatpush1.bf16.msra.mxu0 0
        %2093 = vmatprep.subr.bf16.mxu0 0
        %2094 = vmatpush1.bf16.msra.mxu0 0
        %2095 = vmatprep.subr.bf16.mxu0 0
        %2096 = vmatpush1.bf16.msra.mxu0 0
        %2097 = vmatprep.subr.bf16.mxu0 0
        %2098 = vmatpush1.bf16.msra.mxu0 0
        %2099 = vmatprep.subr.bf16.mxu0 0
        %2100 = vmatpush1.bf16.msra.mxu0 0
        %2101 = vmatprep.subr.bf16.mxu0 0
        %2102 = vmatpush1.bf16.msra.mxu0 0
        %2103 = vmatprep.subr.bf16.mxu0 0
        %2104 = vmatpush1.bf16.msra.mxu0 0
        %2105 = vmatprep.mubr.bf16.mxu0 0
        %2106 = vmatmul.mubr.bf16.gmra.mrb[0].mxu0 %v1992
        %v2107 = vpop.f32.mrb[0].mxu0
        %v2108 = vadd.f32 0.0, %v2107
        %v2109 = vpop.f32.mrb[0].mxu0
        %v2110 = vpop.f32.mrb[0].mxu0
        %v2111 = vadd.f32 0.0, %v2110
        %v2112 = vpop.f32.mrb[0].mxu0
        %2113 = vmatprep.mubr.bf16.mxu0 0
        %2114 = vmatmul.mubr.bf16.gmra.mrb[0].mxu0 %v1993
        %v2115 = vpop.f32.mrb[0].mxu0
        %v2116 = vadd.f32 0.0, %v2115
        %v2117 = vpop.f32.mrb[0].mxu0
        %v2118 = vpop.f32.mrb[0].mxu0
        %v2119 = vadd.f32 0.0, %v2118
        %v2120 = vpop.f32.mrb[0].mxu0
        %2121 = vmatprep.mubr.bf16.mxu0 0
        %2122 = vmatmul.mubr.bf16.gmra.mrb[0].mxu0 %v1994
        %v2123 = vpop.f32.mrb[0].mxu0
        %v2124 = vadd.f32 0.0, %v2123
        %v2125 = vpop.f32.mrb[0].mxu0
        %v2126 = vpop.f32.mrb[0].mxu0
        %v2127 = vadd.f32 0.0, %v2126
        %v2128 = vpop.f32.mrb[0].mxu0
        %2129 = vmatprep.mubr.bf16.mxu0 0
        %2130 = vmatmul.mubr.bf16.gmra.mrb[0].mxu0 %v1995
        %v2131 = vpop.f32.mrb[0].mxu0
        %v2132 = vadd.f32 0.0, %v2131
        %v2133 = vpop.f32.mrb[0].mxu0
        %v2134 = vpop.f32.mrb[0].mxu0
        %v2135 = vadd.f32 0.0, %v2134
        %v2136 = vpop.f32.mrb[0].mxu0
        %2137 = vmatprep.mubr.bf16.mxu0 0
        %2138 = vmatmul.mubr.bf16.gmra.mrb[0].mxu0 %v1996
        %v2139 = vpop.f32.mrb[0].mxu0
        %v2140 = vadd.f32 0.0, %v2139
        %v2141 = vpop.f32.mrb[0].mxu0
        %v2142 = vpop.f32.mrb[0].mxu0
        %v2143 = vadd.f32 0.0, %v2142
        %v2144 = vpop.f32.mrb[0].mxu0
        %2145 = vmatprep.mubr.bf16.mxu0 0
        %2146 = vmatmul.mubr.bf16.gmra.mrb[0].mxu0 %v1997
        %v2147 = vpop.f32.mrb[0].mxu0
        %v2148 = vadd.f32 0.0, %v2147
        %v2149 = vpop.f32.mrb[0].mxu0
        %v2150 = vpop.f32.mrb[0].mxu0
        %v2151 = vadd.f32 0.0, %v2150
        %v2152 = vpop.f32.mrb[0].mxu0
        %2153 = vmatprep.mubr.bf16.mxu0 0
        %2154 = vmatmul.mubr.bf16.gmra.mrb[0].mxu0 %v1998
        %v2155 = vpop.f32.mrb[0].mxu0
        %v2156 = vadd.f32 0.0, %v2155
        %v2157 = vpop.f32.mrb[0].mxu0
        %v2158 = vpop.f32.mrb[0].mxu0
        %v2159 = vadd.f32 0.0, %v2158
        %v2160 = vpop.f32.mrb[0].mxu0
        %2161 = vmatprep.mubr.bf16.mxu0 0
        %2162 = vmatmul.mubr.bf16.gmra.mrb[0].mxu0 %v1999
        %v2163 = vpop.f32.mrb[0].mxu0
        %v2164 = vadd.f32 0.0, %v2163
        %v2165 = vpop.f32.mrb[0].mxu0
        %v2166 = vpop.f32.mrb[0].mxu0
        %v2167 = vadd.f32 0.0, %v2166
        %v2168 = vpop.f32.mrb[0].mxu0
        %2169 = vmatprep.mubr.bf16.mxu0 0
        %2170 = vmatmul.mubr.bf16.gmra.mrb[0].mxu0 %v2000
        %v2171 = vpop.f32.mrb[0].mxu0
        %v2172 = vadd.f32 0.0, %v2171
        %v2173 = vpop.f32.mrb[0].mxu0
        %v2174 = vpop.f32.mrb[0].mxu0
        %v2175 = vadd.f32 0.0, %v2174
        %v2176 = vpop.f32.mrb[0].mxu0
        %2177 = vmatprep.mubr.bf16.mxu0 0
        %2178 = vmatmul.mubr.bf16.gmra.mrb[0].mxu0 %v2001
        %v2179 = vpop.f32.mrb[0].mxu0
        %v2180 = vadd.f32 0.0, %v2179
        %v2181 = vpop.f32.mrb[0].mxu0
        %v2182 = vpop.f32.mrb[0].mxu0
        %v2183 = vadd.f32 0.0, %v2182
        %v2184 = vpop.f32.mrb[0].mxu0
        %2185 = vmatprep.mubr.bf16.mxu0 0
        %2186 = vmatmul.mubr.bf16.gmra.mrb[0].mxu0 %v2002
        %v2187 = vpop.f32.mrb[0].mxu0
        %v2188 = vadd.f32 0.0, %v2187
        %v2189 = vpop.f32.mrb[0].mxu0
        %v2190 = vpop.f32.mrb[0].mxu0
        %v2191 = vadd.f32 0.0, %v2190
        %v2192 = vpop.f32.mrb[0].mxu0
        %2193 = vmatprep.mubr.bf16.mxu0 0
        %2194 = vmatmul.mubr.bf16.gmra.mrb[0].mxu0 %v2003
        %v2195 = vpop.f32.mrb[0].mxu0
        %v2196 = vadd.f32 0.0, %v2195
        %v2197 = vpop.f32.mrb[0].mxu0
        %v2198 = vpop.f32.mrb[0].mxu0
        %v2199 = vadd.f32 0.0, %v2198
        %v2200 = vpop.f32.mrb[0].mxu0
        %2201 = vmatprep.mubr.bf16.mxu0 0
        %2202 = vmatmul.mubr.bf16.gmra.mrb[0].mxu0 %v2004
        %v2203 = vpop.f32.mrb[0].mxu0
        %v2204 = vadd.f32 0.0, %v2203
        %v2205 = vpop.f32.mrb[0].mxu0
        %v2206 = vpop.f32.mrb[0].mxu0
        %v2207 = vadd.f32 0.0, %v2206
        %v2208 = vpop.f32.mrb[0].mxu0
        %2209 = vmatprep.mubr.bf16.mxu0 0
        %2210 = vmatmul.mubr.bf16.gmra.mrb[0].mxu0 %v2005
        %v2211 = vpop.f32.mrb[0].mxu0
        %v2212 = vadd.f32 0.0, %v2211
        %v2213 = vpop.f32.mrb[0].mxu0
        %v2214 = vpop.f32.mrb[0].mxu0
        %v2215 = vadd.f32 0.0, %v2214
        %v2216 = vpop.f32.mrb[0].mxu0
        %2217 = vmatprep.mubr.bf16.mxu0 0
        %2218 = vmatmul.mubr.bf16.gmra.mrb[0].mxu0 %v2006
        %v2219 = vpop.f32.mrb[0].mxu0
        %v2220 = vadd.f32 0.0, %v2219
        %v2221 = vpop.f32.mrb[0].mxu0
        %v2222 = vpop.f32.mrb[0].mxu0
        %v2223 = vadd.f32 0.0, %v2222
        %v2224 = vpop.f32.mrb[0].mxu0
        %2225 = vmatprep.mubr.bf16.mxu0 0
        %2226 = vmatmul.mubr.bf16.gmra.mrb[0].mxu0 %v2007
        %v2227 = vpop.f32.mrb[0].mxu0
        %v2228 = vadd.f32 0.0, %v2227
        %v2229 = vpop.f32.mrb[0].mxu0
        %v2230 = vpop.f32.mrb[0].mxu0
        %v2231 = vadd.f32 0.0, %v2230
        %v2232 = vpop.f32.mrb[0].mxu0
        %2233 = vdwg.mxu0
        %v2234 = vadd.f32 %v1896, %v2108
        %v2235 = vadd.f32 %v1897, %v2111
        %v2236 = vadd.f32 %v1898, %v2116
        %v2237 = vadd.f32 %v1899, %v2119
        %v2238 = vadd.f32 %v1900, %v2124
        %v2239 = vadd.f32 %v1901, %v2127
        %v2240 = vadd.f32 %v1902, %v2132
        %v2241 = vadd.f32 %v1903, %v2135
        %v2242 = vadd.f32 %v1904, %v2140
        %v2243 = vadd.f32 %v1905, %v2143
        %v2244 = vadd.f32 %v1906, %v2148
        %v2245 = vadd.f32 %v1907, %v2151
        %v2246 = vadd.f32 %v1908, %v2156
        %v2247 = vadd.f32 %v1909, %v2159
        %v2248 = vadd.f32 %v1910, %v2164
        %v2249 = vadd.f32 %v1911, %v2167
        %v2250 = vadd.f32 %v1912, %v2172
        %v2251 = vadd.f32 %v1913, %v2175
        %v2252 = vadd.f32 %v1914, %v2180
        %v2253 = vadd.f32 %v1915, %v2183
        %v2254 = vadd.f32 %v1916, %v2188
        %v2255 = vadd.f32 %v1917, %v2191
        %v2256 = vadd.f32 %v1918, %v2196
        %v2257 = vadd.f32 %v1919, %v2199
        %v2258 = vadd.f32 %v1920, %v2204
        %v2259 = vadd.f32 %v1921, %v2207
        %v2260 = vadd.f32 %v1922, %v2212
        %v2261 = vadd.f32 %v1923, %v2215
        %v2262 = vadd.f32 %v1924, %v2220
        %v2263 = vadd.f32 %v1925, %v2223
        %v2264 = vadd.f32 %v1926, %v2228
        %v2265 = vadd.f32 %v1927, %v2231
        %v2266 = vld [vmem:[#allocation2 + $0x11] sm:$0xff]
        %v2267 = vld [vmem:[#allocation2 + $0x19] sm:$0xff]
        %v2268 = vld [vmem:[#allocation2 + $0x21] sm:$0xff]
        %v2269 = vld [vmem:[#allocation2 + $0x29] sm:$0xff]
        %v2270 = vld [vmem:[#allocation2 + $0x31] sm:$0xff]
        %v2271 = vld [vmem:[#allocation2 + $0x39] sm:$0xff]
        %v2272 = vld [vmem:[#allocation2 + $0x41] sm:$0xff]
        %v2273 = vld [vmem:[#allocation2 + $0x49] sm:$0xff]
        %v2274 = vld [vmem:[#allocation2 + $0x51] sm:$0xff]
        %v2275 = vld [vmem:[#allocation2 + $0x59] sm:$0xff]
        %v2276 = vld [vmem:[#allocation2 + $0x61] sm:$0xff]
        %v2277 = vld [vmem:[#allocation2 + $0x69] sm:$0xff]
        %v2278 = vld [vmem:[#allocation2 + $0x71] sm:$0xff]
        %v2279 = vld [vmem:[#allocation2 + $0x79] sm:$0xff]
        %v2280 = vld [vmem:[#allocation2 + $0x81] sm:$0xff]
        %v2281 = vld [vmem:[#allocation2 + $0x89] sm:$0xff]
        %v2282 = vld [vmem:[#allocation2 + $0x91] sm:$0xff]
        %v2283 = vld [vmem:[#allocation2 + $0x99] sm:$0xff]
        %v2284 = vld [vmem:[#allocation2 + $0xa1] sm:$0xff]
        %v2285 = vld [vmem:[#allocation2 + $0xa9] sm:$0xff]
        %v2286 = vld [vmem:[#allocation2 + $0xb1] sm:$0xff]
        %v2287 = vld [vmem:[#allocation2 + $0xb9] sm:$0xff]
        %v2288 = vld [vmem:[#allocation2 + $0xc1] sm:$0xff]
        %v2289 = vld [vmem:[#allocation2 + $0xc9] sm:$0xff]
        %v2290 = vld [vmem:[#allocation2 + $0xd1] sm:$0xff]
        %v2291 = vld [vmem:[#allocation2 + $0xd9] sm:$0xff]
        %v2292 = vld [vmem:[#allocation2 + $0xe1] sm:$0xff]
        %v2293 = vld [vmem:[#allocation2 + $0xe9] sm:$0xff]
        %v2294 = vld [vmem:[#allocation2 + $0xf1] sm:$0xff]
        %v2295 = vld [vmem:[#allocation2 + $0xf9] sm:$0xff]
        %v2296 = vld [vmem:[#allocation2 + $0x101] sm:$0xff]
        %v2297 = vld [vmem:[#allocation2 + $0x109] sm:$0xff]
        %v2298 = vpack.c.bf16 %v2267, %v2266
        %v2299 = vpack.c.bf16 %v2269, %v2268
        %v2300 = vpack.c.bf16 %v2271, %v2270
        %v2301 = vpack.c.bf16 %v2273, %v2272
        %v2302 = vpack.c.bf16 %v2275, %v2274
        %v2303 = vpack.c.bf16 %v2277, %v2276
        %v2304 = vpack.c.bf16 %v2279, %v2278
        %v2305 = vpack.c.bf16 %v2281, %v2280
        %v2306 = vpack.c.bf16 %v2283, %v2282
        %v2307 = vpack.c.bf16 %v2285, %v2284
        %v2308 = vpack.c.bf16 %v2287, %v2286
        %v2309 = vpack.c.bf16 %v2289, %v2288
        %v2310 = vpack.c.bf16 %v2291, %v2290
        %v2311 = vpack.c.bf16 %v2293, %v2292
        %v2312 = vpack.c.bf16 %v2295, %v2294
        %v2313 = vpack.c.bf16 %v2297, %v2296
        %s2314 = scalar_lea.vmem %s4, 256
        %v2315 = vld [vmem:[%s2314] sm:$0xf]
        %v2316 = vld [vmem:[%s2314 + $0x4] sm:$0xf]
        %v2317 = vld [vmem:[%s2314 + $0x8] sm:$0xf]
        %v2318 = vld [vmem:[%s2314 + $0xc] sm:$0xf]
        %v2319 = vld [vmem:[%s2314 + $0x10] sm:$0xf]
        %v2320 = vld [vmem:[%s2314 + $0x14] sm:$0xf]
        %v2321 = vld [vmem:[%s2314 + $0x18] sm:$0xf]
        %v2322 = vld [vmem:[%s2314 + $0x1c] sm:$0xf]
        %v2323 = vld [vmem:[%s2314 + $0x20] sm:$0xf]
        %v2324 = vld [vmem:[%s2314 + $0x24] sm:$0xf]
        %v2325 = vld [vmem:[%s2314 + $0x28] sm:$0xf]
        %v2326 = vld [vmem:[%s2314 + $0x2c] sm:$0xf]
        %v2327 = vld [vmem:[%s2314 + $0x30] sm:$0xf]
        %v2328 = vld [vmem:[%s2314 + $0x34] sm:$0xf]
        %v2329 = vld [vmem:[%s2314 + $0x38] sm:$0xf]
        %v2330 = vld [vmem:[%s2314 + $0x3c] sm:$0xf]
        %v2347 = vunpack.c.l.b16 %v2315
        %v2348 = vunpack.c.l.b16 %v2316
        %v2349 = vunpack.c.l.b16 %v2317
        %v2350 = vunpack.c.l.b16 %v2318
        %v2351 = vunpack.c.l.b16 %v2319
        %v2352 = vunpack.c.l.b16 %v2320
        %v2353 = vunpack.c.l.b16 %v2321
        %v2354 = vunpack.c.l.b16 %v2322
        %v2355 = vunpack.c.l.b16 %v2323
        %v2356 = vunpack.c.l.b16 %v2324
        %v2357 = vunpack.c.l.b16 %v2325
        %v2358 = vunpack.c.l.b16 %v2326
        %v2359 = vunpack.c.l.b16 %v2327
        %v2360 = vunpack.c.l.b16 %v2328
        %v2361 = vunpack.c.l.b16 %v2329
        %v2362 = vunpack.c.l.b16 %v2330
        %v2363 = vpack.c.b16 %v2348, %v2347
        %v2364 = vpack.c.b16 %v2350, %v2349
        %v2365 = vpack.c.b16 %v2352, %v2351
        %v2366 = vpack.c.b16 %v2354, %v2353
        %v2367 = vpack.c.b16 %v2356, %v2355
        %v2368 = vpack.c.b16 %v2358, %v2357
        %v2369 = vpack.c.b16 %v2360, %v2359
        %v2370 = vpack.c.b16 %v2362, %v2361
        %2379 = vmatprep.subr.bf16.mxu0 0
        %2380 = vmatpush1.bf16.msra.mxu0 %v2363
        %2381 = vmatprep.subr.bf16.mxu0 0
        %2382 = vmatpush1.bf16.msra.mxu0 %v2364
        %2383 = vmatprep.subr.bf16.mxu0 0
        %2384 = vmatpush1.bf16.msra.mxu0 %v2365
        %2385 = vmatprep.subr.bf16.mxu0 0
        %2386 = vmatpush1.bf16.msra.mxu0 %v2366
        %2387 = vmatprep.subr.bf16.mxu0 0
        %2388 = vmatpush1.bf16.msra.mxu0 %v2367
        %2389 = vmatprep.subr.bf16.mxu0 0
        %2390 = vmatpush1.bf16.msra.mxu0 %v2368
        %2391 = vmatprep.subr.bf16.mxu0 0
        %2392 = vmatpush1.bf16.msra.mxu0 %v2369
        %2393 = vmatprep.subr.bf16.mxu0 0
        %2394 = vmatpush1.bf16.msra.mxu0 %v2370
        %2395 = vmatprep.subr.bf16.mxu0 0
        %2396 = vmatpush1.bf16.msra.mxu0 0
        %2397 = vmatprep.subr.bf16.mxu0 0
        %2398 = vmatpush1.bf16.msra.mxu0 0
        %2399 = vmatprep.subr.bf16.mxu0 0
        %2400 = vmatpush1.bf16.msra.mxu0 0
        %2401 = vmatprep.subr.bf16.mxu0 0
        %2402 = vmatpush1.bf16.msra.mxu0 0
        %2403 = vmatprep.subr.bf16.mxu0 0
        %2404 = vmatpush1.bf16.msra.mxu0 0
        %2405 = vmatprep.subr.bf16.mxu0 0
        %2406 = vmatpush1.bf16.msra.mxu0 0
        %2407 = vmatprep.subr.bf16.mxu0 0
        %2408 = vmatpush1.bf16.msra.mxu0 0
        %2409 = vmatprep.subr.bf16.mxu0 0
        %2410 = vmatpush1.bf16.msra.mxu0 0
        %2411 = vmatprep.mubr.bf16.mxu0 0
        %2412 = vmatmul.mubr.bf16.gmra.mrb[0].mxu0 %v2298
        %v2413 = vpop.f32.mrb[0].mxu0
        %v2414 = vadd.f32 0.0, %v2413
        %v2415 = vpop.f32.mrb[0].mxu0
        %v2416 = vpop.f32.mrb[0].mxu0
        %v2417 = vadd.f32 0.0, %v2416
        %v2418 = vpop.f32.mrb[0].mxu0
        %2419 = vmatprep.mubr.bf16.mxu0 0
        %2420 = vmatmul.mubr.bf16.gmra.mrb[0].mxu0 %v2299
        %v2421 = vpop.f32.mrb[0].mxu0
        %v2422 = vadd.f32 0.0, %v2421
        %v2423 = vpop.f32.mrb[0].mxu0
        %v2424 = vpop.f32.mrb[0].mxu0
        %v2425 = vadd.f32 0.0, %v2424
        %v2426 = vpop.f32.mrb[0].mxu0
        %2427 = vmatprep.mubr.bf16.mxu0 0
        %2428 = vmatmul.mubr.bf16.gmra.mrb[0].mxu0 %v2300
        %v2429 = vpop.f32.mrb[0].mxu0
        %v2430 = vadd.f32 0.0, %v2429
        %v2431 = vpop.f32.mrb[0].mxu0
        %v2432 = vpop.f32.mrb[0].mxu0
        %v2433 = vadd.f32 0.0, %v2432
        %v2434 = vpop.f32.mrb[0].mxu0
        %2435 = vmatprep.mubr.bf16.mxu0 0
        %2436 = vmatmul.mubr.bf16.gmra.mrb[0].mxu0 %v2301
        %v2437 = vpop.f32.mrb[0].mxu0
        %v2438 = vadd.f32 0.0, %v2437
        %v2439 = vpop.f32.mrb[0].mxu0
        %v2440 = vpop.f32.mrb[0].mxu0
        %v2441 = vadd.f32 0.0, %v2440
        %v2442 = vpop.f32.mrb[0].mxu0
        %2443 = vmatprep.mubr.bf16.mxu0 0
        %2444 = vmatmul.mubr.bf16.gmra.mrb[0].mxu0 %v2302
        %v2445 = vpop.f32.mrb[0].mxu0
        %v2446 = vadd.f32 0.0, %v2445
        %v2447 = vpop.f32.mrb[0].mxu0
        %v2448 = vpop.f32.mrb[0].mxu0
        %v2449 = vadd.f32 0.0, %v2448
        %v2450 = vpop.f32.mrb[0].mxu0
        %2451 = vmatprep.mubr.bf16.mxu0 0
        %2452 = vmatmul.mubr.bf16.gmra.mrb[0].mxu0 %v2303
        %v2453 = vpop.f32.mrb[0].mxu0
        %v2454 = vadd.f32 0.0, %v2453
        %v2455 = vpop.f32.mrb[0].mxu0
        %v2456 = vpop.f32.mrb[0].mxu0
        %v2457 = vadd.f32 0.0, %v2456
        %v2458 = vpop.f32.mrb[0].mxu0
        %2459 = vmatprep.mubr.bf16.mxu0 0
        %2460 = vmatmul.mubr.bf16.gmra.mrb[0].mxu0 %v2304
        %v2461 = vpop.f32.mrb[0].mxu0
        %v2462 = vadd.f32 0.0, %v2461
        %v2463 = vpop.f32.mrb[0].mxu0
        %v2464 = vpop.f32.mrb[0].mxu0
        %v2465 = vadd.f32 0.0, %v2464
        %v2466 = vpop.f32.mrb[0].mxu0
        %2467 = vmatprep.mubr.bf16.mxu0 0
        %2468 = vmatmul.mubr.bf16.gmra.mrb[0].mxu0 %v2305
        %v2469 = vpop.f32.mrb[0].mxu0
        %v2470 = vadd.f32 0.0, %v2469
        %v2471 = vpop.f32.mrb[0].mxu0
        %v2472 = vpop.f32.mrb[0].mxu0
        %v2473 = vadd.f32 0.0, %v2472
        %v2474 = vpop.f32.mrb[0].mxu0
        %2475 = vmatprep.mubr.bf16.mxu0 0
        %2476 = vmatmul.mubr.bf16.gmra.mrb[0].mxu0 %v2306
        %v2477 = vpop.f32.mrb[0].mxu0
        %v2478 = vadd.f32 0.0, %v2477
        %v2479 = vpop.f32.mrb[0].mxu0
        %v2480 = vpop.f32.mrb[0].mxu0
        %v2481 = vadd.f32 0.0, %v2480
        %v2482 = vpop.f32.mrb[0].mxu0
        %2483 = vmatprep.mubr.bf16.mxu0 0
        %2484 = vmatmul.mubr.bf16.gmra.mrb[0].mxu0 %v2307
        %v2485 = vpop.f32.mrb[0].mxu0
        %v2486 = vadd.f32 0.0, %v2485
        %v2487 = vpop.f32.mrb[0].mxu0
        %v2488 = vpop.f32.mrb[0].mxu0
        %v2489 = vadd.f32 0.0, %v2488
        %v2490 = vpop.f32.mrb[0].mxu0
        %2491 = vmatprep.mubr.bf16.mxu0 0
        %2492 = vmatmul.mubr.bf16.gmra.mrb[0].mxu0 %v2308
        %v2493 = vpop.f32.mrb[0].mxu0
        %v2494 = vadd.f32 0.0, %v2493
        %v2495 = vpop.f32.mrb[0].mxu0
        %v2496 = vpop.f32.mrb[0].mxu0
        %v2497 = vadd.f32 0.0, %v2496
        %v2498 = vpop.f32.mrb[0].mxu0
        %2499 = vmatprep.mubr.bf16.mxu0 0
        %2500 = vmatmul.mubr.bf16.gmra.mrb[0].mxu0 %v2309
        %v2501 = vpop.f32.mrb[0].mxu0
        %v2502 = vadd.f32 0.0, %v2501
        %v2503 = vpop.f32.mrb[0].mxu0
        %v2504 = vpop.f32.mrb[0].mxu0
        %v2505 = vadd.f32 0.0, %v2504
        %v2506 = vpop.f32.mrb[0].mxu0
        %2507 = vmatprep.mubr.bf16.mxu0 0
        %2508 = vmatmul.mubr.bf16.gmra.mrb[0].mxu0 %v2310
        %v2509 = vpop.f32.mrb[0].mxu0
        %v2510 = vadd.f32 0.0, %v2509
        %v2511 = vpop.f32.mrb[0].mxu0
        %v2512 = vpop.f32.mrb[0].mxu0
        %v2513 = vadd.f32 0.0, %v2512
        %v2514 = vpop.f32.mrb[0].mxu0
        %2515 = vmatprep.mubr.bf16.mxu0 0
        %2516 = vmatmul.mubr.bf16.gmra.mrb[0].mxu0 %v2311
        %v2517 = vpop.f32.mrb[0].mxu0
        %v2518 = vadd.f32 0.0, %v2517
        %v2519 = vpop.f32.mrb[0].mxu0
        %v2520 = vpop.f32.mrb[0].mxu0
        %v2521 = vadd.f32 0.0, %v2520
        %v2522 = vpop.f32.mrb[0].mxu0
        %2523 = vmatprep.mubr.bf16.mxu0 0
        %2524 = vmatmul.mubr.bf16.gmra.mrb[0].mxu0 %v2312
        %v2525 = vpop.f32.mrb[0].mxu0
        %v2526 = vadd.f32 0.0, %v2525
        %v2527 = vpop.f32.mrb[0].mxu0
        %v2528 = vpop.f32.mrb[0].mxu0
        %v2529 = vadd.f32 0.0, %v2528
        %v2530 = vpop.f32.mrb[0].mxu0
        %2531 = vmatprep.mubr.bf16.mxu0 0
        %2532 = vmatmul.mubr.bf16.gmra.mrb[0].mxu0 %v2313
        %v2533 = vpop.f32.mrb[0].mxu0
        %v2534 = vadd.f32 0.0, %v2533
        %v2535 = vpop.f32.mrb[0].mxu0
        %v2536 = vpop.f32.mrb[0].mxu0
        %v2537 = vadd.f32 0.0, %v2536
        %v2538 = vpop.f32.mrb[0].mxu0
        %2539 = vdwg.mxu0
        %v2540 = vadd.f32 %v2234, %v2414
        %v2541 = vadd.f32 %v2235, %v2417
        %v2542 = vadd.f32 %v2236, %v2422
        %v2543 = vadd.f32 %v2237, %v2425
        %v2544 = vadd.f32 %v2238, %v2430
        %v2545 = vadd.f32 %v2239, %v2433
        %v2546 = vadd.f32 %v2240, %v2438
        %v2547 = vadd.f32 %v2241, %v2441
        %v2548 = vadd.f32 %v2242, %v2446
        %v2549 = vadd.f32 %v2243, %v2449
        %v2550 = vadd.f32 %v2244, %v2454
        %v2551 = vadd.f32 %v2245, %v2457
        %v2552 = vadd.f32 %v2246, %v2462
        %v2553 = vadd.f32 %v2247, %v2465
        %v2554 = vadd.f32 %v2248, %v2470
        %v2555 = vadd.f32 %v2249, %v2473
        %v2556 = vadd.f32 %v2250, %v2478
        %v2557 = vadd.f32 %v2251, %v2481
        %v2558 = vadd.f32 %v2252, %v2486
        %v2559 = vadd.f32 %v2253, %v2489
        %v2560 = vadd.f32 %v2254, %v2494
        %v2561 = vadd.f32 %v2255, %v2497
        %v2562 = vadd.f32 %v2256, %v2502
        %v2563 = vadd.f32 %v2257, %v2505
        %v2564 = vadd.f32 %v2258, %v2510
        %v2565 = vadd.f32 %v2259, %v2513
        %v2566 = vadd.f32 %v2260, %v2518
        %v2567 = vadd.f32 %v2261, %v2521
        %v2568 = vadd.f32 %v2262, %v2526
        %v2569 = vadd.f32 %v2263, %v2529
        %v2570 = vadd.f32 %v2264, %v2534
        %v2571 = vadd.f32 %v2265, %v2537
        %v2572 = vld [vmem:[#allocation2 + $0x12] sm:$0xff]
        %v2573 = vld [vmem:[#allocation2 + $0x1a] sm:$0xff]
        %v2574 = vld [vmem:[#allocation2 + $0x22] sm:$0xff]
        %v2575 = vld [vmem:[#allocation2 + $0x2a] sm:$0xff]
        %v2576 = vld [vmem:[#allocation2 + $0x32] sm:$0xff]
        %v2577 = vld [vmem:[#allocation2 + $0x3a] sm:$0xff]
        %v2578 = vld [vmem:[#allocation2 + $0x42] sm:$0xff]
        %v2579 = vld [vmem:[#allocation2 + $0x4a] sm:$0xff]
        %v2580 = vld [vmem:[#allocation2 + $0x52] sm:$0xff]
        %v2581 = vld [vmem:[#allocation2 + $0x5a] sm:$0xff]
        %v2582 = vld [vmem:[#allocation2 + $0x62] sm:$0xff]
        %v2583 = vld [vmem:[#allocation2 + $0x6a] sm:$0xff]
        %v2584 = vld [vmem:[#allocation2 + $0x72] sm:$0xff]
        %v2585 = vld [vmem:[#allocation2 + $0x7a] sm:$0xff]
        %v2586 = vld [vmem:[#allocation2 + $0x82] sm:$0xff]
        %v2587 = vld [vmem:[#allocation2 + $0x8a] sm:$0xff]
        %v2588 = vld [vmem:[#allocation2 + $0x92] sm:$0xff]
        %v2589 = vld [vmem:[#allocation2 + $0x9a] sm:$0xff]
        %v2590 = vld [vmem:[#allocation2 + $0xa2] sm:$0xff]
        %v2591 = vld [vmem:[#allocation2 + $0xaa] sm:$0xff]
        %v2592 = vld [vmem:[#allocation2 + $0xb2] sm:$0xff]
        %v2593 = vld [vmem:[#allocation2 + $0xba] sm:$0xff]
        %v2594 = vld [vmem:[#allocation2 + $0xc2] sm:$0xff]
        %v2595 = vld [vmem:[#allocation2 + $0xca] sm:$0xff]
        %v2596 = vld [vmem:[#allocation2 + $0xd2] sm:$0xff]
        %v2597 = vld [vmem:[#allocation2 + $0xda] sm:$0xff]
        %v2598 = vld [vmem:[#allocation2 + $0xe2] sm:$0xff]
        %v2599 = vld [vmem:[#allocation2 + $0xea] sm:$0xff]
        %v2600 = vld [vmem:[#allocation2 + $0xf2] sm:$0xff]
        %v2601 = vld [vmem:[#allocation2 + $0xfa] sm:$0xff]
        %v2602 = vld [vmem:[#allocation2 + $0x102] sm:$0xff]
        %v2603 = vld [vmem:[#allocation2 + $0x10a] sm:$0xff]
        %v2604 = vsel %vm1590, %v2572, 0.0
        %v2605 = vsel %vm1591, %v2573, 0.0
        %v2606 = vsel %vm1592, %v2574, 0.0
        %v2607 = vsel %vm1593, %v2575, 0.0
        %v2608 = vsel %vm1594, %v2576, 0.0
        %v2609 = vsel %vm1595, %v2577, 0.0
        %v2610 = vsel %vm1596, %v2578, 0.0
        %v2611 = vsel %vm1597, %v2579, 0.0
        %v2612 = vsel %vm1598, %v2580, 0.0
        %v2613 = vsel %vm1599, %v2581, 0.0
        %v2614 = vsel %vm1600, %v2582, 0.0
        %v2615 = vsel %vm1601, %v2583, 0.0
        %v2616 = vsel %vm1602, %v2584, 0.0
        %v2617 = vsel %vm1603, %v2585, 0.0
        %v2618 = vsel %vm1604, %v2586, 0.0
        %v2619 = vsel %vm1605, %v2587, 0.0
        %v2620 = vsel %vm1606, %v2588, 0.0
        %v2621 = vsel %vm1607, %v2589, 0.0
        %v2622 = vsel %vm1608, %v2590, 0.0
        %v2623 = vsel %vm1609, %v2591, 0.0
        %v2624 = vsel %vm1610, %v2592, 0.0
        %v2625 = vsel %vm1611, %v2593, 0.0
        %v2626 = vsel %vm1612, %v2594, 0.0
        %v2627 = vsel %vm1613, %v2595, 0.0
        %v2628 = vsel %vm1614, %v2596, 0.0
        %v2629 = vsel %vm1615, %v2597, 0.0
        %v2630 = vsel %vm1616, %v2598, 0.0
        %v2631 = vsel %vm1617, %v2599, 0.0
        %v2632 = vsel %vm1618, %v2600, 0.0
        %v2633 = vsel %vm1619, %v2601, 0.0
        %v2634 = vsel %vm1620, %v2602, 0.0
        %v2635 = vsel %vm1621, %v2603, 0.0
        %v2636 = vpack.c.bf16 %v2605, %v2604
        %v2637 = vpack.c.bf16 %v2607, %v2606
        %v2638 = vpack.c.bf16 %v2609, %v2608
        %v2639 = vpack.c.bf16 %v2611, %v2610
        %v2640 = vpack.c.bf16 %v2613, %v2612
        %v2641 = vpack.c.bf16 %v2615, %v2614
        %v2642 = vpack.c.bf16 %v2617, %v2616
        %v2643 = vpack.c.bf16 %v2619, %v2618
        %v2644 = vpack.c.bf16 %v2621, %v2620
        %v2645 = vpack.c.bf16 %v2623, %v2622
        %v2646 = vpack.c.bf16 %v2625, %v2624
        %v2647 = vpack.c.bf16 %v2627, %v2626
        %v2648 = vpack.c.bf16 %v2629, %v2628
        %v2649 = vpack.c.bf16 %v2631, %v2630
        %v2650 = vpack.c.bf16 %v2633, %v2632
        %v2651 = vpack.c.bf16 %v2635, %v2634
        %s2652 = scalar_lea.vmem %s4, 320
        %v2653 = vld [vmem:[%s2652] sm:$0xf]
        %v2654 = vld [vmem:[%s2652 + $0x4] sm:$0xf]
        %v2655 = vld [vmem:[%s2652 + $0x8] sm:$0xf]
        %v2656 = vld [vmem:[%s2652 + $0xc] sm:$0xf]
        %v2657 = vld [vmem:[%s2652 + $0x10] sm:$0xf]
        %v2658 = vld [vmem:[%s2652 + $0x14] sm:$0xf]
        %v2659 = vld [vmem:[%s2652 + $0x18] sm:$0xf]
        %v2660 = vld [vmem:[%s2652 + $0x1c] sm:$0xf]
        %v2661 = vld [vmem:[%s2652 + $0x20] sm:$0xf]
        %v2662 = vld [vmem:[%s2652 + $0x24] sm:$0xf]
        %v2663 = vld [vmem:[%s2652 + $0x28] sm:$0xf]
        %v2664 = vld [vmem:[%s2652 + $0x2c] sm:$0xf]
        %v2665 = vld [vmem:[%s2652 + $0x30] sm:$0xf]
        %v2666 = vld [vmem:[%s2652 + $0x34] sm:$0xf]
        %v2667 = vld [vmem:[%s2652 + $0x38] sm:$0xf]
        %v2668 = vld [vmem:[%s2652 + $0x3c] sm:$0xf]
        %v2685 = vunpack.c.l.b16 %v2653
        %v2686 = vunpack.c.l.b16 %v2654
        %v2687 = vunpack.c.l.b16 %v2655
        %v2688 = vunpack.c.l.b16 %v2656
        %v2689 = vunpack.c.l.b16 %v2657
        %v2690 = vunpack.c.l.b16 %v2658
        %v2691 = vunpack.c.l.b16 %v2659
        %v2692 = vunpack.c.l.b16 %v2660
        %v2693 = vunpack.c.l.b16 %v2661
        %v2694 = vunpack.c.l.b16 %v2662
        %v2695 = vunpack.c.l.b16 %v2663
        %v2696 = vunpack.c.l.b16 %v2664
        %v2697 = vunpack.c.l.b16 %v2665
        %v2698 = vunpack.c.l.b16 %v2666
        %v2699 = vunpack.c.l.b16 %v2667
        %v2700 = vunpack.c.l.b16 %v2668
        %v2701 = vpack.c.b16 %v2686, %v2685
        %v2702 = vpack.c.b16 %v2688, %v2687
        %v2703 = vpack.c.b16 %v2690, %v2689
        %v2704 = vpack.c.b16 %v2692, %v2691
        %v2705 = vpack.c.b16 %v2694, %v2693
        %v2706 = vpack.c.b16 %v2696, %v2695
        %v2707 = vpack.c.b16 %v2698, %v2697
        %v2708 = vpack.c.b16 %v2700, %v2699
        %2717 = vmatprep.subr.bf16.mxu0 0
        %2718 = vmatpush1.bf16.msra.mxu0 %v2701
        %2719 = vmatprep.subr.bf16.mxu0 0
        %2720 = vmatpush1.bf16.msra.mxu0 %v2702
        %2721 = vmatprep.subr.bf16.mxu0 0
        %2722 = vmatpush1.bf16.msra.mxu0 %v2703
        %2723 = vmatprep.subr.bf16.mxu0 0
        %2724 = vmatpush1.bf16.msra.mxu0 %v2704
        %2725 = vmatprep.subr.bf16.mxu0 0
        %2726 = vmatpush1.bf16.msra.mxu0 %v2705
        %2727 = vmatprep.subr.bf16.mxu0 0
        %2728 = vmatpush1.bf16.msra.mxu0 %v2706
        %2729 = vmatprep.subr.bf16.mxu0 0
        %2730 = vmatpush1.bf16.msra.mxu0 %v2707
        %2731 = vmatprep.subr.bf16.mxu0 0
        %2732 = vmatpush1.bf16.msra.mxu0 %v2708
        %2733 = vmatprep.subr.bf16.mxu0 0
        %2734 = vmatpush1.bf16.msra.mxu0 0
        %2735 = vmatprep.subr.bf16.mxu0 0
        %2736 = vmatpush1.bf16.msra.mxu0 0
        %2737 = vmatprep.subr.bf16.mxu0 0
        %2738 = vmatpush1.bf16.msra.mxu0 0
        %2739 = vmatprep.subr.bf16.mxu0 0
        %2740 = vmatpush1.bf16.msra.mxu0 0
        %2741 = vmatprep.subr.bf16.mxu0 0
        %2742 = vmatpush1.bf16.msra.mxu0 0
        %2743 = vmatprep.subr.bf16.mxu0 0
        %2744 = vmatpush1.bf16.msra.mxu0 0
        %2745 = vmatprep.subr.bf16.mxu0 0
        %2746 = vmatpush1.bf16.msra.mxu0 0
        %2747 = vmatprep.subr.bf16.mxu0 0
        %2748 = vmatpush1.bf16.msra.mxu0 0
        %2749 = vmatprep.mubr.bf16.mxu0 0
        %2750 = vmatmul.mubr.bf16.gmra.mrb[0].mxu0 %v2636
        %v2751 = vpop.f32.mrb[0].mxu0
        %v2752 = vadd.f32 0.0, %v2751
        %v2753 = vpop.f32.mrb[0].mxu0
        %v2754 = vpop.f32.mrb[0].mxu0
        %v2755 = vadd.f32 0.0, %v2754
        %v2756 = vpop.f32.mrb[0].mxu0
        %2757 = vmatprep.mubr.bf16.mxu0 0
        %2758 = vmatmul.mubr.bf16.gmra.mrb[0].mxu0 %v2637
        %v2759 = vpop.f32.mrb[0].mxu0
        %v2760 = vadd.f32 0.0, %v2759
        %v2761 = vpop.f32.mrb[0].mxu0
        %v2762 = vpop.f32.mrb[0].mxu0
        %v2763 = vadd.f32 0.0, %v2762
        %v2764 = vpop.f32.mrb[0].mxu0
        %2765 = vmatprep.mubr.bf16.mxu0 0
        %2766 = vmatmul.mubr.bf16.gmra.mrb[0].mxu0 %v2638
        %v2767 = vpop.f32.mrb[0].mxu0
        %v2768 = vadd.f32 0.0, %v2767
        %v2769 = vpop.f32.mrb[0].mxu0
        %v2770 = vpop.f32.mrb[0].mxu0
        %v2771 = vadd.f32 0.0, %v2770
        %v2772 = vpop.f32.mrb[0].mxu0
        %2773 = vmatprep.mubr.bf16.mxu0 0
        %2774 = vmatmul.mubr.bf16.gmra.mrb[0].mxu0 %v2639
        %v2775 = vpop.f32.mrb[0].mxu0
        %v2776 = vadd.f32 0.0, %v2775
        %v2777 = vpop.f32.mrb[0].mxu0
        %v2778 = vpop.f32.mrb[0].mxu0
        %v2779 = vadd.f32 0.0, %v2778
        %v2780 = vpop.f32.mrb[0].mxu0
        %2781 = vmatprep.mubr.bf16.mxu0 0
        %2782 = vmatmul.mubr.bf16.gmra.mrb[0].mxu0 %v2640
        %v2783 = vpop.f32.mrb[0].mxu0
        %v2784 = vadd.f32 0.0, %v2783
        %v2785 = vpop.f32.mrb[0].mxu0
        %v2786 = vpop.f32.mrb[0].mxu0
        %v2787 = vadd.f32 0.0, %v2786
        %v2788 = vpop.f32.mrb[0].mxu0
        %2789 = vmatprep.mubr.bf16.mxu0 0
        %2790 = vmatmul.mubr.bf16.gmra.mrb[0].mxu0 %v2641
        %v2791 = vpop.f32.mrb[0].mxu0
        %v2792 = vadd.f32 0.0, %v2791
        %v2793 = vpop.f32.mrb[0].mxu0
        %v2794 = vpop.f32.mrb[0].mxu0
        %v2795 = vadd.f32 0.0, %v2794
        %v2796 = vpop.f32.mrb[0].mxu0
        %2797 = vmatprep.mubr.bf16.mxu0 0
        %2798 = vmatmul.mubr.bf16.gmra.mrb[0].mxu0 %v2642
        %v2799 = vpop.f32.mrb[0].mxu0
        %v2800 = vadd.f32 0.0, %v2799
        %v2801 = vpop.f32.mrb[0].mxu0
        %v2802 = vpop.f32.mrb[0].mxu0
        %v2803 = vadd.f32 0.0, %v2802
        %v2804 = vpop.f32.mrb[0].mxu0
        %2805 = vmatprep.mubr.bf16.mxu0 0
        %2806 = vmatmul.mubr.bf16.gmra.mrb[0].mxu0 %v2643
        %v2807 = vpop.f32.mrb[0].mxu0
        %v2808 = vadd.f32 0.0, %v2807
        %v2809 = vpop.f32.mrb[0].mxu0
        %v2810 = vpop.f32.mrb[0].mxu0
        %v2811 = vadd.f32 0.0, %v2810
        %v2812 = vpop.f32.mrb[0].mxu0
        %2813 = vmatprep.mubr.bf16.mxu0 0
        %2814 = vmatmul.mubr.bf16.gmra.mrb[0].mxu0 %v2644
        %v2815 = vpop.f32.mrb[0].mxu0
        %v2816 = vadd.f32 0.0, %v2815
        %v2817 = vpop.f32.mrb[0].mxu0
        %v2818 = vpop.f32.mrb[0].mxu0
        %v2819 = vadd.f32 0.0, %v2818
        %v2820 = vpop.f32.mrb[0].mxu0
        %2821 = vmatprep.mubr.bf16.mxu0 0
        %2822 = vmatmul.mubr.bf16.gmra.mrb[0].mxu0 %v2645
        %v2823 = vpop.f32.mrb[0].mxu0
        %v2824 = vadd.f32 0.0, %v2823
        %v2825 = vpop.f32.mrb[0].mxu0
        %v2826 = vpop.f32.mrb[0].mxu0
        %v2827 = vadd.f32 0.0, %v2826
        %v2828 = vpop.f32.mrb[0].mxu0
        %2829 = vmatprep.mubr.bf16.mxu0 0
        %2830 = vmatmul.mubr.bf16.gmra.mrb[0].mxu0 %v2646
        %v2831 = vpop.f32.mrb[0].mxu0
        %v2832 = vadd.f32 0.0, %v2831
        %v2833 = vpop.f32.mrb[0].mxu0
        %v2834 = vpop.f32.mrb[0].mxu0
        %v2835 = vadd.f32 0.0, %v2834
        %v2836 = vpop.f32.mrb[0].mxu0
        %2837 = vmatprep.mubr.bf16.mxu0 0
        %2838 = vmatmul.mubr.bf16.gmra.mrb[0].mxu0 %v2647
        %v2839 = vpop.f32.mrb[0].mxu0
        %v2840 = vadd.f32 0.0, %v2839
        %v2841 = vpop.f32.mrb[0].mxu0
        %v2842 = vpop.f32.mrb[0].mxu0
        %v2843 = vadd.f32 0.0, %v2842
        %v2844 = vpop.f32.mrb[0].mxu0
        %2845 = vmatprep.mubr.bf16.mxu0 0
        %2846 = vmatmul.mubr.bf16.gmra.mrb[0].mxu0 %v2648
        %v2847 = vpop.f32.mrb[0].mxu0
        %v2848 = vadd.f32 0.0, %v2847
        %v2849 = vpop.f32.mrb[0].mxu0
        %v2850 = vpop.f32.mrb[0].mxu0
        %v2851 = vadd.f32 0.0, %v2850
        %v2852 = vpop.f32.mrb[0].mxu0
        %2853 = vmatprep.mubr.bf16.mxu0 0
        %2854 = vmatmul.mubr.bf16.gmra.mrb[0].mxu0 %v2649
        %v2855 = vpop.f32.mrb[0].mxu0
        %v2856 = vadd.f32 0.0, %v2855
        %v2857 = vpop.f32.mrb[0].mxu0
        %v2858 = vpop.f32.mrb[0].mxu0
        %v2859 = vadd.f32 0.0, %v2858
        %v2860 = vpop.f32.mrb[0].mxu0
        %2861 = vmatprep.mubr.bf16.mxu0 0
        %2862 = vmatmul.mubr.bf16.gmra.mrb[0].mxu0 %v2650
        %v2863 = vpop.f32.mrb[0].mxu0
        %v2864 = vadd.f32 0.0, %v2863
        %v2865 = vpop.f32.mrb[0].mxu0
        %v2866 = vpop.f32.mrb[0].mxu0
        %v2867 = vadd.f32 0.0, %v2866
        %v2868 = vpop.f32.mrb[0].mxu0
        %2869 = vmatprep.mubr.bf16.mxu0 0
        %2870 = vmatmul.mubr.bf16.gmra.mrb[0].mxu0 %v2651
        %v2871 = vpop.f32.mrb[0].mxu0
        %v2872 = vadd.f32 0.0, %v2871
        %v2873 = vpop.f32.mrb[0].mxu0
        %v2874 = vpop.f32.mrb[0].mxu0
        %v2875 = vadd.f32 0.0, %v2874
        %v2876 = vpop.f32.mrb[0].mxu0
        %2877 = vdwg.mxu0
        %v2878 = vadd.f32 %v2540, %v2752
        %v2879 = vadd.f32 %v2541, %v2755
        %v2880 = vadd.f32 %v2542, %v2760
        %v2881 = vadd.f32 %v2543, %v2763
        %v2882 = vadd.f32 %v2544, %v2768
        %v2883 = vadd.f32 %v2545, %v2771
        %v2884 = vadd.f32 %v2546, %v2776
        %v2885 = vadd.f32 %v2547, %v2779
        %v2886 = vadd.f32 %v2548, %v2784
        %v2887 = vadd.f32 %v2549, %v2787
        %v2888 = vadd.f32 %v2550, %v2792
        %v2889 = vadd.f32 %v2551, %v2795
        %v2890 = vadd.f32 %v2552, %v2800
        %v2891 = vadd.f32 %v2553, %v2803
        %v2892 = vadd.f32 %v2554, %v2808
        %v2893 = vadd.f32 %v2555, %v2811
        %v2894 = vadd.f32 %v2556, %v2816
        %v2895 = vadd.f32 %v2557, %v2819
        %v2896 = vadd.f32 %v2558, %v2824
        %v2897 = vadd.f32 %v2559, %v2827
        %v2898 = vadd.f32 %v2560, %v2832
        %v2899 = vadd.f32 %v2561, %v2835
        %v2900 = vadd.f32 %v2562, %v2840
        %v2901 = vadd.f32 %v2563, %v2843
        %v2902 = vadd.f32 %v2564, %v2848
        %v2903 = vadd.f32 %v2565, %v2851
        %v2904 = vadd.f32 %v2566, %v2856
        %v2905 = vadd.f32 %v2567, %v2859
        %v2906 = vadd.f32 %v2568, %v2864
        %v2907 = vadd.f32 %v2569, %v2867
        %v2908 = vadd.f32 %v2570, %v2872
        %v2909 = vadd.f32 %v2571, %v2875
        %v2910 = vld [vmem:[#allocation2 + $0x20] sm:$0xff]
        %v2911 = vld [vmem:[#allocation2 + $0x28] sm:$0xff]
        %v2912 = vld [vmem:[#allocation2 + $0x30] sm:$0xff]
        %v2913 = vld [vmem:[#allocation2 + $0x38] sm:$0xff]
        %v2914 = vld [vmem:[#allocation2 + $0x40] sm:$0xff]
        %v2915 = vld [vmem:[#allocation2 + $0x48] sm:$0xff]
        %v2916 = vld [vmem:[#allocation2 + $0x50] sm:$0xff]
        %v2917 = vld [vmem:[#allocation2 + $0x58] sm:$0xff]
        %v2918 = vld [vmem:[#allocation2 + $0x60] sm:$0xff]
        %v2919 = vld [vmem:[#allocation2 + $0x68] sm:$0xff]
        %v2920 = vld [vmem:[#allocation2 + $0x70] sm:$0xff]
        %v2921 = vld [vmem:[#allocation2 + $0x78] sm:$0xff]
        %v2922 = vld [vmem:[#allocation2 + $0x80] sm:$0xff]
        %v2923 = vld [vmem:[#allocation2 + $0x88] sm:$0xff]
        %v2924 = vld [vmem:[#allocation2 + $0x90] sm:$0xff]
        %v2925 = vld [vmem:[#allocation2 + $0x98] sm:$0xff]
        %v2926 = vld [vmem:[#allocation2 + $0xa0] sm:$0xff]
        %v2927 = vld [vmem:[#allocation2 + $0xa8] sm:$0xff]
        %v2928 = vld [vmem:[#allocation2 + $0xb0] sm:$0xff]
        %v2929 = vld [vmem:[#allocation2 + $0xb8] sm:$0xff]
        %v2930 = vld [vmem:[#allocation2 + $0xc0] sm:$0xff]
        %v2931 = vld [vmem:[#allocation2 + $0xc8] sm:$0xff]
        %v2932 = vld [vmem:[#allocation2 + $0xd0] sm:$0xff]
        %v2933 = vld [vmem:[#allocation2 + $0xd8] sm:$0xff]
        %v2934 = vld [vmem:[#allocation2 + $0xe0] sm:$0xff]
        %v2935 = vld [vmem:[#allocation2 + $0xe8] sm:$0xff]
        %v2936 = vld [vmem:[#allocation2 + $0xf0] sm:$0xff]
        %v2937 = vld [vmem:[#allocation2 + $0xf8] sm:$0xff]
        %v2938 = vld [vmem:[#allocation2 + $0x100] sm:$0xff]
        %v2939 = vld [vmem:[#allocation2 + $0x108] sm:$0xff]
        %v2940 = vld [vmem:[#allocation2 + $0x110] sm:$0xff]
        %v2941 = vld [vmem:[#allocation2 + $0x118] sm:$0xff]
        %v2942 = vsel %vm979, %v2910, 0.0
        %v2943 = vsel %vm980, %v2911, 0.0
        %v2944 = vsel %vm981, %v2912, 0.0
        %v2945 = vsel %vm982, %v2913, 0.0
        %v2946 = vsel %vm983, %v2914, 0.0
        %v2947 = vsel %vm984, %v2915, 0.0
        %v2948 = vsel %vm985, %v2916, 0.0
        %v2949 = vsel %vm986, %v2917, 0.0
        %v2950 = vsel %vm987, %v2918, 0.0
        %v2951 = vsel %vm988, %v2919, 0.0
        %v2952 = vsel %vm989, %v2920, 0.0
        %v2953 = vsel %vm990, %v2921, 0.0
        %v2954 = vsel %vm991, %v2922, 0.0
        %v2955 = vsel %vm992, %v2923, 0.0
        %v2956 = vsel %vm993, %v2924, 0.0
        %v2957 = vsel %vm994, %v2925, 0.0
        %v2958 = vsel %vm995, %v2926, 0.0
        %v2959 = vsel %vm996, %v2927, 0.0
        %v2960 = vsel %vm997, %v2928, 0.0
        %v2961 = vsel %vm998, %v2929, 0.0
        %v2962 = vsel %vm999, %v2930, 0.0
        %v2963 = vsel %vm1000, %v2931, 0.0
        %v2964 = vsel %vm1001, %v2932, 0.0
        %v2965 = vsel %vm1002, %v2933, 0.0
        %v2966 = vsel %vm1003, %v2934, 0.0
        %v2967 = vsel %vm1004, %v2935, 0.0
        %v2968 = vsel %vm1005, %v2936, 0.0
        %v2969 = vsel %vm1006, %v2937, 0.0
        %v2970 = vsel %vm1007, %v2938, 0.0
        %v2971 = vsel %vm1008, %v2939, 0.0
        %v2972 = vsel %vm1009, %v2940, 0.0
        %v2973 = vsel %vm1010, %v2941, 0.0
        %v2974 = vpack.c.bf16 %v2943, %v2942
        %v2975 = vpack.c.bf16 %v2945, %v2944
        %v2976 = vpack.c.bf16 %v2947, %v2946
        %v2977 = vpack.c.bf16 %v2949, %v2948
        %v2978 = vpack.c.bf16 %v2951, %v2950
        %v2979 = vpack.c.bf16 %v2953, %v2952
        %v2980 = vpack.c.bf16 %v2955, %v2954
        %v2981 = vpack.c.bf16 %v2957, %v2956
        %v2982 = vpack.c.bf16 %v2959, %v2958
        %v2983 = vpack.c.bf16 %v2961, %v2960
        %v2984 = vpack.c.bf16 %v2963, %v2962
        %v2985 = vpack.c.bf16 %v2965, %v2964
        %v2986 = vpack.c.bf16 %v2967, %v2966
        %v2987 = vpack.c.bf16 %v2969, %v2968
        %v2988 = vpack.c.bf16 %v2971, %v2970
        %v2989 = vpack.c.bf16 %v2973, %v2972
        %s2990 = scalar_lea.vmem %s4, 384
        %v2991 = vld [vmem:[%s2990] sm:$0xf]
        %v2992 = vld [vmem:[%s2990 + $0x4] sm:$0xf]
        %v2993 = vld [vmem:[%s2990 + $0x8] sm:$0xf]
        %v2994 = vld [vmem:[%s2990 + $0xc] sm:$0xf]
        %v2995 = vld [vmem:[%s2990 + $0x10] sm:$0xf]
        %v2996 = vld [vmem:[%s2990 + $0x14] sm:$0xf]
        %v2997 = vld [vmem:[%s2990 + $0x18] sm:$0xf]
        %v2998 = vld [vmem:[%s2990 + $0x1c] sm:$0xf]
        %v2999 = vld [vmem:[%s2990 + $0x20] sm:$0xf]
        %v3000 = vld [vmem:[%s2990 + $0x24] sm:$0xf]
        %v3001 = vld [vmem:[%s2990 + $0x28] sm:$0xf]
        %v3002 = vld [vmem:[%s2990 + $0x2c] sm:$0xf]
        %v3003 = vld [vmem:[%s2990 + $0x30] sm:$0xf]
        %v3004 = vld [vmem:[%s2990 + $0x34] sm:$0xf]
        %v3005 = vld [vmem:[%s2990 + $0x38] sm:$0xf]
        %v3006 = vld [vmem:[%s2990 + $0x3c] sm:$0xf]
        %v3023 = vunpack.c.l.b16 %v2991
        %v3024 = vunpack.c.l.b16 %v2992
        %v3025 = vunpack.c.l.b16 %v2993
        %v3026 = vunpack.c.l.b16 %v2994
        %v3027 = vunpack.c.l.b16 %v2995
        %v3028 = vunpack.c.l.b16 %v2996
        %v3029 = vunpack.c.l.b16 %v2997
        %v3030 = vunpack.c.l.b16 %v2998
        %v3031 = vunpack.c.l.b16 %v2999
        %v3032 = vunpack.c.l.b16 %v3000
        %v3033 = vunpack.c.l.b16 %v3001
        %v3034 = vunpack.c.l.b16 %v3002
        %v3035 = vunpack.c.l.b16 %v3003
        %v3036 = vunpack.c.l.b16 %v3004
        %v3037 = vunpack.c.l.b16 %v3005
        %v3038 = vunpack.c.l.b16 %v3006
        %v3039 = vpack.c.b16 %v3024, %v3023
        %v3040 = vpack.c.b16 %v3026, %v3025
        %v3041 = vpack.c.b16 %v3028, %v3027
        %v3042 = vpack.c.b16 %v3030, %v3029
        %v3043 = vpack.c.b16 %v3032, %v3031
        %v3044 = vpack.c.b16 %v3034, %v3033
        %v3045 = vpack.c.b16 %v3036, %v3035
        %v3046 = vpack.c.b16 %v3038, %v3037
        %3055 = vmatprep.subr.bf16.mxu0 0
        %3056 = vmatpush1.bf16.msra.mxu0 %v3039
        %3057 = vmatprep.subr.bf16.mxu0 0
        %3058 = vmatpush1.bf16.msra.mxu0 %v3040
        %3059 = vmatprep.subr.bf16.mxu0 0
        %3060 = vmatpush1.bf16.msra.mxu0 %v3041
        %3061 = vmatprep.subr.bf16.mxu0 0
        %3062 = vmatpush1.bf16.msra.mxu0 %v3042
        %3063 = vmatprep.subr.bf16.mxu0 0
        %3064 = vmatpush1.bf16.msra.mxu0 %v3043
        %3065 = vmatprep.subr.bf16.mxu0 0
        %3066 = vmatpush1.bf16.msra.mxu0 %v3044
        %3067 = vmatprep.subr.bf16.mxu0 0
        %3068 = vmatpush1.bf16.msra.mxu0 %v3045
        %3069 = vmatprep.subr.bf16.mxu0 0
        %3070 = vmatpush1.bf16.msra.mxu0 %v3046
        %3071 = vmatprep.subr.bf16.mxu0 0
        %3072 = vmatpush1.bf16.msra.mxu0 0
        %3073 = vmatprep.subr.bf16.mxu0 0
        %3074 = vmatpush1.bf16.msra.mxu0 0
        %3075 = vmatprep.subr.bf16.mxu0 0
        %3076 = vmatpush1.bf16.msra.mxu0 0
        %3077 = vmatprep.subr.bf16.mxu0 0
        %3078 = vmatpush1.bf16.msra.mxu0 0
        %3079 = vmatprep.subr.bf16.mxu0 0
        %3080 = vmatpush1.bf16.msra.mxu0 0
        %3081 = vmatprep.subr.bf16.mxu0 0
        %3082 = vmatpush1.bf16.msra.mxu0 0
        %3083 = vmatprep.subr.bf16.mxu0 0
        %3084 = vmatpush1.bf16.msra.mxu0 0
        %3085 = vmatprep.subr.bf16.mxu0 0
        %3086 = vmatpush1.bf16.msra.mxu0 0
        %3087 = vmatprep.mubr.bf16.mxu0 0
        %3088 = vmatmul.mubr.bf16.gmra.mrb[0].mxu0 %v2974
        %v3089 = vpop.f32.mrb[0].mxu0
        %v3090 = vadd.f32 0.0, %v3089
        %v3091 = vpop.f32.mrb[0].mxu0
        %v3092 = vpop.f32.mrb[0].mxu0
        %v3093 = vadd.f32 0.0, %v3092
        %v3094 = vpop.f32.mrb[0].mxu0
        %3095 = vmatprep.mubr.bf16.mxu0 0
        %3096 = vmatmul.mubr.bf16.gmra.mrb[0].mxu0 %v2975
        %v3097 = vpop.f32.mrb[0].mxu0
        %v3098 = vadd.f32 0.0, %v3097
        %v3099 = vpop.f32.mrb[0].mxu0
        %v3100 = vpop.f32.mrb[0].mxu0
        %v3101 = vadd.f32 0.0, %v3100
        %v3102 = vpop.f32.mrb[0].mxu0
        %3103 = vmatprep.mubr.bf16.mxu0 0
        %3104 = vmatmul.mubr.bf16.gmra.mrb[0].mxu0 %v2976
        %v3105 = vpop.f32.mrb[0].mxu0
        %v3106 = vadd.f32 0.0, %v3105
        %v3107 = vpop.f32.mrb[0].mxu0
        %v3108 = vpop.f32.mrb[0].mxu0
        %v3109 = vadd.f32 0.0, %v3108
        %v3110 = vpop.f32.mrb[0].mxu0
        %3111 = vmatprep.mubr.bf16.mxu0 0
        %3112 = vmatmul.mubr.bf16.gmra.mrb[0].mxu0 %v2977
        %v3113 = vpop.f32.mrb[0].mxu0
        %v3114 = vadd.f32 0.0, %v3113
        %v3115 = vpop.f32.mrb[0].mxu0
        %v3116 = vpop.f32.mrb[0].mxu0
        %v3117 = vadd.f32 0.0, %v3116
        %v3118 = vpop.f32.mrb[0].mxu0
        %3119 = vmatprep.mubr.bf16.mxu0 0
        %3120 = vmatmul.mubr.bf16.gmra.mrb[0].mxu0 %v2978
        %v3121 = vpop.f32.mrb[0].mxu0
        %v3122 = vadd.f32 0.0, %v3121
        %v3123 = vpop.f32.mrb[0].mxu0
        %v3124 = vpop.f32.mrb[0].mxu0
        %v3125 = vadd.f32 0.0, %v3124
        %v3126 = vpop.f32.mrb[0].mxu0
        %3127 = vmatprep.mubr.bf16.mxu0 0
        %3128 = vmatmul.mubr.bf16.gmra.mrb[0].mxu0 %v2979
        %v3129 = vpop.f32.mrb[0].mxu0
        %v3130 = vadd.f32 0.0, %v3129
        %v3131 = vpop.f32.mrb[0].mxu0
        %v3132 = vpop.f32.mrb[0].mxu0
        %v3133 = vadd.f32 0.0, %v3132
        %v3134 = vpop.f32.mrb[0].mxu0
        %3135 = vmatprep.mubr.bf16.mxu0 0
        %3136 = vmatmul.mubr.bf16.gmra.mrb[0].mxu0 %v2980
        %v3137 = vpop.f32.mrb[0].mxu0
        %v3138 = vadd.f32 0.0, %v3137
        %v3139 = vpop.f32.mrb[0].mxu0
        %v3140 = vpop.f32.mrb[0].mxu0
        %v3141 = vadd.f32 0.0, %v3140
        %v3142 = vpop.f32.mrb[0].mxu0
        %3143 = vmatprep.mubr.bf16.mxu0 0
        %3144 = vmatmul.mubr.bf16.gmra.mrb[0].mxu0 %v2981
        %v3145 = vpop.f32.mrb[0].mxu0
        %v3146 = vadd.f32 0.0, %v3145
        %v3147 = vpop.f32.mrb[0].mxu0
        %v3148 = vpop.f32.mrb[0].mxu0
        %v3149 = vadd.f32 0.0, %v3148
        %v3150 = vpop.f32.mrb[0].mxu0
        %3151 = vmatprep.mubr.bf16.mxu0 0
        %3152 = vmatmul.mubr.bf16.gmra.mrb[0].mxu0 %v2982
        %v3153 = vpop.f32.mrb[0].mxu0
        %v3154 = vadd.f32 0.0, %v3153
        %v3155 = vpop.f32.mrb[0].mxu0
        %v3156 = vpop.f32.mrb[0].mxu0
        %v3157 = vadd.f32 0.0, %v3156
        %v3158 = vpop.f32.mrb[0].mxu0
        %3159 = vmatprep.mubr.bf16.mxu0 0
        %3160 = vmatmul.mubr.bf16.gmra.mrb[0].mxu0 %v2983
        %v3161 = vpop.f32.mrb[0].mxu0
        %v3162 = vadd.f32 0.0, %v3161
        %v3163 = vpop.f32.mrb[0].mxu0
        %v3164 = vpop.f32.mrb[0].mxu0
        %v3165 = vadd.f32 0.0, %v3164
        %v3166 = vpop.f32.mrb[0].mxu0
        %3167 = vmatprep.mubr.bf16.mxu0 0
        %3168 = vmatmul.mubr.bf16.gmra.mrb[0].mxu0 %v2984
        %v3169 = vpop.f32.mrb[0].mxu0
        %v3170 = vadd.f32 0.0, %v3169
        %v3171 = vpop.f32.mrb[0].mxu0
        %v3172 = vpop.f32.mrb[0].mxu0
        %v3173 = vadd.f32 0.0, %v3172
        %v3174 = vpop.f32.mrb[0].mxu0
        %3175 = vmatprep.mubr.bf16.mxu0 0
        %3176 = vmatmul.mubr.bf16.gmra.mrb[0].mxu0 %v2985
        %v3177 = vpop.f32.mrb[0].mxu0
        %v3178 = vadd.f32 0.0, %v3177
        %v3179 = vpop.f32.mrb[0].mxu0
        %v3180 = vpop.f32.mrb[0].mxu0
        %v3181 = vadd.f32 0.0, %v3180
        %v3182 = vpop.f32.mrb[0].mxu0
        %3183 = vmatprep.mubr.bf16.mxu0 0
        %3184 = vmatmul.mubr.bf16.gmra.mrb[0].mxu0 %v2986
        %v3185 = vpop.f32.mrb[0].mxu0
        %v3186 = vadd.f32 0.0, %v3185
        %v3187 = vpop.f32.mrb[0].mxu0
        %v3188 = vpop.f32.mrb[0].mxu0
        %v3189 = vadd.f32 0.0, %v3188
        %v3190 = vpop.f32.mrb[0].mxu0
        %3191 = vmatprep.mubr.bf16.mxu0 0
        %3192 = vmatmul.mubr.bf16.gmra.mrb[0].mxu0 %v2987
        %v3193 = vpop.f32.mrb[0].mxu0
        %v3194 = vadd.f32 0.0, %v3193
        %v3195 = vpop.f32.mrb[0].mxu0
        %v3196 = vpop.f32.mrb[0].mxu0
        %v3197 = vadd.f32 0.0, %v3196
        %v3198 = vpop.f32.mrb[0].mxu0
        %3199 = vmatprep.mubr.bf16.mxu0 0
        %3200 = vmatmul.mubr.bf16.gmra.mrb[0].mxu0 %v2988
        %v3201 = vpop.f32.mrb[0].mxu0
        %v3202 = vadd.f32 0.0, %v3201
        %v3203 = vpop.f32.mrb[0].mxu0
        %v3204 = vpop.f32.mrb[0].mxu0
        %v3205 = vadd.f32 0.0, %v3204
        %v3206 = vpop.f32.mrb[0].mxu0
        %3207 = vmatprep.mubr.bf16.mxu0 0
        %3208 = vmatmul.mubr.bf16.gmra.mrb[0].mxu0 %v2989
        %v3209 = vpop.f32.mrb[0].mxu0
        %v3210 = vadd.f32 0.0, %v3209
        %v3211 = vpop.f32.mrb[0].mxu0
        %v3212 = vpop.f32.mrb[0].mxu0
        %v3213 = vadd.f32 0.0, %v3212
        %v3214 = vpop.f32.mrb[0].mxu0
        %3215 = vdwg.mxu0
        %v3216 = vadd.f32 %v2878, %v3090
        %v3217 = vadd.f32 %v2879, %v3093
        %v3218 = vadd.f32 %v2880, %v3098
        %v3219 = vadd.f32 %v2881, %v3101
        %v3220 = vadd.f32 %v2882, %v3106
        %v3221 = vadd.f32 %v2883, %v3109
        %v3222 = vadd.f32 %v2884, %v3114
        %v3223 = vadd.f32 %v2885, %v3117
        %v3224 = vadd.f32 %v2886, %v3122
        %v3225 = vadd.f32 %v2887, %v3125
        %v3226 = vadd.f32 %v2888, %v3130
        %v3227 = vadd.f32 %v2889, %v3133
        %v3228 = vadd.f32 %v2890, %v3138
        %v3229 = vadd.f32 %v2891, %v3141
        %v3230 = vadd.f32 %v2892, %v3146
        %v3231 = vadd.f32 %v2893, %v3149
        %v3232 = vadd.f32 %v2894, %v3154
        %v3233 = vadd.f32 %v2895, %v3157
        %v3234 = vadd.f32 %v2896, %v3162
        %v3235 = vadd.f32 %v2897, %v3165
        %v3236 = vadd.f32 %v2898, %v3170
        %v3237 = vadd.f32 %v2899, %v3173
        %v3238 = vadd.f32 %v2900, %v3178
        %v3239 = vadd.f32 %v2901, %v3181
        %v3240 = vadd.f32 %v2902, %v3186
        %v3241 = vadd.f32 %v2903, %v3189
        %v3242 = vadd.f32 %v2904, %v3194
        %v3243 = vadd.f32 %v2905, %v3197
        %v3244 = vadd.f32 %v2906, %v3202
        %v3245 = vadd.f32 %v2907, %v3205
        %v3246 = vadd.f32 %v2908, %v3210
        %v3247 = vadd.f32 %v2909, %v3213
        %v3248 = vld [vmem:[#allocation2 + $0x21] sm:$0xff]
        %v3249 = vld [vmem:[#allocation2 + $0x29] sm:$0xff]
        %v3250 = vld [vmem:[#allocation2 + $0x31] sm:$0xff]
        %v3251 = vld [vmem:[#allocation2 + $0x39] sm:$0xff]
        %v3252 = vld [vmem:[#allocation2 + $0x41] sm:$0xff]
        %v3253 = vld [vmem:[#allocation2 + $0x49] sm:$0xff]
        %v3254 = vld [vmem:[#allocation2 + $0x51] sm:$0xff]
        %v3255 = vld [vmem:[#allocation2 + $0x59] sm:$0xff]
        %v3256 = vld [vmem:[#allocation2 + $0x61] sm:$0xff]
        %v3257 = vld [vmem:[#allocation2 + $0x69] sm:$0xff]
        %v3258 = vld [vmem:[#allocation2 + $0x71] sm:$0xff]
        %v3259 = vld [vmem:[#allocation2 + $0x79] sm:$0xff]
        %v3260 = vld [vmem:[#allocation2 + $0x81] sm:$0xff]
        %v3261 = vld [vmem:[#allocation2 + $0x89] sm:$0xff]
        %v3262 = vld [vmem:[#allocation2 + $0x91] sm:$0xff]
        %v3263 = vld [vmem:[#allocation2 + $0x99] sm:$0xff]
        %v3264 = vld [vmem:[#allocation2 + $0xa1] sm:$0xff]
        %v3265 = vld [vmem:[#allocation2 + $0xa9] sm:$0xff]
        %v3266 = vld [vmem:[#allocation2 + $0xb1] sm:$0xff]
        %v3267 = vld [vmem:[#allocation2 + $0xb9] sm:$0xff]
        %v3268 = vld [vmem:[#allocation2 + $0xc1] sm:$0xff]
        %v3269 = vld [vmem:[#allocation2 + $0xc9] sm:$0xff]
        %v3270 = vld [vmem:[#allocation2 + $0xd1] sm:$0xff]
        %v3271 = vld [vmem:[#allocation2 + $0xd9] sm:$0xff]
        %v3272 = vld [vmem:[#allocation2 + $0xe1] sm:$0xff]
        %v3273 = vld [vmem:[#allocation2 + $0xe9] sm:$0xff]
        %v3274 = vld [vmem:[#allocation2 + $0xf1] sm:$0xff]
        %v3275 = vld [vmem:[#allocation2 + $0xf9] sm:$0xff]
        %v3276 = vld [vmem:[#allocation2 + $0x101] sm:$0xff]
        %v3277 = vld [vmem:[#allocation2 + $0x109] sm:$0xff]
        %v3278 = vld [vmem:[#allocation2 + $0x111] sm:$0xff]
        %v3279 = vld [vmem:[#allocation2 + $0x119] sm:$0xff]
        %v3280 = vpack.c.bf16 %v3249, %v3248
        %v3281 = vpack.c.bf16 %v3251, %v3250
        %v3282 = vpack.c.bf16 %v3253, %v3252
        %v3283 = vpack.c.bf16 %v3255, %v3254
        %v3284 = vpack.c.bf16 %v3257, %v3256
        %v3285 = vpack.c.bf16 %v3259, %v3258
        %v3286 = vpack.c.bf16 %v3261, %v3260
        %v3287 = vpack.c.bf16 %v3263, %v3262
        %v3288 = vpack.c.bf16 %v3265, %v3264
        %v3289 = vpack.c.bf16 %v3267, %v3266
        %v3290 = vpack.c.bf16 %v3269, %v3268
        %v3291 = vpack.c.bf16 %v3271, %v3270
        %v3292 = vpack.c.bf16 %v3273, %v3272
        %v3293 = vpack.c.bf16 %v3275, %v3274
        %v3294 = vpack.c.bf16 %v3277, %v3276
        %v3295 = vpack.c.bf16 %v3279, %v3278
        %s3296 = scalar_lea.vmem %s4, 448
        %v3297 = vld [vmem:[%s3296] sm:$0xf]
        %v3298 = vld [vmem:[%s3296 + $0x4] sm:$0xf]
        %v3299 = vld [vmem:[%s3296 + $0x8] sm:$0xf]
        %v3300 = vld [vmem:[%s3296 + $0xc] sm:$0xf]
        %v3301 = vld [vmem:[%s3296 + $0x10] sm:$0xf]
        %v3302 = vld [vmem:[%s3296 + $0x14] sm:$0xf]
        %v3303 = vld [vmem:[%s3296 + $0x18] sm:$0xf]
        %v3304 = vld [vmem:[%s3296 + $0x1c] sm:$0xf]
        %v3305 = vld [vmem:[%s3296 + $0x20] sm:$0xf]
        %v3306 = vld [vmem:[%s3296 + $0x24] sm:$0xf]
        %v3307 = vld [vmem:[%s3296 + $0x28] sm:$0xf]
        %v3308 = vld [vmem:[%s3296 + $0x2c] sm:$0xf]
        %v3309 = vld [vmem:[%s3296 + $0x30] sm:$0xf]
        %v3310 = vld [vmem:[%s3296 + $0x34] sm:$0xf]
        %v3311 = vld [vmem:[%s3296 + $0x38] sm:$0xf]
        %v3312 = vld [vmem:[%s3296 + $0x3c] sm:$0xf]
        %v3329 = vunpack.c.l.b16 %v3297
        %v3330 = vunpack.c.l.b16 %v3298
        %v3331 = vunpack.c.l.b16 %v3299
        %v3332 = vunpack.c.l.b16 %v3300
        %v3333 = vunpack.c.l.b16 %v3301
        %v3334 = vunpack.c.l.b16 %v3302
        %v3335 = vunpack.c.l.b16 %v3303
        %v3336 = vunpack.c.l.b16 %v3304
        %v3337 = vunpack.c.l.b16 %v3305
        %v3338 = vunpack.c.l.b16 %v3306
        %v3339 = vunpack.c.l.b16 %v3307
        %v3340 = vunpack.c.l.b16 %v3308
        %v3341 = vunpack.c.l.b16 %v3309
        %v3342 = vunpack.c.l.b16 %v3310
        %v3343 = vunpack.c.l.b16 %v3311
        %v3344 = vunpack.c.l.b16 %v3312
        %v3345 = vpack.c.b16 %v3330, %v3329
        %v3346 = vpack.c.b16 %v3332, %v3331
        %v3347 = vpack.c.b16 %v3334, %v3333
        %v3348 = vpack.c.b16 %v3336, %v3335
        %v3349 = vpack.c.b16 %v3338, %v3337
        %v3350 = vpack.c.b16 %v3340, %v3339
        %v3351 = vpack.c.b16 %v3342, %v3341
        %v3352 = vpack.c.b16 %v3344, %v3343
        %3361 = vmatprep.subr.bf16.mxu0 0
        %3362 = vmatpush1.bf16.msra.mxu0 %v3345
        %3363 = vmatprep.subr.bf16.mxu0 0
        %3364 = vmatpush1.bf16.msra.mxu0 %v3346
        %3365 = vmatprep.subr.bf16.mxu0 0
        %3366 = vmatpush1.bf16.msra.mxu0 %v3347
        %3367 = vmatprep.subr.bf16.mxu0 0
        %3368 = vmatpush1.bf16.msra.mxu0 %v3348
        %3369 = vmatprep.subr.bf16.mxu0 0
        %3370 = vmatpush1.bf16.msra.mxu0 %v3349
        %3371 = vmatprep.subr.bf16.mxu0 0
        %3372 = vmatpush1.bf16.msra.mxu0 %v3350
        %3373 = vmatprep.subr.bf16.mxu0 0
        %3374 = vmatpush1.bf16.msra.mxu0 %v3351
        %3375 = vmatprep.subr.bf16.mxu0 0
        %3376 = vmatpush1.bf16.msra.mxu0 %v3352
        %3377 = vmatprep.subr.bf16.mxu0 0
        %3378 = vmatpush1.bf16.msra.mxu0 0
        %3379 = vmatprep.subr.bf16.mxu0 0
        %3380 = vmatpush1.bf16.msra.mxu0 0
        %3381 = vmatprep.subr.bf16.mxu0 0
        %3382 = vmatpush1.bf16.msra.mxu0 0
        %3383 = vmatprep.subr.bf16.mxu0 0
        %3384 = vmatpush1.bf16.msra.mxu0 0
        %3385 = vmatprep.subr.bf16.mxu0 0
        %3386 = vmatpush1.bf16.msra.mxu0 0
        %3387 = vmatprep.subr.bf16.mxu0 0
        %3388 = vmatpush1.bf16.msra.mxu0 0
        %3389 = vmatprep.subr.bf16.mxu0 0
        %3390 = vmatpush1.bf16.msra.mxu0 0
        %3391 = vmatprep.subr.bf16.mxu0 0
        %3392 = vmatpush1.bf16.msra.mxu0 0
        %3393 = vmatprep.mubr.bf16.mxu0 0
        %3394 = vmatmul.mubr.bf16.gmra.mrb[0].mxu0 %v3280
        %v3395 = vpop.f32.mrb[0].mxu0
        %v3396 = vadd.f32 0.0, %v3395
        %v3397 = vpop.f32.mrb[0].mxu0
        %v3398 = vpop.f32.mrb[0].mxu0
        %v3399 = vadd.f32 0.0, %v3398
        %v3400 = vpop.f32.mrb[0].mxu0
        %3401 = vmatprep.mubr.bf16.mxu0 0
        %3402 = vmatmul.mubr.bf16.gmra.mrb[0].mxu0 %v3281
        %v3403 = vpop.f32.mrb[0].mxu0
        %v3404 = vadd.f32 0.0, %v3403
        %v3405 = vpop.f32.mrb[0].mxu0
        %v3406 = vpop.f32.mrb[0].mxu0
        %v3407 = vadd.f32 0.0, %v3406
        %v3408 = vpop.f32.mrb[0].mxu0
        %3409 = vmatprep.mubr.bf16.mxu0 0
        %3410 = vmatmul.mubr.bf16.gmra.mrb[0].mxu0 %v3282
        %v3411 = vpop.f32.mrb[0].mxu0
        %v3412 = vadd.f32 0.0, %v3411
        %v3413 = vpop.f32.mrb[0].mxu0
        %v3414 = vpop.f32.mrb[0].mxu0
        %v3415 = vadd.f32 0.0, %v3414
        %v3416 = vpop.f32.mrb[0].mxu0
        %3417 = vmatprep.mubr.bf16.mxu0 0
        %3418 = vmatmul.mubr.bf16.gmra.mrb[0].mxu0 %v3283
        %v3419 = vpop.f32.mrb[0].mxu0
        %v3420 = vadd.f32 0.0, %v3419
        %v3421 = vpop.f32.mrb[0].mxu0
        %v3422 = vpop.f32.mrb[0].mxu0
        %v3423 = vadd.f32 0.0, %v3422
        %v3424 = vpop.f32.mrb[0].mxu0
        %3425 = vmatprep.mubr.bf16.mxu0 0
        %3426 = vmatmul.mubr.bf16.gmra.mrb[0].mxu0 %v3284
        %v3427 = vpop.f32.mrb[0].mxu0
        %v3428 = vadd.f32 0.0, %v3427
        %v3429 = vpop.f32.mrb[0].mxu0
        %v3430 = vpop.f32.mrb[0].mxu0
        %v3431 = vadd.f32 0.0, %v3430
        %v3432 = vpop.f32.mrb[0].mxu0
        %3433 = vmatprep.mubr.bf16.mxu0 0
        %3434 = vmatmul.mubr.bf16.gmra.mrb[0].mxu0 %v3285
        %v3435 = vpop.f32.mrb[0].mxu0
        %v3436 = vadd.f32 0.0, %v3435
        %v3437 = vpop.f32.mrb[0].mxu0
        %v3438 = vpop.f32.mrb[0].mxu0
        %v3439 = vadd.f32 0.0, %v3438
        %v3440 = vpop.f32.mrb[0].mxu0
        %3441 = vmatprep.mubr.bf16.mxu0 0
        %3442 = vmatmul.mubr.bf16.gmra.mrb[0].mxu0 %v3286
        %v3443 = vpop.f32.mrb[0].mxu0
        %v3444 = vadd.f32 0.0, %v3443
        %v3445 = vpop.f32.mrb[0].mxu0
        %v3446 = vpop.f32.mrb[0].mxu0
        %v3447 = vadd.f32 0.0, %v3446
        %v3448 = vpop.f32.mrb[0].mxu0
        %3449 = vmatprep.mubr.bf16.mxu0 0
        %3450 = vmatmul.mubr.bf16.gmra.mrb[0].mxu0 %v3287
        %v3451 = vpop.f32.mrb[0].mxu0
        %v3452 = vadd.f32 0.0, %v3451
        %v3453 = vpop.f32.mrb[0].mxu0
        %v3454 = vpop.f32.mrb[0].mxu0
        %v3455 = vadd.f32 0.0, %v3454
        %v3456 = vpop.f32.mrb[0].mxu0
        %3457 = vmatprep.mubr.bf16.mxu0 0
        %3458 = vmatmul.mubr.bf16.gmra.mrb[0].mxu0 %v3288
        %v3459 = vpop.f32.mrb[0].mxu0
        %v3460 = vadd.f32 0.0, %v3459
        %v3461 = vpop.f32.mrb[0].mxu0
        %v3462 = vpop.f32.mrb[0].mxu0
        %v3463 = vadd.f32 0.0, %v3462
        %v3464 = vpop.f32.mrb[0].mxu0
        %3465 = vmatprep.mubr.bf16.mxu0 0
        %3466 = vmatmul.mubr.bf16.gmra.mrb[0].mxu0 %v3289
        %v3467 = vpop.f32.mrb[0].mxu0
        %v3468 = vadd.f32 0.0, %v3467
        %v3469 = vpop.f32.mrb[0].mxu0
        %v3470 = vpop.f32.mrb[0].mxu0
        %v3471 = vadd.f32 0.0, %v3470
        %v3472 = vpop.f32.mrb[0].mxu0
        %3473 = vmatprep.mubr.bf16.mxu0 0
        %3474 = vmatmul.mubr.bf16.gmra.mrb[0].mxu0 %v3290
        %v3475 = vpop.f32.mrb[0].mxu0
        %v3476 = vadd.f32 0.0, %v3475
        %v3477 = vpop.f32.mrb[0].mxu0
        %v3478 = vpop.f32.mrb[0].mxu0
        %v3479 = vadd.f32 0.0, %v3478
        %v3480 = vpop.f32.mrb[0].mxu0
        %3481 = vmatprep.mubr.bf16.mxu0 0
        %3482 = vmatmul.mubr.bf16.gmra.mrb[0].mxu0 %v3291
        %v3483 = vpop.f32.mrb[0].mxu0
        %v3484 = vadd.f32 0.0, %v3483
        %v3485 = vpop.f32.mrb[0].mxu0
        %v3486 = vpop.f32.mrb[0].mxu0
        %v3487 = vadd.f32 0.0, %v3486
        %v3488 = vpop.f32.mrb[0].mxu0
        %3489 = vmatprep.mubr.bf16.mxu0 0
        %3490 = vmatmul.mubr.bf16.gmra.mrb[0].mxu0 %v3292
        %v3491 = vpop.f32.mrb[0].mxu0
        %v3492 = vadd.f32 0.0, %v3491
        %v3493 = vpop.f32.mrb[0].mxu0
        %v3494 = vpop.f32.mrb[0].mxu0
        %v3495 = vadd.f32 0.0, %v3494
        %v3496 = vpop.f32.mrb[0].mxu0
        %3497 = vmatprep.mubr.bf16.mxu0 0
        %3498 = vmatmul.mubr.bf16.gmra.mrb[0].mxu0 %v3293
        %v3499 = vpop.f32.mrb[0].mxu0
        %v3500 = vadd.f32 0.0, %v3499
        %v3501 = vpop.f32.mrb[0].mxu0
        %v3502 = vpop.f32.mrb[0].mxu0
        %v3503 = vadd.f32 0.0, %v3502
        %v3504 = vpop.f32.mrb[0].mxu0
        %3505 = vmatprep.mubr.bf16.mxu0 0
        %3506 = vmatmul.mubr.bf16.gmra.mrb[0].mxu0 %v3294
        %v3507 = vpop.f32.mrb[0].mxu0
        %v3508 = vadd.f32 0.0, %v3507
        %v3509 = vpop.f32.mrb[0].mxu0
        %v3510 = vpop.f32.mrb[0].mxu0
        %v3511 = vadd.f32 0.0, %v3510
        %v3512 = vpop.f32.mrb[0].mxu0
        %3513 = vmatprep.mubr.bf16.mxu0 0
        %3514 = vmatmul.mubr.bf16.gmra.mrb[0].mxu0 %v3295
        %v3515 = vpop.f32.mrb[0].mxu0
        %v3516 = vadd.f32 0.0, %v3515
        %v3517 = vpop.f32.mrb[0].mxu0
        %v3518 = vpop.f32.mrb[0].mxu0
        %v3519 = vadd.f32 0.0, %v3518
        %v3520 = vpop.f32.mrb[0].mxu0
        %3521 = vdwg.mxu0
        %v3522 = vadd.f32 %v3216, %v3396
        %v3523 = vadd.f32 %v3217, %v3399
        %v3524 = vadd.f32 %v3218, %v3404
        %v3525 = vadd.f32 %v3219, %v3407
        %v3526 = vadd.f32 %v3220, %v3412
        %v3527 = vadd.f32 %v3221, %v3415
        %v3528 = vadd.f32 %v3222, %v3420
        %v3529 = vadd.f32 %v3223, %v3423
        %v3530 = vadd.f32 %v3224, %v3428
        %v3531 = vadd.f32 %v3225, %v3431
        %v3532 = vadd.f32 %v3226, %v3436
        %v3533 = vadd.f32 %v3227, %v3439
        %v3534 = vadd.f32 %v3228, %v3444
        %v3535 = vadd.f32 %v3229, %v3447
        %v3536 = vadd.f32 %v3230, %v3452
        %v3537 = vadd.f32 %v3231, %v3455
        %v3538 = vadd.f32 %v3232, %v3460
        %v3539 = vadd.f32 %v3233, %v3463
        %v3540 = vadd.f32 %v3234, %v3468
        %v3541 = vadd.f32 %v3235, %v3471
        %v3542 = vadd.f32 %v3236, %v3476
        %v3543 = vadd.f32 %v3237, %v3479
        %v3544 = vadd.f32 %v3238, %v3484
        %v3545 = vadd.f32 %v3239, %v3487
        %v3546 = vadd.f32 %v3240, %v3492
        %v3547 = vadd.f32 %v3241, %v3495
        %v3548 = vadd.f32 %v3242, %v3500
        %v3549 = vadd.f32 %v3243, %v3503
        %v3550 = vadd.f32 %v3244, %v3508
        %v3551 = vadd.f32 %v3245, %v3511
        %v3552 = vadd.f32 %v3246, %v3516
        %v3553 = vadd.f32 %v3247, %v3519
        %v3554 = vld [vmem:[#allocation2 + $0x22] sm:$0xff]
        %v3555 = vld [vmem:[#allocation2 + $0x2a] sm:$0xff]
        %v3556 = vld [vmem:[#allocation2 + $0x32] sm:$0xff]
        %v3557 = vld [vmem:[#allocation2 + $0x3a] sm:$0xff]
        %v3558 = vld [vmem:[#allocation2 + $0x42] sm:$0xff]
        %v3559 = vld [vmem:[#allocation2 + $0x4a] sm:$0xff]
        %v3560 = vld [vmem:[#allocation2 + $0x52] sm:$0xff]
        %v3561 = vld [vmem:[#allocation2 + $0x5a] sm:$0xff]
        %v3562 = vld [vmem:[#allocation2 + $0x62] sm:$0xff]
        %v3563 = vld [vmem:[#allocation2 + $0x6a] sm:$0xff]
        %v3564 = vld [vmem:[#allocation2 + $0x72] sm:$0xff]
        %v3565 = vld [vmem:[#allocation2 + $0x7a] sm:$0xff]
        %v3566 = vld [vmem:[#allocation2 + $0x82] sm:$0xff]
        %v3567 = vld [vmem:[#allocation2 + $0x8a] sm:$0xff]
        %v3568 = vld [vmem:[#allocation2 + $0x92] sm:$0xff]
        %v3569 = vld [vmem:[#allocation2 + $0x9a] sm:$0xff]
        %v3570 = vld [vmem:[#allocation2 + $0xa2] sm:$0xff]
        %v3571 = vld [vmem:[#allocation2 + $0xaa] sm:$0xff]
        %v3572 = vld [vmem:[#allocation2 + $0xb2] sm:$0xff]
        %v3573 = vld [vmem:[#allocation2 + $0xba] sm:$0xff]
        %v3574 = vld [vmem:[#allocation2 + $0xc2] sm:$0xff]
        %v3575 = vld [vmem:[#allocation2 + $0xca] sm:$0xff]
        %v3576 = vld [vmem:[#allocation2 + $0xd2] sm:$0xff]
        %v3577 = vld [vmem:[#allocation2 + $0xda] sm:$0xff]
        %v3578 = vld [vmem:[#allocation2 + $0xe2] sm:$0xff]
        %v3579 = vld [vmem:[#allocation2 + $0xea] sm:$0xff]
        %v3580 = vld [vmem:[#allocation2 + $0xf2] sm:$0xff]
        %v3581 = vld [vmem:[#allocation2 + $0xfa] sm:$0xff]
        %v3582 = vld [vmem:[#allocation2 + $0x102] sm:$0xff]
        %v3583 = vld [vmem:[#allocation2 + $0x10a] sm:$0xff]
        %v3584 = vld [vmem:[#allocation2 + $0x112] sm:$0xff]
        %v3585 = vld [vmem:[#allocation2 + $0x11a] sm:$0xff]
        %v3586 = vsel %vm1590, %v3554, 0.0
        %v3587 = vsel %vm1591, %v3555, 0.0
        %v3588 = vsel %vm1592, %v3556, 0.0
        %v3589 = vsel %vm1593, %v3557, 0.0
        %v3590 = vsel %vm1594, %v3558, 0.0
        %v3591 = vsel %vm1595, %v3559, 0.0
        %v3592 = vsel %vm1596, %v3560, 0.0
        %v3593 = vsel %vm1597, %v3561, 0.0
        %v3594 = vsel %vm1598, %v3562, 0.0
        %v3595 = vsel %vm1599, %v3563, 0.0
        %v3596 = vsel %vm1600, %v3564, 0.0
        %v3597 = vsel %vm1601, %v3565, 0.0
        %v3598 = vsel %vm1602, %v3566, 0.0
        %v3599 = vsel %vm1603, %v3567, 0.0
        %v3600 = vsel %vm1604, %v3568, 0.0
        %v3601 = vsel %vm1605, %v3569, 0.0
        %v3602 = vsel %vm1606, %v3570, 0.0
        %v3603 = vsel %vm1607, %v3571, 0.0
        %v3604 = vsel %vm1608, %v3572, 0.0
        %v3605 = vsel %vm1609, %v3573, 0.0
        %v3606 = vsel %vm1610, %v3574, 0.0
        %v3607 = vsel %vm1611, %v3575, 0.0
        %v3608 = vsel %vm1612, %v3576, 0.0
        %v3609 = vsel %vm1613, %v3577, 0.0
        %v3610 = vsel %vm1614, %v3578, 0.0
        %v3611 = vsel %vm1615, %v3579, 0.0
        %v3612 = vsel %vm1616, %v3580, 0.0
        %v3613 = vsel %vm1617, %v3581, 0.0
        %v3614 = vsel %vm1618, %v3582, 0.0
        %v3615 = vsel %vm1619, %v3583, 0.0
        %v3616 = vsel %vm1620, %v3584, 0.0
        %v3617 = vsel %vm1621, %v3585, 0.0
        %v3618 = vpack.c.bf16 %v3587, %v3586
        %v3619 = vpack.c.bf16 %v3589, %v3588
        %v3620 = vpack.c.bf16 %v3591, %v3590
        %v3621 = vpack.c.bf16 %v3593, %v3592
        %v3622 = vpack.c.bf16 %v3595, %v3594
        %v3623 = vpack.c.bf16 %v3597, %v3596
        %v3624 = vpack.c.bf16 %v3599, %v3598
        %v3625 = vpack.c.bf16 %v3601, %v3600
        %v3626 = vpack.c.bf16 %v3603, %v3602
        %v3627 = vpack.c.bf16 %v3605, %v3604
        %v3628 = vpack.c.bf16 %v3607, %v3606
        %v3629 = vpack.c.bf16 %v3609, %v3608
        %v3630 = vpack.c.bf16 %v3611, %v3610
        %v3631 = vpack.c.bf16 %v3613, %v3612
        %v3632 = vpack.c.bf16 %v3615, %v3614
        %v3633 = vpack.c.bf16 %v3617, %v3616
        %s3634 = scalar_lea.vmem %s4, 512
        %v3635 = vld [vmem:[%s3634] sm:$0xf]
        %v3636 = vld [vmem:[%s3634 + $0x4] sm:$0xf]
        %v3637 = vld [vmem:[%s3634 + $0x8] sm:$0xf]
        %v3638 = vld [vmem:[%s3634 + $0xc] sm:$0xf]
        %v3639 = vld [vmem:[%s3634 + $0x10] sm:$0xf]
        %v3640 = vld [vmem:[%s3634 + $0x14] sm:$0xf]
        %v3641 = vld [vmem:[%s3634 + $0x18] sm:$0xf]
        %v3642 = vld [vmem:[%s3634 + $0x1c] sm:$0xf]
        %v3643 = vld [vmem:[%s3634 + $0x20] sm:$0xf]
        %v3644 = vld [vmem:[%s3634 + $0x24] sm:$0xf]
        %v3645 = vld [vmem:[%s3634 + $0x28] sm:$0xf]
        %v3646 = vld [vmem:[%s3634 + $0x2c] sm:$0xf]
        %v3647 = vld [vmem:[%s3634 + $0x30] sm:$0xf]
        %v3648 = vld [vmem:[%s3634 + $0x34] sm:$0xf]
        %v3649 = vld [vmem:[%s3634 + $0x38] sm:$0xf]
        %v3650 = vld [vmem:[%s3634 + $0x3c] sm:$0xf]
        %v3667 = vunpack.c.l.b16 %v3635
        %v3668 = vunpack.c.l.b16 %v3636
        %v3669 = vunpack.c.l.b16 %v3637
        %v3670 = vunpack.c.l.b16 %v3638
        %v3671 = vunpack.c.l.b16 %v3639
        %v3672 = vunpack.c.l.b16 %v3640
        %v3673 = vunpack.c.l.b16 %v3641
        %v3674 = vunpack.c.l.b16 %v3642
        %v3675 = vunpack.c.l.b16 %v3643
        %v3676 = vunpack.c.l.b16 %v3644
        %v3677 = vunpack.c.l.b16 %v3645
        %v3678 = vunpack.c.l.b16 %v3646
        %v3679 = vunpack.c.l.b16 %v3647
        %v3680 = vunpack.c.l.b16 %v3648
        %v3681 = vunpack.c.l.b16 %v3649
        %v3682 = vunpack.c.l.b16 %v3650
        %v3683 = vpack.c.b16 %v3668, %v3667
        %v3684 = vpack.c.b16 %v3670, %v3669
        %v3685 = vpack.c.b16 %v3672, %v3671
        %v3686 = vpack.c.b16 %v3674, %v3673
        %v3687 = vpack.c.b16 %v3676, %v3675
        %v3688 = vpack.c.b16 %v3678, %v3677
        %v3689 = vpack.c.b16 %v3680, %v3679
        %v3690 = vpack.c.b16 %v3682, %v3681
        %3699 = vmatprep.subr.bf16.mxu0 0
        %3700 = vmatpush1.bf16.msra.mxu0 %v3683
        %3701 = vmatprep.subr.bf16.mxu0 0
        %3702 = vmatpush1.bf16.msra.mxu0 %v3684
        %3703 = vmatprep.subr.bf16.mxu0 0
        %3704 = vmatpush1.bf16.msra.mxu0 %v3685
        %3705 = vmatprep.subr.bf16.mxu0 0
        %3706 = vmatpush1.bf16.msra.mxu0 %v3686
        %3707 = vmatprep.subr.bf16.mxu0 0
        %3708 = vmatpush1.bf16.msra.mxu0 %v3687
        %3709 = vmatprep.subr.bf16.mxu0 0
        %3710 = vmatpush1.bf16.msra.mxu0 %v3688
        %3711 = vmatprep.subr.bf16.mxu0 0
        %3712 = vmatpush1.bf16.msra.mxu0 %v3689
        %3713 = vmatprep.subr.bf16.mxu0 0
        %3714 = vmatpush1.bf16.msra.mxu0 %v3690
        %3715 = vmatprep.subr.bf16.mxu0 0
        %3716 = vmatpush1.bf16.msra.mxu0 0
        %3717 = vmatprep.subr.bf16.mxu0 0
        %3718 = vmatpush1.bf16.msra.mxu0 0
        %3719 = vmatprep.subr.bf16.mxu0 0
        %3720 = vmatpush1.bf16.msra.mxu0 0
        %3721 = vmatprep.subr.bf16.mxu0 0
        %3722 = vmatpush1.bf16.msra.mxu0 0
        %3723 = vmatprep.subr.bf16.mxu0 0
        %3724 = vmatpush1.bf16.msra.mxu0 0
        %3725 = vmatprep.subr.bf16.mxu0 0
        %3726 = vmatpush1.bf16.msra.mxu0 0
        %3727 = vmatprep.subr.bf16.mxu0 0
        %3728 = vmatpush1.bf16.msra.mxu0 0
        %3729 = vmatprep.subr.bf16.mxu0 0
        %3730 = vmatpush1.bf16.msra.mxu0 0
        %3731 = vmatprep.mubr.bf16.mxu0 0
        %3732 = vmatmul.mubr.bf16.gmra.mrb[0].mxu0 %v3618
        %v3733 = vpop.f32.mrb[0].mxu0
        %v3734 = vadd.f32 0.0, %v3733
        %v3735 = vpop.f32.mrb[0].mxu0
        %v3736 = vpop.f32.mrb[0].mxu0
        %v3737 = vadd.f32 0.0, %v3736
        %v3738 = vpop.f32.mrb[0].mxu0
        %3739 = vmatprep.mubr.bf16.mxu0 0
        %3740 = vmatmul.mubr.bf16.gmra.mrb[0].mxu0 %v3619
        %v3741 = vpop.f32.mrb[0].mxu0
        %v3742 = vadd.f32 0.0, %v3741
        %v3743 = vpop.f32.mrb[0].mxu0
        %v3744 = vpop.f32.mrb[0].mxu0
        %v3745 = vadd.f32 0.0, %v3744
        %v3746 = vpop.f32.mrb[0].mxu0
        %3747 = vmatprep.mubr.bf16.mxu0 0
        %3748 = vmatmul.mubr.bf16.gmra.mrb[0].mxu0 %v3620
        %v3749 = vpop.f32.mrb[0].mxu0
        %v3750 = vadd.f32 0.0, %v3749
        %v3751 = vpop.f32.mrb[0].mxu0
        %v3752 = vpop.f32.mrb[0].mxu0
        %v3753 = vadd.f32 0.0, %v3752
        %v3754 = vpop.f32.mrb[0].mxu0
        %3755 = vmatprep.mubr.bf16.mxu0 0
        %3756 = vmatmul.mubr.bf16.gmra.mrb[0].mxu0 %v3621
        %v3757 = vpop.f32.mrb[0].mxu0
        %v3758 = vadd.f32 0.0, %v3757
        %v3759 = vpop.f32.mrb[0].mxu0
        %v3760 = vpop.f32.mrb[0].mxu0
        %v3761 = vadd.f32 0.0, %v3760
        %v3762 = vpop.f32.mrb[0].mxu0
        %3763 = vmatprep.mubr.bf16.mxu0 0
        %3764 = vmatmul.mubr.bf16.gmra.mrb[0].mxu0 %v3622
        %v3765 = vpop.f32.mrb[0].mxu0
        %v3766 = vadd.f32 0.0, %v3765
        %v3767 = vpop.f32.mrb[0].mxu0
        %v3768 = vpop.f32.mrb[0].mxu0
        %v3769 = vadd.f32 0.0, %v3768
        %v3770 = vpop.f32.mrb[0].mxu0
        %3771 = vmatprep.mubr.bf16.mxu0 0
        %3772 = vmatmul.mubr.bf16.gmra.mrb[0].mxu0 %v3623
        %v3773 = vpop.f32.mrb[0].mxu0
        %v3774 = vadd.f32 0.0, %v3773
        %v3775 = vpop.f32.mrb[0].mxu0
        %v3776 = vpop.f32.mrb[0].mxu0
        %v3777 = vadd.f32 0.0, %v3776
        %v3778 = vpop.f32.mrb[0].mxu0
        %3779 = vmatprep.mubr.bf16.mxu0 0
        %3780 = vmatmul.mubr.bf16.gmra.mrb[0].mxu0 %v3624
        %v3781 = vpop.f32.mrb[0].mxu0
        %v3782 = vadd.f32 0.0, %v3781
        %v3783 = vpop.f32.mrb[0].mxu0
        %v3784 = vpop.f32.mrb[0].mxu0
        %v3785 = vadd.f32 0.0, %v3784
        %v3786 = vpop.f32.mrb[0].mxu0
        %3787 = vmatprep.mubr.bf16.mxu0 0
        %3788 = vmatmul.mubr.bf16.gmra.mrb[0].mxu0 %v3625
        %v3789 = vpop.f32.mrb[0].mxu0
        %v3790 = vadd.f32 0.0, %v3789
        %v3791 = vpop.f32.mrb[0].mxu0
        %v3792 = vpop.f32.mrb[0].mxu0
        %v3793 = vadd.f32 0.0, %v3792
        %v3794 = vpop.f32.mrb[0].mxu0
        %3795 = vmatprep.mubr.bf16.mxu0 0
        %3796 = vmatmul.mubr.bf16.gmra.mrb[0].mxu0 %v3626
        %v3797 = vpop.f32.mrb[0].mxu0
        %v3798 = vadd.f32 0.0, %v3797
        %v3799 = vpop.f32.mrb[0].mxu0
        %v3800 = vpop.f32.mrb[0].mxu0
        %v3801 = vadd.f32 0.0, %v3800
        %v3802 = vpop.f32.mrb[0].mxu0
        %3803 = vmatprep.mubr.bf16.mxu0 0
        %3804 = vmatmul.mubr.bf16.gmra.mrb[0].mxu0 %v3627
        %v3805 = vpop.f32.mrb[0].mxu0
        %v3806 = vadd.f32 0.0, %v3805
        %v3807 = vpop.f32.mrb[0].mxu0
        %v3808 = vpop.f32.mrb[0].mxu0
        %v3809 = vadd.f32 0.0, %v3808
        %v3810 = vpop.f32.mrb[0].mxu0
        %3811 = vmatprep.mubr.bf16.mxu0 0
        %3812 = vmatmul.mubr.bf16.gmra.mrb[0].mxu0 %v3628
        %v3813 = vpop.f32.mrb[0].mxu0
        %v3814 = vadd.f32 0.0, %v3813
        %v3815 = vpop.f32.mrb[0].mxu0
        %v3816 = vpop.f32.mrb[0].mxu0
        %v3817 = vadd.f32 0.0, %v3816
        %v3818 = vpop.f32.mrb[0].mxu0
        %3819 = vmatprep.mubr.bf16.mxu0 0
        %3820 = vmatmul.mubr.bf16.gmra.mrb[0].mxu0 %v3629
        %v3821 = vpop.f32.mrb[0].mxu0
        %v3822 = vadd.f32 0.0, %v3821
        %v3823 = vpop.f32.mrb[0].mxu0
        %v3824 = vpop.f32.mrb[0].mxu0
        %v3825 = vadd.f32 0.0, %v3824
        %v3826 = vpop.f32.mrb[0].mxu0
        %3827 = vmatprep.mubr.bf16.mxu0 0
        %3828 = vmatmul.mubr.bf16.gmra.mrb[0].mxu0 %v3630
        %v3829 = vpop.f32.mrb[0].mxu0
        %v3830 = vadd.f32 0.0, %v3829
        %v3831 = vpop.f32.mrb[0].mxu0
        %v3832 = vpop.f32.mrb[0].mxu0
        %v3833 = vadd.f32 0.0, %v3832
        %v3834 = vpop.f32.mrb[0].mxu0
        %3835 = vmatprep.mubr.bf16.mxu0 0
        %3836 = vmatmul.mubr.bf16.gmra.mrb[0].mxu0 %v3631
        %v3837 = vpop.f32.mrb[0].mxu0
        %v3838 = vadd.f32 0.0, %v3837
        %v3839 = vpop.f32.mrb[0].mxu0
        %v3840 = vpop.f32.mrb[0].mxu0
        %v3841 = vadd.f32 0.0, %v3840
        %v3842 = vpop.f32.mrb[0].mxu0
        %3843 = vmatprep.mubr.bf16.mxu0 0
        %3844 = vmatmul.mubr.bf16.gmra.mrb[0].mxu0 %v3632
        %v3845 = vpop.f32.mrb[0].mxu0
        %v3846 = vadd.f32 0.0, %v3845
        %v3847 = vpop.f32.mrb[0].mxu0
        %v3848 = vpop.f32.mrb[0].mxu0
        %v3849 = vadd.f32 0.0, %v3848
        %v3850 = vpop.f32.mrb[0].mxu0
        %3851 = vmatprep.mubr.bf16.mxu0 0
        %3852 = vmatmul.mubr.bf16.gmra.mrb[0].mxu0 %v3633
        %v3853 = vpop.f32.mrb[0].mxu0
        %v3854 = vadd.f32 0.0, %v3853
        %v3855 = vpop.f32.mrb[0].mxu0
        %v3856 = vpop.f32.mrb[0].mxu0
        %v3857 = vadd.f32 0.0, %v3856
        %v3858 = vpop.f32.mrb[0].mxu0
        %3859 = vdwg.mxu0
        %v3860 = vadd.f32 %v3522, %v3734
        %v3861 = vadd.f32 %v3523, %v3737
        %v3862 = vadd.f32 %v3524, %v3742
        %v3863 = vadd.f32 %v3525, %v3745
        %v3864 = vadd.f32 %v3526, %v3750
        %v3865 = vadd.f32 %v3527, %v3753
        %v3866 = vadd.f32 %v3528, %v3758
        %v3867 = vadd.f32 %v3529, %v3761
        %v3868 = vadd.f32 %v3530, %v3766
        %v3869 = vadd.f32 %v3531, %v3769
        %v3870 = vadd.f32 %v3532, %v3774
        %v3871 = vadd.f32 %v3533, %v3777
        %v3872 = vadd.f32 %v3534, %v3782
        %v3873 = vadd.f32 %v3535, %v3785
        %v3874 = vadd.f32 %v3536, %v3790
        %v3875 = vadd.f32 %v3537, %v3793
        %v3876 = vadd.f32 %v3538, %v3798
        %v3877 = vadd.f32 %v3539, %v3801
        %v3878 = vadd.f32 %v3540, %v3806
        %v3879 = vadd.f32 %v3541, %v3809
        %v3880 = vadd.f32 %v3542, %v3814
        %v3881 = vadd.f32 %v3543, %v3817
        %v3882 = vadd.f32 %v3544, %v3822
        %v3883 = vadd.f32 %v3545, %v3825
        %v3884 = vadd.f32 %v3546, %v3830
        %v3885 = vadd.f32 %v3547, %v3833
        %v3886 = vadd.f32 %v3548, %v3838
        %v3887 = vadd.f32 %v3549, %v3841
        %v3888 = vadd.f32 %v3550, %v3846
        %v3889 = vadd.f32 %v3551, %v3849
        %v3890 = vadd.f32 %v3552, %v3854
        %v3891 = vadd.f32 %v3553, %v3857
        %v3892 = vadd.f32 %v3860, %v3861
        %v3893 = vadd.f32 %v3892, %v3862
        %v3894 = vadd.f32 %v3893, %v3863
        %v3895 = vadd.f32 %v3894, %v3864
        %v3896 = vadd.f32 %v3895, %v3865
        %v3897 = vadd.f32 %v3896, %v3866
        %v3898 = vadd.f32 %v3897, %v3867
        %v3899 = vadd.f32 %v3898, %v3868
        %v3900 = vadd.f32 %v3899, %v3869
        %v3901 = vadd.f32 %v3900, %v3870
        %v3902 = vadd.f32 %v3901, %v3871
        %v3903 = vadd.f32 %v3902, %v3872
        %v3904 = vadd.f32 %v3903, %v3873
        %v3905 = vadd.f32 %v3904, %v3874
        %v3906 = vadd.f32 %v3905, %v3875
        %v3907 = vadd.f32 %v3906, %v3876
        %v3908 = vadd.f32 %v3907, %v3877
        %v3909 = vadd.f32 %v3908, %v3878
        %v3910 = vadd.f32 %v3909, %v3879
        %v3911 = vadd.f32 %v3910, %v3880
        %v3912 = vadd.f32 %v3911, %v3881
        %v3913 = vadd.f32 %v3912, %v3882
        %v3914 = vadd.f32 %v3913, %v3883
        %v3915 = vadd.f32 %v3914, %v3884
        %v3916 = vadd.f32 %v3915, %v3885
        %v3917 = vadd.f32 %v3916, %v3886
        %v3918 = vadd.f32 %v3917, %v3887
        %v3919 = vadd.f32 %v3918, %v3888
        %v3920 = vadd.f32 %v3919, %v3889
        %v3921 = vadd.f32 %v3920, %v3890
        %v3922 = vadd.f32 %v3921, %v3891
        %v3923 = vrot.slane %v3922, 4
        %v3924 = vadd.f32 %v3922, %v3923
        %v3925 = vrot.slane %v3924, 2
        %v3926 = vadd.f32 %v3924, %v3925
        %v3927 = vrot.slane %v3926, 1
        %v3928 = vadd.f32 %v3926, %v3927
        %3929 = vst [vmem:[%s296] sm:$0x1] %v3928
        %v3930 = vmul.f32 %v3860, %v3860
        %v3931 = vmul.f32 %v3861, %v3861
        %v3932 = vmul.f32 %v3862, %v3862
        %v3933 = vmul.f32 %v3863, %v3863
        %v3934 = vmul.f32 %v3864, %v3864
        %v3935 = vmul.f32 %v3865, %v3865
        %v3936 = vmul.f32 %v3866, %v3866
        %v3937 = vmul.f32 %v3867, %v3867
        %v3938 = vmul.f32 %v3868, %v3868
        %v3939 = vmul.f32 %v3869, %v3869
        %v3940 = vmul.f32 %v3870, %v3870
        %v3941 = vmul.f32 %v3871, %v3871
        %v3942 = vmul.f32 %v3872, %v3872
        %v3943 = vmul.f32 %v3873, %v3873
        %v3944 = vmul.f32 %v3874, %v3874
        %v3945 = vmul.f32 %v3875, %v3875
        %v3946 = vmul.f32 %v3876, %v3876
        %v3947 = vmul.f32 %v3877, %v3877
        %v3948 = vmul.f32 %v3878, %v3878
        %v3949 = vmul.f32 %v3879, %v3879
        %v3950 = vmul.f32 %v3880, %v3880
        %v3951 = vmul.f32 %v3881, %v3881
        %v3952 = vmul.f32 %v3882, %v3882
        %v3953 = vmul.f32 %v3883, %v3883
        %v3954 = vmul.f32 %v3884, %v3884
        %v3955 = vmul.f32 %v3885, %v3885
        %v3956 = vmul.f32 %v3886, %v3886
        %v3957 = vmul.f32 %v3887, %v3887
        %v3958 = vmul.f32 %v3888, %v3888
        %v3959 = vmul.f32 %v3889, %v3889
        %v3960 = vmul.f32 %v3890, %v3890
        %v3961 = vmul.f32 %v3891, %v3891
        %v3962 = vadd.f32 %v3930, %v3931
        %v3963 = vadd.f32 %v3962, %v3932
        %v3964 = vadd.f32 %v3963, %v3933
        %v3965 = vadd.f32 %v3964, %v3934
        %v3966 = vadd.f32 %v3965, %v3935
        %v3967 = vadd.f32 %v3966, %v3936
        %v3968 = vadd.f32 %v3967, %v3937
        %v3969 = vadd.f32 %v3968, %v3938
        %v3970 = vadd.f32 %v3969, %v3939
        %v3971 = vadd.f32 %v3970, %v3940
        %v3972 = vadd.f32 %v3971, %v3941
        %v3973 = vadd.f32 %v3972, %v3942
        %v3974 = vadd.f32 %v3973, %v3943
        %v3975 = vadd.f32 %v3974, %v3944
        %v3976 = vadd.f32 %v3975, %v3945
        %v3977 = vadd.f32 %v3976, %v3946
        %v3978 = vadd.f32 %v3977, %v3947
        %v3979 = vadd.f32 %v3978, %v3948
        %v3980 = vadd.f32 %v3979, %v3949
        %v3981 = vadd.f32 %v3980, %v3950
        %v3982 = vadd.f32 %v3981, %v3951
        %v3983 = vadd.f32 %v3982, %v3952
        %v3984 = vadd.f32 %v3983, %v3953
        %v3985 = vadd.f32 %v3984, %v3954
        %v3986 = vadd.f32 %v3985, %v3955
        %v3987 = vadd.f32 %v3986, %v3956
        %v3988 = vadd.f32 %v3987, %v3957
        %v3989 = vadd.f32 %v3988, %v3958
        %v3990 = vadd.f32 %v3989, %v3959
        %v3991 = vadd.f32 %v3990, %v3960
        %v3992 = vadd.f32 %v3991, %v3961
        %v3993 = vrot.slane %v3992, 4
        %v3994 = vadd.f32 %v3992, %v3993
        %v3995 = vrot.slane %v3994, 2
        %v3996 = vadd.f32 %v3994, %v3995
        %v3997 = vrot.slane %v3996, 1
        %v3998 = vadd.f32 %v3996, %v3997
        %3999 = vst [vmem:[%s302] sm:$0x1] %v3998
        %v4000 = vlaneseq
        %v4001 = vand.u32 %v4000, 127
        %vm4002 = vcmp.ge.s32.totalorder %v4001, 8
        %vm4003 = vcmp.lt.s32.totalorder %v4001, 12
        %vm4004 = vmand %vm4002, %vm4003
        %v4005 = vld [vmem:[%s307] sm:$0xff]
        %v4006 = vld [vmem:[%s307 + $0x8] sm:$0xff]
        %v4007 = vld [vmem:[%s307 + $0x10] sm:$0xff]
        %v4008 = vld [vmem:[%s307 + $0x18] sm:$0xff]
        %v4009 = vld [vmem:[%s307 + $0x20] sm:$0xff]
        %v4010 = vld [vmem:[%s307 + $0x28] sm:$0xff]
        %v4011 = vld [vmem:[%s307 + $0x30] sm:$0xff]
        %v4012 = vld [vmem:[%s307 + $0x38] sm:$0xff]
        %v4013 = vld [vmem:[%s307 + $0x40] sm:$0xff]
        %v4014 = vld [vmem:[%s307 + $0x48] sm:$0xff]
        %v4015 = vld [vmem:[%s307 + $0x50] sm:$0xff]
        %v4016 = vld [vmem:[%s307 + $0x58] sm:$0xff]
        %v4017 = vld [vmem:[%s307 + $0x60] sm:$0xff]
        %v4018 = vld [vmem:[%s307 + $0x68] sm:$0xff]
        %v4019 = vld [vmem:[%s307 + $0x70] sm:$0xff]
        %v4020 = vld [vmem:[%s307 + $0x78] sm:$0xff]
        %v4021 = vld [vmem:[%s307 + $0x80] sm:$0xff]
        %v4022 = vld [vmem:[%s307 + $0x88] sm:$0xff]
        %v4023 = vld [vmem:[%s307 + $0x90] sm:$0xff]
        %v4024 = vld [vmem:[%s307 + $0x98] sm:$0xff]
        %v4025 = vld [vmem:[%s307 + $0xa0] sm:$0xff]
        %v4026 = vld [vmem:[%s307 + $0xa8] sm:$0xff]
        %v4027 = vld [vmem:[%s307 + $0xb0] sm:$0xff]
        %v4028 = vld [vmem:[%s307 + $0xb8] sm:$0xff]
        %v4029 = vld [vmem:[%s307 + $0xc0] sm:$0xff]
        %v4030 = vld [vmem:[%s307 + $0xc8] sm:$0xff]
        %v4031 = vld [vmem:[%s307 + $0xd0] sm:$0xff]
        %v4032 = vld [vmem:[%s307 + $0xd8] sm:$0xff]
        %v4033 = vld [vmem:[%s307 + $0xe0] sm:$0xff]
        %v4034 = vld [vmem:[%s307 + $0xe8] sm:$0xff]
        %v4035 = vld [vmem:[%s307 + $0xf0] sm:$0xff]
        %v4036 = vld [vmem:[%s307 + $0xf8] sm:$0xff]
        %v4037 = vsel %vm4004, %v3860, %v4005
        %v4038 = vsel %vm4004, %v3861, %v4006
        %v4039 = vsel %vm4004, %v3862, %v4007
        %v4040 = vsel %vm4004, %v3863, %v4008
        %v4041 = vsel %vm4004, %v3864, %v4009
        %v4042 = vsel %vm4004, %v3865, %v4010
        %v4043 = vsel %vm4004, %v3866, %v4011
        %v4044 = vsel %vm4004, %v3867, %v4012
        %v4045 = vsel %vm4004, %v3868, %v4013
        %v4046 = vsel %vm4004, %v3869, %v4014
        %v4047 = vsel %vm4004, %v3870, %v4015
        %v4048 = vsel %vm4004, %v3871, %v4016
        %v4049 = vsel %vm4004, %v3872, %v4017
        %v4050 = vsel %vm4004, %v3873, %v4018
        %v4051 = vsel %vm4004, %v3874, %v4019
        %v4052 = vsel %vm4004, %v3875, %v4020
        %v4053 = vsel %vm4004, %v3876, %v4021
        %v4054 = vsel %vm4004, %v3877, %v4022
        %v4055 = vsel %vm4004, %v3878, %v4023
        %v4056 = vsel %vm4004, %v3879, %v4024
        %v4057 = vsel %vm4004, %v3880, %v4025
        %v4058 = vsel %vm4004, %v3881, %v4026
        %v4059 = vsel %vm4004, %v3882, %v4027
        %v4060 = vsel %vm4004, %v3883, %v4028
        %v4061 = vsel %vm4004, %v3884, %v4029
        %v4062 = vsel %vm4004, %v3885, %v4030
        %v4063 = vsel %vm4004, %v3886, %v4031
        %v4064 = vsel %vm4004, %v3887, %v4032
        %v4065 = vsel %vm4004, %v3888, %v4033
        %v4066 = vsel %vm4004, %v3889, %v4034
        %v4067 = vsel %vm4004, %v3890, %v4035
        %v4068 = vsel %vm4004, %v3891, %v4036
        %4069 = vst [vmem:[%s317] sm:$0xff] %v4037
        %4070 = vst [vmem:[%s317 + $0x8] sm:$0xff] %v4038
        %4071 = vst [vmem:[%s317 + $0x10] sm:$0xff] %v4039
        %4072 = vst [vmem:[%s317 + $0x18] sm:$0xff] %v4040
        %4073 = vst [vmem:[%s317 + $0x20] sm:$0xff] %v4041
        %4074 = vst [vmem:[%s317 + $0x28] sm:$0xff] %v4042
        %4075 = vst [vmem:[%s317 + $0x30] sm:$0xff] %v4043
        %4076 = vst [vmem:[%s317 + $0x38] sm:$0xff] %v4044
        %4077 = vst [vmem:[%s317 + $0x40] sm:$0xff] %v4045
        %4078 = vst [vmem:[%s317 + $0x48] sm:$0xff] %v4046
        %4079 = vst [vmem:[%s317 + $0x50] sm:$0xff] %v4047
        %4080 = vst [vmem:[%s317 + $0x58] sm:$0xff] %v4048
        %4081 = vst [vmem:[%s317 + $0x60] sm:$0xff] %v4049
        %4082 = vst [vmem:[%s317 + $0x68] sm:$0xff] %v4050
        %4083 = vst [vmem:[%s317 + $0x70] sm:$0xff] %v4051
        %4084 = vst [vmem:[%s317 + $0x78] sm:$0xff] %v4052
        %4085 = vst [vmem:[%s317 + $0x80] sm:$0xff] %v4053
        %4086 = vst [vmem:[%s317 + $0x88] sm:$0xff] %v4054
        %4087 = vst [vmem:[%s317 + $0x90] sm:$0xff] %v4055
        %4088 = vst [vmem:[%s317 + $0x98] sm:$0xff] %v4056
        %4089 = vst [vmem:[%s317 + $0xa0] sm:$0xff] %v4057
        %4090 = vst [vmem:[%s317 + $0xa8] sm:$0xff] %v4058
        %4091 = vst [vmem:[%s317 + $0xb0] sm:$0xff] %v4059
        %4092 = vst [vmem:[%s317 + $0xb8] sm:$0xff] %v4060
        %4093 = vst [vmem:[%s317 + $0xc0] sm:$0xff] %v4061
        %4094 = vst [vmem:[%s317 + $0xc8] sm:$0xff] %v4062
        %4095 = vst [vmem:[%s317 + $0xd0] sm:$0xff] %v4063
        %4096 = vst [vmem:[%s317 + $0xd8] sm:$0xff] %v4064
        %4097 = vst [vmem:[%s317 + $0xe0] sm:$0xff] %v4065
        %4098 = vst [vmem:[%s317 + $0xe8] sm:$0xff] %v4066
        %4099 = vst [vmem:[%s317 + $0xf0] sm:$0xff] %v4067
        %4100 = vst [vmem:[%s317 + $0xf8] sm:$0xff] %v4068
        %p4101 = scmp.lt.s32.totalorder %s25, 1
        %s4102 = scalar_select %p4101, %s25, 1
        %s4103 = smul.addr %s4102, 32
        %s4104 = smul.addr %s4103, 8
        %s4105 = scalar_lea.vmem %s5, %s4104
        %s4106 = sand.u32 %s174, 1
        %s4107 = scalar_lea.sflag [#allocation4], %s4106
        %s4108 = sand.u32 %s174, 1
        %s4109 = scalar_lea.vmem [#allocation3], %s4108
        %s4110 = sand.u32 %s200, 1
        %s4111 = scalar_lea.sflag [#allocation6], %s4110
        %s4112 = sand.u32 %s200, 1
        %s4113 = scalar_lea.vmem [#allocation5], %s4112
        // Predicated region
        $region41: #{dense_block_forward.9} parent=39 // pred_check
          %p4114 = pneg %p158
        $region42: #{dense_block_forward.9} parent=39 // pred_check_branch
          %4116 = sbr.rel (%p4114) target = $region44
        $region43: #{dense_block_forward.9} parent=39 // pred_region
          _
        $region44: #{dense_block_forward.9} parent=39 // pred_fallthru
          _
        // Predicated region
        $region45: #{dense_block_forward.9} parent=39 // pred_check
          %p4117 = pneg %p184
        $region46: #{dense_block_forward.9} parent=39 // pred_check_branch
          %4119 = sbr.rel (%p4117) target = $region48
        $region47: #{dense_block_forward.9} parent=39 // pred_region
          %s4121 = ssub.s32 16, 16
          %4122 = vsyncadd %s4107, %s4121
          %s4123 = smul.addr %s25, 16
          %s4124 = scalar_lea.hbm %s6, %s4123
          %s4126 = sshll.u32 %s4109, 4
          %s4127 = int_to_ptr.vmem [resolvable:$true] %s4126
          %4129 = dma.vmem_to_hbm [thread:$0]  %s4127, 16, %s4124, %s4107
        $region48: #{dense_block_forward.9} parent=39 // pred_fallthru
          _
        // Predicated region
        $region49: #{dense_block_forward.9} parent=39 // pred_check
          %p4130 = pneg %p210
        $region50: #{dense_block_forward.9} parent=39 // pred_check_branch
          %4132 = sbr.rel (%p4130) target = $region52
        $region51: #{dense_block_forward.9} parent=39 // pred_region
          %s4134 = ssub.s32 16, 16
          %4135 = vsyncadd %s4111, %s4134
          %s4136 = smul.addr %s25, 16
          %s4137 = scalar_lea.hbm %s7, %s4136
          %s4139 = sshll.u32 %s4113, 4
          %s4140 = int_to_ptr.vmem [resolvable:$true] %s4139
          %4142 = dma.vmem_to_hbm [thread:$0]  %s4140, 16, %s4137, %s4111
        $region52: #{dense_block_forward.9} parent=39 // pred_fallthru
          _
      $region40: #{dense_block_forward.9} parent=5 // pred_fallthru
        _
      %p4143 = scmp.le.s32.totalorder 2, %s20
      // Predicated region
      $region53: #{dense_block_forward.9} parent=5 // pred_check
        %p4144 = pneg %p4143
      $region54: #{dense_block_forward.9} parent=5 // pred_check_branch
        %4146 = sbr.rel (%p4144) target = $region56
      $region55: #{dense_block_forward.9} parent=5 // pred_region
        %s4147 = ssub.s32 %s20, 2
        // Predicated region
        $region57: #{dense_block_forward.9} parent=55 // pred_check
          %p4148 = pneg %p164
        $region58: #{dense_block_forward.9} parent=55 // pred_check_branch
          %4150 = sbr.rel (%p4148) target = $region60
        $region59: #{dense_block_forward.9} parent=55 // pred_region
          %p4151 = scmp.lt.s32.totalorder %s26, 1
          %s4152 = scalar_select %p4151, %s26, 1
          %s4153 = smul.addr %s4152, 32
          %s4154 = smul.addr %s4153, 8
          %s4155 = scalar_lea.vmem %s5, %s4154
        $region60: #{dense_block_forward.9} parent=55 // pred_fallthru
          _
        // Predicated region
        $region61: #{dense_block_forward.9} parent=55 // pred_check
          %p4156 = pneg %p190
        $region62: #{dense_block_forward.9} parent=55 // pred_check_branch
          %4158 = sbr.rel (%p4156) target = $region64
        $region63: #{dense_block_forward.9} parent=55 // pred_region
          %s4159 = sand.u32 %s175, 1
          %s4160 = scalar_lea.sflag [#allocation4], %s4159
          %s4161 = sand.u32 %s175, 1
          %s4162 = scalar_lea.vmem [#allocation3], %s4161
          %4163 = dma.done %s4160, 16
        $region64: #{dense_block_forward.9} parent=55 // pred_fallthru
          _
        // Predicated region
        $region65: #{dense_block_forward.9} parent=55 // pred_check
          %p4164 = pneg %p216
        $region66: #{dense_block_forward.9} parent=55 // pred_check_branch
          %4166 = sbr.rel (%p4164) target = $region68
        $region67: #{dense_block_forward.9} parent=55 // pred_region
          %s4167 = sand.u32 %s201, 1
          %s4168 = scalar_lea.sflag [#allocation6], %s4167
          %s4169 = sand.u32 %s201, 1
          %s4170 = scalar_lea.vmem [#allocation5], %s4169
          %4171 = dma.done %s4168, 16
        $region68: #{dense_block_forward.9} parent=55 // pred_fallthru
          _
      $region56: #{dense_block_forward.9} parent=5 // pred_fallthru
        _
    $region6: #{dense_block_forward.9} parent=1 // loop_footer
      %s24 = sadd.s32 1, %s20
    $region7: #{dense_block_forward.9} parent=1 // loop_footer_branch
      %19 = sbr.rel target = $region3
    $region8: #{dense_block_forward.9} parent=1 // loop_exit
      _
    %4172 = vsyncpa [#allocation4], 1
    %s4173 = scalar_lea.sflag [#allocation4], 1
    %4174 = vsyncpa %s4173, 1
    %4175 = vsyncpa [#allocation6], 1
    %s4176 = scalar_lea.sflag [#allocation6], 1
    %4177 = vsyncpa %s4176, 1

</llo_original>
